<compile_context>
chip_gen: v6e
topology: v6e:2x2x1
jax: 0.10.0
libtpu: 0.0.40
codegen_flags: <defaults>
</compile_context>

<pallas_src>
import jax
import jax.numpy as jnp
from jax.experimental import pallas as pl
from jax.experimental.pallas import tpu as pltpu

KSIZE = 5
PAD = 2
NTAPS = KSIZE * KSIZE

# Logical channel counts.
CIN = 20
C1 = 50            # conv1 out
C23 = 200          # conv2(100) + conv3(100) fused out
C4 = 100           # conv4 out
F1 = 500           # fc1 out
NCLS = 10          # fc2 out

# Lane-padded channel counts and padded folded-K sizes (128-multiples).
C1P, C23P, C4P = 128, 256, 128
K1P = 512          # 25*20  = 500  -> 512
K23P = 1280        # 25*50  = 1250 -> 1280
K4P = 5120         # 25*200 = 5000 -> 5120
F1P = 512          # 500 -> 512
F2P = 128          # 10  -> 128


# ---------------------------------------------------------------------------
# Kernels
# ---------------------------------------------------------------------------

def conv_pool_relu_kernel(x_ref, w_ref, b_ref, o_ref):
    """5x5 conv as one folded-K matmul + bias + ReLU + fused 2x2 maxpool.

    x_ref: (1, 4*M2, K)  im2col patches, rows ordered (phase, h2, w2), bf16
    w_ref: (K, Cp)       folded, channel-padded weights, bf16
    b_ref: (1, Cp)       bias, f32 (zero in padded lanes)
    o_ref: (1, M2, Cp)   pooled output, rows ordered (h2, w2)
    """
    m2 = o_ref.shape[1]
    y = jnp.dot(x_ref[0], w_ref[...], preferred_element_type=jnp.float32)
    y = jnp.maximum(y + b_ref[...], 0.0)                 # ReLU before pool (as in torch)
    p01 = jnp.maximum(y[0:m2], y[m2:2 * m2])
    p23 = jnp.maximum(y[2 * m2:3 * m2], y[3 * m2:4 * m2])
    o_ref[0] = jnp.maximum(p01, p23).astype(o_ref.dtype)


def conv_relu_kernel(x_ref, w_ref, b_ref, o_ref):
    """5x5 conv as one folded-K matmul + bias + ReLU (no pooling)."""
    y = jnp.dot(x_ref[0], w_ref[...], preferred_element_type=jnp.float32)
    o_ref[0] = jnp.maximum(y + b_ref[...], 0.0).astype(o_ref.dtype)


def fc_fused_kernel(x_ref, w1_ref, b1_ref, w2_ref, b2_ref, o_ref):
    """fc1 (+ReLU) and fc2 fused; the (N, 512) hidden never leaves VMEM."""
    h = jnp.dot(x_ref[...], w1_ref[...], preferred_element_type=jnp.float32)
    h = jnp.maximum(h + b1_ref[...], 0.0)
    y = jnp.dot(h.astype(w2_ref.dtype), w2_ref[...],
                preferred_element_type=jnp.float32)
    o_ref[...] = (y + b2_ref[...]).astype(o_ref.dtype)


# ---------------------------------------------------------------------------
# Wrappers (im2col / padding glue stays in plain JAX on tiny arrays)
# ---------------------------------------------------------------------------

def _conv_patches(x_nhwc, k_pad, *, phase_order):
    """Folded 5x5 'same'-conv im2col, K zero-padded to k_pad, bf16.

    Rows are ordered (ph, pw, h2, w2) when phase_order (so a fused 2x2 pool is
    a max over 4 static row slices), else plain (h, w).
    """
    n, h, w, c = x_nhwc.shape
    xp = jnp.pad(x_nhwc, ((0, 0), (PAD, PAD), (PAD, PAD), (0, 0)))
    taps = [xp[:, kh:kh + h, kw:kw + w, :]
            for kh in range(KSIZE) for kw in range(KSIZE)]
    col = jnp.concatenate(taps, axis=-1)                  # (N, H, W, 25*C)
    k = NTAPS * c
    if k_pad > k:
        col = jnp.pad(col, ((0, 0), (0, 0), (0, 0), (0, k_pad - k)))
    if phase_order:
        col = col.reshape(n, h // 2, 2, w // 2, 2, k_pad)
        col = jnp.transpose(col, (0, 2, 4, 1, 3, 5))      # (n, ph, pw, h2, w2, K)
        col = col.reshape(n, 2 * 2 * (h // 2) * (w // 2), k_pad)
    else:
        col = col.reshape(n, h * w, k_pad)
    return col.astype(jnp.bfloat16)


def conv5x5(x_nhwc, w, b, *, pool):
    """One (optionally pool-fused) conv layer as a single pallas_call."""
    n, h, ww, _ = x_nhwc.shape
    k_pad, c_pad = w.shape
    patches = _conv_patches(x_nhwc, k_pad, phase_order=pool)
    rows = patches.shape[1]
    if pool:
        m_out = (h // 2) * (ww // 2)
        kernel = conv_pool_relu_kernel
    else:
        m_out = h * ww
        kernel = conv_relu_kernel

    out = pl.pallas_call(
        kernel,
        out_shape=jax.ShapeDtypeStruct((n, m_out, c_pad), jnp.bfloat16),
        grid_spec=pltpu.PrefetchScalarGridSpec(
            num_scalar_prefetch=0,
            grid=(n,),
            in_specs=[
                pl.BlockSpec((1, rows, k_pad), lambda i: (i, 0, 0)),
                pl.BlockSpec((k_pad, c_pad), lambda i: (0, 0)),
                pl.BlockSpec((1, c_pad), lambda i: (0, 0)),
            ],
            out_specs=pl.BlockSpec((1, m_out, c_pad), lambda i: (i, 0, 0)),
        ),
        compiler_params=pltpu.CompilerParams(
            dimension_semantics=("parallel",)),
    )(patches, w, b)

    if pool:
        return out.reshape(n, h // 2, ww // 2, c_pad)
    return out.reshape(n, h, ww, c_pad)


def fc_fused(x_flat, w1, b1, w2, b2):
    n = x_flat.shape[0]
    return pl.pallas_call(
        fc_fused_kernel,
        out_shape=jax.ShapeDtypeStruct((n, w2.shape[1]), jnp.float32),
    )(x_flat, w1, b1, w2, b2)


# ---------------------------------------------------------------------------
# Params
# ---------------------------------------------------------------------------

def init_params(key):
    ks = jax.random.split(key, 12)

    def conv_wb(kw, kb, cin, cout):
        scale = (NTAPS * cin) ** -0.5
        w = jax.random.normal(kw, (NTAPS, cin, cout), jnp.float32) * scale
        b = jax.random.normal(kb, (cout,), jnp.float32) * scale
        return w, b

    def fold_w(w_taps, k_pad, c_pad):
        ntaps, cin, cout = w_taps.shape
        w = w_taps.reshape(ntaps * cin, cout)             # K index = tap*Cin + c
        w = jnp.pad(w, ((0, k_pad - ntaps * cin), (0, c_pad - cout)))
        return w.astype(jnp.bfloat16)

    def pad_b(b, c_pad):
        return jnp.pad(b, (0, c_pad - b.shape[0])).reshape(1, c_pad).astype(jnp.float32)

    p = {}
    w1, b1 = conv_wb(ks[0], ks[1], CIN, C1)
    p["w1"], p["b1"] = fold_w(w1, K1P, C1P), pad_b(b1, C1P)

    # conv2 and conv3 fused along the output-channel axis.
    w2, b2 = conv_wb(ks[2], ks[3], C1, 100)
    w3, b3 = conv_wb(ks[4], ks[5], C1, 100)
    w23 = jnp.concatenate([w2, w3], axis=-1)              # (25, 50, 200)
    b23 = jnp.concatenate([b2, b3], axis=0)               # (200,)
    p["w23"], p["b23"] = fold_w(w23, K23P, C23P), pad_b(b23, C23P)

    w4, b4 = conv_wb(ks[6], ks[7], C23, C4)
    p["w4"], p["b4"] = fold_w(w4, K4P, C4P), pad_b(b4, C4P)

    # fc1: Linear(100*4*4, 500), rows in torch's channel-major flatten order.
    # Permute + pad its rows so the kernel consumes the padded-NHWC flatten
    # (h, w, c_pad) directly.
    scale1 = (C4 * 4 * 4) ** -0.5
    fw1 = jax.random.normal(ks[8], (C4 * 4 * 4, F1), jnp.float32) * scale1
    fb1 = jax.random.normal(ks[9], (F1,), jnp.float32) * scale1
    fw1 = fw1.reshape(C4, 4, 4, F1)                       # (c, h, w, out)
    fw1 = jnp.transpose(fw1, (1, 2, 0, 3))                # (h, w, c, out)
    fw1 = jnp.pad(fw1, ((0, 0), (0, 0), (0, C4P - C4), (0, F1P - F1)))
    p["fw1"] = fw1.reshape(4 * 4 * C4P, F1P).astype(jnp.bfloat16)
    p["fb1"] = pad_b(fb1, F1P)

    scale2 = F1 ** -0.5
    fw2 = jax.random.normal(ks[10], (F1, NCLS), jnp.float32) * scale2
    fb2 = jax.random.normal(ks[11], (NCLS,), jnp.float32) * scale2
    p["fw2"] = jnp.pad(fw2, ((0, F1P - F1), (0, F2P - NCLS))).astype(jnp.bfloat16)
    p["fb2"] = pad_b(fb2, F2P)
    return p


# ---------------------------------------------------------------------------
# Model
# ---------------------------------------------------------------------------

@jax.jit
def forward(params, x_nchw):
    x = jnp.transpose(x_nchw, (0, 2, 3, 1)).astype(jnp.bfloat16)        # NCHW -> NHWC
    x = conv5x5(x, params["w1"], params["b1"], pool=True)               # (N, 8, 8, 128); 50 real ch
    x = conv5x5(x[..., :C1], params["w23"], params["b23"], pool=True)   # (N, 4, 4, 256); 200 real ch
    x = conv5x5(x[..., :C23], params["w4"], params["b4"], pool=False)   # (N, 4, 4, 128); 100 real ch
    n = x.shape[0]
    x = x.reshape(n, 4 * 4 * C4P)                                       # padded-NHWC flatten
    y = fc_fused(x, params["fw1"], params["fb1"], params["fw2"], params["fb2"])
    return y[:, :NCLS]                                                  # (N, 10)


if __name__ == "__main__":
    key = jax.random.PRNGKey(0)
    k_param, k_x = jax.random.split(key)
    # Small shape consistent with the module: spatial 16 so the 4x4 flatten works.
    x = jax.random.normal(k_x, (2, 20, 16, 16), dtype=jnp.float32)      # NCHW
    params = init_params(k_param)
    out = forward(params, x)
    jax.block_until_ready(out)
    assert out.shape == (2, 10)
    assert bool(jnp.all(jnp.isfinite(out)))
    print("KERNEL_OK")
</pallas_src>

<mosaic_0001>
module attributes {stable_mosaic.version = 11 : i64} {
  func.func @conv_pool_relu_kernel(%arg0: i32, %arg1: memref<1x256x512xbf16, #tpu.memory_space<vmem>>, %arg2: memref<512x128xbf16, #tpu.memory_space<vmem>>, %arg3: memref<1x128xf32, #tpu.memory_space<vmem>>, %arg4: memref<1x64x128xbf16, #tpu.memory_space<vmem>>) attributes {dimension_semantics = [#tpu.dimension_semantics<parallel>], iteration_bounds = array<i64: 2>, scalar_prefetch = 0 : i64, scratch_operands = 0 : i64, tpu.core_type = #tpu.core_type<tc>, window_params = [{transform_indices = @transform_0, window_bounds = array<i64: 1, 256, 512>}, {pipeline_mode = #tpu.pipeline_mode<synchronous>, transform_indices = @transform_1, window_bounds = array<i64: 512, 128>}, {pipeline_mode = #tpu.pipeline_mode<synchronous>, transform_indices = @transform_2, window_bounds = array<i64: 1, 128>}, {transform_indices = @transform_3, window_bounds = array<i64: 1, 64, 128>}]} {
    %c0 = arith.constant 0 : index
    %c0_0 = arith.constant 0 : index
    %c0_1 = arith.constant 0 : index
    %0 = vector.load %arg1[%c0, %c0_0, %c0_1] : memref<1x256x512xbf16, #tpu.memory_space<vmem>>, vector<1x256x512xbf16>
    %1 = vector.shape_cast %0 : vector<1x256x512xbf16> to vector<256x512xbf16>
    %c0_2 = arith.constant 0 : index
    %c0_3 = arith.constant 0 : index
    %2 = vector.load %arg2[%c0_2, %c0_3] : memref<512x128xbf16, #tpu.memory_space<vmem>>, vector<512x128xbf16>
    %cst = arith.constant dense<0.000000e+00> : vector<256x128xf32>
    %3 = tpu.matmul %1, %2, %cst {dimension_numbers = #tpu.dot_dimension_numbers<[1], [0], [0], [1], [0, 0, 1, 1], [], []>} : vector<256x512xbf16>, vector<512x128xbf16>, vector<256x128xf32> -> vector<256x128xf32>
    %c0_4 = arith.constant 0 : index
    %c0_5 = arith.constant 0 : index
    %4 = vector.load %arg3[%c0_4, %c0_5] : memref<1x128xf32, #tpu.memory_space<vmem>>, vector<1x128xf32>
    %5 = vector.broadcast %4 : vector<1x128xf32> to vector<256x128xf32>
    %6 = arith.addf %3, %5 : vector<256x128xf32>
    %cst_6 = arith.constant 0.000000e+00 : f32
    %7 = vector.broadcast %cst_6 : f32 to vector<256x128xf32>
    %8 = arith.maximumf %6, %7 : vector<256x128xf32>
    %9 = vector.extract_strided_slice %8 {offsets = [0, 0], sizes = [64, 128], strides = [1, 1]} : vector<256x128xf32> to vector<64x128xf32>
    %10 = vector.extract_strided_slice %8 {offsets = [64, 0], sizes = [64, 128], strides = [1, 1]} : vector<256x128xf32> to vector<64x128xf32>
    %11 = arith.maximumf %9, %10 : vector<64x128xf32>
    %12 = vector.extract_strided_slice %8 {offsets = [128, 0], sizes = [64, 128], strides = [1, 1]} : vector<256x128xf32> to vector<64x128xf32>
    %13 = vector.extract_strided_slice %8 {offsets = [192, 0], sizes = [64, 128], strides = [1, 1]} : vector<256x128xf32> to vector<64x128xf32>
    %14 = arith.maximumf %12, %13 : vector<64x128xf32>
    %15 = arith.maximumf %11, %14 : vector<64x128xf32>
    %16 = arith.truncf %15 : vector<64x128xf32> to vector<64x128xbf16>
    %c0_7 = arith.constant 0 : index
    %c0_8 = arith.constant 0 : index
    %c0_9 = arith.constant 0 : index
    %17 = vector.load %arg4[%c0_7, %c0_8, %c0_9] : memref<1x64x128xbf16, #tpu.memory_space<vmem>>, vector<1x64x128xbf16>
    %18 = vector.shape_cast %17 : vector<1x64x128xbf16> to vector<64x128xbf16>
    %19 = vector.shape_cast %16 : vector<64x128xbf16> to vector<1x64x128xbf16>
    tpu.vector_store %arg4[%c0_7, %c0_8, %c0_9], %19 {strides = array<i32>} : memref<1x64x128xbf16, #tpu.memory_space<vmem>>, vector<1x64x128xbf16>,
    return
  }
  func.func @transform_0(%arg0: i32) -> (i32, i32, i32) {
    %c0_i32 = arith.constant 0 : i32
    %c0_i32_0 = arith.constant 0 : i32
    %c0_i32_1 = arith.constant 0 : i32
    return %arg0, %c0_i32, %c0_i32_0 : i32, i32, i32
  }
  func.func @transform_1(%arg0: i32) -> (i32, i32) {
    %c0_i32 = arith.constant 0 : i32
    %c0_i32_0 = arith.constant 0 : i32
    %c0_i32_1 = arith.constant 0 : i32
    return %c0_i32, %c0_i32_0 : i32, i32
  }
  func.func @transform_2(%arg0: i32) -> (i32, i32) {
    %c0_i32 = arith.constant 0 : i32
    %c0_i32_0 = arith.constant 0 : i32
    %c0_i32_1 = arith.constant 0 : i32
    return %c0_i32, %c0_i32_0 : i32, i32
  }
  func.func @transform_3(%arg0: i32) -> (i32, i32, i32) {
    %c0_i32 = arith.constant 0 : i32
    %c0_i32_0 = arith.constant 0 : i32
    %c0_i32_1 = arith.constant 0 : i32
    return %arg0, %c0_i32, %c0_i32_0 : i32, i32, i32
  }
}

module attributes {stable_mosaic.version = 11 : i64} {
  func.func @conv_pool_relu_kernel(%arg0: i32, %arg1: memref<1x64x1280xbf16, #tpu.memory_space<vmem>>, %arg2: memref<1280x256xbf16, #tpu.memory_space<vmem>>, %arg3: memref<1x256xf32, #tpu.memory_space<vmem>>, %arg4: memref<1x16x256xbf16, #tpu.memory_space<vmem>>) attributes {dimension_semantics = [#tpu.dimension_semantics<parallel>], iteration_bounds = array<i64: 2>, scalar_prefetch = 0 : i64, scratch_operands = 0 : i64, tpu.core_type = #tpu.core_type<tc>, window_params = [{transform_indices = @transform_0, window_bounds = array<i64: 1, 64, 1280>}, {pipeline_mode = #tpu.pipeline_mode<synchronous>, transform_indices = @transform_1, window_bounds = array<i64: 1280, 256>}, {pipeline_mode = #tpu.pipeline_mode<synchronous>, transform_indices = @transform_2, window_bounds = array<i64: 1, 256>}, {transform_indices = @transform_3, window_bounds = array<i64: 1, 16, 256>}]} {
    %c0 = arith.constant 0 : index
    %c0_0 = arith.constant 0 : index
    %c0_1 = arith.constant 0 : index
    %0 = vector.load %arg1[%c0, %c0_0, %c0_1] : memref<1x64x1280xbf16, #tpu.memory_space<vmem>>, vector<1x64x1280xbf16>
    %1 = vector.shape_cast %0 : vector<1x64x1280xbf16> to vector<64x1280xbf16>
    %c0_2 = arith.constant 0 : index
    %c0_3 = arith.constant 0 : index
    %2 = vector.load %arg2[%c0_2, %c0_3] : memref<1280x256xbf16, #tpu.memory_space<vmem>>, vector<1280x256xbf16>
    %cst = arith.constant dense<0.000000e+00> : vector<64x256xf32>
    %3 = tpu.matmul %1, %2, %cst {dimension_numbers = #tpu.dot_dimension_numbers<[1], [0], [0], [1], [0, 0, 1, 1], [], []>} : vector<64x1280xbf16>, vector<1280x256xbf16>, vector<64x256xf32> -> vector<64x256xf32>
    %c0_4 = arith.constant 0 : index
    %c0_5 = arith.constant 0 : index
    %4 = vector.load %arg3[%c0_4, %c0_5] : memref<1x256xf32, #tpu.memory_space<vmem>>, vector<1x256xf32>
    %5 = vector.broadcast %4 : vector<1x256xf32> to vector<64x256xf32>
    %6 = arith.addf %3, %5 : vector<64x256xf32>
    %cst_6 = arith.constant 0.000000e+00 : f32
    %7 = vector.broadcast %cst_6 : f32 to vector<64x256xf32>
    %8 = arith.maximumf %6, %7 : vector<64x256xf32>
    %9 = vector.extract_strided_slice %8 {offsets = [0, 0], sizes = [16, 256], strides = [1, 1]} : vector<64x256xf32> to vector<16x256xf32>
    %10 = vector.extract_strided_slice %8 {offsets = [16, 0], sizes = [16, 256], strides = [1, 1]} : vector<64x256xf32> to vector<16x256xf32>
    %11 = arith.maximumf %9, %10 : vector<16x256xf32>
    %12 = vector.extract_strided_slice %8 {offsets = [32, 0], sizes = [16, 256], strides = [1, 1]} : vector<64x256xf32> to vector<16x256xf32>
    %13 = vector.extract_strided_slice %8 {offsets = [48, 0], sizes = [16, 256], strides = [1, 1]} : vector<64x256xf32> to vector<16x256xf32>
    %14 = arith.maximumf %12, %13 : vector<16x256xf32>
    %15 = arith.maximumf %11, %14 : vector<16x256xf32>
    %16 = arith.truncf %15 : vector<16x256xf32> to vector<16x256xbf16>
    %c0_7 = arith.constant 0 : index
    %c0_8 = arith.constant 0 : index
    %c0_9 = arith.constant 0 : index
    %17 = vector.load %arg4[%c0_7, %c0_8, %c0_9] : memref<1x16x256xbf16, #tpu.memory_space<vmem>>, vector<1x16x256xbf16>
    %18 = vector.shape_cast %17 : vector<1x16x256xbf16> to vector<16x256xbf16>
    %19 = vector.shape_cast %16 : vector<16x256xbf16> to vector<1x16x256xbf16>
    tpu.vector_store %arg4[%c0_7, %c0_8, %c0_9], %19 {strides = array<i32>} : memref<1x16x256xbf16, #tpu.memory_space<vmem>>, vector<1x16x256xbf16>,
    return
  }
  func.func @transform_0(%arg0: i32) -> (i32, i32, i32) {
    %c0_i32 = arith.constant 0 : i32
    %c0_i32_0 = arith.constant 0 : i32
    %c0_i32_1 = arith.constant 0 : i32
    return %arg0, %c0_i32, %c0_i32_0 : i32, i32, i32
  }
  func.func @transform_1(%arg0: i32) -> (i32, i32) {
    %c0_i32 = arith.constant 0 : i32
    %c0_i32_0 = arith.constant 0 : i32
    %c0_i32_1 = arith.constant 0 : i32
    return %c0_i32, %c0_i32_0 : i32, i32
  }
  func.func @transform_2(%arg0: i32) -> (i32, i32) {
    %c0_i32 = arith.constant 0 : i32
    %c0_i32_0 = arith.constant 0 : i32
    %c0_i32_1 = arith.constant 0 : i32
    return %c0_i32, %c0_i32_0 : i32, i32
  }
  func.func @transform_3(%arg0: i32) -> (i32, i32, i32) {
    %c0_i32 = arith.constant 0 : i32
    %c0_i32_0 = arith.constant 0 : i32
    %c0_i32_1 = arith.constant 0 : i32
    return %arg0, %c0_i32, %c0_i32_0 : i32, i32, i32
  }
}

module attributes {stable_mosaic.version = 11 : i64} {
  func.func @conv_relu_kernel(%arg0: i32, %arg1: memref<1x16x5120xbf16, #tpu.memory_space<vmem>>, %arg2: memref<5120x128xbf16, #tpu.memory_space<vmem>>, %arg3: memref<1x128xf32, #tpu.memory_space<vmem>>, %arg4: memref<1x16x128xbf16, #tpu.memory_space<vmem>>) attributes {dimension_semantics = [#tpu.dimension_semantics<parallel>], iteration_bounds = array<i64: 2>, scalar_prefetch = 0 : i64, scratch_operands = 0 : i64, tpu.core_type = #tpu.core_type<tc>, window_params = [{transform_indices = @transform_0, window_bounds = array<i64: 1, 16, 5120>}, {pipeline_mode = #tpu.pipeline_mode<synchronous>, transform_indices = @transform_1, window_bounds = array<i64: 5120, 128>}, {pipeline_mode = #tpu.pipeline_mode<synchronous>, transform_indices = @transform_2, window_bounds = array<i64: 1, 128>}, {transform_indices = @transform_3, window_bounds = array<i64: 1, 16, 128>}]} {
    %c0 = arith.constant 0 : index
    %c0_0 = arith.constant 0 : index
    %c0_1 = arith.constant 0 : index
    %0 = vector.load %arg1[%c0, %c0_0, %c0_1] : memref<1x16x5120xbf16, #tpu.memory_space<vmem>>, vector<1x16x5120xbf16>
    %1 = vector.shape_cast %0 : vector<1x16x5120xbf16> to vector<16x5120xbf16>
    %c0_2 = arith.constant 0 : index
    %c0_3 = arith.constant 0 : index
    %2 = vector.load %arg2[%c0_2, %c0_3] : memref<5120x128xbf16, #tpu.memory_space<vmem>>, vector<5120x128xbf16>
    %cst = arith.constant dense<0.000000e+00> : vector<16x128xf32>
    %3 = tpu.matmul %1, %2, %cst {dimension_numbers = #tpu.dot_dimension_numbers<[1], [0], [0], [1], [0, 0, 1, 1], [], []>} : vector<16x5120xbf16>, vector<5120x128xbf16>, vector<16x128xf32> -> vector<16x128xf32>
    %c0_4 = arith.constant 0 : index
    %c0_5 = arith.constant 0 : index
    %4 = vector.load %arg3[%c0_4, %c0_5] : memref<1x128xf32, #tpu.memory_space<vmem>>, vector<1x128xf32>
    %5 = vector.broadcast %4 : vector<1x128xf32> to vector<16x128xf32>
    %6 = arith.addf %3, %5 : vector<16x128xf32>
    %cst_6 = arith.constant 0.000000e+00 : f32
    %7 = vector.broadcast %cst_6 : f32 to vector<16x128xf32>
    %8 = arith.maximumf %6, %7 : vector<16x128xf32>
    %9 = arith.truncf %8 : vector<16x128xf32> to vector<16x128xbf16>
    %c0_7 = arith.constant 0 : index
    %c0_8 = arith.constant 0 : index
    %c0_9 = arith.constant 0 : index
    %10 = vector.load %arg4[%c0_7, %c0_8, %c0_9] : memref<1x16x128xbf16, #tpu.memory_space<vmem>>, vector<1x16x128xbf16>
    %11 = vector.shape_cast %10 : vector<1x16x128xbf16> to vector<16x128xbf16>
    %12 = vector.shape_cast %9 : vector<16x128xbf16> to vector<1x16x128xbf16>
    tpu.vector_store %arg4[%c0_7, %c0_8, %c0_9], %12 {strides = array<i32>} : memref<1x16x128xbf16, #tpu.memory_space<vmem>>, vector<1x16x128xbf16>,
    return
  }
  func.func @transform_0(%arg0: i32) -> (i32, i32, i32) {
    %c0_i32 = arith.constant 0 : i32
    %c0_i32_0 = arith.constant 0 : i32
    %c0_i32_1 = arith.constant 0 : i32
    return %arg0, %c0_i32, %c0_i32_0 : i32, i32, i32
  }
  func.func @transform_1(%arg0: i32) -> (i32, i32) {
    %c0_i32 = arith.constant 0 : i32
    %c0_i32_0 = arith.constant 0 : i32
    %c0_i32_1 = arith.constant 0 : i32
    return %c0_i32, %c0_i32_0 : i32, i32
  }
  func.func @transform_2(%arg0: i32) -> (i32, i32) {
    %c0_i32 = arith.constant 0 : i32
    %c0_i32_0 = arith.constant 0 : i32
    %c0_i32_1 = arith.constant 0 : i32
    return %c0_i32, %c0_i32_0 : i32, i32
  }
  func.func @transform_3(%arg0: i32) -> (i32, i32, i32) {
    %c0_i32 = arith.constant 0 : i32
    %c0_i32_0 = arith.constant 0 : i32
    %c0_i32_1 = arith.constant 0 : i32
    return %arg0, %c0_i32, %c0_i32_0 : i32, i32, i32
  }
}

module attributes {stable_mosaic.version = 11 : i64} {
  func.func @fc_fused_kernel(%arg0: memref<2x2048xbf16, #tpu.memory_space<vmem>>, %arg1: memref<2048x512xbf16, #tpu.memory_space<vmem>>, %arg2: memref<1x512xf32, #tpu.memory_space<vmem>>, %arg3: memref<512x128xbf16, #tpu.memory_space<vmem>>, %arg4: memref<1x128xf32, #tpu.memory_space<vmem>>, %arg5: memref<2x128xf32, #tpu.memory_space<vmem>>) attributes {dimension_semantics = [], scalar_prefetch = 0 : i64, scratch_operands = 0 : i64, tpu.core_type = #tpu.core_type<tc>} {
    %c0 = arith.constant 0 : index
    %c0_0 = arith.constant 0 : index
    %0 = vector.load %arg0[%c0, %c0_0] : memref<2x2048xbf16, #tpu.memory_space<vmem>>, vector<2x2048xbf16>
    %c0_1 = arith.constant 0 : index
    %c0_2 = arith.constant 0 : index
    %1 = vector.load %arg1[%c0_1, %c0_2] : memref<2048x512xbf16, #tpu.memory_space<vmem>>, vector<2048x512xbf16>
    %cst = arith.constant dense<0.000000e+00> : vector<2x512xf32>
    %2 = tpu.matmul %0, %1, %cst {dimension_numbers = #tpu.dot_dimension_numbers<[1], [0], [0], [1], [0, 0, 1, 1], [], []>} : vector<2x2048xbf16>, vector<2048x512xbf16>, vector<2x512xf32> -> vector<2x512xf32>
    %c0_3 = arith.constant 0 : index
    %c0_4 = arith.constant 0 : index
    %3 = vector.load %arg2[%c0_3, %c0_4] : memref<1x512xf32, #tpu.memory_space<vmem>>, vector<1x512xf32>
    %4 = vector.broadcast %3 : vector<1x512xf32> to vector<2x512xf32>
    %5 = arith.addf %2, %4 : vector<2x512xf32>
    %cst_5 = arith.constant 0.000000e+00 : f32
    %6 = vector.broadcast %cst_5 : f32 to vector<2x512xf32>
    %7 = arith.maximumf %5, %6 : vector<2x512xf32>
    %8 = arith.truncf %7 : vector<2x512xf32> to vector<2x512xbf16>
    %c0_6 = arith.constant 0 : index
    %c0_7 = arith.constant 0 : index
    %9 = vector.load %arg3[%c0_6, %c0_7] : memref<512x128xbf16, #tpu.memory_space<vmem>>, vector<512x128xbf16>
    %cst_8 = arith.constant dense<0.000000e+00> : vector<2x128xf32>
    %10 = tpu.matmul %8, %9, %cst_8 {dimension_numbers = #tpu.dot_dimension_numbers<[1], [0], [0], [1], [0, 0, 1, 1], [], []>} : vector<2x512xbf16>, vector<512x128xbf16>, vector<2x128xf32> -> vector<2x128xf32>
    %c0_9 = arith.constant 0 : index
    %c0_10 = arith.constant 0 : index
    %11 = vector.load %arg4[%c0_9, %c0_10] : memref<1x128xf32, #tpu.memory_space<vmem>>, vector<1x128xf32>
    %12 = vector.broadcast %11 : vector<1x128xf32> to vector<2x128xf32>
    %13 = arith.addf %10, %12 : vector<2x128xf32>
    %c0_11 = arith.constant 0 : index
    %c0_12 = arith.constant 0 : index
    %14 = vector.load %arg5[%c0_11, %c0_12] : memref<2x128xf32, #tpu.memory_space<vmem>>, vector<2x128xf32>
    tpu.vector_store %arg5[%c0_11, %c0_12], %13 {strides = array<i32>} : memref<2x128xf32, #tpu.memory_space<vmem>>, vector<2x128xf32>,
    return
  }
}

</mosaic_0001>

<llo_original>
// kernel: forward.4
$region0: #{forward.4}
  #allocation0 [shape = 'u32[]', space=smem, size = 0x4, offset = 0x4, fixed_abs, tag = 'smem constant byte address 0x4 - core index']
  #allocation1 [shape = 'u32[144,128]{1,0:T(1,128)}', space=vmem, size = 0x12000, scoped, tag = 'internal scratch']
  %s0 = inlined_call_operand.vmem [shape: bf16[2,256,512], index: 0, kind: input, shape index: {}]
  %s1 = inlined_call_operand.vmem [shape: bf16[512,128], index: 1, kind: input, shape index: {}]
  %s2 = inlined_call_operand.vmem [shape: f32[1,128], index: 2, kind: input, shape index: {}]
  %s3 = inlined_call_operand.vmem [shape: bf16[2,64,128], index: 3, kind: output, shape index: {}]
  %s4 = sld [smem:[#allocation0]]
  $region45: #{forward.4} parent=0
    _
  %s6 = ssub.s32 1, %s4
  %s7 = scalar_select 0, %s6, %s4
  loop: start=0, step=1, limit=4
  $region2: #{forward.4} parent=0 // loop_pre_header
    _
  $region3: #{forward.4} parent=0 // loop_header
    %s9 = sphi 0, %s13
    %p10 = scmp.ge.s32.totalorder %s9, 4
    %s19 = sphi 0, %s21
    %s22 = sphi 0, %s19
    %s23 = sphi 0, %s22
    %s39 = sphi 0, %s23
    %s43 = sphi 0, %s43
    %s45 = sphi 0, %s43
    %s46 = sphi 0, %s45
    %s60 = sphi 0, %s46
    %s64 = sphi 0, %s64
    %s66 = sphi 0, %s64
    %s67 = sphi 0, %s66
    %s81 = sphi 0, %s67
    %s87 = sphi 0, %s89
    %s90 = sphi 0, %s87
    %s91 = sphi 0, %s90
    %s107 = sphi 0, %s91
  $region4: #{forward.4} parent=0 // loop_header_branch
    %12 = sbr.rel (%p10) target = $region8
  $region5: #{forward.4} parent=0 // loop_body
    %s14 = ssub.s32 %s9, 1
    %s15 = ssub.s32 %s9, 2
    %s16 = sadd.s32 %s9, 1
    %s17 = ssub.s32 %s9, %s16
    %p18 = scmp.eq.s32.totalorder %s17, 0
    %s20 = sadd.s32 %s19, 1
    %s21 = scalar_select %p18, %s19, %s20
    %p24 = pneg %p18
    %p25 = scmp.eq.s32.totalorder %s9, 1
    %p26 = por %p24, %p25
    %p27 = scmp.ne.s32.totalorder %s19, %s22
    %p28 = scmp.eq.s32.totalorder %s9, 0
    %p29 = por %p27, %p28
    %p30 = scmp.ne.s32.totalorder %s19, %s22
    %p31 = scmp.eq.s32.totalorder %s14, 1
    %p32 = por %p30, %p31
    %p33 = scmp.ne.s32.totalorder %s22, %s23
    %p34 = scmp.eq.s32.totalorder %s14, 0
    %p35 = por %p33, %p34
    %p36 = scmp.ne.s32.totalorder %s22, %s23
    %p37 = scmp.eq.s32.totalorder %s15, 1
    %p38 = por %p36, %p37
    %p40 = scmp.ne.s32.totalorder %s23, %s39
    %p41 = scmp.eq.s32.totalorder %s15, 0
    %p42 = por %p40, %p41
    %s44 = sadd.s32 %s43, 1
    %p47 = scmp.eq.s32.totalorder %s9, 1
    %p48 = scmp.ne.s32.totalorder %s43, %s45
    %p49 = scmp.eq.s32.totalorder %s9, 0
    %p50 = por %p48, %p49
    %p51 = scmp.ne.s32.totalorder %s43, %s45
    %p52 = scmp.eq.s32.totalorder %s14, 1
    %p53 = por %p51, %p52
    %p54 = scmp.ne.s32.totalorder %s45, %s46
    %p55 = scmp.eq.s32.totalorder %s14, 0
    %p56 = por %p54, %p55
    %p57 = scmp.ne.s32.totalorder %s45, %s46
    %p58 = scmp.eq.s32.totalorder %s15, 1
    %p59 = por %p57, %p58
    %p61 = scmp.ne.s32.totalorder %s46, %s60
    %p62 = scmp.eq.s32.totalorder %s15, 0
    %p63 = por %p61, %p62
    %s65 = sadd.s32 %s64, 1
    %p68 = scmp.eq.s32.totalorder %s9, 1
    %p69 = scmp.ne.s32.totalorder %s64, %s66
    %p70 = scmp.eq.s32.totalorder %s9, 0
    %p71 = por %p69, %p70
    %p72 = scmp.ne.s32.totalorder %s64, %s66
    %p73 = scmp.eq.s32.totalorder %s14, 1
    %p74 = por %p72, %p73
    %p75 = scmp.ne.s32.totalorder %s66, %s67
    %p76 = scmp.eq.s32.totalorder %s14, 0
    %p77 = por %p75, %p76
    %p78 = scmp.ne.s32.totalorder %s66, %s67
    %p79 = scmp.eq.s32.totalorder %s15, 1
    %p80 = por %p78, %p79
    %p82 = scmp.ne.s32.totalorder %s67, %s81
    %p83 = scmp.eq.s32.totalorder %s15, 0
    %p84 = por %p82, %p83
    %s85 = ssub.s32 %s9, %s16
    %p86 = scmp.eq.s32.totalorder %s85, 0
    %s88 = sadd.s32 %s87, 1
    %s89 = scalar_select %p86, %s87, %s88
    %p92 = pneg %p86
    %p93 = scmp.eq.s32.totalorder %s9, 1
    %p94 = por %p92, %p93
    %p95 = scmp.ne.s32.totalorder %s87, %s90
    %p96 = scmp.eq.s32.totalorder %s9, 0
    %p97 = por %p95, %p96
    %p98 = scmp.ne.s32.totalorder %s87, %s90
    %p99 = scmp.eq.s32.totalorder %s14, 1
    %p100 = por %p98, %p99
    %p101 = scmp.ne.s32.totalorder %s90, %s91
    %p102 = scmp.eq.s32.totalorder %s14, 0
    %p103 = por %p101, %p102
    %p104 = scmp.ne.s32.totalorder %s90, %s91
    %p105 = scmp.eq.s32.totalorder %s15, 1
    %p106 = por %p104, %p105
    %p108 = scmp.ne.s32.totalorder %s91, %s107
    %p109 = scmp.eq.s32.totalorder %s15, 0
    %p110 = por %p108, %p109
    %p111 = scmp.le.s32.totalorder 1, %s9
    %p112 = scmp.lt.s32.totalorder %s9, 3
    %p113 = pnand %p111, %p112
    %p114 = pneg %p113
    // Predicated region
    $region9: #{forward.4} parent=5 // pred_check
      _
    $region10: #{forward.4} parent=5 // pred_check_branch
      %116 = sbr.rel (%p113) target = $region12
    $region11: #{forward.4} parent=5 // pred_region
      %s117 = ssub.s32 %s9, 1
      // Predicated region
      $region13: #{forward.4} parent=11 // pred_check
        %p118 = pneg %p56
      $region14: #{forward.4} parent=11 // pred_check_branch
        %120 = sbr.rel (%p118) target = $region16
      $region15: #{forward.4} parent=11 // pred_region
        _
      $region16: #{forward.4} parent=11 // pred_fallthru
        _
      // Predicated region
      $region17: #{forward.4} parent=11 // pred_check
        %p121 = pneg %p77
      $region18: #{forward.4} parent=11 // pred_check_branch
        %123 = sbr.rel (%p121) target = $region20
      $region19: #{forward.4} parent=11 // pred_region
        _
      $region20: #{forward.4} parent=11 // pred_fallthru
        _
    $region12: #{forward.4} parent=5 // pred_fallthru
      _
    %p124 = scmp.lt.s32.totalorder %s9, 2
    // Predicated region
    $region21: #{forward.4} parent=5 // pred_check
      %p125 = pneg %p124
    $region22: #{forward.4} parent=5 // pred_check_branch
      %127 = sbr.rel (%p125) target = $region24
    $region23: #{forward.4} parent=5 // pred_region
      // Predicated region
      $region25: #{forward.4} parent=23 // pred_check
        %p128 = pneg %p29
      $region26: #{forward.4} parent=23 // pred_check_branch
        %130 = sbr.rel (%p128) target = $region28
      $region27: #{forward.4} parent=23 // pred_region
        %p131 = scmp.lt.s32.totalorder %s9, 1
        %s132 = scalar_select %p131, %s9, 1
        %s133 = smul.addr %s132, 128
        %s134 = smul.addr %s133, 4
        %s135 = scalar_lea.vmem %s0, %s134
      $region28: #{forward.4} parent=23 // pred_fallthru
        _
    $region24: #{forward.4} parent=5 // pred_fallthru
      _
    %p136 = scmp.le.s32.totalorder 1, %s9
    %p137 = scmp.lt.s32.totalorder %s9, 3
    %p138 = pnand %p136, %p137
    %p139 = pneg %p138
    // Predicated region
    $region29: #{forward.4} parent=5 // pred_check
      _
    $region30: #{forward.4} parent=5 // pred_check_branch
      %141 = sbr.rel (%p138) target = $region32
    $region31: #{forward.4} parent=5 // pred_region
      %s142 = ssub.s32 %s9, 1
      %p143 = scmp.lt.s32.totalorder %s14, 1
      %s144 = scalar_select %p143, %s14, 1
      %s145 = smul.addr %s144, 128
      %s146 = smul.addr %s145, 4
      %s147 = scalar_lea.vmem %s0, %s146
      %p148 = pneg %p35
      %p149 = pneg %p32
      %p150 = pneg %p56
      %p151 = pneg %p53
      %p152 = pneg %p77
      %p153 = pneg %p74
      %p154 = pneg %p103
      %p155 = pneg %p100
      %p156 = scmp.lt.s32.totalorder %s14, 1
      %s157 = scalar_select %p156, %s14, 1
      %s158 = smul.addr %s157, 8
      %s159 = smul.addr %s158, 4
      %s160 = scalar_lea.vmem %s3, %s159
      %p161 = scmp.lt.s32.totalorder %s14, 1
      %s162 = scalar_select %p161, %s14, 1
      %s163 = smul.addr %s162, 128
      %s164 = smul.addr %s163, 4
      %s165 = scalar_lea.vmem %s0, %s164
      %p166 = scmp.lt.s32.totalorder %s14, 1
      %s167 = scalar_select %p166, %s14, 1
      %s168 = smul.addr %s167, 8
      %s169 = smul.addr %s168, 4
      %s170 = scalar_lea.vmem %s3, %s169
      %v172 = vld [vmem:[%s165] sm:$0xff]
      %v173 = vld [vmem:[%s165 + $0x8] sm:$0xff]
      %v174 = vld [vmem:[%s165 + $0x10] sm:$0xff]
      %v175 = vld [vmem:[%s165 + $0x18] sm:$0xff]
      %v176 = vld [vmem:[%s165 + $0x20] sm:$0xff]
      %v177 = vld [vmem:[%s165 + $0x28] sm:$0xff]
      %v178 = vld [vmem:[%s165 + $0x30] sm:$0xff]
      %v179 = vld [vmem:[%s165 + $0x38] sm:$0xff]
      %v180 = vld [vmem:[%s165 + $0x40] sm:$0xff]
      %v181 = vld [vmem:[%s165 + $0x48] sm:$0xff]
      %v182 = vld [vmem:[%s165 + $0x50] sm:$0xff]
      %v183 = vld [vmem:[%s165 + $0x58] sm:$0xff]
      %v184 = vld [vmem:[%s165 + $0x60] sm:$0xff]
      %v185 = vld [vmem:[%s165 + $0x68] sm:$0xff]
      %v186 = vld [vmem:[%s165 + $0x70] sm:$0xff]
      %v187 = vld [vmem:[%s165 + $0x78] sm:$0xff]
      %v188 = vld [vmem:[%s165 + $0x80] sm:$0xff]
      %v189 = vld [vmem:[%s165 + $0x88] sm:$0xff]
      %v190 = vld [vmem:[%s165 + $0x90] sm:$0xff]
      %v191 = vld [vmem:[%s165 + $0x98] sm:$0xff]
      %v192 = vld [vmem:[%s165 + $0xa0] sm:$0xff]
      %v193 = vld [vmem:[%s165 + $0xa8] sm:$0xff]
      %v194 = vld [vmem:[%s165 + $0xb0] sm:$0xff]
      %v195 = vld [vmem:[%s165 + $0xb8] sm:$0xff]
      %v196 = vld [vmem:[%s165 + $0xc0] sm:$0xff]
      %v197 = vld [vmem:[%s165 + $0xc8] sm:$0xff]
      %v198 = vld [vmem:[%s165 + $0xd0] sm:$0xff]
      %v199 = vld [vmem:[%s165 + $0xd8] sm:$0xff]
      %v200 = vld [vmem:[%s165 + $0xe0] sm:$0xff]
      %v201 = vld [vmem:[%s165 + $0xe8] sm:$0xff]
      %v202 = vld [vmem:[%s165 + $0xf0] sm:$0xff]
      %v203 = vld [vmem:[%s165 + $0xf8] sm:$0xff]
      %v204 = vld [vmem:[%s165 + $0x100] sm:$0xff]
      %v205 = vld [vmem:[%s165 + $0x108] sm:$0xff]
      %v206 = vld [vmem:[%s165 + $0x110] sm:$0xff]
      %v207 = vld [vmem:[%s165 + $0x118] sm:$0xff]
      %v208 = vld [vmem:[%s165 + $0x120] sm:$0xff]
      %v209 = vld [vmem:[%s165 + $0x128] sm:$0xff]
      %v210 = vld [vmem:[%s165 + $0x130] sm:$0xff]
      %v211 = vld [vmem:[%s165 + $0x138] sm:$0xff]
      %v212 = vld [vmem:[%s165 + $0x140] sm:$0xff]
      %v213 = vld [vmem:[%s165 + $0x148] sm:$0xff]
      %v214 = vld [vmem:[%s165 + $0x150] sm:$0xff]
      %v215 = vld [vmem:[%s165 + $0x158] sm:$0xff]
      %v216 = vld [vmem:[%s165 + $0x160] sm:$0xff]
      %v217 = vld [vmem:[%s165 + $0x168] sm:$0xff]
      %v218 = vld [vmem:[%s165 + $0x170] sm:$0xff]
      %v219 = vld [vmem:[%s165 + $0x178] sm:$0xff]
      %v220 = vld [vmem:[%s165 + $0x180] sm:$0xff]
      %v221 = vld [vmem:[%s165 + $0x188] sm:$0xff]
      %v222 = vld [vmem:[%s165 + $0x190] sm:$0xff]
      %v223 = vld [vmem:[%s165 + $0x198] sm:$0xff]
      %v224 = vld [vmem:[%s165 + $0x1a0] sm:$0xff]
      %v225 = vld [vmem:[%s165 + $0x1a8] sm:$0xff]
      %v226 = vld [vmem:[%s165 + $0x1b0] sm:$0xff]
      %v227 = vld [vmem:[%s165 + $0x1b8] sm:$0xff]
      %v228 = vld [vmem:[%s165 + $0x1c0] sm:$0xff]
      %v229 = vld [vmem:[%s165 + $0x1c8] sm:$0xff]
      %v230 = vld [vmem:[%s165 + $0x1d0] sm:$0xff]
      %v231 = vld [vmem:[%s165 + $0x1d8] sm:$0xff]
      %v232 = vld [vmem:[%s165 + $0x1e0] sm:$0xff]
      %v233 = vld [vmem:[%s165 + $0x1e8] sm:$0xff]
      %v234 = vld [vmem:[%s165 + $0x1f0] sm:$0xff]
      %v235 = vld [vmem:[%s165 + $0x1f8] sm:$0xff]
      %v236 = vld [vmem:[%s1] sm:$0xf]
      %v237 = vld [vmem:[%s1 + $0x4] sm:$0xf]
      %v238 = vld [vmem:[%s1 + $0x8] sm:$0xf]
      %v239 = vld [vmem:[%s1 + $0xc] sm:$0xf]
      %v240 = vld [vmem:[%s1 + $0x10] sm:$0xf]
      %v241 = vld [vmem:[%s1 + $0x14] sm:$0xf]
      %v242 = vld [vmem:[%s1 + $0x18] sm:$0xf]
      %v243 = vld [vmem:[%s1 + $0x1c] sm:$0xf]
      %v244 = vld [vmem:[%s1 + $0x20] sm:$0xf]
      %v245 = vld [vmem:[%s1 + $0x24] sm:$0xf]
      %v246 = vld [vmem:[%s1 + $0x28] sm:$0xf]
      %v247 = vld [vmem:[%s1 + $0x2c] sm:$0xf]
      %v248 = vld [vmem:[%s1 + $0x30] sm:$0xf]
      %v249 = vld [vmem:[%s1 + $0x34] sm:$0xf]
      %v250 = vld [vmem:[%s1 + $0x38] sm:$0xf]
      %v251 = vld [vmem:[%s1 + $0x3c] sm:$0xf]
      %v252 = vld [vmem:[%s1 + $0x40] sm:$0xf]
      %v253 = vld [vmem:[%s1 + $0x44] sm:$0xf]
      %v254 = vld [vmem:[%s1 + $0x48] sm:$0xf]
      %v255 = vld [vmem:[%s1 + $0x4c] sm:$0xf]
      %v256 = vld [vmem:[%s1 + $0x50] sm:$0xf]
      %v257 = vld [vmem:[%s1 + $0x54] sm:$0xf]
      %v258 = vld [vmem:[%s1 + $0x58] sm:$0xf]
      %v259 = vld [vmem:[%s1 + $0x5c] sm:$0xf]
      %v260 = vld [vmem:[%s1 + $0x60] sm:$0xf]
      %v261 = vld [vmem:[%s1 + $0x64] sm:$0xf]
      %v262 = vld [vmem:[%s1 + $0x68] sm:$0xf]
      %v263 = vld [vmem:[%s1 + $0x6c] sm:$0xf]
      %v264 = vld [vmem:[%s1 + $0x70] sm:$0xf]
      %v265 = vld [vmem:[%s1 + $0x74] sm:$0xf]
      %v266 = vld [vmem:[%s1 + $0x78] sm:$0xf]
      %v267 = vld [vmem:[%s1 + $0x7c] sm:$0xf]
      %v268 = vld [vmem:[%s1 + $0x80] sm:$0xf]
      %v269 = vld [vmem:[%s1 + $0x84] sm:$0xf]
      %v270 = vld [vmem:[%s1 + $0x88] sm:$0xf]
      %v271 = vld [vmem:[%s1 + $0x8c] sm:$0xf]
      %v272 = vld [vmem:[%s1 + $0x90] sm:$0xf]
      %v273 = vld [vmem:[%s1 + $0x94] sm:$0xf]
      %v274 = vld [vmem:[%s1 + $0x98] sm:$0xf]
      %v275 = vld [vmem:[%s1 + $0x9c] sm:$0xf]
      %v276 = vld [vmem:[%s1 + $0xa0] sm:$0xf]
      %v277 = vld [vmem:[%s1 + $0xa4] sm:$0xf]
      %v278 = vld [vmem:[%s1 + $0xa8] sm:$0xf]
      %v279 = vld [vmem:[%s1 + $0xac] sm:$0xf]
      %v280 = vld [vmem:[%s1 + $0xb0] sm:$0xf]
      %v281 = vld [vmem:[%s1 + $0xb4] sm:$0xf]
      %v282 = vld [vmem:[%s1 + $0xb8] sm:$0xf]
      %v283 = vld [vmem:[%s1 + $0xbc] sm:$0xf]
      %v284 = vld [vmem:[%s1 + $0xc0] sm:$0xf]
      %v285 = vld [vmem:[%s1 + $0xc4] sm:$0xf]
      %v286 = vld [vmem:[%s1 + $0xc8] sm:$0xf]
      %v287 = vld [vmem:[%s1 + $0xcc] sm:$0xf]
      %v288 = vld [vmem:[%s1 + $0xd0] sm:$0xf]
      %v289 = vld [vmem:[%s1 + $0xd4] sm:$0xf]
      %v290 = vld [vmem:[%s1 + $0xd8] sm:$0xf]
      %v291 = vld [vmem:[%s1 + $0xdc] sm:$0xf]
      %v292 = vld [vmem:[%s1 + $0xe0] sm:$0xf]
      %v293 = vld [vmem:[%s1 + $0xe4] sm:$0xf]
      %v294 = vld [vmem:[%s1 + $0xe8] sm:$0xf]
      %v295 = vld [vmem:[%s1 + $0xec] sm:$0xf]
      %v296 = vld [vmem:[%s1 + $0xf0] sm:$0xf]
      %v297 = vld [vmem:[%s1 + $0xf4] sm:$0xf]
      %v298 = vld [vmem:[%s1 + $0xf8] sm:$0xf]
      %v299 = vld [vmem:[%s1 + $0xfc] sm:$0xf]
      %v300 = vld [vmem:[%s2] sm:$0x1]
      %v302 = vlaneseq
      %v303 = vshrl.u32 %v302, 7
      %v304 = vsub.s32 0, %v303
      %v305 = vrot.slane %v300, %v304
      %v371 = vunpack.c.l.b16 %v172
      %v372 = vunpack.c.h.b16 %v172
      %v373 = vunpack.c.l.b16 %v173
      %v374 = vunpack.c.h.b16 %v173
      %v375 = vunpack.c.l.b16 %v174
      %v376 = vunpack.c.h.b16 %v174
      %v377 = vunpack.c.l.b16 %v175
      %v378 = vunpack.c.h.b16 %v175
      %v379 = vunpack.c.l.b16 %v176
      %v380 = vunpack.c.h.b16 %v176
      %v381 = vunpack.c.l.b16 %v177
      %v382 = vunpack.c.h.b16 %v177
      %v383 = vunpack.c.l.b16 %v178
      %v384 = vunpack.c.h.b16 %v178
      %v385 = vunpack.c.l.b16 %v179
      %v386 = vunpack.c.h.b16 %v179
      %v387 = vunpack.c.l.b16 %v180
      %v388 = vunpack.c.h.b16 %v180
      %v389 = vunpack.c.l.b16 %v181
      %v390 = vunpack.c.h.b16 %v181
      %v391 = vunpack.c.l.b16 %v182
      %v392 = vunpack.c.h.b16 %v182
      %v393 = vunpack.c.l.b16 %v183
      %v394 = vunpack.c.h.b16 %v183
      %v395 = vunpack.c.l.b16 %v184
      %v396 = vunpack.c.h.b16 %v184
      %v397 = vunpack.c.l.b16 %v185
      %v398 = vunpack.c.h.b16 %v185
      %v399 = vunpack.c.l.b16 %v186
      %v400 = vunpack.c.h.b16 %v186
      %v401 = vunpack.c.l.b16 %v187
      %v402 = vunpack.c.h.b16 %v187
      %v403 = vunpack.c.l.b16 %v188
      %v404 = vunpack.c.h.b16 %v188
      %v405 = vunpack.c.l.b16 %v189
      %v406 = vunpack.c.h.b16 %v189
      %v407 = vunpack.c.l.b16 %v190
      %v408 = vunpack.c.h.b16 %v190
      %v409 = vunpack.c.l.b16 %v191
      %v410 = vunpack.c.h.b16 %v191
      %v411 = vunpack.c.l.b16 %v192
      %v412 = vunpack.c.h.b16 %v192
      %v413 = vunpack.c.l.b16 %v193
      %v414 = vunpack.c.h.b16 %v193
      %v415 = vunpack.c.l.b16 %v194
      %v416 = vunpack.c.h.b16 %v194
      %v417 = vunpack.c.l.b16 %v195
      %v418 = vunpack.c.h.b16 %v195
      %v419 = vunpack.c.l.b16 %v196
      %v420 = vunpack.c.h.b16 %v196
      %v421 = vunpack.c.l.b16 %v197
      %v422 = vunpack.c.h.b16 %v197
      %v423 = vunpack.c.l.b16 %v198
      %v424 = vunpack.c.h.b16 %v198
      %v425 = vunpack.c.l.b16 %v199
      %v426 = vunpack.c.h.b16 %v199
      %v427 = vunpack.c.l.b16 %v200
      %v428 = vunpack.c.h.b16 %v200
      %v429 = vunpack.c.l.b16 %v201
      %v430 = vunpack.c.h.b16 %v201
      %v431 = vunpack.c.l.b16 %v202
      %v432 = vunpack.c.h.b16 %v202
      %v433 = vunpack.c.l.b16 %v203
      %v434 = vunpack.c.h.b16 %v203
      %v435 = vunpack.c.l.b16 %v204
      %v436 = vunpack.c.h.b16 %v204
      %v437 = vunpack.c.l.b16 %v205
      %v438 = vunpack.c.h.b16 %v205
      %v439 = vunpack.c.l.b16 %v206
      %v440 = vunpack.c.h.b16 %v206
      %v441 = vunpack.c.l.b16 %v207
      %v442 = vunpack.c.h.b16 %v207
      %v443 = vunpack.c.l.b16 %v208
      %v444 = vunpack.c.h.b16 %v208
      %v445 = vunpack.c.l.b16 %v209
      %v446 = vunpack.c.h.b16 %v209
      %v447 = vunpack.c.l.b16 %v210
      %v448 = vunpack.c.h.b16 %v210
      %v449 = vunpack.c.l.b16 %v211
      %v450 = vunpack.c.h.b16 %v211
      %v451 = vunpack.c.l.b16 %v212
      %v452 = vunpack.c.h.b16 %v212
      %v453 = vunpack.c.l.b16 %v213
      %v454 = vunpack.c.h.b16 %v213
      %v455 = vunpack.c.l.b16 %v214
      %v456 = vunpack.c.h.b16 %v214
      %v457 = vunpack.c.l.b16 %v215
      %v458 = vunpack.c.h.b16 %v215
      %v459 = vunpack.c.l.b16 %v216
      %v460 = vunpack.c.h.b16 %v216
      %v461 = vunpack.c.l.b16 %v217
      %v462 = vunpack.c.h.b16 %v217
      %v463 = vunpack.c.l.b16 %v218
      %v464 = vunpack.c.h.b16 %v218
      %v465 = vunpack.c.l.b16 %v219
      %v466 = vunpack.c.h.b16 %v219
      %v467 = vunpack.c.l.b16 %v220
      %v468 = vunpack.c.h.b16 %v220
      %v469 = vunpack.c.l.b16 %v221
      %v470 = vunpack.c.h.b16 %v221
      %v471 = vunpack.c.l.b16 %v222
      %v472 = vunpack.c.h.b16 %v222
      %v473 = vunpack.c.l.b16 %v223
      %v474 = vunpack.c.h.b16 %v223
      %v475 = vunpack.c.l.b16 %v224
      %v476 = vunpack.c.h.b16 %v224
      %v477 = vunpack.c.l.b16 %v225
      %v478 = vunpack.c.h.b16 %v225
      %v479 = vunpack.c.l.b16 %v226
      %v480 = vunpack.c.h.b16 %v226
      %v481 = vunpack.c.l.b16 %v227
      %v482 = vunpack.c.h.b16 %v227
      %v483 = vunpack.c.l.b16 %v228
      %v484 = vunpack.c.h.b16 %v228
      %v485 = vunpack.c.l.b16 %v229
      %v486 = vunpack.c.h.b16 %v229
      %v487 = vunpack.c.l.b16 %v230
      %v488 = vunpack.c.h.b16 %v230
      %v489 = vunpack.c.l.b16 %v231
      %v490 = vunpack.c.h.b16 %v231
      %v491 = vunpack.c.l.b16 %v232
      %v492 = vunpack.c.h.b16 %v232
      %v493 = vunpack.c.l.b16 %v233
      %v494 = vunpack.c.h.b16 %v233
      %v495 = vunpack.c.l.b16 %v234
      %v496 = vunpack.c.h.b16 %v234
      %v497 = vunpack.c.l.b16 %v235
      %v498 = vunpack.c.h.b16 %v235
      %v499 = vpack.c.b16 %v375, %v371
      %v500 = vpack.c.b16 %v376, %v372
      %v501 = vpack.c.b16 %v377, %v373
      %v502 = vpack.c.b16 %v378, %v374
      %v503 = vpack.c.b16 %v383, %v379
      %v504 = vpack.c.b16 %v384, %v380
      %v505 = vpack.c.b16 %v385, %v381
      %v506 = vpack.c.b16 %v386, %v382
      %v507 = vpack.c.b16 %v391, %v387
      %v508 = vpack.c.b16 %v392, %v388
      %v509 = vpack.c.b16 %v393, %v389
      %v510 = vpack.c.b16 %v394, %v390
      %v511 = vpack.c.b16 %v399, %v395
      %v512 = vpack.c.b16 %v400, %v396
      %v513 = vpack.c.b16 %v401, %v397
      %v514 = vpack.c.b16 %v402, %v398
      %v515 = vpack.c.b16 %v407, %v403
      %v516 = vpack.c.b16 %v408, %v404
      %v517 = vpack.c.b16 %v409, %v405
      %v518 = vpack.c.b16 %v410, %v406
      %v519 = vpack.c.b16 %v415, %v411
      %v520 = vpack.c.b16 %v416, %v412
      %v521 = vpack.c.b16 %v417, %v413
      %v522 = vpack.c.b16 %v418, %v414
      %v523 = vpack.c.b16 %v423, %v419
      %v524 = vpack.c.b16 %v424, %v420
      %v525 = vpack.c.b16 %v425, %v421
      %v526 = vpack.c.b16 %v426, %v422
      %v527 = vpack.c.b16 %v431, %v427
      %v528 = vpack.c.b16 %v432, %v428
      %v529 = vpack.c.b16 %v433, %v429
      %v530 = vpack.c.b16 %v434, %v430
      %v531 = vpack.c.b16 %v439, %v435
      %v532 = vpack.c.b16 %v440, %v436
      %v533 = vpack.c.b16 %v441, %v437
      %v534 = vpack.c.b16 %v442, %v438
      %v535 = vpack.c.b16 %v447, %v443
      %v536 = vpack.c.b16 %v448, %v444
      %v537 = vpack.c.b16 %v449, %v445
      %v538 = vpack.c.b16 %v450, %v446
      %v539 = vpack.c.b16 %v455, %v451
      %v540 = vpack.c.b16 %v456, %v452
      %v541 = vpack.c.b16 %v457, %v453
      %v542 = vpack.c.b16 %v458, %v454
      %v543 = vpack.c.b16 %v463, %v459
      %v544 = vpack.c.b16 %v464, %v460
      %v545 = vpack.c.b16 %v465, %v461
      %v546 = vpack.c.b16 %v466, %v462
      %v547 = vpack.c.b16 %v471, %v467
      %v548 = vpack.c.b16 %v472, %v468
      %v549 = vpack.c.b16 %v473, %v469
      %v550 = vpack.c.b16 %v474, %v470
      %v551 = vpack.c.b16 %v479, %v475
      %v552 = vpack.c.b16 %v480, %v476
      %v553 = vpack.c.b16 %v481, %v477
      %v554 = vpack.c.b16 %v482, %v478
      %v555 = vpack.c.b16 %v487, %v483
      %v556 = vpack.c.b16 %v488, %v484
      %v557 = vpack.c.b16 %v489, %v485
      %v558 = vpack.c.b16 %v490, %v486
      %v559 = vpack.c.b16 %v495, %v491
      %v560 = vpack.c.b16 %v496, %v492
      %v561 = vpack.c.b16 %v497, %v493
      %v562 = vpack.c.b16 %v498, %v494
      %v691 = vunpack.c.l.b16 %v236
      %v692 = vunpack.c.l.b16 %v237
      %v693 = vunpack.c.l.b16 %v238
      %v694 = vunpack.c.l.b16 %v239
      %v695 = vunpack.c.l.b16 %v240
      %v696 = vunpack.c.l.b16 %v241
      %v697 = vunpack.c.l.b16 %v242
      %v698 = vunpack.c.l.b16 %v243
      %v699 = vunpack.c.l.b16 %v244
      %v700 = vunpack.c.l.b16 %v245
      %v701 = vunpack.c.l.b16 %v246
      %v702 = vunpack.c.l.b16 %v247
      %v703 = vunpack.c.l.b16 %v248
      %v704 = vunpack.c.l.b16 %v249
      %v705 = vunpack.c.l.b16 %v250
      %v706 = vunpack.c.l.b16 %v251
      %v707 = vunpack.c.l.b16 %v252
      %v708 = vunpack.c.l.b16 %v253
      %v709 = vunpack.c.l.b16 %v254
      %v710 = vunpack.c.l.b16 %v255
      %v711 = vunpack.c.l.b16 %v256
      %v712 = vunpack.c.l.b16 %v257
      %v713 = vunpack.c.l.b16 %v258
      %v714 = vunpack.c.l.b16 %v259
      %v715 = vunpack.c.l.b16 %v260
      %v716 = vunpack.c.l.b16 %v261
      %v717 = vunpack.c.l.b16 %v262
      %v718 = vunpack.c.l.b16 %v263
      %v719 = vunpack.c.l.b16 %v264
      %v720 = vunpack.c.l.b16 %v265
      %v721 = vunpack.c.l.b16 %v266
      %v722 = vunpack.c.l.b16 %v267
      %v723 = vunpack.c.l.b16 %v268
      %v724 = vunpack.c.l.b16 %v269
      %v725 = vunpack.c.l.b16 %v270
      %v726 = vunpack.c.l.b16 %v271
      %v727 = vunpack.c.l.b16 %v272
      %v728 = vunpack.c.l.b16 %v273
      %v729 = vunpack.c.l.b16 %v274
      %v730 = vunpack.c.l.b16 %v275
      %v731 = vunpack.c.l.b16 %v276
      %v732 = vunpack.c.l.b16 %v277
      %v733 = vunpack.c.l.b16 %v278
      %v734 = vunpack.c.l.b16 %v279
      %v735 = vunpack.c.l.b16 %v280
      %v736 = vunpack.c.l.b16 %v281
      %v737 = vunpack.c.l.b16 %v282
      %v738 = vunpack.c.l.b16 %v283
      %v739 = vunpack.c.l.b16 %v284
      %v740 = vunpack.c.l.b16 %v285
      %v741 = vunpack.c.l.b16 %v286
      %v742 = vunpack.c.l.b16 %v287
      %v743 = vunpack.c.l.b16 %v288
      %v744 = vunpack.c.l.b16 %v289
      %v745 = vunpack.c.l.b16 %v290
      %v746 = vunpack.c.l.b16 %v291
      %v747 = vunpack.c.l.b16 %v292
      %v748 = vunpack.c.l.b16 %v293
      %v749 = vunpack.c.l.b16 %v294
      %v750 = vunpack.c.l.b16 %v295
      %v751 = vunpack.c.l.b16 %v296
      %v752 = vunpack.c.l.b16 %v297
      %v753 = vunpack.c.l.b16 %v298
      %v754 = vunpack.c.l.b16 %v299
      %v755 = vpack.c.b16 %v692, %v691
      %v756 = vpack.c.b16 %v694, %v693
      %v757 = vpack.c.b16 %v696, %v695
      %v758 = vpack.c.b16 %v698, %v697
      %v759 = vpack.c.b16 %v700, %v699
      %v760 = vpack.c.b16 %v702, %v701
      %v761 = vpack.c.b16 %v704, %v703
      %v762 = vpack.c.b16 %v706, %v705
      %v763 = vpack.c.b16 %v708, %v707
      %v764 = vpack.c.b16 %v710, %v709
      %v765 = vpack.c.b16 %v712, %v711
      %v766 = vpack.c.b16 %v714, %v713
      %v767 = vpack.c.b16 %v716, %v715
      %v768 = vpack.c.b16 %v718, %v717
      %v769 = vpack.c.b16 %v720, %v719
      %v770 = vpack.c.b16 %v722, %v721
      %v771 = vpack.c.b16 %v724, %v723
      %v772 = vpack.c.b16 %v726, %v725
      %v773 = vpack.c.b16 %v728, %v727
      %v774 = vpack.c.b16 %v730, %v729
      %v775 = vpack.c.b16 %v732, %v731
      %v776 = vpack.c.b16 %v734, %v733
      %v777 = vpack.c.b16 %v736, %v735
      %v778 = vpack.c.b16 %v738, %v737
      %v779 = vpack.c.b16 %v740, %v739
      %v780 = vpack.c.b16 %v742, %v741
      %v781 = vpack.c.b16 %v744, %v743
      %v782 = vpack.c.b16 %v746, %v745
      %v783 = vpack.c.b16 %v748, %v747
      %v784 = vpack.c.b16 %v750, %v749
      %v785 = vpack.c.b16 %v752, %v751
      %v786 = vpack.c.b16 %v754, %v753
      %819 = vmatprep.subr.bf16.mxu0 0
      %820 = vmatpush1.bf16.msra.mxu0 %v762
      %821 = vmatprep.subr.bf16.mxu0 0
      %822 = vmatpush1.bf16.msra.mxu0 %v761
      %823 = vmatprep.subr.bf16.mxu0 0
      %824 = vmatpush1.bf16.msra.mxu0 %v760
      %825 = vmatprep.subr.bf16.mxu0 0
      %826 = vmatpush1.bf16.msra.mxu0 %v759
      %827 = vmatprep.subr.bf16.mxu0 0
      %828 = vmatpush1.bf16.msra.mxu0 %v758
      %829 = vmatprep.subr.bf16.mxu0 0
      %830 = vmatpush1.bf16.msra.mxu0 %v757
      %831 = vmatprep.subr.bf16.mxu0 0
      %832 = vmatpush1.bf16.msra.mxu0 %v756
      %833 = vmatprep.subr.bf16.mxu0 0
      %834 = vmatpush1.bf16.msra.mxu0 %v755
      %835 = vmatprep.subr.bf16.mxu0 0
      %836 = vmatpush2.bf16.msra.mxu0 %v770
      %837 = vmatprep.subr.bf16.mxu0 0
      %838 = vmatpush2.bf16.msra.mxu0 %v769
      %839 = vmatprep.subr.bf16.mxu0 0
      %840 = vmatpush2.bf16.msra.mxu0 %v768
      %841 = vmatprep.subr.bf16.mxu0 0
      %842 = vmatpush2.bf16.msra.mxu0 %v767
      %843 = vmatprep.subr.bf16.mxu0 0
      %844 = vmatpush2.bf16.msra.mxu0 %v766
      %845 = vmatprep.subr.bf16.mxu0 0
      %846 = vmatpush2.bf16.msra.mxu0 %v765
      %847 = vmatprep.subr.bf16.mxu0 0
      %848 = vmatpush2.bf16.msra.mxu0 %v764
      %849 = vmatprep.subr.bf16.mxu0 0
      %850 = vmatpush2.bf16.msra.mxu0 %v763
      %851 = vmatprep.mubr.bf16.mxu0 %v500
      %852 = vmatmul.mubr.bf16.gmra.mxu0 %v499
      %v853 = vpop.f32.mrf.mxu0
      %v854 = vadd.f32 %v305, %v853
      %v855 = vpop.f32.mrf.mxu0
      %v856 = vpop.f32.mrf.mxu0
      %v857 = vadd.f32 %v305, %v856
      %v858 = vpop.f32.mrf.mxu0
      %859 = vmatprep.mubr.bf16.mxu0 %v504
      %860 = vmatmul.mubr.bf16.gmra.mxu0 %v503
      %v861 = vpop.f32.mrf.mxu0
      %v862 = vadd.f32 %v305, %v861
      %v863 = vpop.f32.mrf.mxu0
      %v864 = vpop.f32.mrf.mxu0
      %v865 = vadd.f32 %v305, %v864
      %v866 = vpop.f32.mrf.mxu0
      %867 = vmatprep.mubr.bf16.mxu0 %v508
      %868 = vmatmul.mubr.bf16.gmra.mxu0 %v507
      %v869 = vpop.f32.mrf.mxu0
      %v870 = vadd.f32 %v305, %v869
      %v871 = vpop.f32.mrf.mxu0
      %v872 = vpop.f32.mrf.mxu0
      %v873 = vadd.f32 %v305, %v872
      %v874 = vpop.f32.mrf.mxu0
      %875 = vmatprep.mubr.bf16.mxu0 %v512
      %876 = vmatmul.mubr.bf16.gmra.mxu0 %v511
      %v877 = vpop.f32.mrf.mxu0
      %v878 = vadd.f32 %v305, %v877
      %v879 = vpop.f32.mrf.mxu0
      %v880 = vpop.f32.mrf.mxu0
      %v881 = vadd.f32 %v305, %v880
      %v882 = vpop.f32.mrf.mxu0
      %883 = vmatprep.mubr.bf16.mxu0 %v516
      %884 = vmatmul.mubr.bf16.gmra.mxu0 %v515
      %v885 = vpop.f32.mrf.mxu0
      %v886 = vadd.f32 %v305, %v885
      %v887 = vpop.f32.mrf.mxu0
      %v888 = vpop.f32.mrf.mxu0
      %v889 = vadd.f32 %v305, %v888
      %v890 = vpop.f32.mrf.mxu0
      %891 = vmatprep.mubr.bf16.mxu0 %v520
      %892 = vmatmul.mubr.bf16.gmra.mxu0 %v519
      %v893 = vpop.f32.mrf.mxu0
      %v894 = vadd.f32 %v305, %v893
      %v895 = vpop.f32.mrf.mxu0
      %v896 = vpop.f32.mrf.mxu0
      %v897 = vadd.f32 %v305, %v896
      %v898 = vpop.f32.mrf.mxu0
      %899 = vmatprep.mubr.bf16.mxu0 %v524
      %900 = vmatmul.mubr.bf16.gmra.mxu0 %v523
      %v901 = vpop.f32.mrf.mxu0
      %v902 = vadd.f32 %v305, %v901
      %v903 = vpop.f32.mrf.mxu0
      %v904 = vpop.f32.mrf.mxu0
      %v905 = vadd.f32 %v305, %v904
      %v906 = vpop.f32.mrf.mxu0
      %907 = vmatprep.mubr.bf16.mxu0 %v528
      %908 = vmatmul.mubr.bf16.gmra.mxu0 %v527
      %v909 = vpop.f32.mrf.mxu0
      %v910 = vadd.f32 %v305, %v909
      %v911 = vpop.f32.mrf.mxu0
      %v912 = vpop.f32.mrf.mxu0
      %v913 = vadd.f32 %v305, %v912
      %v914 = vpop.f32.mrf.mxu0
      %915 = vmatprep.mubr.bf16.mxu0 %v532
      %916 = vmatmul.mubr.bf16.gmra.mxu0 %v531
      %v917 = vpop.f32.mrf.mxu0
      %v918 = vadd.f32 %v305, %v917
      %v919 = vpop.f32.mrf.mxu0
      %v920 = vpop.f32.mrf.mxu0
      %v921 = vadd.f32 %v305, %v920
      %v922 = vpop.f32.mrf.mxu0
      %923 = vmatprep.mubr.bf16.mxu0 %v536
      %924 = vmatmul.mubr.bf16.gmra.mxu0 %v535
      %v925 = vpop.f32.mrf.mxu0
      %v926 = vadd.f32 %v305, %v925
      %v927 = vpop.f32.mrf.mxu0
      %v928 = vpop.f32.mrf.mxu0
      %v929 = vadd.f32 %v305, %v928
      %v930 = vpop.f32.mrf.mxu0
      %931 = vmatprep.mubr.bf16.mxu0 %v540
      %932 = vmatmul.mubr.bf16.gmra.mxu0 %v539
      %v933 = vpop.f32.mrf.mxu0
      %v934 = vadd.f32 %v305, %v933
      %v935 = vpop.f32.mrf.mxu0
      %v936 = vpop.f32.mrf.mxu0
      %v937 = vadd.f32 %v305, %v936
      %v938 = vpop.f32.mrf.mxu0
      %939 = vmatprep.mubr.bf16.mxu0 %v544
      %940 = vmatmul.mubr.bf16.gmra.mxu0 %v543
      %v941 = vpop.f32.mrf.mxu0
      %v942 = vadd.f32 %v305, %v941
      %v943 = vpop.f32.mrf.mxu0
      %v944 = vpop.f32.mrf.mxu0
      %v945 = vadd.f32 %v305, %v944
      %v946 = vpop.f32.mrf.mxu0
      %947 = vmatprep.mubr.bf16.mxu0 %v548
      %948 = vmatmul.mubr.bf16.gmra.mxu0 %v547
      %v949 = vpop.f32.mrf.mxu0
      %v950 = vadd.f32 %v305, %v949
      %v951 = vpop.f32.mrf.mxu0
      %v952 = vpop.f32.mrf.mxu0
      %v953 = vadd.f32 %v305, %v952
      %v954 = vpop.f32.mrf.mxu0
      %955 = vmatprep.mubr.bf16.mxu0 %v552
      %956 = vmatmul.mubr.bf16.gmra.mxu0 %v551
      %v957 = vpop.f32.mrf.mxu0
      %v958 = vadd.f32 %v305, %v957
      %v959 = vpop.f32.mrf.mxu0
      %v960 = vpop.f32.mrf.mxu0
      %v961 = vadd.f32 %v305, %v960
      %v962 = vpop.f32.mrf.mxu0
      %963 = vmatprep.mubr.bf16.mxu0 %v556
      %964 = vmatmul.mubr.bf16.gmra.mxu0 %v555
      %v965 = vpop.f32.mrf.mxu0
      %v966 = vadd.f32 %v305, %v965
      %v967 = vpop.f32.mrf.mxu0
      %v968 = vpop.f32.mrf.mxu0
      %v969 = vadd.f32 %v305, %v968
      %v970 = vpop.f32.mrf.mxu0
      %971 = vmatprep.mubr.bf16.mxu0 %v560
      %972 = vmatmul.mubr.bf16.gmra.mxu0 %v559
      %v973 = vpop.f32.mrf.mxu0
      %v974 = vadd.f32 %v305, %v973
      %v975 = vpop.f32.mrf.mxu0
      %v976 = vpop.f32.mrf.mxu0
      %v977 = vadd.f32 %v305, %v976
      %v978 = vpop.f32.mrf.mxu0
      %979 = vdwg.mxu0
      %980 = vmatprep.subr.bf16.mxu0 0
      %981 = vmatpush1.bf16.msra.mxu0 %v778
      %982 = vmatprep.subr.bf16.mxu0 0
      %983 = vmatpush1.bf16.msra.mxu0 %v777
      %984 = vmatprep.subr.bf16.mxu0 0
      %985 = vmatpush1.bf16.msra.mxu0 %v776
      %986 = vmatprep.subr.bf16.mxu0 0
      %987 = vmatpush1.bf16.msra.mxu0 %v775
      %988 = vmatprep.subr.bf16.mxu0 0
      %989 = vmatpush1.bf16.msra.mxu0 %v774
      %990 = vmatprep.subr.bf16.mxu0 0
      %991 = vmatpush1.bf16.msra.mxu0 %v773
      %992 = vmatprep.subr.bf16.mxu0 0
      %993 = vmatpush1.bf16.msra.mxu0 %v772
      %994 = vmatprep.subr.bf16.mxu0 0
      %995 = vmatpush1.bf16.msra.mxu0 %v771
      %996 = vmatprep.subr.bf16.mxu0 0
      %997 = vmatpush2.bf16.msra.mxu0 %v786
      %998 = vmatprep.subr.bf16.mxu0 0
      %999 = vmatpush2.bf16.msra.mxu0 %v785
      %1000 = vmatprep.subr.bf16.mxu0 0
      %1001 = vmatpush2.bf16.msra.mxu0 %v784
      %1002 = vmatprep.subr.bf16.mxu0 0
      %1003 = vmatpush2.bf16.msra.mxu0 %v783
      %1004 = vmatprep.subr.bf16.mxu0 0
      %1005 = vmatpush2.bf16.msra.mxu0 %v782
      %1006 = vmatprep.subr.bf16.mxu0 0
      %1007 = vmatpush2.bf16.msra.mxu0 %v781
      %1008 = vmatprep.subr.bf16.mxu0 0
      %1009 = vmatpush2.bf16.msra.mxu0 %v780
      %1010 = vmatprep.subr.bf16.mxu0 0
      %1011 = vmatpush2.bf16.msra.mxu0 %v779
      %1012 = vmatprep.mubr.bf16.mxu0 %v502
      %1013 = vmatmul.mubr.bf16.gmra.mxu0 %v501
      %v1014 = vpop.f32.mrf.mxu0
      %v1015 = vadd.f32 %v854, %v1014
      %v1016 = vpop.f32.mrf.mxu0
      %v1017 = vpop.f32.mrf.mxu0
      %v1018 = vadd.f32 %v857, %v1017
      %v1019 = vpop.f32.mrf.mxu0
      %1020 = vmatprep.mubr.bf16.mxu0 %v506
      %1021 = vmatmul.mubr.bf16.gmra.mxu0 %v505
      %v1022 = vpop.f32.mrf.mxu0
      %v1023 = vadd.f32 %v862, %v1022
      %v1024 = vpop.f32.mrf.mxu0
      %v1025 = vpop.f32.mrf.mxu0
      %v1026 = vadd.f32 %v865, %v1025
      %v1027 = vpop.f32.mrf.mxu0
      %1028 = vmatprep.mubr.bf16.mxu0 %v510
      %1029 = vmatmul.mubr.bf16.gmra.mxu0 %v509
      %v1030 = vpop.f32.mrf.mxu0
      %v1031 = vadd.f32 %v870, %v1030
      %v1032 = vpop.f32.mrf.mxu0
      %v1033 = vpop.f32.mrf.mxu0
      %v1034 = vadd.f32 %v873, %v1033
      %v1035 = vpop.f32.mrf.mxu0
      %1036 = vmatprep.mubr.bf16.mxu0 %v514
      %1037 = vmatmul.mubr.bf16.gmra.mxu0 %v513
      %v1038 = vpop.f32.mrf.mxu0
      %v1039 = vadd.f32 %v878, %v1038
      %v1040 = vpop.f32.mrf.mxu0
      %v1041 = vpop.f32.mrf.mxu0
      %v1042 = vadd.f32 %v881, %v1041
      %v1043 = vpop.f32.mrf.mxu0
      %1044 = vmatprep.mubr.bf16.mxu0 %v518
      %1045 = vmatmul.mubr.bf16.gmra.mxu0 %v517
      %v1046 = vpop.f32.mrf.mxu0
      %v1047 = vadd.f32 %v886, %v1046
      %v1048 = vpop.f32.mrf.mxu0
      %v1049 = vpop.f32.mrf.mxu0
      %v1050 = vadd.f32 %v889, %v1049
      %v1051 = vpop.f32.mrf.mxu0
      %1052 = vmatprep.mubr.bf16.mxu0 %v522
      %1053 = vmatmul.mubr.bf16.gmra.mxu0 %v521
      %v1054 = vpop.f32.mrf.mxu0
      %v1055 = vadd.f32 %v894, %v1054
      %v1056 = vpop.f32.mrf.mxu0
      %v1057 = vpop.f32.mrf.mxu0
      %v1058 = vadd.f32 %v897, %v1057
      %v1059 = vpop.f32.mrf.mxu0
      %1060 = vmatprep.mubr.bf16.mxu0 %v526
      %1061 = vmatmul.mubr.bf16.gmra.mxu0 %v525
      %v1062 = vpop.f32.mrf.mxu0
      %v1063 = vadd.f32 %v902, %v1062
      %v1064 = vpop.f32.mrf.mxu0
      %v1065 = vpop.f32.mrf.mxu0
      %v1066 = vadd.f32 %v905, %v1065
      %v1067 = vpop.f32.mrf.mxu0
      %1068 = vmatprep.mubr.bf16.mxu0 %v530
      %1069 = vmatmul.mubr.bf16.gmra.mxu0 %v529
      %v1070 = vpop.f32.mrf.mxu0
      %v1071 = vadd.f32 %v910, %v1070
      %v1072 = vpop.f32.mrf.mxu0
      %v1073 = vpop.f32.mrf.mxu0
      %v1074 = vadd.f32 %v913, %v1073
      %v1075 = vpop.f32.mrf.mxu0
      %1076 = vmatprep.mubr.bf16.mxu0 %v534
      %1077 = vmatmul.mubr.bf16.gmra.mxu0 %v533
      %v1078 = vpop.f32.mrf.mxu0
      %v1079 = vadd.f32 %v918, %v1078
      %v1080 = vpop.f32.mrf.mxu0
      %v1081 = vpop.f32.mrf.mxu0
      %v1082 = vadd.f32 %v921, %v1081
      %v1083 = vpop.f32.mrf.mxu0
      %1084 = vmatprep.mubr.bf16.mxu0 %v538
      %1085 = vmatmul.mubr.bf16.gmra.mxu0 %v537
      %v1086 = vpop.f32.mrf.mxu0
      %v1087 = vadd.f32 %v926, %v1086
      %v1088 = vpop.f32.mrf.mxu0
      %v1089 = vpop.f32.mrf.mxu0
      %v1090 = vadd.f32 %v929, %v1089
      %v1091 = vpop.f32.mrf.mxu0
      %1092 = vmatprep.mubr.bf16.mxu0 %v542
      %1093 = vmatmul.mubr.bf16.gmra.mxu0 %v541
      %v1094 = vpop.f32.mrf.mxu0
      %v1095 = vadd.f32 %v934, %v1094
      %v1096 = vpop.f32.mrf.mxu0
      %v1097 = vpop.f32.mrf.mxu0
      %v1098 = vadd.f32 %v937, %v1097
      %v1099 = vpop.f32.mrf.mxu0
      %1100 = vmatprep.mubr.bf16.mxu0 %v546
      %1101 = vmatmul.mubr.bf16.gmra.mxu0 %v545
      %v1102 = vpop.f32.mrf.mxu0
      %v1103 = vadd.f32 %v942, %v1102
      %v1104 = vpop.f32.mrf.mxu0
      %v1105 = vpop.f32.mrf.mxu0
      %v1106 = vadd.f32 %v945, %v1105
      %v1107 = vpop.f32.mrf.mxu0
      %1108 = vmatprep.mubr.bf16.mxu0 %v550
      %1109 = vmatmul.mubr.bf16.gmra.mxu0 %v549
      %v1110 = vpop.f32.mrf.mxu0
      %v1111 = vadd.f32 %v950, %v1110
      %v1112 = vpop.f32.mrf.mxu0
      %v1113 = vpop.f32.mrf.mxu0
      %v1114 = vadd.f32 %v953, %v1113
      %v1115 = vpop.f32.mrf.mxu0
      %1116 = vmatprep.mubr.bf16.mxu0 %v554
      %1117 = vmatmul.mubr.bf16.gmra.mxu0 %v553
      %v1118 = vpop.f32.mrf.mxu0
      %v1119 = vadd.f32 %v958, %v1118
      %v1120 = vpop.f32.mrf.mxu0
      %v1121 = vpop.f32.mrf.mxu0
      %v1122 = vadd.f32 %v961, %v1121
      %v1123 = vpop.f32.mrf.mxu0
      %1124 = vmatprep.mubr.bf16.mxu0 %v558
      %1125 = vmatmul.mubr.bf16.gmra.mxu0 %v557
      %v1126 = vpop.f32.mrf.mxu0
      %v1127 = vadd.f32 %v966, %v1126
      %v1128 = vpop.f32.mrf.mxu0
      %v1129 = vpop.f32.mrf.mxu0
      %v1130 = vadd.f32 %v969, %v1129
      %v1131 = vpop.f32.mrf.mxu0
      %1132 = vmatprep.mubr.bf16.mxu0 %v562
      %1133 = vmatmul.mubr.bf16.gmra.mxu0 %v561
      %v1134 = vpop.f32.mrf.mxu0
      %v1135 = vadd.f32 %v974, %v1134
      %v1136 = vpop.f32.mrf.mxu0
      %v1137 = vpop.f32.mrf.mxu0
      %v1138 = vadd.f32 %v977, %v1137
      %v1139 = vpop.f32.mrf.mxu0
      %1140 = vdwg.mxu0
      %v1141 = vmax.f32 %v1015, 0.0
      %v1142 = vmax.f32 %v1018, 0.0
      %v1143 = vmax.f32 %v1023, 0.0
      %v1144 = vmax.f32 %v1026, 0.0
      %v1145 = vmax.f32 %v1031, 0.0
      %v1146 = vmax.f32 %v1034, 0.0
      %v1147 = vmax.f32 %v1039, 0.0
      %v1148 = vmax.f32 %v1042, 0.0
      %v1149 = vmax.f32 %v1047, 0.0
      %v1150 = vmax.f32 %v1050, 0.0
      %v1151 = vmax.f32 %v1055, 0.0
      %v1152 = vmax.f32 %v1058, 0.0
      %v1153 = vmax.f32 %v1063, 0.0
      %v1154 = vmax.f32 %v1066, 0.0
      %v1155 = vmax.f32 %v1071, 0.0
      %v1156 = vmax.f32 %v1074, 0.0
      %v1157 = vmax.f32 %v1079, 0.0
      %v1158 = vmax.f32 %v1082, 0.0
      %v1159 = vmax.f32 %v1087, 0.0
      %v1160 = vmax.f32 %v1090, 0.0
      %v1161 = vmax.f32 %v1095, 0.0
      %v1162 = vmax.f32 %v1098, 0.0
      %v1163 = vmax.f32 %v1103, 0.0
      %v1164 = vmax.f32 %v1106, 0.0
      %v1165 = vmax.f32 %v1111, 0.0
      %v1166 = vmax.f32 %v1114, 0.0
      %v1167 = vmax.f32 %v1119, 0.0
      %v1168 = vmax.f32 %v1122, 0.0
      %v1169 = vmax.f32 %v1127, 0.0
      %v1170 = vmax.f32 %v1130, 0.0
      %v1171 = vmax.f32 %v1135, 0.0
      %v1172 = vmax.f32 %v1138, 0.0
      %v1173 = vmax.f32 %v1141, %v1149
      %v1174 = vmax.f32 %v1142, %v1150
      %v1175 = vmax.f32 %v1143, %v1151
      %v1176 = vmax.f32 %v1144, %v1152
      %v1177 = vmax.f32 %v1145, %v1153
      %v1178 = vmax.f32 %v1146, %v1154
      %v1179 = vmax.f32 %v1147, %v1155
      %v1180 = vmax.f32 %v1148, %v1156
      %v1181 = vmax.f32 %v1157, %v1165
      %v1182 = vmax.f32 %v1158, %v1166
      %v1183 = vmax.f32 %v1159, %v1167
      %v1184 = vmax.f32 %v1160, %v1168
      %v1185 = vmax.f32 %v1161, %v1169
      %v1186 = vmax.f32 %v1162, %v1170
      %v1187 = vmax.f32 %v1163, %v1171
      %v1188 = vmax.f32 %v1164, %v1172
      %v1189 = vmax.f32 %v1173, %v1181
      %v1190 = vmax.f32 %v1174, %v1182
      %v1191 = vmax.f32 %v1175, %v1183
      %v1192 = vmax.f32 %v1176, %v1184
      %v1193 = vmax.f32 %v1177, %v1185
      %v1194 = vmax.f32 %v1178, %v1186
      %v1195 = vmax.f32 %v1179, %v1187
      %v1196 = vmax.f32 %v1180, %v1188
      %v1197 = vpack.c.bf16 %v1190, %v1189
      %v1198 = vpack.c.bf16 %v1192, %v1191
      %v1199 = vpack.c.bf16 %v1194, %v1193
      %v1200 = vpack.c.bf16 %v1196, %v1195
      %v1205 = vunpack.c.l.b16 %v1197
      %v1206 = vunpack.c.h.b16 %v1197
      %v1207 = vunpack.c.l.b16 %v1198
      %v1208 = vunpack.c.h.b16 %v1198
      %v1209 = vunpack.c.l.b16 %v1199
      %v1210 = vunpack.c.h.b16 %v1199
      %v1211 = vunpack.c.l.b16 %v1200
      %v1212 = vunpack.c.h.b16 %v1200
      %v1213 = vpack.c.b16 %v1205, %v1205
      %v1214 = vpack.c.b16 %v1206, %v1206
      %v1215 = vpack.c.b16 %v1207, %v1207
      %v1216 = vpack.c.b16 %v1208, %v1208
      %v1217 = vpack.c.b16 %v1209, %v1209
      %v1218 = vpack.c.b16 %v1210, %v1210
      %v1219 = vpack.c.b16 %v1211, %v1211
      %v1220 = vpack.c.b16 %v1212, %v1212
      %1229 = vst [vmem:[%s170] sm:$0xf] %v1213
      %1230 = vst [vmem:[%s170 + $0x4] sm:$0xf] %v1214
      %1231 = vst [vmem:[%s170 + $0x8] sm:$0xf] %v1215
      %1232 = vst [vmem:[%s170 + $0xc] sm:$0xf] %v1216
      %1233 = vst [vmem:[%s170 + $0x10] sm:$0xf] %v1217
      %1234 = vst [vmem:[%s170 + $0x14] sm:$0xf] %v1218
      %1235 = vst [vmem:[%s170 + $0x18] sm:$0xf] %v1219
      %1236 = vst [vmem:[%s170 + $0x1c] sm:$0xf] %v1220
      %p1237 = scmp.lt.s32.totalorder %s14, 1
      %s1238 = scalar_select %p1237, %s14, 1
      %s1239 = smul.addr %s1238, 8
      %s1240 = smul.addr %s1239, 4
      %s1241 = scalar_lea.vmem %s3, %s1240
      // Predicated region
      $region33: #{forward.4} parent=31 // pred_check
        %p1242 = pneg %p100
      $region34: #{forward.4} parent=31 // pred_check_branch
        %1244 = sbr.rel (%p1242) target = $region36
      $region35: #{forward.4} parent=31 // pred_region
        _
      $region36: #{forward.4} parent=31 // pred_fallthru
        _
    $region32: #{forward.4} parent=5 // pred_fallthru
      _
    %p1245 = scmp.le.s32.totalorder 2, %s9
    // Predicated region
    $region37: #{forward.4} parent=5 // pred_check
      %p1246 = pneg %p1245
    $region38: #{forward.4} parent=5 // pred_check_branch
      %1248 = sbr.rel (%p1246) target = $region40
    $region39: #{forward.4} parent=5 // pred_region
      %s1249 = ssub.s32 %s9, 2
      // Predicated region
      $region41: #{forward.4} parent=39 // pred_check
        %p1250 = pneg %p106
      $region42: #{forward.4} parent=39 // pred_check_branch
        %1252 = sbr.rel (%p1250) target = $region44
      $region43: #{forward.4} parent=39 // pred_region
        %p1253 = scmp.lt.s32.totalorder %s15, 1
        %s1254 = scalar_select %p1253, %s15, 1
        %s1255 = smul.addr %s1254, 8
        %s1256 = smul.addr %s1255, 4
        %s1257 = scalar_lea.vmem %s3, %s1256
      $region44: #{forward.4} parent=39 // pred_fallthru
        _
    $region40: #{forward.4} parent=5 // pred_fallthru
      _
  $region6: #{forward.4} parent=0 // loop_footer
    %s13 = sadd.s32 1, %s9
  $region7: #{forward.4} parent=0 // loop_footer_branch
    %8 = sbr.rel target = $region3
  $region8: #{forward.4} parent=0 // loop_exit
    _

// kernel: forward.5
$region0: #{forward.5}
  #allocation0 [shape = 'u32[]', space=smem, size = 0x4, offset = 0x4, fixed_abs, tag = 'smem constant byte address 0x4 - core index']
  #allocation1 [shape = 'u32[144,128]{1,0:T(1,128)}', space=vmem, size = 0x12000, scoped, tag = 'internal scratch']
  %s0 = inlined_call_operand.vmem [shape: bf16[2,64,1280], index: 0, kind: input, shape index: {}]
  %s1 = inlined_call_operand.vmem [shape: bf16[1280,256], index: 1, kind: input, shape index: {}]
  %s2 = inlined_call_operand.vmem [shape: f32[1,256], index: 2, kind: input, shape index: {}]
  %s3 = inlined_call_operand.vmem [shape: bf16[2,16,256], index: 3, kind: output, shape index: {}]
  %s4 = sld [smem:[#allocation0]]
  $region45: #{forward.5} parent=0
    _
  %s6 = ssub.s32 1, %s4
  %s7 = scalar_select 0, %s6, %s4
  loop: start=0, step=1, limit=4
  $region2: #{forward.5} parent=0 // loop_pre_header
    _
  $region3: #{forward.5} parent=0 // loop_header
    %s9 = sphi 0, %s13
    %p10 = scmp.ge.s32.totalorder %s9, 4
    %s19 = sphi 0, %s21
    %s22 = sphi 0, %s19
    %s23 = sphi 0, %s22
    %s39 = sphi 0, %s23
    %s43 = sphi 0, %s43
    %s45 = sphi 0, %s43
    %s46 = sphi 0, %s45
    %s60 = sphi 0, %s46
    %s64 = sphi 0, %s64
    %s66 = sphi 0, %s64
    %s67 = sphi 0, %s66
    %s81 = sphi 0, %s67
    %s87 = sphi 0, %s89
    %s90 = sphi 0, %s87
    %s91 = sphi 0, %s90
    %s107 = sphi 0, %s91
  $region4: #{forward.5} parent=0 // loop_header_branch
    %12 = sbr.rel (%p10) target = $region8
  $region5: #{forward.5} parent=0 // loop_body
    %s14 = ssub.s32 %s9, 1
    %s15 = ssub.s32 %s9, 2
    %s16 = sadd.s32 %s9, 1
    %s17 = ssub.s32 %s9, %s16
    %p18 = scmp.eq.s32.totalorder %s17, 0
    %s20 = sadd.s32 %s19, 1
    %s21 = scalar_select %p18, %s19, %s20
    %p24 = pneg %p18
    %p25 = scmp.eq.s32.totalorder %s9, 1
    %p26 = por %p24, %p25
    %p27 = scmp.ne.s32.totalorder %s19, %s22
    %p28 = scmp.eq.s32.totalorder %s9, 0
    %p29 = por %p27, %p28
    %p30 = scmp.ne.s32.totalorder %s19, %s22
    %p31 = scmp.eq.s32.totalorder %s14, 1
    %p32 = por %p30, %p31
    %p33 = scmp.ne.s32.totalorder %s22, %s23
    %p34 = scmp.eq.s32.totalorder %s14, 0
    %p35 = por %p33, %p34
    %p36 = scmp.ne.s32.totalorder %s22, %s23
    %p37 = scmp.eq.s32.totalorder %s15, 1
    %p38 = por %p36, %p37
    %p40 = scmp.ne.s32.totalorder %s23, %s39
    %p41 = scmp.eq.s32.totalorder %s15, 0
    %p42 = por %p40, %p41
    %s44 = sadd.s32 %s43, 1
    %p47 = scmp.eq.s32.totalorder %s9, 1
    %p48 = scmp.ne.s32.totalorder %s43, %s45
    %p49 = scmp.eq.s32.totalorder %s9, 0
    %p50 = por %p48, %p49
    %p51 = scmp.ne.s32.totalorder %s43, %s45
    %p52 = scmp.eq.s32.totalorder %s14, 1
    %p53 = por %p51, %p52
    %p54 = scmp.ne.s32.totalorder %s45, %s46
    %p55 = scmp.eq.s32.totalorder %s14, 0
    %p56 = por %p54, %p55
    %p57 = scmp.ne.s32.totalorder %s45, %s46
    %p58 = scmp.eq.s32.totalorder %s15, 1
    %p59 = por %p57, %p58
    %p61 = scmp.ne.s32.totalorder %s46, %s60
    %p62 = scmp.eq.s32.totalorder %s15, 0
    %p63 = por %p61, %p62
    %s65 = sadd.s32 %s64, 1
    %p68 = scmp.eq.s32.totalorder %s9, 1
    %p69 = scmp.ne.s32.totalorder %s64, %s66
    %p70 = scmp.eq.s32.totalorder %s9, 0
    %p71 = por %p69, %p70
    %p72 = scmp.ne.s32.totalorder %s64, %s66
    %p73 = scmp.eq.s32.totalorder %s14, 1
    %p74 = por %p72, %p73
    %p75 = scmp.ne.s32.totalorder %s66, %s67
    %p76 = scmp.eq.s32.totalorder %s14, 0
    %p77 = por %p75, %p76
    %p78 = scmp.ne.s32.totalorder %s66, %s67
    %p79 = scmp.eq.s32.totalorder %s15, 1
    %p80 = por %p78, %p79
    %p82 = scmp.ne.s32.totalorder %s67, %s81
    %p83 = scmp.eq.s32.totalorder %s15, 0
    %p84 = por %p82, %p83
    %s85 = ssub.s32 %s9, %s16
    %p86 = scmp.eq.s32.totalorder %s85, 0
    %s88 = sadd.s32 %s87, 1
    %s89 = scalar_select %p86, %s87, %s88
    %p92 = pneg %p86
    %p93 = scmp.eq.s32.totalorder %s9, 1
    %p94 = por %p92, %p93
    %p95 = scmp.ne.s32.totalorder %s87, %s90
    %p96 = scmp.eq.s32.totalorder %s9, 0
    %p97 = por %p95, %p96
    %p98 = scmp.ne.s32.totalorder %s87, %s90
    %p99 = scmp.eq.s32.totalorder %s14, 1
    %p100 = por %p98, %p99
    %p101 = scmp.ne.s32.totalorder %s90, %s91
    %p102 = scmp.eq.s32.totalorder %s14, 0
    %p103 = por %p101, %p102
    %p104 = scmp.ne.s32.totalorder %s90, %s91
    %p105 = scmp.eq.s32.totalorder %s15, 1
    %p106 = por %p104, %p105
    %p108 = scmp.ne.s32.totalorder %s91, %s107
    %p109 = scmp.eq.s32.totalorder %s15, 0
    %p110 = por %p108, %p109
    %p111 = scmp.le.s32.totalorder 1, %s9
    %p112 = scmp.lt.s32.totalorder %s9, 3
    %p113 = pnand %p111, %p112
    %p114 = pneg %p113
    // Predicated region
    $region9: #{forward.5} parent=5 // pred_check
      _
    $region10: #{forward.5} parent=5 // pred_check_branch
      %116 = sbr.rel (%p113) target = $region12
    $region11: #{forward.5} parent=5 // pred_region
      %s117 = ssub.s32 %s9, 1
      // Predicated region
      $region13: #{forward.5} parent=11 // pred_check
        %p118 = pneg %p56
      $region14: #{forward.5} parent=11 // pred_check_branch
        %120 = sbr.rel (%p118) target = $region16
      $region15: #{forward.5} parent=11 // pred_region
        _
      $region16: #{forward.5} parent=11 // pred_fallthru
        _
      // Predicated region
      $region17: #{forward.5} parent=11 // pred_check
        %p121 = pneg %p77
      $region18: #{forward.5} parent=11 // pred_check_branch
        %123 = sbr.rel (%p121) target = $region20
      $region19: #{forward.5} parent=11 // pred_region
        _
      $region20: #{forward.5} parent=11 // pred_fallthru
        _
    $region12: #{forward.5} parent=5 // pred_fallthru
      _
    %p124 = scmp.lt.s32.totalorder %s9, 2
    // Predicated region
    $region21: #{forward.5} parent=5 // pred_check
      %p125 = pneg %p124
    $region22: #{forward.5} parent=5 // pred_check_branch
      %127 = sbr.rel (%p125) target = $region24
    $region23: #{forward.5} parent=5 // pred_region
      // Predicated region
      $region25: #{forward.5} parent=23 // pred_check
        %p128 = pneg %p29
      $region26: #{forward.5} parent=23 // pred_check_branch
        %130 = sbr.rel (%p128) target = $region28
      $region27: #{forward.5} parent=23 // pred_region
        %p131 = scmp.lt.s32.totalorder %s9, 1
        %s132 = scalar_select %p131, %s9, 1
        %s133 = smul.addr %s132, 80
        %s134 = smul.addr %s133, 4
        %s135 = scalar_lea.vmem %s0, %s134
      $region28: #{forward.5} parent=23 // pred_fallthru
        _
    $region24: #{forward.5} parent=5 // pred_fallthru
      _
    %p136 = scmp.le.s32.totalorder 1, %s9
    %p137 = scmp.lt.s32.totalorder %s9, 3
    %p138 = pnand %p136, %p137
    %p139 = pneg %p138
    // Predicated region
    $region29: #{forward.5} parent=5 // pred_check
      _
    $region30: #{forward.5} parent=5 // pred_check_branch
      %141 = sbr.rel (%p138) target = $region32
    $region31: #{forward.5} parent=5 // pred_region
      %s142 = ssub.s32 %s9, 1
      %p143 = scmp.lt.s32.totalorder %s14, 1
      %s144 = scalar_select %p143, %s14, 1
      %s145 = smul.addr %s144, 80
      %s146 = smul.addr %s145, 4
      %s147 = scalar_lea.vmem %s0, %s146
      %p148 = pneg %p35
      %p149 = pneg %p32
      %p150 = pneg %p56
      %p151 = pneg %p53
      %p152 = pneg %p77
      %p153 = pneg %p74
      %p154 = pneg %p103
      %p155 = pneg %p100
      %p156 = scmp.lt.s32.totalorder %s14, 1
      %s157 = scalar_select %p156, %s14, 1
      %s158 = smul.addr %s157, 4
      %s159 = smul.addr %s158, 4
      %s160 = scalar_lea.vmem %s3, %s159
      %p161 = scmp.lt.s32.totalorder %s14, 1
      %s162 = scalar_select %p161, %s14, 1
      %s163 = smul.addr %s162, 80
      %s164 = smul.addr %s163, 4
      %s165 = scalar_lea.vmem %s0, %s164
      %p166 = scmp.lt.s32.totalorder %s14, 1
      %s167 = scalar_select %p166, %s14, 1
      %s168 = smul.addr %s167, 4
      %s169 = smul.addr %s168, 4
      %s170 = scalar_lea.vmem %s3, %s169
      %v171 = vld [vmem:[%s165] sm:$0xff]
      %v172 = vld [vmem:[%s165 + $0x8] sm:$0xff]
      %v173 = vld [vmem:[%s165 + $0x10] sm:$0xff]
      %v174 = vld [vmem:[%s165 + $0x18] sm:$0xff]
      %v175 = vld [vmem:[%s165 + $0x20] sm:$0xff]
      %v176 = vld [vmem:[%s165 + $0x28] sm:$0xff]
      %v177 = vld [vmem:[%s165 + $0x30] sm:$0xff]
      %v178 = vld [vmem:[%s165 + $0x38] sm:$0xff]
      %v179 = vld [vmem:[%s165 + $0x40] sm:$0xff]
      %v180 = vld [vmem:[%s165 + $0x48] sm:$0xff]
      %v181 = vld [vmem:[%s165 + $0x50] sm:$0xff]
      %v182 = vld [vmem:[%s165 + $0x58] sm:$0xff]
      %v183 = vld [vmem:[%s165 + $0x60] sm:$0xff]
      %v184 = vld [vmem:[%s165 + $0x68] sm:$0xff]
      %v185 = vld [vmem:[%s165 + $0x70] sm:$0xff]
      %v186 = vld [vmem:[%s165 + $0x78] sm:$0xff]
      %v187 = vld [vmem:[%s165 + $0x80] sm:$0xff]
      %v188 = vld [vmem:[%s165 + $0x88] sm:$0xff]
      %v189 = vld [vmem:[%s165 + $0x90] sm:$0xff]
      %v190 = vld [vmem:[%s165 + $0x98] sm:$0xff]
      %v191 = vld [vmem:[%s165 + $0xa0] sm:$0xff]
      %v192 = vld [vmem:[%s165 + $0xa8] sm:$0xff]
      %v193 = vld [vmem:[%s165 + $0xb0] sm:$0xff]
      %v194 = vld [vmem:[%s165 + $0xb8] sm:$0xff]
      %v195 = vld [vmem:[%s165 + $0xc0] sm:$0xff]
      %v196 = vld [vmem:[%s165 + $0xc8] sm:$0xff]
      %v197 = vld [vmem:[%s165 + $0xd0] sm:$0xff]
      %v198 = vld [vmem:[%s165 + $0xd8] sm:$0xff]
      %v199 = vld [vmem:[%s165 + $0xe0] sm:$0xff]
      %v200 = vld [vmem:[%s165 + $0xe8] sm:$0xff]
      %v201 = vld [vmem:[%s165 + $0xf0] sm:$0xff]
      %v202 = vld [vmem:[%s165 + $0xf8] sm:$0xff]
      %v203 = vld [vmem:[%s165 + $0x100] sm:$0xff]
      %v204 = vld [vmem:[%s165 + $0x108] sm:$0xff]
      %v205 = vld [vmem:[%s165 + $0x110] sm:$0xff]
      %v206 = vld [vmem:[%s165 + $0x118] sm:$0xff]
      %v207 = vld [vmem:[%s165 + $0x120] sm:$0xff]
      %v208 = vld [vmem:[%s165 + $0x128] sm:$0xff]
      %v209 = vld [vmem:[%s165 + $0x130] sm:$0xff]
      %v210 = vld [vmem:[%s165 + $0x138] sm:$0xff]
      %v211 = vld [vmem:[%s1] sm:$0xff]
      %v212 = vld [vmem:[%s1 + $0x8] sm:$0xff]
      %v213 = vld [vmem:[%s1 + $0x10] sm:$0xff]
      %v214 = vld [vmem:[%s1 + $0x18] sm:$0xff]
      %v215 = vld [vmem:[%s1 + $0x20] sm:$0xff]
      %v216 = vld [vmem:[%s1 + $0x28] sm:$0xff]
      %v217 = vld [vmem:[%s1 + $0x30] sm:$0xff]
      %v218 = vld [vmem:[%s1 + $0x38] sm:$0xff]
      %v219 = vld [vmem:[%s1 + $0x40] sm:$0xff]
      %v220 = vld [vmem:[%s1 + $0x48] sm:$0xff]
      %v221 = vld [vmem:[%s1 + $0x50] sm:$0xff]
      %v222 = vld [vmem:[%s1 + $0x58] sm:$0xff]
      %v223 = vld [vmem:[%s1 + $0x60] sm:$0xff]
      %v224 = vld [vmem:[%s1 + $0x68] sm:$0xff]
      %v225 = vld [vmem:[%s1 + $0x70] sm:$0xff]
      %v226 = vld [vmem:[%s1 + $0x78] sm:$0xff]
      %v227 = vld [vmem:[%s1 + $0x80] sm:$0xff]
      %v228 = vld [vmem:[%s1 + $0x88] sm:$0xff]
      %v229 = vld [vmem:[%s1 + $0x90] sm:$0xff]
      %v230 = vld [vmem:[%s1 + $0x98] sm:$0xff]
      %v231 = vld [vmem:[%s1 + $0xa0] sm:$0xff]
      %v232 = vld [vmem:[%s1 + $0xa8] sm:$0xff]
      %v233 = vld [vmem:[%s1 + $0xb0] sm:$0xff]
      %v234 = vld [vmem:[%s1 + $0xb8] sm:$0xff]
      %v235 = vld [vmem:[%s1 + $0xc0] sm:$0xff]
      %v236 = vld [vmem:[%s1 + $0xc8] sm:$0xff]
      %v237 = vld [vmem:[%s1 + $0xd0] sm:$0xff]
      %v238 = vld [vmem:[%s1 + $0xd8] sm:$0xff]
      %v239 = vld [vmem:[%s1 + $0xe0] sm:$0xff]
      %v240 = vld [vmem:[%s1 + $0xe8] sm:$0xff]
      %v241 = vld [vmem:[%s1 + $0xf0] sm:$0xff]
      %v242 = vld [vmem:[%s1 + $0xf8] sm:$0xff]
      %v243 = vld [vmem:[%s1 + $0x100] sm:$0xff]
      %v244 = vld [vmem:[%s1 + $0x108] sm:$0xff]
      %v245 = vld [vmem:[%s1 + $0x110] sm:$0xff]
      %v246 = vld [vmem:[%s1 + $0x118] sm:$0xff]
      %v247 = vld [vmem:[%s1 + $0x120] sm:$0xff]
      %v248 = vld [vmem:[%s1 + $0x128] sm:$0xff]
      %v249 = vld [vmem:[%s1 + $0x130] sm:$0xff]
      %v250 = vld [vmem:[%s1 + $0x138] sm:$0xff]
      %v251 = vld [vmem:[%s1 + $0x140] sm:$0xff]
      %v252 = vld [vmem:[%s1 + $0x148] sm:$0xff]
      %v253 = vld [vmem:[%s1 + $0x150] sm:$0xff]
      %v254 = vld [vmem:[%s1 + $0x158] sm:$0xff]
      %v255 = vld [vmem:[%s1 + $0x160] sm:$0xff]
      %v256 = vld [vmem:[%s1 + $0x168] sm:$0xff]
      %v257 = vld [vmem:[%s1 + $0x170] sm:$0xff]
      %v258 = vld [vmem:[%s1 + $0x178] sm:$0xff]
      %v259 = vld [vmem:[%s1 + $0x180] sm:$0xff]
      %v260 = vld [vmem:[%s1 + $0x188] sm:$0xff]
      %v261 = vld [vmem:[%s1 + $0x190] sm:$0xff]
      %v262 = vld [vmem:[%s1 + $0x198] sm:$0xff]
      %v263 = vld [vmem:[%s1 + $0x1a0] sm:$0xff]
      %v264 = vld [vmem:[%s1 + $0x1a8] sm:$0xff]
      %v265 = vld [vmem:[%s1 + $0x1b0] sm:$0xff]
      %v266 = vld [vmem:[%s1 + $0x1b8] sm:$0xff]
      %v267 = vld [vmem:[%s1 + $0x1c0] sm:$0xff]
      %v268 = vld [vmem:[%s1 + $0x1c8] sm:$0xff]
      %v269 = vld [vmem:[%s1 + $0x1d0] sm:$0xff]
      %v270 = vld [vmem:[%s1 + $0x1d8] sm:$0xff]
      %v271 = vld [vmem:[%s1 + $0x1e0] sm:$0xff]
      %v272 = vld [vmem:[%s1 + $0x1e8] sm:$0xff]
      %v273 = vld [vmem:[%s1 + $0x1f0] sm:$0xff]
      %v274 = vld [vmem:[%s1 + $0x1f8] sm:$0xff]
      %v275 = vld [vmem:[%s1 + $0x200] sm:$0xff]
      %v276 = vld [vmem:[%s1 + $0x208] sm:$0xff]
      %v277 = vld [vmem:[%s1 + $0x210] sm:$0xff]
      %v278 = vld [vmem:[%s1 + $0x218] sm:$0xff]
      %v279 = vld [vmem:[%s1 + $0x220] sm:$0xff]
      %v280 = vld [vmem:[%s1 + $0x228] sm:$0xff]
      %v281 = vld [vmem:[%s1 + $0x230] sm:$0xff]
      %v282 = vld [vmem:[%s1 + $0x238] sm:$0xff]
      %v283 = vld [vmem:[%s1 + $0x240] sm:$0xff]
      %v284 = vld [vmem:[%s1 + $0x248] sm:$0xff]
      %v285 = vld [vmem:[%s1 + $0x250] sm:$0xff]
      %v286 = vld [vmem:[%s1 + $0x258] sm:$0xff]
      %v287 = vld [vmem:[%s1 + $0x260] sm:$0xff]
      %v288 = vld [vmem:[%s1 + $0x268] sm:$0xff]
      %v289 = vld [vmem:[%s1 + $0x270] sm:$0xff]
      %v290 = vld [vmem:[%s1 + $0x278] sm:$0xff]
      %v291 = vld [vmem:[%s1 + $0x280] sm:$0xff]
      %v292 = vld [vmem:[%s1 + $0x288] sm:$0xff]
      %v293 = vld [vmem:[%s1 + $0x290] sm:$0xff]
      %v294 = vld [vmem:[%s1 + $0x298] sm:$0xff]
      %v295 = vld [vmem:[%s1 + $0x2a0] sm:$0xff]
      %v296 = vld [vmem:[%s1 + $0x2a8] sm:$0xff]
      %v297 = vld [vmem:[%s1 + $0x2b0] sm:$0xff]
      %v298 = vld [vmem:[%s1 + $0x2b8] sm:$0xff]
      %v299 = vld [vmem:[%s1 + $0x2c0] sm:$0xff]
      %v300 = vld [vmem:[%s1 + $0x2c8] sm:$0xff]
      %v301 = vld [vmem:[%s1 + $0x2d0] sm:$0xff]
      %v302 = vld [vmem:[%s1 + $0x2d8] sm:$0xff]
      %v303 = vld [vmem:[%s1 + $0x2e0] sm:$0xff]
      %v304 = vld [vmem:[%s1 + $0x2e8] sm:$0xff]
      %v305 = vld [vmem:[%s1 + $0x2f0] sm:$0xff]
      %v306 = vld [vmem:[%s1 + $0x2f8] sm:$0xff]
      %v307 = vld [vmem:[%s1 + $0x300] sm:$0xff]
      %v308 = vld [vmem:[%s1 + $0x308] sm:$0xff]
      %v309 = vld [vmem:[%s1 + $0x310] sm:$0xff]
      %v310 = vld [vmem:[%s1 + $0x318] sm:$0xff]
      %v311 = vld [vmem:[%s1 + $0x320] sm:$0xff]
      %v312 = vld [vmem:[%s1 + $0x328] sm:$0xff]
      %v313 = vld [vmem:[%s1 + $0x330] sm:$0xff]
      %v314 = vld [vmem:[%s1 + $0x338] sm:$0xff]
      %v315 = vld [vmem:[%s1 + $0x340] sm:$0xff]
      %v316 = vld [vmem:[%s1 + $0x348] sm:$0xff]
      %v317 = vld [vmem:[%s1 + $0x350] sm:$0xff]
      %v318 = vld [vmem:[%s1 + $0x358] sm:$0xff]
      %v319 = vld [vmem:[%s1 + $0x360] sm:$0xff]
      %v320 = vld [vmem:[%s1 + $0x368] sm:$0xff]
      %v321 = vld [vmem:[%s1 + $0x370] sm:$0xff]
      %v322 = vld [vmem:[%s1 + $0x378] sm:$0xff]
      %v323 = vld [vmem:[%s1 + $0x380] sm:$0xff]
      %v324 = vld [vmem:[%s1 + $0x388] sm:$0xff]
      %v325 = vld [vmem:[%s1 + $0x390] sm:$0xff]
      %v326 = vld [vmem:[%s1 + $0x398] sm:$0xff]
      %v327 = vld [vmem:[%s1 + $0x3a0] sm:$0xff]
      %v328 = vld [vmem:[%s1 + $0x3a8] sm:$0xff]
      %v329 = vld [vmem:[%s1 + $0x3b0] sm:$0xff]
      %v330 = vld [vmem:[%s1 + $0x3b8] sm:$0xff]
      %v331 = vld [vmem:[%s1 + $0x3c0] sm:$0xff]
      %v332 = vld [vmem:[%s1 + $0x3c8] sm:$0xff]
      %v333 = vld [vmem:[%s1 + $0x3d0] sm:$0xff]
      %v334 = vld [vmem:[%s1 + $0x3d8] sm:$0xff]
      %v335 = vld [vmem:[%s1 + $0x3e0] sm:$0xff]
      %v336 = vld [vmem:[%s1 + $0x3e8] sm:$0xff]
      %v337 = vld [vmem:[%s1 + $0x3f0] sm:$0xff]
      %v338 = vld [vmem:[%s1 + $0x3f8] sm:$0xff]
      %v339 = vld [vmem:[%s1 + $0x400] sm:$0xff]
      %v340 = vld [vmem:[%s1 + $0x408] sm:$0xff]
      %v341 = vld [vmem:[%s1 + $0x410] sm:$0xff]
      %v342 = vld [vmem:[%s1 + $0x418] sm:$0xff]
      %v343 = vld [vmem:[%s1 + $0x420] sm:$0xff]
      %v344 = vld [vmem:[%s1 + $0x428] sm:$0xff]
      %v345 = vld [vmem:[%s1 + $0x430] sm:$0xff]
      %v346 = vld [vmem:[%s1 + $0x438] sm:$0xff]
      %v347 = vld [vmem:[%s1 + $0x440] sm:$0xff]
      %v348 = vld [vmem:[%s1 + $0x448] sm:$0xff]
      %v349 = vld [vmem:[%s1 + $0x450] sm:$0xff]
      %v350 = vld [vmem:[%s1 + $0x458] sm:$0xff]
      %v351 = vld [vmem:[%s1 + $0x460] sm:$0xff]
      %v352 = vld [vmem:[%s1 + $0x468] sm:$0xff]
      %v353 = vld [vmem:[%s1 + $0x470] sm:$0xff]
      %v354 = vld [vmem:[%s1 + $0x478] sm:$0xff]
      %v355 = vld [vmem:[%s1 + $0x480] sm:$0xff]
      %v356 = vld [vmem:[%s1 + $0x488] sm:$0xff]
      %v357 = vld [vmem:[%s1 + $0x490] sm:$0xff]
      %v358 = vld [vmem:[%s1 + $0x498] sm:$0xff]
      %v359 = vld [vmem:[%s1 + $0x4a0] sm:$0xff]
      %v360 = vld [vmem:[%s1 + $0x4a8] sm:$0xff]
      %v361 = vld [vmem:[%s1 + $0x4b0] sm:$0xff]
      %v362 = vld [vmem:[%s1 + $0x4b8] sm:$0xff]
      %v363 = vld [vmem:[%s1 + $0x4c0] sm:$0xff]
      %v364 = vld [vmem:[%s1 + $0x4c8] sm:$0xff]
      %v365 = vld [vmem:[%s1 + $0x4d0] sm:$0xff]
      %v366 = vld [vmem:[%s1 + $0x4d8] sm:$0xff]
      %v367 = vld [vmem:[%s1 + $0x4e0] sm:$0xff]
      %v368 = vld [vmem:[%s1 + $0x4e8] sm:$0xff]
      %v369 = vld [vmem:[%s1 + $0x4f0] sm:$0xff]
      %v370 = vld [vmem:[%s1 + $0x4f8] sm:$0xff]
      %v371 = vld [vmem:[%s2] sm:$0x3]
      %v373 = vlaneseq
      %v374 = vshrl.u32 %v373, 7
      %v375 = vsub.s32 0, %v374
      %v376 = vrot.slane %v371, %v375
      %v377 = vlaneseq
      %v378 = vshrl.u32 %v377, 7
      %v379 = vsub.s32 1, %v378
      %v380 = vrot.slane %v371, %v379
      %v423 = vunpack.c.l.b16 %v171
      %v424 = vunpack.c.h.b16 %v171
      %v425 = vunpack.c.l.b16 %v172
      %v426 = vunpack.c.h.b16 %v172
      %v427 = vunpack.c.l.b16 %v173
      %v428 = vunpack.c.h.b16 %v173
      %v429 = vunpack.c.l.b16 %v174
      %v430 = vunpack.c.h.b16 %v174
      %v431 = vunpack.c.l.b16 %v175
      %v432 = vunpack.c.h.b16 %v175
      %v433 = vunpack.c.l.b16 %v176
      %v434 = vunpack.c.h.b16 %v176
      %v435 = vunpack.c.l.b16 %v177
      %v436 = vunpack.c.h.b16 %v177
      %v437 = vunpack.c.l.b16 %v178
      %v438 = vunpack.c.h.b16 %v178
      %v439 = vunpack.c.l.b16 %v179
      %v440 = vunpack.c.h.b16 %v179
      %v441 = vunpack.c.l.b16 %v180
      %v442 = vunpack.c.h.b16 %v180
      %v443 = vunpack.c.l.b16 %v181
      %v444 = vunpack.c.h.b16 %v181
      %v445 = vunpack.c.l.b16 %v182
      %v446 = vunpack.c.h.b16 %v182
      %v447 = vunpack.c.l.b16 %v183
      %v448 = vunpack.c.h.b16 %v183
      %v449 = vunpack.c.l.b16 %v184
      %v450 = vunpack.c.h.b16 %v184
      %v451 = vunpack.c.l.b16 %v185
      %v452 = vunpack.c.h.b16 %v185
      %v453 = vunpack.c.l.b16 %v186
      %v454 = vunpack.c.h.b16 %v186
      %v455 = vunpack.c.l.b16 %v187
      %v456 = vunpack.c.h.b16 %v187
      %v457 = vunpack.c.l.b16 %v188
      %v458 = vunpack.c.h.b16 %v188
      %v459 = vunpack.c.l.b16 %v189
      %v460 = vunpack.c.h.b16 %v189
      %v461 = vunpack.c.l.b16 %v190
      %v462 = vunpack.c.h.b16 %v190
      %v463 = vunpack.c.l.b16 %v191
      %v464 = vunpack.c.h.b16 %v191
      %v465 = vunpack.c.l.b16 %v192
      %v466 = vunpack.c.h.b16 %v192
      %v467 = vunpack.c.l.b16 %v193
      %v468 = vunpack.c.h.b16 %v193
      %v469 = vunpack.c.l.b16 %v194
      %v470 = vunpack.c.h.b16 %v194
      %v471 = vunpack.c.l.b16 %v195
      %v472 = vunpack.c.h.b16 %v195
      %v473 = vunpack.c.l.b16 %v196
      %v474 = vunpack.c.h.b16 %v196
      %v475 = vunpack.c.l.b16 %v197
      %v476 = vunpack.c.h.b16 %v197
      %v477 = vunpack.c.l.b16 %v198
      %v478 = vunpack.c.h.b16 %v198
      %v479 = vunpack.c.l.b16 %v199
      %v480 = vunpack.c.h.b16 %v199
      %v481 = vunpack.c.l.b16 %v200
      %v482 = vunpack.c.h.b16 %v200
      %v483 = vunpack.c.l.b16 %v201
      %v484 = vunpack.c.h.b16 %v201
      %v485 = vunpack.c.l.b16 %v202
      %v486 = vunpack.c.h.b16 %v202
      %v487 = vunpack.c.l.b16 %v203
      %v488 = vunpack.c.h.b16 %v203
      %v489 = vunpack.c.l.b16 %v204
      %v490 = vunpack.c.h.b16 %v204
      %v491 = vunpack.c.l.b16 %v205
      %v492 = vunpack.c.h.b16 %v205
      %v493 = vunpack.c.l.b16 %v206
      %v494 = vunpack.c.h.b16 %v206
      %v495 = vunpack.c.l.b16 %v207
      %v496 = vunpack.c.h.b16 %v207
      %v497 = vunpack.c.l.b16 %v208
      %v498 = vunpack.c.h.b16 %v208
      %v499 = vunpack.c.l.b16 %v209
      %v500 = vunpack.c.h.b16 %v209
      %v501 = vunpack.c.l.b16 %v210
      %v502 = vunpack.c.h.b16 %v210
      %v503 = vpack.c.b16 %v433, %v423
      %v504 = vpack.c.b16 %v434, %v424
      %v505 = vpack.c.b16 %v435, %v425
      %v506 = vpack.c.b16 %v436, %v426
      %v507 = vpack.c.b16 %v437, %v427
      %v508 = vpack.c.b16 %v438, %v428
      %v509 = vpack.c.b16 %v439, %v429
      %v510 = vpack.c.b16 %v440, %v430
      %v511 = vpack.c.b16 %v441, %v431
      %v512 = vpack.c.b16 %v442, %v432
      %v513 = vpack.c.b16 %v453, %v443
      %v514 = vpack.c.b16 %v454, %v444
      %v515 = vpack.c.b16 %v455, %v445
      %v516 = vpack.c.b16 %v456, %v446
      %v517 = vpack.c.b16 %v457, %v447
      %v518 = vpack.c.b16 %v458, %v448
      %v519 = vpack.c.b16 %v459, %v449
      %v520 = vpack.c.b16 %v460, %v450
      %v521 = vpack.c.b16 %v461, %v451
      %v522 = vpack.c.b16 %v462, %v452
      %v523 = vpack.c.b16 %v473, %v463
      %v524 = vpack.c.b16 %v474, %v464
      %v525 = vpack.c.b16 %v475, %v465
      %v526 = vpack.c.b16 %v476, %v466
      %v527 = vpack.c.b16 %v477, %v467
      %v528 = vpack.c.b16 %v478, %v468
      %v529 = vpack.c.b16 %v479, %v469
      %v530 = vpack.c.b16 %v480, %v470
      %v531 = vpack.c.b16 %v481, %v471
      %v532 = vpack.c.b16 %v482, %v472
      %v533 = vpack.c.b16 %v493, %v483
      %v534 = vpack.c.b16 %v494, %v484
      %v535 = vpack.c.b16 %v495, %v485
      %v536 = vpack.c.b16 %v496, %v486
      %v537 = vpack.c.b16 %v497, %v487
      %v538 = vpack.c.b16 %v498, %v488
      %v539 = vpack.c.b16 %v499, %v489
      %v540 = vpack.c.b16 %v500, %v490
      %v541 = vpack.c.b16 %v501, %v491
      %v542 = vpack.c.b16 %v502, %v492
      %v743 = vunpack.c.l.b16 %v211
      %v744 = vunpack.c.h.b16 %v211
      %v745 = vunpack.c.l.b16 %v212
      %v746 = vunpack.c.h.b16 %v212
      %v747 = vunpack.c.l.b16 %v213
      %v748 = vunpack.c.h.b16 %v213
      %v749 = vunpack.c.l.b16 %v214
      %v750 = vunpack.c.h.b16 %v214
      %v751 = vunpack.c.l.b16 %v215
      %v752 = vunpack.c.h.b16 %v215
      %v753 = vunpack.c.l.b16 %v216
      %v754 = vunpack.c.h.b16 %v216
      %v755 = vunpack.c.l.b16 %v217
      %v756 = vunpack.c.h.b16 %v217
      %v757 = vunpack.c.l.b16 %v218
      %v758 = vunpack.c.h.b16 %v218
      %v759 = vunpack.c.l.b16 %v219
      %v760 = vunpack.c.h.b16 %v219
      %v761 = vunpack.c.l.b16 %v220
      %v762 = vunpack.c.h.b16 %v220
      %v763 = vunpack.c.l.b16 %v221
      %v764 = vunpack.c.h.b16 %v221
      %v765 = vunpack.c.l.b16 %v222
      %v766 = vunpack.c.h.b16 %v222
      %v767 = vunpack.c.l.b16 %v223
      %v768 = vunpack.c.h.b16 %v223
      %v769 = vunpack.c.l.b16 %v224
      %v770 = vunpack.c.h.b16 %v224
      %v771 = vunpack.c.l.b16 %v225
      %v772 = vunpack.c.h.b16 %v225
      %v773 = vunpack.c.l.b16 %v226
      %v774 = vunpack.c.h.b16 %v226
      %v775 = vunpack.c.l.b16 %v227
      %v776 = vunpack.c.h.b16 %v227
      %v777 = vunpack.c.l.b16 %v228
      %v778 = vunpack.c.h.b16 %v228
      %v779 = vunpack.c.l.b16 %v229
      %v780 = vunpack.c.h.b16 %v229
      %v781 = vunpack.c.l.b16 %v230
      %v782 = vunpack.c.h.b16 %v230
      %v783 = vunpack.c.l.b16 %v231
      %v784 = vunpack.c.h.b16 %v231
      %v785 = vunpack.c.l.b16 %v232
      %v786 = vunpack.c.h.b16 %v232
      %v787 = vunpack.c.l.b16 %v233
      %v788 = vunpack.c.h.b16 %v233
      %v789 = vunpack.c.l.b16 %v234
      %v790 = vunpack.c.h.b16 %v234
      %v791 = vunpack.c.l.b16 %v235
      %v792 = vunpack.c.h.b16 %v235
      %v793 = vunpack.c.l.b16 %v236
      %v794 = vunpack.c.h.b16 %v236
      %v795 = vunpack.c.l.b16 %v237
      %v796 = vunpack.c.h.b16 %v237
      %v797 = vunpack.c.l.b16 %v238
      %v798 = vunpack.c.h.b16 %v238
      %v799 = vunpack.c.l.b16 %v239
      %v800 = vunpack.c.h.b16 %v239
      %v801 = vunpack.c.l.b16 %v240
      %v802 = vunpack.c.h.b16 %v240
      %v803 = vunpack.c.l.b16 %v241
      %v804 = vunpack.c.h.b16 %v241
      %v805 = vunpack.c.l.b16 %v242
      %v806 = vunpack.c.h.b16 %v242
      %v807 = vunpack.c.l.b16 %v243
      %v808 = vunpack.c.h.b16 %v243
      %v809 = vunpack.c.l.b16 %v244
      %v810 = vunpack.c.h.b16 %v244
      %v811 = vunpack.c.l.b16 %v245
      %v812 = vunpack.c.h.b16 %v245
      %v813 = vunpack.c.l.b16 %v246
      %v814 = vunpack.c.h.b16 %v246
      %v815 = vunpack.c.l.b16 %v247
      %v816 = vunpack.c.h.b16 %v247
      %v817 = vunpack.c.l.b16 %v248
      %v818 = vunpack.c.h.b16 %v248
      %v819 = vunpack.c.l.b16 %v249
      %v820 = vunpack.c.h.b16 %v249
      %v821 = vunpack.c.l.b16 %v250
      %v822 = vunpack.c.h.b16 %v250
      %v823 = vunpack.c.l.b16 %v251
      %v824 = vunpack.c.h.b16 %v251
      %v825 = vunpack.c.l.b16 %v252
      %v826 = vunpack.c.h.b16 %v252
      %v827 = vunpack.c.l.b16 %v253
      %v828 = vunpack.c.h.b16 %v253
      %v829 = vunpack.c.l.b16 %v254
      %v830 = vunpack.c.h.b16 %v254
      %v831 = vunpack.c.l.b16 %v255
      %v832 = vunpack.c.h.b16 %v255
      %v833 = vunpack.c.l.b16 %v256
      %v834 = vunpack.c.h.b16 %v256
      %v835 = vunpack.c.l.b16 %v257
      %v836 = vunpack.c.h.b16 %v257
      %v837 = vunpack.c.l.b16 %v258
      %v838 = vunpack.c.h.b16 %v258
      %v839 = vunpack.c.l.b16 %v259
      %v840 = vunpack.c.h.b16 %v259
      %v841 = vunpack.c.l.b16 %v260
      %v842 = vunpack.c.h.b16 %v260
      %v843 = vunpack.c.l.b16 %v261
      %v844 = vunpack.c.h.b16 %v261
      %v845 = vunpack.c.l.b16 %v262
      %v846 = vunpack.c.h.b16 %v262
      %v847 = vunpack.c.l.b16 %v263
      %v848 = vunpack.c.h.b16 %v263
      %v849 = vunpack.c.l.b16 %v264
      %v850 = vunpack.c.h.b16 %v264
      %v851 = vunpack.c.l.b16 %v265
      %v852 = vunpack.c.h.b16 %v265
      %v853 = vunpack.c.l.b16 %v266
      %v854 = vunpack.c.h.b16 %v266
      %v855 = vunpack.c.l.b16 %v267
      %v856 = vunpack.c.h.b16 %v267
      %v857 = vunpack.c.l.b16 %v268
      %v858 = vunpack.c.h.b16 %v268
      %v859 = vunpack.c.l.b16 %v269
      %v860 = vunpack.c.h.b16 %v269
      %v861 = vunpack.c.l.b16 %v270
      %v862 = vunpack.c.h.b16 %v270
      %v863 = vunpack.c.l.b16 %v271
      %v864 = vunpack.c.h.b16 %v271
      %v865 = vunpack.c.l.b16 %v272
      %v866 = vunpack.c.h.b16 %v272
      %v867 = vunpack.c.l.b16 %v273
      %v868 = vunpack.c.h.b16 %v273
      %v869 = vunpack.c.l.b16 %v274
      %v870 = vunpack.c.h.b16 %v274
      %v871 = vunpack.c.l.b16 %v275
      %v872 = vunpack.c.h.b16 %v275
      %v873 = vunpack.c.l.b16 %v276
      %v874 = vunpack.c.h.b16 %v276
      %v875 = vunpack.c.l.b16 %v277
      %v876 = vunpack.c.h.b16 %v277
      %v877 = vunpack.c.l.b16 %v278
      %v878 = vunpack.c.h.b16 %v278
      %v879 = vunpack.c.l.b16 %v279
      %v880 = vunpack.c.h.b16 %v279
      %v881 = vunpack.c.l.b16 %v280
      %v882 = vunpack.c.h.b16 %v280
      %v883 = vunpack.c.l.b16 %v281
      %v884 = vunpack.c.h.b16 %v281
      %v885 = vunpack.c.l.b16 %v282
      %v886 = vunpack.c.h.b16 %v282
      %v887 = vunpack.c.l.b16 %v283
      %v888 = vunpack.c.h.b16 %v283
      %v889 = vunpack.c.l.b16 %v284
      %v890 = vunpack.c.h.b16 %v284
      %v891 = vunpack.c.l.b16 %v285
      %v892 = vunpack.c.h.b16 %v285
      %v893 = vunpack.c.l.b16 %v286
      %v894 = vunpack.c.h.b16 %v286
      %v895 = vunpack.c.l.b16 %v287
      %v896 = vunpack.c.h.b16 %v287
      %v897 = vunpack.c.l.b16 %v288
      %v898 = vunpack.c.h.b16 %v288
      %v899 = vunpack.c.l.b16 %v289
      %v900 = vunpack.c.h.b16 %v289
      %v901 = vunpack.c.l.b16 %v290
      %v902 = vunpack.c.h.b16 %v290
      %v903 = vunpack.c.l.b16 %v291
      %v904 = vunpack.c.h.b16 %v291
      %v905 = vunpack.c.l.b16 %v292
      %v906 = vunpack.c.h.b16 %v292
      %v907 = vunpack.c.l.b16 %v293
      %v908 = vunpack.c.h.b16 %v293
      %v909 = vunpack.c.l.b16 %v294
      %v910 = vunpack.c.h.b16 %v294
      %v911 = vunpack.c.l.b16 %v295
      %v912 = vunpack.c.h.b16 %v295
      %v913 = vunpack.c.l.b16 %v296
      %v914 = vunpack.c.h.b16 %v296
      %v915 = vunpack.c.l.b16 %v297
      %v916 = vunpack.c.h.b16 %v297
      %v917 = vunpack.c.l.b16 %v298
      %v918 = vunpack.c.h.b16 %v298
      %v919 = vunpack.c.l.b16 %v299
      %v920 = vunpack.c.h.b16 %v299
      %v921 = vunpack.c.l.b16 %v300
      %v922 = vunpack.c.h.b16 %v300
      %v923 = vunpack.c.l.b16 %v301
      %v924 = vunpack.c.h.b16 %v301
      %v925 = vunpack.c.l.b16 %v302
      %v926 = vunpack.c.h.b16 %v302
      %v927 = vunpack.c.l.b16 %v303
      %v928 = vunpack.c.h.b16 %v303
      %v929 = vunpack.c.l.b16 %v304
      %v930 = vunpack.c.h.b16 %v304
      %v931 = vunpack.c.l.b16 %v305
      %v932 = vunpack.c.h.b16 %v305
      %v933 = vunpack.c.l.b16 %v306
      %v934 = vunpack.c.h.b16 %v306
      %v935 = vunpack.c.l.b16 %v307
      %v936 = vunpack.c.h.b16 %v307
      %v937 = vunpack.c.l.b16 %v308
      %v938 = vunpack.c.h.b16 %v308
      %v939 = vunpack.c.l.b16 %v309
      %v940 = vunpack.c.h.b16 %v309
      %v941 = vunpack.c.l.b16 %v310
      %v942 = vunpack.c.h.b16 %v310
      %v943 = vunpack.c.l.b16 %v311
      %v944 = vunpack.c.h.b16 %v311
      %v945 = vunpack.c.l.b16 %v312
      %v946 = vunpack.c.h.b16 %v312
      %v947 = vunpack.c.l.b16 %v313
      %v948 = vunpack.c.h.b16 %v313
      %v949 = vunpack.c.l.b16 %v314
      %v950 = vunpack.c.h.b16 %v314
      %v951 = vunpack.c.l.b16 %v315
      %v952 = vunpack.c.h.b16 %v315
      %v953 = vunpack.c.l.b16 %v316
      %v954 = vunpack.c.h.b16 %v316
      %v955 = vunpack.c.l.b16 %v317
      %v956 = vunpack.c.h.b16 %v317
      %v957 = vunpack.c.l.b16 %v318
      %v958 = vunpack.c.h.b16 %v318
      %v959 = vunpack.c.l.b16 %v319
      %v960 = vunpack.c.h.b16 %v319
      %v961 = vunpack.c.l.b16 %v320
      %v962 = vunpack.c.h.b16 %v320
      %v963 = vunpack.c.l.b16 %v321
      %v964 = vunpack.c.h.b16 %v321
      %v965 = vunpack.c.l.b16 %v322
      %v966 = vunpack.c.h.b16 %v322
      %v967 = vunpack.c.l.b16 %v323
      %v968 = vunpack.c.h.b16 %v323
      %v969 = vunpack.c.l.b16 %v324
      %v970 = vunpack.c.h.b16 %v324
      %v971 = vunpack.c.l.b16 %v325
      %v972 = vunpack.c.h.b16 %v325
      %v973 = vunpack.c.l.b16 %v326
      %v974 = vunpack.c.h.b16 %v326
      %v975 = vunpack.c.l.b16 %v327
      %v976 = vunpack.c.h.b16 %v327
      %v977 = vunpack.c.l.b16 %v328
      %v978 = vunpack.c.h.b16 %v328
      %v979 = vunpack.c.l.b16 %v329
      %v980 = vunpack.c.h.b16 %v329
      %v981 = vunpack.c.l.b16 %v330
      %v982 = vunpack.c.h.b16 %v330
      %v983 = vunpack.c.l.b16 %v331
      %v984 = vunpack.c.h.b16 %v331
      %v985 = vunpack.c.l.b16 %v332
      %v986 = vunpack.c.h.b16 %v332
      %v987 = vunpack.c.l.b16 %v333
      %v988 = vunpack.c.h.b16 %v333
      %v989 = vunpack.c.l.b16 %v334
      %v990 = vunpack.c.h.b16 %v334
      %v991 = vunpack.c.l.b16 %v335
      %v992 = vunpack.c.h.b16 %v335
      %v993 = vunpack.c.l.b16 %v336
      %v994 = vunpack.c.h.b16 %v336
      %v995 = vunpack.c.l.b16 %v337
      %v996 = vunpack.c.h.b16 %v337
      %v997 = vunpack.c.l.b16 %v338
      %v998 = vunpack.c.h.b16 %v338
      %v999 = vunpack.c.l.b16 %v339
      %v1000 = vunpack.c.h.b16 %v339
      %v1001 = vunpack.c.l.b16 %v340
      %v1002 = vunpack.c.h.b16 %v340
      %v1003 = vunpack.c.l.b16 %v341
      %v1004 = vunpack.c.h.b16 %v341
      %v1005 = vunpack.c.l.b16 %v342
      %v1006 = vunpack.c.h.b16 %v342
      %v1007 = vunpack.c.l.b16 %v343
      %v1008 = vunpack.c.h.b16 %v343
      %v1009 = vunpack.c.l.b16 %v344
      %v1010 = vunpack.c.h.b16 %v344
      %v1011 = vunpack.c.l.b16 %v345
      %v1012 = vunpack.c.h.b16 %v345
      %v1013 = vunpack.c.l.b16 %v346
      %v1014 = vunpack.c.h.b16 %v346
      %v1015 = vunpack.c.l.b16 %v347
      %v1016 = vunpack.c.h.b16 %v347
      %v1017 = vunpack.c.l.b16 %v348
      %v1018 = vunpack.c.h.b16 %v348
      %v1019 = vunpack.c.l.b16 %v349
      %v1020 = vunpack.c.h.b16 %v349
      %v1021 = vunpack.c.l.b16 %v350
      %v1022 = vunpack.c.h.b16 %v350
      %v1023 = vunpack.c.l.b16 %v351
      %v1024 = vunpack.c.h.b16 %v351
      %v1025 = vunpack.c.l.b16 %v352
      %v1026 = vunpack.c.h.b16 %v352
      %v1027 = vunpack.c.l.b16 %v353
      %v1028 = vunpack.c.h.b16 %v353
      %v1029 = vunpack.c.l.b16 %v354
      %v1030 = vunpack.c.h.b16 %v354
      %v1031 = vunpack.c.l.b16 %v355
      %v1032 = vunpack.c.h.b16 %v355
      %v1033 = vunpack.c.l.b16 %v356
      %v1034 = vunpack.c.h.b16 %v356
      %v1035 = vunpack.c.l.b16 %v357
      %v1036 = vunpack.c.h.b16 %v357
      %v1037 = vunpack.c.l.b16 %v358
      %v1038 = vunpack.c.h.b16 %v358
      %v1039 = vunpack.c.l.b16 %v359
      %v1040 = vunpack.c.h.b16 %v359
      %v1041 = vunpack.c.l.b16 %v360
      %v1042 = vunpack.c.h.b16 %v360
      %v1043 = vunpack.c.l.b16 %v361
      %v1044 = vunpack.c.h.b16 %v361
      %v1045 = vunpack.c.l.b16 %v362
      %v1046 = vunpack.c.h.b16 %v362
      %v1047 = vunpack.c.l.b16 %v363
      %v1048 = vunpack.c.h.b16 %v363
      %v1049 = vunpack.c.l.b16 %v364
      %v1050 = vunpack.c.h.b16 %v364
      %v1051 = vunpack.c.l.b16 %v365
      %v1052 = vunpack.c.h.b16 %v365
      %v1053 = vunpack.c.l.b16 %v366
      %v1054 = vunpack.c.h.b16 %v366
      %v1055 = vunpack.c.l.b16 %v367
      %v1056 = vunpack.c.h.b16 %v367
      %v1057 = vunpack.c.l.b16 %v368
      %v1058 = vunpack.c.h.b16 %v368
      %v1059 = vunpack.c.l.b16 %v369
      %v1060 = vunpack.c.h.b16 %v369
      %v1061 = vunpack.c.l.b16 %v370
      %v1062 = vunpack.c.h.b16 %v370
      %v1063 = vpack.c.b16 %v745, %v743
      %v1064 = vpack.c.b16 %v746, %v744
      %v1065 = vpack.c.b16 %v749, %v747
      %v1066 = vpack.c.b16 %v750, %v748
      %v1067 = vpack.c.b16 %v753, %v751
      %v1068 = vpack.c.b16 %v754, %v752
      %v1069 = vpack.c.b16 %v757, %v755
      %v1070 = vpack.c.b16 %v758, %v756
      %v1071 = vpack.c.b16 %v761, %v759
      %v1072 = vpack.c.b16 %v762, %v760
      %v1073 = vpack.c.b16 %v765, %v763
      %v1074 = vpack.c.b16 %v766, %v764
      %v1075 = vpack.c.b16 %v769, %v767
      %v1076 = vpack.c.b16 %v770, %v768
      %v1077 = vpack.c.b16 %v773, %v771
      %v1078 = vpack.c.b16 %v774, %v772
      %v1079 = vpack.c.b16 %v777, %v775
      %v1080 = vpack.c.b16 %v778, %v776
      %v1081 = vpack.c.b16 %v781, %v779
      %v1082 = vpack.c.b16 %v782, %v780
      %v1083 = vpack.c.b16 %v785, %v783
      %v1084 = vpack.c.b16 %v786, %v784
      %v1085 = vpack.c.b16 %v789, %v787
      %v1086 = vpack.c.b16 %v790, %v788
      %v1087 = vpack.c.b16 %v793, %v791
      %v1088 = vpack.c.b16 %v794, %v792
      %v1089 = vpack.c.b16 %v797, %v795
      %v1090 = vpack.c.b16 %v798, %v796
      %v1091 = vpack.c.b16 %v801, %v799
      %v1092 = vpack.c.b16 %v802, %v800
      %v1093 = vpack.c.b16 %v805, %v803
      %v1094 = vpack.c.b16 %v806, %v804
      %v1095 = vpack.c.b16 %v809, %v807
      %v1096 = vpack.c.b16 %v810, %v808
      %v1097 = vpack.c.b16 %v813, %v811
      %v1098 = vpack.c.b16 %v814, %v812
      %v1099 = vpack.c.b16 %v817, %v815
      %v1100 = vpack.c.b16 %v818, %v816
      %v1101 = vpack.c.b16 %v821, %v819
      %v1102 = vpack.c.b16 %v822, %v820
      %v1103 = vpack.c.b16 %v825, %v823
      %v1104 = vpack.c.b16 %v826, %v824
      %v1105 = vpack.c.b16 %v829, %v827
      %v1106 = vpack.c.b16 %v830, %v828
      %v1107 = vpack.c.b16 %v833, %v831
      %v1108 = vpack.c.b16 %v834, %v832
      %v1109 = vpack.c.b16 %v837, %v835
      %v1110 = vpack.c.b16 %v838, %v836
      %v1111 = vpack.c.b16 %v841, %v839
      %v1112 = vpack.c.b16 %v842, %v840
      %v1113 = vpack.c.b16 %v845, %v843
      %v1114 = vpack.c.b16 %v846, %v844
      %v1115 = vpack.c.b16 %v849, %v847
      %v1116 = vpack.c.b16 %v850, %v848
      %v1117 = vpack.c.b16 %v853, %v851
      %v1118 = vpack.c.b16 %v854, %v852
      %v1119 = vpack.c.b16 %v857, %v855
      %v1120 = vpack.c.b16 %v858, %v856
      %v1121 = vpack.c.b16 %v861, %v859
      %v1122 = vpack.c.b16 %v862, %v860
      %v1123 = vpack.c.b16 %v865, %v863
      %v1124 = vpack.c.b16 %v866, %v864
      %v1125 = vpack.c.b16 %v869, %v867
      %v1126 = vpack.c.b16 %v870, %v868
      %v1127 = vpack.c.b16 %v873, %v871
      %v1128 = vpack.c.b16 %v874, %v872
      %v1129 = vpack.c.b16 %v877, %v875
      %v1130 = vpack.c.b16 %v878, %v876
      %v1131 = vpack.c.b16 %v881, %v879
      %v1132 = vpack.c.b16 %v882, %v880
      %v1133 = vpack.c.b16 %v885, %v883
      %v1134 = vpack.c.b16 %v886, %v884
      %v1135 = vpack.c.b16 %v889, %v887
      %v1136 = vpack.c.b16 %v890, %v888
      %v1137 = vpack.c.b16 %v893, %v891
      %v1138 = vpack.c.b16 %v894, %v892
      %v1139 = vpack.c.b16 %v897, %v895
      %v1140 = vpack.c.b16 %v898, %v896
      %v1141 = vpack.c.b16 %v901, %v899
      %v1142 = vpack.c.b16 %v902, %v900
      %v1143 = vpack.c.b16 %v905, %v903
      %v1144 = vpack.c.b16 %v906, %v904
      %v1145 = vpack.c.b16 %v909, %v907
      %v1146 = vpack.c.b16 %v910, %v908
      %v1147 = vpack.c.b16 %v913, %v911
      %v1148 = vpack.c.b16 %v914, %v912
      %v1149 = vpack.c.b16 %v917, %v915
      %v1150 = vpack.c.b16 %v918, %v916
      %v1151 = vpack.c.b16 %v921, %v919
      %v1152 = vpack.c.b16 %v922, %v920
      %v1153 = vpack.c.b16 %v925, %v923
      %v1154 = vpack.c.b16 %v926, %v924
      %v1155 = vpack.c.b16 %v929, %v927
      %v1156 = vpack.c.b16 %v930, %v928
      %v1157 = vpack.c.b16 %v933, %v931
      %v1158 = vpack.c.b16 %v934, %v932
      %v1159 = vpack.c.b16 %v937, %v935
      %v1160 = vpack.c.b16 %v938, %v936
      %v1161 = vpack.c.b16 %v941, %v939
      %v1162 = vpack.c.b16 %v942, %v940
      %v1163 = vpack.c.b16 %v945, %v943
      %v1164 = vpack.c.b16 %v946, %v944
      %v1165 = vpack.c.b16 %v949, %v947
      %v1166 = vpack.c.b16 %v950, %v948
      %v1167 = vpack.c.b16 %v953, %v951
      %v1168 = vpack.c.b16 %v954, %v952
      %v1169 = vpack.c.b16 %v957, %v955
      %v1170 = vpack.c.b16 %v958, %v956
      %v1171 = vpack.c.b16 %v961, %v959
      %v1172 = vpack.c.b16 %v962, %v960
      %v1173 = vpack.c.b16 %v965, %v963
      %v1174 = vpack.c.b16 %v966, %v964
      %v1175 = vpack.c.b16 %v969, %v967
      %v1176 = vpack.c.b16 %v970, %v968
      %v1177 = vpack.c.b16 %v973, %v971
      %v1178 = vpack.c.b16 %v974, %v972
      %v1179 = vpack.c.b16 %v977, %v975
      %v1180 = vpack.c.b16 %v978, %v976
      %v1181 = vpack.c.b16 %v981, %v979
      %v1182 = vpack.c.b16 %v982, %v980
      %v1183 = vpack.c.b16 %v985, %v983
      %v1184 = vpack.c.b16 %v986, %v984
      %v1185 = vpack.c.b16 %v989, %v987
      %v1186 = vpack.c.b16 %v990, %v988
      %v1187 = vpack.c.b16 %v993, %v991
      %v1188 = vpack.c.b16 %v994, %v992
      %v1189 = vpack.c.b16 %v997, %v995
      %v1190 = vpack.c.b16 %v998, %v996
      %v1191 = vpack.c.b16 %v1001, %v999
      %v1192 = vpack.c.b16 %v1002, %v1000
      %v1193 = vpack.c.b16 %v1005, %v1003
      %v1194 = vpack.c.b16 %v1006, %v1004
      %v1195 = vpack.c.b16 %v1009, %v1007
      %v1196 = vpack.c.b16 %v1010, %v1008
      %v1197 = vpack.c.b16 %v1013, %v1011
      %v1198 = vpack.c.b16 %v1014, %v1012
      %v1199 = vpack.c.b16 %v1017, %v1015
      %v1200 = vpack.c.b16 %v1018, %v1016
      %v1201 = vpack.c.b16 %v1021, %v1019
      %v1202 = vpack.c.b16 %v1022, %v1020
      %v1203 = vpack.c.b16 %v1025, %v1023
      %v1204 = vpack.c.b16 %v1026, %v1024
      %v1205 = vpack.c.b16 %v1029, %v1027
      %v1206 = vpack.c.b16 %v1030, %v1028
      %v1207 = vpack.c.b16 %v1033, %v1031
      %v1208 = vpack.c.b16 %v1034, %v1032
      %v1209 = vpack.c.b16 %v1037, %v1035
      %v1210 = vpack.c.b16 %v1038, %v1036
      %v1211 = vpack.c.b16 %v1041, %v1039
      %v1212 = vpack.c.b16 %v1042, %v1040
      %v1213 = vpack.c.b16 %v1045, %v1043
      %v1214 = vpack.c.b16 %v1046, %v1044
      %v1215 = vpack.c.b16 %v1049, %v1047
      %v1216 = vpack.c.b16 %v1050, %v1048
      %v1217 = vpack.c.b16 %v1053, %v1051
      %v1218 = vpack.c.b16 %v1054, %v1052
      %v1219 = vpack.c.b16 %v1057, %v1055
      %v1220 = vpack.c.b16 %v1058, %v1056
      %v1221 = vpack.c.b16 %v1061, %v1059
      %v1222 = vpack.c.b16 %v1062, %v1060
      %1383 = vmatprep.subr.bf16.mxu0 %v1078
      %1384 = vmatpush1.bf16.msra.mxu0 %v1077
      %1385 = vmatprep.subr.bf16.mxu0 %v1076
      %1386 = vmatpush1.bf16.msra.mxu0 %v1075
      %1387 = vmatprep.subr.bf16.mxu0 %v1074
      %1388 = vmatpush1.bf16.msra.mxu0 %v1073
      %1389 = vmatprep.subr.bf16.mxu0 %v1072
      %1390 = vmatpush1.bf16.msra.mxu0 %v1071
      %1391 = vmatprep.subr.bf16.mxu0 %v1070
      %1392 = vmatpush1.bf16.msra.mxu0 %v1069
      %1393 = vmatprep.subr.bf16.mxu0 %v1068
      %1394 = vmatpush1.bf16.msra.mxu0 %v1067
      %1395 = vmatprep.subr.bf16.mxu0 %v1066
      %1396 = vmatpush1.bf16.msra.mxu0 %v1065
      %1397 = vmatprep.subr.bf16.mxu0 %v1064
      %1398 = vmatpush1.bf16.msra.mxu0 %v1063
      %1399 = vmatprep.subr.bf16.mxu0 %v1094
      %1400 = vmatpush2.bf16.msra.mxu0 %v1093
      %1401 = vmatprep.subr.bf16.mxu0 %v1092
      %1402 = vmatpush2.bf16.msra.mxu0 %v1091
      %1403 = vmatprep.subr.bf16.mxu0 %v1090
      %1404 = vmatpush2.bf16.msra.mxu0 %v1089
      %1405 = vmatprep.subr.bf16.mxu0 %v1088
      %1406 = vmatpush2.bf16.msra.mxu0 %v1087
      %1407 = vmatprep.subr.bf16.mxu0 %v1086
      %1408 = vmatpush2.bf16.msra.mxu0 %v1085
      %1409 = vmatprep.subr.bf16.mxu0 %v1084
      %1410 = vmatpush2.bf16.msra.mxu0 %v1083
      %1411 = vmatprep.subr.bf16.mxu0 %v1082
      %1412 = vmatpush2.bf16.msra.mxu0 %v1081
      %1413 = vmatprep.subr.bf16.mxu0 %v1080
      %1414 = vmatpush2.bf16.msra.mxu0 %v1079
      %1415 = vmatprep.mubr.bf16.mxu0 %v504
      %1416 = vmatmul.mubr.bf16.gmra.mxu0 %v503
      %v1417 = vpop.f32.mrf.mxu0
      %v1418 = vadd.f32 %v376, %v1417
      %v1419 = vpop.f32.mrf.mxu0
      %v1420 = vadd.f32 %v380, %v1419
      %v1421 = vpop.f32.mrf.mxu0
      %v1422 = vadd.f32 %v376, %v1421
      %v1423 = vpop.f32.mrf.mxu0
      %v1424 = vadd.f32 %v380, %v1423
      %1425 = vmatprep.mubr.bf16.mxu0 %v514
      %1426 = vmatmul.mubr.bf16.gmra.mxu0 %v513
      %v1427 = vpop.f32.mrf.mxu0
      %v1428 = vadd.f32 %v376, %v1427
      %v1429 = vpop.f32.mrf.mxu0
      %v1430 = vadd.f32 %v380, %v1429
      %v1431 = vpop.f32.mrf.mxu0
      %v1432 = vadd.f32 %v376, %v1431
      %v1433 = vpop.f32.mrf.mxu0
      %v1434 = vadd.f32 %v380, %v1433
      %1435 = vmatprep.mubr.bf16.mxu0 %v524
      %1436 = vmatmul.mubr.bf16.gmra.mxu0 %v523
      %v1437 = vpop.f32.mrf.mxu0
      %v1438 = vadd.f32 %v376, %v1437
      %v1439 = vpop.f32.mrf.mxu0
      %v1440 = vadd.f32 %v380, %v1439
      %v1441 = vpop.f32.mrf.mxu0
      %v1442 = vadd.f32 %v376, %v1441
      %v1443 = vpop.f32.mrf.mxu0
      %v1444 = vadd.f32 %v380, %v1443
      %1445 = vmatprep.mubr.bf16.mxu0 %v534
      %1446 = vmatmul.mubr.bf16.gmra.mxu0 %v533
      %v1447 = vpop.f32.mrf.mxu0
      %v1448 = vadd.f32 %v376, %v1447
      %v1449 = vpop.f32.mrf.mxu0
      %v1450 = vadd.f32 %v380, %v1449
      %v1451 = vpop.f32.mrf.mxu0
      %v1452 = vadd.f32 %v376, %v1451
      %v1453 = vpop.f32.mrf.mxu0
      %v1454 = vadd.f32 %v380, %v1453
      %1455 = vdwg.mxu0
      %1456 = vmatprep.subr.bf16.mxu0 %v1110
      %1457 = vmatpush1.bf16.msra.mxu0 %v1109
      %1458 = vmatprep.subr.bf16.mxu0 %v1108
      %1459 = vmatpush1.bf16.msra.mxu0 %v1107
      %1460 = vmatprep.subr.bf16.mxu0 %v1106
      %1461 = vmatpush1.bf16.msra.mxu0 %v1105
      %1462 = vmatprep.subr.bf16.mxu0 %v1104
      %1463 = vmatpush1.bf16.msra.mxu0 %v1103
      %1464 = vmatprep.subr.bf16.mxu0 %v1102
      %1465 = vmatpush1.bf16.msra.mxu0 %v1101
      %1466 = vmatprep.subr.bf16.mxu0 %v1100
      %1467 = vmatpush1.bf16.msra.mxu0 %v1099
      %1468 = vmatprep.subr.bf16.mxu0 %v1098
      %1469 = vmatpush1.bf16.msra.mxu0 %v1097
      %1470 = vmatprep.subr.bf16.mxu0 %v1096
      %1471 = vmatpush1.bf16.msra.mxu0 %v1095
      %1472 = vmatprep.subr.bf16.mxu0 %v1126
      %1473 = vmatpush2.bf16.msra.mxu0 %v1125
      %1474 = vmatprep.subr.bf16.mxu0 %v1124
      %1475 = vmatpush2.bf16.msra.mxu0 %v1123
      %1476 = vmatprep.subr.bf16.mxu0 %v1122
      %1477 = vmatpush2.bf16.msra.mxu0 %v1121
      %1478 = vmatprep.subr.bf16.mxu0 %v1120
      %1479 = vmatpush2.bf16.msra.mxu0 %v1119
      %1480 = vmatprep.subr.bf16.mxu0 %v1118
      %1481 = vmatpush2.bf16.msra.mxu0 %v1117
      %1482 = vmatprep.subr.bf16.mxu0 %v1116
      %1483 = vmatpush2.bf16.msra.mxu0 %v1115
      %1484 = vmatprep.subr.bf16.mxu0 %v1114
      %1485 = vmatpush2.bf16.msra.mxu0 %v1113
      %1486 = vmatprep.subr.bf16.mxu0 %v1112
      %1487 = vmatpush2.bf16.msra.mxu0 %v1111
      %1488 = vmatprep.mubr.bf16.mxu0 %v506
      %1489 = vmatmul.mubr.bf16.gmra.mxu0 %v505
      %v1490 = vpop.f32.mrf.mxu0
      %v1491 = vadd.f32 %v1418, %v1490
      %v1492 = vpop.f32.mrf.mxu0
      %v1493 = vadd.f32 %v1420, %v1492
      %v1494 = vpop.f32.mrf.mxu0
      %v1495 = vadd.f32 %v1422, %v1494
      %v1496 = vpop.f32.mrf.mxu0
      %v1497 = vadd.f32 %v1424, %v1496
      %1498 = vmatprep.mubr.bf16.mxu0 %v516
      %1499 = vmatmul.mubr.bf16.gmra.mxu0 %v515
      %v1500 = vpop.f32.mrf.mxu0
      %v1501 = vadd.f32 %v1428, %v1500
      %v1502 = vpop.f32.mrf.mxu0
      %v1503 = vadd.f32 %v1430, %v1502
      %v1504 = vpop.f32.mrf.mxu0
      %v1505 = vadd.f32 %v1432, %v1504
      %v1506 = vpop.f32.mrf.mxu0
      %v1507 = vadd.f32 %v1434, %v1506
      %1508 = vmatprep.mubr.bf16.mxu0 %v526
      %1509 = vmatmul.mubr.bf16.gmra.mxu0 %v525
      %v1510 = vpop.f32.mrf.mxu0
      %v1511 = vadd.f32 %v1438, %v1510
      %v1512 = vpop.f32.mrf.mxu0
      %v1513 = vadd.f32 %v1440, %v1512
      %v1514 = vpop.f32.mrf.mxu0
      %v1515 = vadd.f32 %v1442, %v1514
      %v1516 = vpop.f32.mrf.mxu0
      %v1517 = vadd.f32 %v1444, %v1516
      %1518 = vmatprep.mubr.bf16.mxu0 %v536
      %1519 = vmatmul.mubr.bf16.gmra.mxu0 %v535
      %v1520 = vpop.f32.mrf.mxu0
      %v1521 = vadd.f32 %v1448, %v1520
      %v1522 = vpop.f32.mrf.mxu0
      %v1523 = vadd.f32 %v1450, %v1522
      %v1524 = vpop.f32.mrf.mxu0
      %v1525 = vadd.f32 %v1452, %v1524
      %v1526 = vpop.f32.mrf.mxu0
      %v1527 = vadd.f32 %v1454, %v1526
      %1528 = vdwg.mxu0
      %1529 = vmatprep.subr.bf16.mxu0 %v1142
      %1530 = vmatpush1.bf16.msra.mxu0 %v1141
      %1531 = vmatprep.subr.bf16.mxu0 %v1140
      %1532 = vmatpush1.bf16.msra.mxu0 %v1139
      %1533 = vmatprep.subr.bf16.mxu0 %v1138
      %1534 = vmatpush1.bf16.msra.mxu0 %v1137
      %1535 = vmatprep.subr.bf16.mxu0 %v1136
      %1536 = vmatpush1.bf16.msra.mxu0 %v1135
      %1537 = vmatprep.subr.bf16.mxu0 %v1134
      %1538 = vmatpush1.bf16.msra.mxu0 %v1133
      %1539 = vmatprep.subr.bf16.mxu0 %v1132
      %1540 = vmatpush1.bf16.msra.mxu0 %v1131
      %1541 = vmatprep.subr.bf16.mxu0 %v1130
      %1542 = vmatpush1.bf16.msra.mxu0 %v1129
      %1543 = vmatprep.subr.bf16.mxu0 %v1128
      %1544 = vmatpush1.bf16.msra.mxu0 %v1127
      %1545 = vmatprep.subr.bf16.mxu0 %v1158
      %1546 = vmatpush2.bf16.msra.mxu0 %v1157
      %1547 = vmatprep.subr.bf16.mxu0 %v1156
      %1548 = vmatpush2.bf16.msra.mxu0 %v1155
      %1549 = vmatprep.subr.bf16.mxu0 %v1154
      %1550 = vmatpush2.bf16.msra.mxu0 %v1153
      %1551 = vmatprep.subr.bf16.mxu0 %v1152
      %1552 = vmatpush2.bf16.msra.mxu0 %v1151
      %1553 = vmatprep.subr.bf16.mxu0 %v1150
      %1554 = vmatpush2.bf16.msra.mxu0 %v1149
      %1555 = vmatprep.subr.bf16.mxu0 %v1148
      %1556 = vmatpush2.bf16.msra.mxu0 %v1147
      %1557 = vmatprep.subr.bf16.mxu0 %v1146
      %1558 = vmatpush2.bf16.msra.mxu0 %v1145
      %1559 = vmatprep.subr.bf16.mxu0 %v1144
      %1560 = vmatpush2.bf16.msra.mxu0 %v1143
      %1561 = vmatprep.mubr.bf16.mxu0 %v508
      %1562 = vmatmul.mubr.bf16.gmra.mxu0 %v507
      %v1563 = vpop.f32.mrf.mxu0
      %v1564 = vadd.f32 %v1491, %v1563
      %v1565 = vpop.f32.mrf.mxu0
      %v1566 = vadd.f32 %v1493, %v1565
      %v1567 = vpop.f32.mrf.mxu0
      %v1568 = vadd.f32 %v1495, %v1567
      %v1569 = vpop.f32.mrf.mxu0
      %v1570 = vadd.f32 %v1497, %v1569
      %1571 = vmatprep.mubr.bf16.mxu0 %v518
      %1572 = vmatmul.mubr.bf16.gmra.mxu0 %v517
      %v1573 = vpop.f32.mrf.mxu0
      %v1574 = vadd.f32 %v1501, %v1573
      %v1575 = vpop.f32.mrf.mxu0
      %v1576 = vadd.f32 %v1503, %v1575
      %v1577 = vpop.f32.mrf.mxu0
      %v1578 = vadd.f32 %v1505, %v1577
      %v1579 = vpop.f32.mrf.mxu0
      %v1580 = vadd.f32 %v1507, %v1579
      %1581 = vmatprep.mubr.bf16.mxu0 %v528
      %1582 = vmatmul.mubr.bf16.gmra.mxu0 %v527
      %v1583 = vpop.f32.mrf.mxu0
      %v1584 = vadd.f32 %v1511, %v1583
      %v1585 = vpop.f32.mrf.mxu0
      %v1586 = vadd.f32 %v1513, %v1585
      %v1587 = vpop.f32.mrf.mxu0
      %v1588 = vadd.f32 %v1515, %v1587
      %v1589 = vpop.f32.mrf.mxu0
      %v1590 = vadd.f32 %v1517, %v1589
      %1591 = vmatprep.mubr.bf16.mxu0 %v538
      %1592 = vmatmul.mubr.bf16.gmra.mxu0 %v537
      %v1593 = vpop.f32.mrf.mxu0
      %v1594 = vadd.f32 %v1521, %v1593
      %v1595 = vpop.f32.mrf.mxu0
      %v1596 = vadd.f32 %v1523, %v1595
      %v1597 = vpop.f32.mrf.mxu0
      %v1598 = vadd.f32 %v1525, %v1597
      %v1599 = vpop.f32.mrf.mxu0
      %v1600 = vadd.f32 %v1527, %v1599
      %1601 = vdwg.mxu0
      %1602 = vmatprep.subr.bf16.mxu0 %v1174
      %1603 = vmatpush1.bf16.msra.mxu0 %v1173
      %1604 = vmatprep.subr.bf16.mxu0 %v1172
      %1605 = vmatpush1.bf16.msra.mxu0 %v1171
      %1606 = vmatprep.subr.bf16.mxu0 %v1170
      %1607 = vmatpush1.bf16.msra.mxu0 %v1169
      %1608 = vmatprep.subr.bf16.mxu0 %v1168
      %1609 = vmatpush1.bf16.msra.mxu0 %v1167
      %1610 = vmatprep.subr.bf16.mxu0 %v1166
      %1611 = vmatpush1.bf16.msra.mxu0 %v1165
      %1612 = vmatprep.subr.bf16.mxu0 %v1164
      %1613 = vmatpush1.bf16.msra.mxu0 %v1163
      %1614 = vmatprep.subr.bf16.mxu0 %v1162
      %1615 = vmatpush1.bf16.msra.mxu0 %v1161
      %1616 = vmatprep.subr.bf16.mxu0 %v1160
      %1617 = vmatpush1.bf16.msra.mxu0 %v1159
      %1618 = vmatprep.subr.bf16.mxu0 %v1190
      %1619 = vmatpush2.bf16.msra.mxu0 %v1189
      %1620 = vmatprep.subr.bf16.mxu0 %v1188
      %1621 = vmatpush2.bf16.msra.mxu0 %v1187
      %1622 = vmatprep.subr.bf16.mxu0 %v1186
      %1623 = vmatpush2.bf16.msra.mxu0 %v1185
      %1624 = vmatprep.subr.bf16.mxu0 %v1184
      %1625 = vmatpush2.bf16.msra.mxu0 %v1183
      %1626 = vmatprep.subr.bf16.mxu0 %v1182
      %1627 = vmatpush2.bf16.msra.mxu0 %v1181
      %1628 = vmatprep.subr.bf16.mxu0 %v1180
      %1629 = vmatpush2.bf16.msra.mxu0 %v1179
      %1630 = vmatprep.subr.bf16.mxu0 %v1178
      %1631 = vmatpush2.bf16.msra.mxu0 %v1177
      %1632 = vmatprep.subr.bf16.mxu0 %v1176
      %1633 = vmatpush2.bf16.msra.mxu0 %v1175
      %1634 = vmatprep.mubr.bf16.mxu0 %v510
      %1635 = vmatmul.mubr.bf16.gmra.mxu0 %v509
      %v1636 = vpop.f32.mrf.mxu0
      %v1637 = vadd.f32 %v1564, %v1636
      %v1638 = vpop.f32.mrf.mxu0
      %v1639 = vadd.f32 %v1566, %v1638
      %v1640 = vpop.f32.mrf.mxu0
      %v1641 = vadd.f32 %v1568, %v1640
      %v1642 = vpop.f32.mrf.mxu0
      %v1643 = vadd.f32 %v1570, %v1642
      %1644 = vmatprep.mubr.bf16.mxu0 %v520
      %1645 = vmatmul.mubr.bf16.gmra.mxu0 %v519
      %v1646 = vpop.f32.mrf.mxu0
      %v1647 = vadd.f32 %v1574, %v1646
      %v1648 = vpop.f32.mrf.mxu0
      %v1649 = vadd.f32 %v1576, %v1648
      %v1650 = vpop.f32.mrf.mxu0
      %v1651 = vadd.f32 %v1578, %v1650
      %v1652 = vpop.f32.mrf.mxu0
      %v1653 = vadd.f32 %v1580, %v1652
      %1654 = vmatprep.mubr.bf16.mxu0 %v530
      %1655 = vmatmul.mubr.bf16.gmra.mxu0 %v529
      %v1656 = vpop.f32.mrf.mxu0
      %v1657 = vadd.f32 %v1584, %v1656
      %v1658 = vpop.f32.mrf.mxu0
      %v1659 = vadd.f32 %v1586, %v1658
      %v1660 = vpop.f32.mrf.mxu0
      %v1661 = vadd.f32 %v1588, %v1660
      %v1662 = vpop.f32.mrf.mxu0
      %v1663 = vadd.f32 %v1590, %v1662
      %1664 = vmatprep.mubr.bf16.mxu0 %v540
      %1665 = vmatmul.mubr.bf16.gmra.mxu0 %v539
      %v1666 = vpop.f32.mrf.mxu0
      %v1667 = vadd.f32 %v1594, %v1666
      %v1668 = vpop.f32.mrf.mxu0
      %v1669 = vadd.f32 %v1596, %v1668
      %v1670 = vpop.f32.mrf.mxu0
      %v1671 = vadd.f32 %v1598, %v1670
      %v1672 = vpop.f32.mrf.mxu0
      %v1673 = vadd.f32 %v1600, %v1672
      %1674 = vdwg.mxu0
      %1675 = vmatprep.subr.bf16.mxu0 %v1206
      %1676 = vmatpush1.bf16.msra.mxu0 %v1205
      %1677 = vmatprep.subr.bf16.mxu0 %v1204
      %1678 = vmatpush1.bf16.msra.mxu0 %v1203
      %1679 = vmatprep.subr.bf16.mxu0 %v1202
      %1680 = vmatpush1.bf16.msra.mxu0 %v1201
      %1681 = vmatprep.subr.bf16.mxu0 %v1200
      %1682 = vmatpush1.bf16.msra.mxu0 %v1199
      %1683 = vmatprep.subr.bf16.mxu0 %v1198
      %1684 = vmatpush1.bf16.msra.mxu0 %v1197
      %1685 = vmatprep.subr.bf16.mxu0 %v1196
      %1686 = vmatpush1.bf16.msra.mxu0 %v1195
      %1687 = vmatprep.subr.bf16.mxu0 %v1194
      %1688 = vmatpush1.bf16.msra.mxu0 %v1193
      %1689 = vmatprep.subr.bf16.mxu0 %v1192
      %1690 = vmatpush1.bf16.msra.mxu0 %v1191
      %1691 = vmatprep.subr.bf16.mxu0 %v1222
      %1692 = vmatpush2.bf16.msra.mxu0 %v1221
      %1693 = vmatprep.subr.bf16.mxu0 %v1220
      %1694 = vmatpush2.bf16.msra.mxu0 %v1219
      %1695 = vmatprep.subr.bf16.mxu0 %v1218
      %1696 = vmatpush2.bf16.msra.mxu0 %v1217
      %1697 = vmatprep.subr.bf16.mxu0 %v1216
      %1698 = vmatpush2.bf16.msra.mxu0 %v1215
      %1699 = vmatprep.subr.bf16.mxu0 %v1214
      %1700 = vmatpush2.bf16.msra.mxu0 %v1213
      %1701 = vmatprep.subr.bf16.mxu0 %v1212
      %1702 = vmatpush2.bf16.msra.mxu0 %v1211
      %1703 = vmatprep.subr.bf16.mxu0 %v1210
      %1704 = vmatpush2.bf16.msra.mxu0 %v1209
      %1705 = vmatprep.subr.bf16.mxu0 %v1208
      %1706 = vmatpush2.bf16.msra.mxu0 %v1207
      %1707 = vmatprep.mubr.bf16.mxu0 %v512
      %1708 = vmatmul.mubr.bf16.gmra.mxu0 %v511
      %v1709 = vpop.f32.mrf.mxu0
      %v1710 = vadd.f32 %v1637, %v1709
      %v1711 = vpop.f32.mrf.mxu0
      %v1712 = vadd.f32 %v1639, %v1711
      %v1713 = vpop.f32.mrf.mxu0
      %v1714 = vadd.f32 %v1641, %v1713
      %v1715 = vpop.f32.mrf.mxu0
      %v1716 = vadd.f32 %v1643, %v1715
      %1717 = vmatprep.mubr.bf16.mxu0 %v522
      %1718 = vmatmul.mubr.bf16.gmra.mxu0 %v521
      %v1719 = vpop.f32.mrf.mxu0
      %v1720 = vadd.f32 %v1647, %v1719
      %v1721 = vpop.f32.mrf.mxu0
      %v1722 = vadd.f32 %v1649, %v1721
      %v1723 = vpop.f32.mrf.mxu0
      %v1724 = vadd.f32 %v1651, %v1723
      %v1725 = vpop.f32.mrf.mxu0
      %v1726 = vadd.f32 %v1653, %v1725
      %1727 = vmatprep.mubr.bf16.mxu0 %v532
      %1728 = vmatmul.mubr.bf16.gmra.mxu0 %v531
      %v1729 = vpop.f32.mrf.mxu0
      %v1730 = vadd.f32 %v1657, %v1729
      %v1731 = vpop.f32.mrf.mxu0
      %v1732 = vadd.f32 %v1659, %v1731
      %v1733 = vpop.f32.mrf.mxu0
      %v1734 = vadd.f32 %v1661, %v1733
      %v1735 = vpop.f32.mrf.mxu0
      %v1736 = vadd.f32 %v1663, %v1735
      %1737 = vmatprep.mubr.bf16.mxu0 %v542
      %1738 = vmatmul.mubr.bf16.gmra.mxu0 %v541
      %v1739 = vpop.f32.mrf.mxu0
      %v1740 = vadd.f32 %v1667, %v1739
      %v1741 = vpop.f32.mrf.mxu0
      %v1742 = vadd.f32 %v1669, %v1741
      %v1743 = vpop.f32.mrf.mxu0
      %v1744 = vadd.f32 %v1671, %v1743
      %v1745 = vpop.f32.mrf.mxu0
      %v1746 = vadd.f32 %v1673, %v1745
      %1747 = vdwg.mxu0
      %v1748 = vmax.f32 %v1710, 0.0
      %v1749 = vmax.f32 %v1712, 0.0
      %v1750 = vmax.f32 %v1714, 0.0
      %v1751 = vmax.f32 %v1716, 0.0
      %v1752 = vmax.f32 %v1720, 0.0
      %v1753 = vmax.f32 %v1722, 0.0
      %v1754 = vmax.f32 %v1724, 0.0
      %v1755 = vmax.f32 %v1726, 0.0
      %v1756 = vmax.f32 %v1730, 0.0
      %v1757 = vmax.f32 %v1732, 0.0
      %v1758 = vmax.f32 %v1734, 0.0
      %v1759 = vmax.f32 %v1736, 0.0
      %v1760 = vmax.f32 %v1740, 0.0
      %v1761 = vmax.f32 %v1742, 0.0
      %v1762 = vmax.f32 %v1744, 0.0
      %v1763 = vmax.f32 %v1746, 0.0
      %v1764 = vmax.f32 %v1748, %v1752
      %v1765 = vmax.f32 %v1749, %v1753
      %v1766 = vmax.f32 %v1750, %v1754
      %v1767 = vmax.f32 %v1751, %v1755
      %v1768 = vmax.f32 %v1756, %v1760
      %v1769 = vmax.f32 %v1757, %v1761
      %v1770 = vmax.f32 %v1758, %v1762
      %v1771 = vmax.f32 %v1759, %v1763
      %v1772 = vmax.f32 %v1764, %v1768
      %v1773 = vmax.f32 %v1765, %v1769
      %v1774 = vmax.f32 %v1766, %v1770
      %v1775 = vmax.f32 %v1767, %v1771
      %v1776 = vpack.c.bf16 %v1774, %v1772
      %v1777 = vpack.c.bf16 %v1775, %v1773
      %v1780 = vunpack.c.l.b16 %v1776
      %v1781 = vunpack.c.l.b16 %v1777
      %v1782 = vunpack.c.h.b16 %v1776
      %v1783 = vunpack.c.h.b16 %v1777
      %v1784 = vpack.c.b16 %v1781, %v1780
      %v1785 = vpack.c.b16 %v1783, %v1782
      %1788 = vst [vmem:[%s170] sm:$0xff] %v1784
      %1789 = vst [vmem:[%s170 + $0x8] sm:$0xff] %v1785
      %p1790 = scmp.lt.s32.totalorder %s14, 1
      %s1791 = scalar_select %p1790, %s14, 1
      %s1792 = smul.addr %s1791, 4
      %s1793 = smul.addr %s1792, 4
      %s1794 = scalar_lea.vmem %s3, %s1793
      // Predicated region
      $region33: #{forward.5} parent=31 // pred_check
        %p1795 = pneg %p100
      $region34: #{forward.5} parent=31 // pred_check_branch
        %1797 = sbr.rel (%p1795) target = $region36
      $region35: #{forward.5} parent=31 // pred_region
        _
      $region36: #{forward.5} parent=31 // pred_fallthru
        _
    $region32: #{forward.5} parent=5 // pred_fallthru
      _
    %p1798 = scmp.le.s32.totalorder 2, %s9
    // Predicated region
    $region37: #{forward.5} parent=5 // pred_check
      %p1799 = pneg %p1798
    $region38: #{forward.5} parent=5 // pred_check_branch
      %1801 = sbr.rel (%p1799) target = $region40
    $region39: #{forward.5} parent=5 // pred_region
      %s1802 = ssub.s32 %s9, 2
      // Predicated region
      $region41: #{forward.5} parent=39 // pred_check
        %p1803 = pneg %p106
      $region42: #{forward.5} parent=39 // pred_check_branch
        %1805 = sbr.rel (%p1803) target = $region44
      $region43: #{forward.5} parent=39 // pred_region
        %p1806 = scmp.lt.s32.totalorder %s15, 1
        %s1807 = scalar_select %p1806, %s15, 1
        %s1808 = smul.addr %s1807, 4
        %s1809 = smul.addr %s1808, 4
        %s1810 = scalar_lea.vmem %s3, %s1809
      $region44: #{forward.5} parent=39 // pred_fallthru
        _
    $region40: #{forward.5} parent=5 // pred_fallthru
      _
  $region6: #{forward.5} parent=0 // loop_footer
    %s13 = sadd.s32 1, %s9
  $region7: #{forward.5} parent=0 // loop_footer_branch
    %8 = sbr.rel target = $region3
  $region8: #{forward.5} parent=0 // loop_exit
    _

// kernel: forward.6
$region0: #{forward.6}
  #allocation0 [shape = 'u32[]', space=smem, size = 0x4, offset = 0x4, fixed_abs, tag = 'smem constant byte address 0x4 - core index']
  #allocation1 [shape = 'u32[144,128]{1,0:T(1,128)}', space=vmem, size = 0x12000, scoped, tag = 'internal scratch']
  %s0 = inlined_call_operand.vmem [shape: bf16[2,16,5120], index: 0, kind: input, shape index: {}]
  %s1 = inlined_call_operand.vmem [shape: bf16[5120,128], index: 1, kind: input, shape index: {}]
  %s2 = inlined_call_operand.vmem [shape: f32[1,128], index: 2, kind: input, shape index: {}]
  %s3 = inlined_call_operand.vmem [shape: bf16[2,16,128], index: 3, kind: output, shape index: {}]
  %s4 = sld [smem:[#allocation0]]
  $region45: #{forward.6} parent=0
    _
  %s6 = ssub.s32 1, %s4
  %s7 = scalar_select 0, %s6, %s4
  loop: start=0, step=1, limit=4
  $region2: #{forward.6} parent=0 // loop_pre_header
    _
  $region3: #{forward.6} parent=0 // loop_header
    %s9 = sphi 0, %s13
    %p10 = scmp.ge.s32.totalorder %s9, 4
    %s19 = sphi 0, %s21
    %s22 = sphi 0, %s19
    %s23 = sphi 0, %s22
    %s39 = sphi 0, %s23
    %s43 = sphi 0, %s43
    %s45 = sphi 0, %s43
    %s46 = sphi 0, %s45
    %s60 = sphi 0, %s46
    %s64 = sphi 0, %s64
    %s66 = sphi 0, %s64
    %s67 = sphi 0, %s66
    %s81 = sphi 0, %s67
    %s87 = sphi 0, %s89
    %s90 = sphi 0, %s87
    %s91 = sphi 0, %s90
    %s107 = sphi 0, %s91
  $region4: #{forward.6} parent=0 // loop_header_branch
    %12 = sbr.rel (%p10) target = $region8
  $region5: #{forward.6} parent=0 // loop_body
    %s14 = ssub.s32 %s9, 1
    %s15 = ssub.s32 %s9, 2
    %s16 = sadd.s32 %s9, 1
    %s17 = ssub.s32 %s9, %s16
    %p18 = scmp.eq.s32.totalorder %s17, 0
    %s20 = sadd.s32 %s19, 1
    %s21 = scalar_select %p18, %s19, %s20
    %p24 = pneg %p18
    %p25 = scmp.eq.s32.totalorder %s9, 1
    %p26 = por %p24, %p25
    %p27 = scmp.ne.s32.totalorder %s19, %s22
    %p28 = scmp.eq.s32.totalorder %s9, 0
    %p29 = por %p27, %p28
    %p30 = scmp.ne.s32.totalorder %s19, %s22
    %p31 = scmp.eq.s32.totalorder %s14, 1
    %p32 = por %p30, %p31
    %p33 = scmp.ne.s32.totalorder %s22, %s23
    %p34 = scmp.eq.s32.totalorder %s14, 0
    %p35 = por %p33, %p34
    %p36 = scmp.ne.s32.totalorder %s22, %s23
    %p37 = scmp.eq.s32.totalorder %s15, 1
    %p38 = por %p36, %p37
    %p40 = scmp.ne.s32.totalorder %s23, %s39
    %p41 = scmp.eq.s32.totalorder %s15, 0
    %p42 = por %p40, %p41
    %s44 = sadd.s32 %s43, 1
    %p47 = scmp.eq.s32.totalorder %s9, 1
    %p48 = scmp.ne.s32.totalorder %s43, %s45
    %p49 = scmp.eq.s32.totalorder %s9, 0
    %p50 = por %p48, %p49
    %p51 = scmp.ne.s32.totalorder %s43, %s45
    %p52 = scmp.eq.s32.totalorder %s14, 1
    %p53 = por %p51, %p52
    %p54 = scmp.ne.s32.totalorder %s45, %s46
    %p55 = scmp.eq.s32.totalorder %s14, 0
    %p56 = por %p54, %p55
    %p57 = scmp.ne.s32.totalorder %s45, %s46
    %p58 = scmp.eq.s32.totalorder %s15, 1
    %p59 = por %p57, %p58
    %p61 = scmp.ne.s32.totalorder %s46, %s60
    %p62 = scmp.eq.s32.totalorder %s15, 0
    %p63 = por %p61, %p62
    %s65 = sadd.s32 %s64, 1
    %p68 = scmp.eq.s32.totalorder %s9, 1
    %p69 = scmp.ne.s32.totalorder %s64, %s66
    %p70 = scmp.eq.s32.totalorder %s9, 0
    %p71 = por %p69, %p70
    %p72 = scmp.ne.s32.totalorder %s64, %s66
    %p73 = scmp.eq.s32.totalorder %s14, 1
    %p74 = por %p72, %p73
    %p75 = scmp.ne.s32.totalorder %s66, %s67
    %p76 = scmp.eq.s32.totalorder %s14, 0
    %p77 = por %p75, %p76
    %p78 = scmp.ne.s32.totalorder %s66, %s67
    %p79 = scmp.eq.s32.totalorder %s15, 1
    %p80 = por %p78, %p79
    %p82 = scmp.ne.s32.totalorder %s67, %s81
    %p83 = scmp.eq.s32.totalorder %s15, 0
    %p84 = por %p82, %p83
    %s85 = ssub.s32 %s9, %s16
    %p86 = scmp.eq.s32.totalorder %s85, 0
    %s88 = sadd.s32 %s87, 1
    %s89 = scalar_select %p86, %s87, %s88
    %p92 = pneg %p86
    %p93 = scmp.eq.s32.totalorder %s9, 1
    %p94 = por %p92, %p93
    %p95 = scmp.ne.s32.totalorder %s87, %s90
    %p96 = scmp.eq.s32.totalorder %s9, 0
    %p97 = por %p95, %p96
    %p98 = scmp.ne.s32.totalorder %s87, %s90
    %p99 = scmp.eq.s32.totalorder %s14, 1
    %p100 = por %p98, %p99
    %p101 = scmp.ne.s32.totalorder %s90, %s91
    %p102 = scmp.eq.s32.totalorder %s14, 0
    %p103 = por %p101, %p102
    %p104 = scmp.ne.s32.totalorder %s90, %s91
    %p105 = scmp.eq.s32.totalorder %s15, 1
    %p106 = por %p104, %p105
    %p108 = scmp.ne.s32.totalorder %s91, %s107
    %p109 = scmp.eq.s32.totalorder %s15, 0
    %p110 = por %p108, %p109
    %p111 = scmp.le.s32.totalorder 1, %s9
    %p112 = scmp.lt.s32.totalorder %s9, 3
    %p113 = pnand %p111, %p112
    %p114 = pneg %p113
    // Predicated region
    $region9: #{forward.6} parent=5 // pred_check
      _
    $region10: #{forward.6} parent=5 // pred_check_branch
      %116 = sbr.rel (%p113) target = $region12
    $region11: #{forward.6} parent=5 // pred_region
      %s117 = ssub.s32 %s9, 1
      // Predicated region
      $region13: #{forward.6} parent=11 // pred_check
        %p118 = pneg %p56
      $region14: #{forward.6} parent=11 // pred_check_branch
        %120 = sbr.rel (%p118) target = $region16
      $region15: #{forward.6} parent=11 // pred_region
        _
      $region16: #{forward.6} parent=11 // pred_fallthru
        _
      // Predicated region
      $region17: #{forward.6} parent=11 // pred_check
        %p121 = pneg %p77
      $region18: #{forward.6} parent=11 // pred_check_branch
        %123 = sbr.rel (%p121) target = $region20
      $region19: #{forward.6} parent=11 // pred_region
        _
      $region20: #{forward.6} parent=11 // pred_fallthru
        _
    $region12: #{forward.6} parent=5 // pred_fallthru
      _
    %p124 = scmp.lt.s32.totalorder %s9, 2
    // Predicated region
    $region21: #{forward.6} parent=5 // pred_check
      %p125 = pneg %p124
    $region22: #{forward.6} parent=5 // pred_check_branch
      %127 = sbr.rel (%p125) target = $region24
    $region23: #{forward.6} parent=5 // pred_region
      // Predicated region
      $region25: #{forward.6} parent=23 // pred_check
        %p128 = pneg %p29
      $region26: #{forward.6} parent=23 // pred_check_branch
        %130 = sbr.rel (%p128) target = $region28
      $region27: #{forward.6} parent=23 // pred_region
        %p131 = scmp.lt.s32.totalorder %s9, 1
        %s132 = scalar_select %p131, %s9, 1
        %s133 = smul.addr %s132, 80
        %s134 = smul.addr %s133, 4
        %s135 = scalar_lea.vmem %s0, %s134
      $region28: #{forward.6} parent=23 // pred_fallthru
        _
    $region24: #{forward.6} parent=5 // pred_fallthru
      _
    %p136 = scmp.le.s32.totalorder 1, %s9
    %p137 = scmp.lt.s32.totalorder %s9, 3
    %p138 = pnand %p136, %p137
    %p139 = pneg %p138
    // Predicated region
    $region29: #{forward.6} parent=5 // pred_check
      _
    $region30: #{forward.6} parent=5 // pred_check_branch
      %141 = sbr.rel (%p138) target = $region32
    $region31: #{forward.6} parent=5 // pred_region
      %s142 = ssub.s32 %s9, 1
      %p143 = scmp.lt.s32.totalorder %s14, 1
      %s144 = scalar_select %p143, %s14, 1
      %s145 = smul.addr %s144, 80
      %s146 = smul.addr %s145, 4
      %s147 = scalar_lea.vmem %s0, %s146
      %p148 = pneg %p35
      %p149 = pneg %p32
      %p150 = pneg %p56
      %p151 = pneg %p53
      %p152 = pneg %p77
      %p153 = pneg %p74
      %p154 = pneg %p103
      %p155 = pneg %p100
      %p156 = scmp.lt.s32.totalorder %s14, 1
      %s157 = scalar_select %p156, %s14, 1
      %s158 = smul.addr %s157, 2
      %s159 = smul.addr %s158, 4
      %s160 = scalar_lea.vmem %s3, %s159
      %p161 = scmp.lt.s32.totalorder %s14, 1
      %s162 = scalar_select %p161, %s14, 1
      %s163 = smul.addr %s162, 80
      %s164 = smul.addr %s163, 4
      %s165 = scalar_lea.vmem %s0, %s164
      %p166 = scmp.lt.s32.totalorder %s14, 1
      %s167 = scalar_select %p166, %s14, 1
      %s168 = smul.addr %s167, 2
      %s169 = smul.addr %s168, 4
      %s170 = scalar_lea.vmem %s3, %s169
      %v172 = vld [vmem:[%s165] sm:$0xff]
      %v173 = vld [vmem:[%s165 + $0x8] sm:$0xff]
      %v174 = vld [vmem:[%s165 + $0x10] sm:$0xff]
      %v175 = vld [vmem:[%s165 + $0x18] sm:$0xff]
      %v176 = vld [vmem:[%s165 + $0x20] sm:$0xff]
      %v177 = vld [vmem:[%s165 + $0x28] sm:$0xff]
      %v178 = vld [vmem:[%s165 + $0x30] sm:$0xff]
      %v179 = vld [vmem:[%s165 + $0x38] sm:$0xff]
      %v180 = vld [vmem:[%s165 + $0x40] sm:$0xff]
      %v181 = vld [vmem:[%s165 + $0x48] sm:$0xff]
      %v182 = vld [vmem:[%s165 + $0x50] sm:$0xff]
      %v183 = vld [vmem:[%s165 + $0x58] sm:$0xff]
      %v184 = vld [vmem:[%s165 + $0x60] sm:$0xff]
      %v185 = vld [vmem:[%s165 + $0x68] sm:$0xff]
      %v186 = vld [vmem:[%s165 + $0x70] sm:$0xff]
      %v187 = vld [vmem:[%s165 + $0x78] sm:$0xff]
      %v188 = vld [vmem:[%s165 + $0x80] sm:$0xff]
      %v189 = vld [vmem:[%s165 + $0x88] sm:$0xff]
      %v190 = vld [vmem:[%s165 + $0x90] sm:$0xff]
      %v191 = vld [vmem:[%s165 + $0x98] sm:$0xff]
      %v192 = vld [vmem:[%s165 + $0xa0] sm:$0xff]
      %v193 = vld [vmem:[%s165 + $0xa8] sm:$0xff]
      %v194 = vld [vmem:[%s165 + $0xb0] sm:$0xff]
      %v195 = vld [vmem:[%s165 + $0xb8] sm:$0xff]
      %v196 = vld [vmem:[%s165 + $0xc0] sm:$0xff]
      %v197 = vld [vmem:[%s165 + $0xc8] sm:$0xff]
      %v198 = vld [vmem:[%s165 + $0xd0] sm:$0xff]
      %v199 = vld [vmem:[%s165 + $0xd8] sm:$0xff]
      %v200 = vld [vmem:[%s165 + $0xe0] sm:$0xff]
      %v201 = vld [vmem:[%s165 + $0xe8] sm:$0xff]
      %v202 = vld [vmem:[%s165 + $0xf0] sm:$0xff]
      %v203 = vld [vmem:[%s165 + $0xf8] sm:$0xff]
      %v204 = vld [vmem:[%s165 + $0x100] sm:$0xff]
      %v205 = vld [vmem:[%s165 + $0x108] sm:$0xff]
      %v206 = vld [vmem:[%s165 + $0x110] sm:$0xff]
      %v207 = vld [vmem:[%s165 + $0x118] sm:$0xff]
      %v208 = vld [vmem:[%s165 + $0x120] sm:$0xff]
      %v209 = vld [vmem:[%s165 + $0x128] sm:$0xff]
      %v210 = vld [vmem:[%s165 + $0x130] sm:$0xff]
      %v211 = vld [vmem:[%s165 + $0x138] sm:$0xff]
      %v212 = vld [vmem:[%s1] sm:$0xf]
      %v213 = vld [vmem:[%s1 + $0x4] sm:$0xf]
      %v214 = vld [vmem:[%s1 + $0x8] sm:$0xf]
      %v215 = vld [vmem:[%s1 + $0xc] sm:$0xf]
      %v216 = vld [vmem:[%s1 + $0x10] sm:$0xf]
      %v217 = vld [vmem:[%s1 + $0x14] sm:$0xf]
      %v218 = vld [vmem:[%s1 + $0x18] sm:$0xf]
      %v219 = vld [vmem:[%s1 + $0x1c] sm:$0xf]
      %v220 = vld [vmem:[%s1 + $0x20] sm:$0xf]
      %v221 = vld [vmem:[%s1 + $0x24] sm:$0xf]
      %v222 = vld [vmem:[%s1 + $0x28] sm:$0xf]
      %v223 = vld [vmem:[%s1 + $0x2c] sm:$0xf]
      %v224 = vld [vmem:[%s1 + $0x30] sm:$0xf]
      %v225 = vld [vmem:[%s1 + $0x34] sm:$0xf]
      %v226 = vld [vmem:[%s1 + $0x38] sm:$0xf]
      %v227 = vld [vmem:[%s1 + $0x3c] sm:$0xf]
      %v228 = vld [vmem:[%s1 + $0x40] sm:$0xf]
      %v229 = vld [vmem:[%s1 + $0x44] sm:$0xf]
      %v230 = vld [vmem:[%s1 + $0x48] sm:$0xf]
      %v231 = vld [vmem:[%s1 + $0x4c] sm:$0xf]
      %v232 = vld [vmem:[%s1 + $0x50] sm:$0xf]
      %v233 = vld [vmem:[%s1 + $0x54] sm:$0xf]
      %v234 = vld [vmem:[%s1 + $0x58] sm:$0xf]
      %v235 = vld [vmem:[%s1 + $0x5c] sm:$0xf]
      %v236 = vld [vmem:[%s1 + $0x60] sm:$0xf]
      %v237 = vld [vmem:[%s1 + $0x64] sm:$0xf]
      %v238 = vld [vmem:[%s1 + $0x68] sm:$0xf]
      %v239 = vld [vmem:[%s1 + $0x6c] sm:$0xf]
      %v240 = vld [vmem:[%s1 + $0x70] sm:$0xf]
      %v241 = vld [vmem:[%s1 + $0x74] sm:$0xf]
      %v242 = vld [vmem:[%s1 + $0x78] sm:$0xf]
      %v243 = vld [vmem:[%s1 + $0x7c] sm:$0xf]
      %v244 = vld [vmem:[%s1 + $0x80] sm:$0xf]
      %v245 = vld [vmem:[%s1 + $0x84] sm:$0xf]
      %v246 = vld [vmem:[%s1 + $0x88] sm:$0xf]
      %v247 = vld [vmem:[%s1 + $0x8c] sm:$0xf]
      %v248 = vld [vmem:[%s1 + $0x90] sm:$0xf]
      %v249 = vld [vmem:[%s1 + $0x94] sm:$0xf]
      %v250 = vld [vmem:[%s1 + $0x98] sm:$0xf]
      %v251 = vld [vmem:[%s1 + $0x9c] sm:$0xf]
      %v252 = vld [vmem:[%s1 + $0xa0] sm:$0xf]
      %v253 = vld [vmem:[%s1 + $0xa4] sm:$0xf]
      %v254 = vld [vmem:[%s1 + $0xa8] sm:$0xf]
      %v255 = vld [vmem:[%s1 + $0xac] sm:$0xf]
      %v256 = vld [vmem:[%s1 + $0xb0] sm:$0xf]
      %v257 = vld [vmem:[%s1 + $0xb4] sm:$0xf]
      %v258 = vld [vmem:[%s1 + $0xb8] sm:$0xf]
      %v259 = vld [vmem:[%s1 + $0xbc] sm:$0xf]
      %v260 = vld [vmem:[%s1 + $0xc0] sm:$0xf]
      %v261 = vld [vmem:[%s1 + $0xc4] sm:$0xf]
      %v262 = vld [vmem:[%s1 + $0xc8] sm:$0xf]
      %v263 = vld [vmem:[%s1 + $0xcc] sm:$0xf]
      %v264 = vld [vmem:[%s1 + $0xd0] sm:$0xf]
      %v265 = vld [vmem:[%s1 + $0xd4] sm:$0xf]
      %v266 = vld [vmem:[%s1 + $0xd8] sm:$0xf]
      %v267 = vld [vmem:[%s1 + $0xdc] sm:$0xf]
      %v268 = vld [vmem:[%s1 + $0xe0] sm:$0xf]
      %v269 = vld [vmem:[%s1 + $0xe4] sm:$0xf]
      %v270 = vld [vmem:[%s1 + $0xe8] sm:$0xf]
      %v271 = vld [vmem:[%s1 + $0xec] sm:$0xf]
      %v272 = vld [vmem:[%s1 + $0xf0] sm:$0xf]
      %v273 = vld [vmem:[%s1 + $0xf4] sm:$0xf]
      %v274 = vld [vmem:[%s1 + $0xf8] sm:$0xf]
      %v275 = vld [vmem:[%s1 + $0xfc] sm:$0xf]
      %v276 = vld [vmem:[%s1 + $0x100] sm:$0xf]
      %v277 = vld [vmem:[%s1 + $0x104] sm:$0xf]
      %v278 = vld [vmem:[%s1 + $0x108] sm:$0xf]
      %v279 = vld [vmem:[%s1 + $0x10c] sm:$0xf]
      %v280 = vld [vmem:[%s1 + $0x110] sm:$0xf]
      %v281 = vld [vmem:[%s1 + $0x114] sm:$0xf]
      %v282 = vld [vmem:[%s1 + $0x118] sm:$0xf]
      %v283 = vld [vmem:[%s1 + $0x11c] sm:$0xf]
      %v284 = vld [vmem:[%s1 + $0x120] sm:$0xf]
      %v285 = vld [vmem:[%s1 + $0x124] sm:$0xf]
      %v286 = vld [vmem:[%s1 + $0x128] sm:$0xf]
      %v287 = vld [vmem:[%s1 + $0x12c] sm:$0xf]
      %v288 = vld [vmem:[%s1 + $0x130] sm:$0xf]
      %v289 = vld [vmem:[%s1 + $0x134] sm:$0xf]
      %v290 = vld [vmem:[%s1 + $0x138] sm:$0xf]
      %v291 = vld [vmem:[%s1 + $0x13c] sm:$0xf]
      %v292 = vld [vmem:[%s1 + $0x140] sm:$0xf]
      %v293 = vld [vmem:[%s1 + $0x144] sm:$0xf]
      %v294 = vld [vmem:[%s1 + $0x148] sm:$0xf]
      %v295 = vld [vmem:[%s1 + $0x14c] sm:$0xf]
      %v296 = vld [vmem:[%s1 + $0x150] sm:$0xf]
      %v297 = vld [vmem:[%s1 + $0x154] sm:$0xf]
      %v298 = vld [vmem:[%s1 + $0x158] sm:$0xf]
      %v299 = vld [vmem:[%s1 + $0x15c] sm:$0xf]
      %v300 = vld [vmem:[%s1 + $0x160] sm:$0xf]
      %v301 = vld [vmem:[%s1 + $0x164] sm:$0xf]
      %v302 = vld [vmem:[%s1 + $0x168] sm:$0xf]
      %v303 = vld [vmem:[%s1 + $0x16c] sm:$0xf]
      %v304 = vld [vmem:[%s1 + $0x170] sm:$0xf]
      %v305 = vld [vmem:[%s1 + $0x174] sm:$0xf]
      %v306 = vld [vmem:[%s1 + $0x178] sm:$0xf]
      %v307 = vld [vmem:[%s1 + $0x17c] sm:$0xf]
      %v308 = vld [vmem:[%s1 + $0x180] sm:$0xf]
      %v309 = vld [vmem:[%s1 + $0x184] sm:$0xf]
      %v310 = vld [vmem:[%s1 + $0x188] sm:$0xf]
      %v311 = vld [vmem:[%s1 + $0x18c] sm:$0xf]
      %v312 = vld [vmem:[%s1 + $0x190] sm:$0xf]
      %v313 = vld [vmem:[%s1 + $0x194] sm:$0xf]
      %v314 = vld [vmem:[%s1 + $0x198] sm:$0xf]
      %v315 = vld [vmem:[%s1 + $0x19c] sm:$0xf]
      %v316 = vld [vmem:[%s1 + $0x1a0] sm:$0xf]
      %v317 = vld [vmem:[%s1 + $0x1a4] sm:$0xf]
      %v318 = vld [vmem:[%s1 + $0x1a8] sm:$0xf]
      %v319 = vld [vmem:[%s1 + $0x1ac] sm:$0xf]
      %v320 = vld [vmem:[%s1 + $0x1b0] sm:$0xf]
      %v321 = vld [vmem:[%s1 + $0x1b4] sm:$0xf]
      %v322 = vld [vmem:[%s1 + $0x1b8] sm:$0xf]
      %v323 = vld [vmem:[%s1 + $0x1bc] sm:$0xf]
      %v324 = vld [vmem:[%s1 + $0x1c0] sm:$0xf]
      %v325 = vld [vmem:[%s1 + $0x1c4] sm:$0xf]
      %v326 = vld [vmem:[%s1 + $0x1c8] sm:$0xf]
      %v327 = vld [vmem:[%s1 + $0x1cc] sm:$0xf]
      %v328 = vld [vmem:[%s1 + $0x1d0] sm:$0xf]
      %v329 = vld [vmem:[%s1 + $0x1d4] sm:$0xf]
      %v330 = vld [vmem:[%s1 + $0x1d8] sm:$0xf]
      %v331 = vld [vmem:[%s1 + $0x1dc] sm:$0xf]
      %v332 = vld [vmem:[%s1 + $0x1e0] sm:$0xf]
      %v333 = vld [vmem:[%s1 + $0x1e4] sm:$0xf]
      %v334 = vld [vmem:[%s1 + $0x1e8] sm:$0xf]
      %v335 = vld [vmem:[%s1 + $0x1ec] sm:$0xf]
      %v336 = vld [vmem:[%s1 + $0x1f0] sm:$0xf]
      %v337 = vld [vmem:[%s1 + $0x1f4] sm:$0xf]
      %v338 = vld [vmem:[%s1 + $0x1f8] sm:$0xf]
      %v339 = vld [vmem:[%s1 + $0x1fc] sm:$0xf]
      %v340 = vld [vmem:[%s1 + $0x200] sm:$0xf]
      %v341 = vld [vmem:[%s1 + $0x204] sm:$0xf]
      %v342 = vld [vmem:[%s1 + $0x208] sm:$0xf]
      %v343 = vld [vmem:[%s1 + $0x20c] sm:$0xf]
      %v344 = vld [vmem:[%s1 + $0x210] sm:$0xf]
      %v345 = vld [vmem:[%s1 + $0x214] sm:$0xf]
      %v346 = vld [vmem:[%s1 + $0x218] sm:$0xf]
      %v347 = vld [vmem:[%s1 + $0x21c] sm:$0xf]
      %v348 = vld [vmem:[%s1 + $0x220] sm:$0xf]
      %v349 = vld [vmem:[%s1 + $0x224] sm:$0xf]
      %v350 = vld [vmem:[%s1 + $0x228] sm:$0xf]
      %v351 = vld [vmem:[%s1 + $0x22c] sm:$0xf]
      %v352 = vld [vmem:[%s1 + $0x230] sm:$0xf]
      %v353 = vld [vmem:[%s1 + $0x234] sm:$0xf]
      %v354 = vld [vmem:[%s1 + $0x238] sm:$0xf]
      %v355 = vld [vmem:[%s1 + $0x23c] sm:$0xf]
      %v356 = vld [vmem:[%s1 + $0x240] sm:$0xf]
      %v357 = vld [vmem:[%s1 + $0x244] sm:$0xf]
      %v358 = vld [vmem:[%s1 + $0x248] sm:$0xf]
      %v359 = vld [vmem:[%s1 + $0x24c] sm:$0xf]
      %v360 = vld [vmem:[%s1 + $0x250] sm:$0xf]
      %v361 = vld [vmem:[%s1 + $0x254] sm:$0xf]
      %v362 = vld [vmem:[%s1 + $0x258] sm:$0xf]
      %v363 = vld [vmem:[%s1 + $0x25c] sm:$0xf]
      %v364 = vld [vmem:[%s1 + $0x260] sm:$0xf]
      %v365 = vld [vmem:[%s1 + $0x264] sm:$0xf]
      %v366 = vld [vmem:[%s1 + $0x268] sm:$0xf]
      %v367 = vld [vmem:[%s1 + $0x26c] sm:$0xf]
      %v368 = vld [vmem:[%s1 + $0x270] sm:$0xf]
      %v369 = vld [vmem:[%s1 + $0x274] sm:$0xf]
      %v370 = vld [vmem:[%s1 + $0x278] sm:$0xf]
      %v371 = vld [vmem:[%s1 + $0x27c] sm:$0xf]
      %v372 = vld [vmem:[%s1 + $0x280] sm:$0xf]
      %v373 = vld [vmem:[%s1 + $0x284] sm:$0xf]
      %v374 = vld [vmem:[%s1 + $0x288] sm:$0xf]
      %v375 = vld [vmem:[%s1 + $0x28c] sm:$0xf]
      %v376 = vld [vmem:[%s1 + $0x290] sm:$0xf]
      %v377 = vld [vmem:[%s1 + $0x294] sm:$0xf]
      %v378 = vld [vmem:[%s1 + $0x298] sm:$0xf]
      %v379 = vld [vmem:[%s1 + $0x29c] sm:$0xf]
      %v380 = vld [vmem:[%s1 + $0x2a0] sm:$0xf]
      %v381 = vld [vmem:[%s1 + $0x2a4] sm:$0xf]
      %v382 = vld [vmem:[%s1 + $0x2a8] sm:$0xf]
      %v383 = vld [vmem:[%s1 + $0x2ac] sm:$0xf]
      %v384 = vld [vmem:[%s1 + $0x2b0] sm:$0xf]
      %v385 = vld [vmem:[%s1 + $0x2b4] sm:$0xf]
      %v386 = vld [vmem:[%s1 + $0x2b8] sm:$0xf]
      %v387 = vld [vmem:[%s1 + $0x2bc] sm:$0xf]
      %v388 = vld [vmem:[%s1 + $0x2c0] sm:$0xf]
      %v389 = vld [vmem:[%s1 + $0x2c4] sm:$0xf]
      %v390 = vld [vmem:[%s1 + $0x2c8] sm:$0xf]
      %v391 = vld [vmem:[%s1 + $0x2cc] sm:$0xf]
      %v392 = vld [vmem:[%s1 + $0x2d0] sm:$0xf]
      %v393 = vld [vmem:[%s1 + $0x2d4] sm:$0xf]
      %v394 = vld [vmem:[%s1 + $0x2d8] sm:$0xf]
      %v395 = vld [vmem:[%s1 + $0x2dc] sm:$0xf]
      %v396 = vld [vmem:[%s1 + $0x2e0] sm:$0xf]
      %v397 = vld [vmem:[%s1 + $0x2e4] sm:$0xf]
      %v398 = vld [vmem:[%s1 + $0x2e8] sm:$0xf]
      %v399 = vld [vmem:[%s1 + $0x2ec] sm:$0xf]
      %v400 = vld [vmem:[%s1 + $0x2f0] sm:$0xf]
      %v401 = vld [vmem:[%s1 + $0x2f4] sm:$0xf]
      %v402 = vld [vmem:[%s1 + $0x2f8] sm:$0xf]
      %v403 = vld [vmem:[%s1 + $0x2fc] sm:$0xf]
      %v404 = vld [vmem:[%s1 + $0x300] sm:$0xf]
      %v405 = vld [vmem:[%s1 + $0x304] sm:$0xf]
      %v406 = vld [vmem:[%s1 + $0x308] sm:$0xf]
      %v407 = vld [vmem:[%s1 + $0x30c] sm:$0xf]
      %v408 = vld [vmem:[%s1 + $0x310] sm:$0xf]
      %v409 = vld [vmem:[%s1 + $0x314] sm:$0xf]
      %v410 = vld [vmem:[%s1 + $0x318] sm:$0xf]
      %v411 = vld [vmem:[%s1 + $0x31c] sm:$0xf]
      %v412 = vld [vmem:[%s1 + $0x320] sm:$0xf]
      %v413 = vld [vmem:[%s1 + $0x324] sm:$0xf]
      %v414 = vld [vmem:[%s1 + $0x328] sm:$0xf]
      %v415 = vld [vmem:[%s1 + $0x32c] sm:$0xf]
      %v416 = vld [vmem:[%s1 + $0x330] sm:$0xf]
      %v417 = vld [vmem:[%s1 + $0x334] sm:$0xf]
      %v418 = vld [vmem:[%s1 + $0x338] sm:$0xf]
      %v419 = vld [vmem:[%s1 + $0x33c] sm:$0xf]
      %v420 = vld [vmem:[%s1 + $0x340] sm:$0xf]
      %v421 = vld [vmem:[%s1 + $0x344] sm:$0xf]
      %v422 = vld [vmem:[%s1 + $0x348] sm:$0xf]
      %v423 = vld [vmem:[%s1 + $0x34c] sm:$0xf]
      %v424 = vld [vmem:[%s1 + $0x350] sm:$0xf]
      %v425 = vld [vmem:[%s1 + $0x354] sm:$0xf]
      %v426 = vld [vmem:[%s1 + $0x358] sm:$0xf]
      %v427 = vld [vmem:[%s1 + $0x35c] sm:$0xf]
      %v428 = vld [vmem:[%s1 + $0x360] sm:$0xf]
      %v429 = vld [vmem:[%s1 + $0x364] sm:$0xf]
      %v430 = vld [vmem:[%s1 + $0x368] sm:$0xf]
      %v431 = vld [vmem:[%s1 + $0x36c] sm:$0xf]
      %v432 = vld [vmem:[%s1 + $0x370] sm:$0xf]
      %v433 = vld [vmem:[%s1 + $0x374] sm:$0xf]
      %v434 = vld [vmem:[%s1 + $0x378] sm:$0xf]
      %v435 = vld [vmem:[%s1 + $0x37c] sm:$0xf]
      %v436 = vld [vmem:[%s1 + $0x380] sm:$0xf]
      %v437 = vld [vmem:[%s1 + $0x384] sm:$0xf]
      %v438 = vld [vmem:[%s1 + $0x388] sm:$0xf]
      %v439 = vld [vmem:[%s1 + $0x38c] sm:$0xf]
      %v440 = vld [vmem:[%s1 + $0x390] sm:$0xf]
      %v441 = vld [vmem:[%s1 + $0x394] sm:$0xf]
      %v442 = vld [vmem:[%s1 + $0x398] sm:$0xf]
      %v443 = vld [vmem:[%s1 + $0x39c] sm:$0xf]
      %v444 = vld [vmem:[%s1 + $0x3a0] sm:$0xf]
      %v445 = vld [vmem:[%s1 + $0x3a4] sm:$0xf]
      %v446 = vld [vmem:[%s1 + $0x3a8] sm:$0xf]
      %v447 = vld [vmem:[%s1 + $0x3ac] sm:$0xf]
      %v448 = vld [vmem:[%s1 + $0x3b0] sm:$0xf]
      %v449 = vld [vmem:[%s1 + $0x3b4] sm:$0xf]
      %v450 = vld [vmem:[%s1 + $0x3b8] sm:$0xf]
      %v451 = vld [vmem:[%s1 + $0x3bc] sm:$0xf]
      %v452 = vld [vmem:[%s1 + $0x3c0] sm:$0xf]
      %v453 = vld [vmem:[%s1 + $0x3c4] sm:$0xf]
      %v454 = vld [vmem:[%s1 + $0x3c8] sm:$0xf]
      %v455 = vld [vmem:[%s1 + $0x3cc] sm:$0xf]
      %v456 = vld [vmem:[%s1 + $0x3d0] sm:$0xf]
      %v457 = vld [vmem:[%s1 + $0x3d4] sm:$0xf]
      %v458 = vld [vmem:[%s1 + $0x3d8] sm:$0xf]
      %v459 = vld [vmem:[%s1 + $0x3dc] sm:$0xf]
      %v460 = vld [vmem:[%s1 + $0x3e0] sm:$0xf]
      %v461 = vld [vmem:[%s1 + $0x3e4] sm:$0xf]
      %v462 = vld [vmem:[%s1 + $0x3e8] sm:$0xf]
      %v463 = vld [vmem:[%s1 + $0x3ec] sm:$0xf]
      %v464 = vld [vmem:[%s1 + $0x3f0] sm:$0xf]
      %v465 = vld [vmem:[%s1 + $0x3f4] sm:$0xf]
      %v466 = vld [vmem:[%s1 + $0x3f8] sm:$0xf]
      %v467 = vld [vmem:[%s1 + $0x3fc] sm:$0xf]
      %v468 = vld [vmem:[%s1 + $0x400] sm:$0xf]
      %v469 = vld [vmem:[%s1 + $0x404] sm:$0xf]
      %v470 = vld [vmem:[%s1 + $0x408] sm:$0xf]
      %v471 = vld [vmem:[%s1 + $0x40c] sm:$0xf]
      %v472 = vld [vmem:[%s1 + $0x410] sm:$0xf]
      %v473 = vld [vmem:[%s1 + $0x414] sm:$0xf]
      %v474 = vld [vmem:[%s1 + $0x418] sm:$0xf]
      %v475 = vld [vmem:[%s1 + $0x41c] sm:$0xf]
      %v476 = vld [vmem:[%s1 + $0x420] sm:$0xf]
      %v477 = vld [vmem:[%s1 + $0x424] sm:$0xf]
      %v478 = vld [vmem:[%s1 + $0x428] sm:$0xf]
      %v479 = vld [vmem:[%s1 + $0x42c] sm:$0xf]
      %v480 = vld [vmem:[%s1 + $0x430] sm:$0xf]
      %v481 = vld [vmem:[%s1 + $0x434] sm:$0xf]
      %v482 = vld [vmem:[%s1 + $0x438] sm:$0xf]
      %v483 = vld [vmem:[%s1 + $0x43c] sm:$0xf]
      %v484 = vld [vmem:[%s1 + $0x440] sm:$0xf]
      %v485 = vld [vmem:[%s1 + $0x444] sm:$0xf]
      %v486 = vld [vmem:[%s1 + $0x448] sm:$0xf]
      %v487 = vld [vmem:[%s1 + $0x44c] sm:$0xf]
      %v488 = vld [vmem:[%s1 + $0x450] sm:$0xf]
      %v489 = vld [vmem:[%s1 + $0x454] sm:$0xf]
      %v490 = vld [vmem:[%s1 + $0x458] sm:$0xf]
      %v491 = vld [vmem:[%s1 + $0x45c] sm:$0xf]
      %v492 = vld [vmem:[%s1 + $0x460] sm:$0xf]
      %v493 = vld [vmem:[%s1 + $0x464] sm:$0xf]
      %v494 = vld [vmem:[%s1 + $0x468] sm:$0xf]
      %v495 = vld [vmem:[%s1 + $0x46c] sm:$0xf]
      %v496 = vld [vmem:[%s1 + $0x470] sm:$0xf]
      %v497 = vld [vmem:[%s1 + $0x474] sm:$0xf]
      %v498 = vld [vmem:[%s1 + $0x478] sm:$0xf]
      %v499 = vld [vmem:[%s1 + $0x47c] sm:$0xf]
      %v500 = vld [vmem:[%s1 + $0x480] sm:$0xf]
      %v501 = vld [vmem:[%s1 + $0x484] sm:$0xf]
      %v502 = vld [vmem:[%s1 + $0x488] sm:$0xf]
      %v503 = vld [vmem:[%s1 + $0x48c] sm:$0xf]
      %v504 = vld [vmem:[%s1 + $0x490] sm:$0xf]
      %v505 = vld [vmem:[%s1 + $0x494] sm:$0xf]
      %v506 = vld [vmem:[%s1 + $0x498] sm:$0xf]
      %v507 = vld [vmem:[%s1 + $0x49c] sm:$0xf]
      %v508 = vld [vmem:[%s1 + $0x4a0] sm:$0xf]
      %v509 = vld [vmem:[%s1 + $0x4a4] sm:$0xf]
      %v510 = vld [vmem:[%s1 + $0x4a8] sm:$0xf]
      %v511 = vld [vmem:[%s1 + $0x4ac] sm:$0xf]
      %v512 = vld [vmem:[%s1 + $0x4b0] sm:$0xf]
      %v513 = vld [vmem:[%s1 + $0x4b4] sm:$0xf]
      %v514 = vld [vmem:[%s1 + $0x4b8] sm:$0xf]
      %v515 = vld [vmem:[%s1 + $0x4bc] sm:$0xf]
      %v516 = vld [vmem:[%s1 + $0x4c0] sm:$0xf]
      %v517 = vld [vmem:[%s1 + $0x4c4] sm:$0xf]
      %v518 = vld [vmem:[%s1 + $0x4c8] sm:$0xf]
      %v519 = vld [vmem:[%s1 + $0x4cc] sm:$0xf]
      %v520 = vld [vmem:[%s1 + $0x4d0] sm:$0xf]
      %v521 = vld [vmem:[%s1 + $0x4d4] sm:$0xf]
      %v522 = vld [vmem:[%s1 + $0x4d8] sm:$0xf]
      %v523 = vld [vmem:[%s1 + $0x4dc] sm:$0xf]
      %v524 = vld [vmem:[%s1 + $0x4e0] sm:$0xf]
      %v525 = vld [vmem:[%s1 + $0x4e4] sm:$0xf]
      %v526 = vld [vmem:[%s1 + $0x4e8] sm:$0xf]
      %v527 = vld [vmem:[%s1 + $0x4ec] sm:$0xf]
      %v528 = vld [vmem:[%s1 + $0x4f0] sm:$0xf]
      %v529 = vld [vmem:[%s1 + $0x4f4] sm:$0xf]
      %v530 = vld [vmem:[%s1 + $0x4f8] sm:$0xf]
      %v531 = vld [vmem:[%s1 + $0x4fc] sm:$0xf]
      %v532 = vld [vmem:[%s1 + $0x500] sm:$0xf]
      %v533 = vld [vmem:[%s1 + $0x504] sm:$0xf]
      %v534 = vld [vmem:[%s1 + $0x508] sm:$0xf]
      %v535 = vld [vmem:[%s1 + $0x50c] sm:$0xf]
      %v536 = vld [vmem:[%s1 + $0x510] sm:$0xf]
      %v537 = vld [vmem:[%s1 + $0x514] sm:$0xf]
      %v538 = vld [vmem:[%s1 + $0x518] sm:$0xf]
      %v539 = vld [vmem:[%s1 + $0x51c] sm:$0xf]
      %v540 = vld [vmem:[%s1 + $0x520] sm:$0xf]
      %v541 = vld [vmem:[%s1 + $0x524] sm:$0xf]
      %v542 = vld [vmem:[%s1 + $0x528] sm:$0xf]
      %v543 = vld [vmem:[%s1 + $0x52c] sm:$0xf]
      %v544 = vld [vmem:[%s1 + $0x530] sm:$0xf]
      %v545 = vld [vmem:[%s1 + $0x534] sm:$0xf]
      %v546 = vld [vmem:[%s1 + $0x538] sm:$0xf]
      %v547 = vld [vmem:[%s1 + $0x53c] sm:$0xf]
      %v548 = vld [vmem:[%s1 + $0x540] sm:$0xf]
      %v549 = vld [vmem:[%s1 + $0x544] sm:$0xf]
      %v550 = vld [vmem:[%s1 + $0x548] sm:$0xf]
      %v551 = vld [vmem:[%s1 + $0x54c] sm:$0xf]
      %v552 = vld [vmem:[%s1 + $0x550] sm:$0xf]
      %v553 = vld [vmem:[%s1 + $0x554] sm:$0xf]
      %v554 = vld [vmem:[%s1 + $0x558] sm:$0xf]
      %v555 = vld [vmem:[%s1 + $0x55c] sm:$0xf]
      %v556 = vld [vmem:[%s1 + $0x560] sm:$0xf]
      %v557 = vld [vmem:[%s1 + $0x564] sm:$0xf]
      %v558 = vld [vmem:[%s1 + $0x568] sm:$0xf]
      %v559 = vld [vmem:[%s1 + $0x56c] sm:$0xf]
      %v560 = vld [vmem:[%s1 + $0x570] sm:$0xf]
      %v561 = vld [vmem:[%s1 + $0x574] sm:$0xf]
      %v562 = vld [vmem:[%s1 + $0x578] sm:$0xf]
      %v563 = vld [vmem:[%s1 + $0x57c] sm:$0xf]
      %v564 = vld [vmem:[%s1 + $0x580] sm:$0xf]
      %v565 = vld [vmem:[%s1 + $0x584] sm:$0xf]
      %v566 = vld [vmem:[%s1 + $0x588] sm:$0xf]
      %v567 = vld [vmem:[%s1 + $0x58c] sm:$0xf]
      %v568 = vld [vmem:[%s1 + $0x590] sm:$0xf]
      %v569 = vld [vmem:[%s1 + $0x594] sm:$0xf]
      %v570 = vld [vmem:[%s1 + $0x598] sm:$0xf]
      %v571 = vld [vmem:[%s1 + $0x59c] sm:$0xf]
      %v572 = vld [vmem:[%s1 + $0x5a0] sm:$0xf]
      %v573 = vld [vmem:[%s1 + $0x5a4] sm:$0xf]
      %v574 = vld [vmem:[%s1 + $0x5a8] sm:$0xf]
      %v575 = vld [vmem:[%s1 + $0x5ac] sm:$0xf]
      %v576 = vld [vmem:[%s1 + $0x5b0] sm:$0xf]
      %v577 = vld [vmem:[%s1 + $0x5b4] sm:$0xf]
      %v578 = vld [vmem:[%s1 + $0x5b8] sm:$0xf]
      %v579 = vld [vmem:[%s1 + $0x5bc] sm:$0xf]
      %v580 = vld [vmem:[%s1 + $0x5c0] sm:$0xf]
      %v581 = vld [vmem:[%s1 + $0x5c4] sm:$0xf]
      %v582 = vld [vmem:[%s1 + $0x5c8] sm:$0xf]
      %v583 = vld [vmem:[%s1 + $0x5cc] sm:$0xf]
      %v584 = vld [vmem:[%s1 + $0x5d0] sm:$0xf]
      %v585 = vld [vmem:[%s1 + $0x5d4] sm:$0xf]
      %v586 = vld [vmem:[%s1 + $0x5d8] sm:$0xf]
      %v587 = vld [vmem:[%s1 + $0x5dc] sm:$0xf]
      %v588 = vld [vmem:[%s1 + $0x5e0] sm:$0xf]
      %v589 = vld [vmem:[%s1 + $0x5e4] sm:$0xf]
      %v590 = vld [vmem:[%s1 + $0x5e8] sm:$0xf]
      %v591 = vld [vmem:[%s1 + $0x5ec] sm:$0xf]
      %v592 = vld [vmem:[%s1 + $0x5f0] sm:$0xf]
      %v593 = vld [vmem:[%s1 + $0x5f4] sm:$0xf]
      %v594 = vld [vmem:[%s1 + $0x5f8] sm:$0xf]
      %v595 = vld [vmem:[%s1 + $0x5fc] sm:$0xf]
      %v596 = vld [vmem:[%s1 + $0x600] sm:$0xf]
      %v597 = vld [vmem:[%s1 + $0x604] sm:$0xf]
      %v598 = vld [vmem:[%s1 + $0x608] sm:$0xf]
      %v599 = vld [vmem:[%s1 + $0x60c] sm:$0xf]
      %v600 = vld [vmem:[%s1 + $0x610] sm:$0xf]
      %v601 = vld [vmem:[%s1 + $0x614] sm:$0xf]
      %v602 = vld [vmem:[%s1 + $0x618] sm:$0xf]
      %v603 = vld [vmem:[%s1 + $0x61c] sm:$0xf]
      %v604 = vld [vmem:[%s1 + $0x620] sm:$0xf]
      %v605 = vld [vmem:[%s1 + $0x624] sm:$0xf]
      %v606 = vld [vmem:[%s1 + $0x628] sm:$0xf]
      %v607 = vld [vmem:[%s1 + $0x62c] sm:$0xf]
      %v608 = vld [vmem:[%s1 + $0x630] sm:$0xf]
      %v609 = vld [vmem:[%s1 + $0x634] sm:$0xf]
      %v610 = vld [vmem:[%s1 + $0x638] sm:$0xf]
      %v611 = vld [vmem:[%s1 + $0x63c] sm:$0xf]
      %v612 = vld [vmem:[%s1 + $0x640] sm:$0xf]
      %v613 = vld [vmem:[%s1 + $0x644] sm:$0xf]
      %v614 = vld [vmem:[%s1 + $0x648] sm:$0xf]
      %v615 = vld [vmem:[%s1 + $0x64c] sm:$0xf]
      %v616 = vld [vmem:[%s1 + $0x650] sm:$0xf]
      %v617 = vld [vmem:[%s1 + $0x654] sm:$0xf]
      %v618 = vld [vmem:[%s1 + $0x658] sm:$0xf]
      %v619 = vld [vmem:[%s1 + $0x65c] sm:$0xf]
      %v620 = vld [vmem:[%s1 + $0x660] sm:$0xf]
      %v621 = vld [vmem:[%s1 + $0x664] sm:$0xf]
      %v622 = vld [vmem:[%s1 + $0x668] sm:$0xf]
      %v623 = vld [vmem:[%s1 + $0x66c] sm:$0xf]
      %v624 = vld [vmem:[%s1 + $0x670] sm:$0xf]
      %v625 = vld [vmem:[%s1 + $0x674] sm:$0xf]
      %v626 = vld [vmem:[%s1 + $0x678] sm:$0xf]
      %v627 = vld [vmem:[%s1 + $0x67c] sm:$0xf]
      %v628 = vld [vmem:[%s1 + $0x680] sm:$0xf]
      %v629 = vld [vmem:[%s1 + $0x684] sm:$0xf]
      %v630 = vld [vmem:[%s1 + $0x688] sm:$0xf]
      %v631 = vld [vmem:[%s1 + $0x68c] sm:$0xf]
      %v632 = vld [vmem:[%s1 + $0x690] sm:$0xf]
      %v633 = vld [vmem:[%s1 + $0x694] sm:$0xf]
      %v634 = vld [vmem:[%s1 + $0x698] sm:$0xf]
      %v635 = vld [vmem:[%s1 + $0x69c] sm:$0xf]
      %v636 = vld [vmem:[%s1 + $0x6a0] sm:$0xf]
      %v637 = vld [vmem:[%s1 + $0x6a4] sm:$0xf]
      %v638 = vld [vmem:[%s1 + $0x6a8] sm:$0xf]
      %v639 = vld [vmem:[%s1 + $0x6ac] sm:$0xf]
      %v640 = vld [vmem:[%s1 + $0x6b0] sm:$0xf]
      %v641 = vld [vmem:[%s1 + $0x6b4] sm:$0xf]
      %v642 = vld [vmem:[%s1 + $0x6b8] sm:$0xf]
      %v643 = vld [vmem:[%s1 + $0x6bc] sm:$0xf]
      %v644 = vld [vmem:[%s1 + $0x6c0] sm:$0xf]
      %v645 = vld [vmem:[%s1 + $0x6c4] sm:$0xf]
      %v646 = vld [vmem:[%s1 + $0x6c8] sm:$0xf]
      %v647 = vld [vmem:[%s1 + $0x6cc] sm:$0xf]
      %v648 = vld [vmem:[%s1 + $0x6d0] sm:$0xf]
      %v649 = vld [vmem:[%s1 + $0x6d4] sm:$0xf]
      %v650 = vld [vmem:[%s1 + $0x6d8] sm:$0xf]
      %v651 = vld [vmem:[%s1 + $0x6dc] sm:$0xf]
      %v652 = vld [vmem:[%s1 + $0x6e0] sm:$0xf]
      %v653 = vld [vmem:[%s1 + $0x6e4] sm:$0xf]
      %v654 = vld [vmem:[%s1 + $0x6e8] sm:$0xf]
      %v655 = vld [vmem:[%s1 + $0x6ec] sm:$0xf]
      %v656 = vld [vmem:[%s1 + $0x6f0] sm:$0xf]
      %v657 = vld [vmem:[%s1 + $0x6f4] sm:$0xf]
      %v658 = vld [vmem:[%s1 + $0x6f8] sm:$0xf]
      %v659 = vld [vmem:[%s1 + $0x6fc] sm:$0xf]
      %v660 = vld [vmem:[%s1 + $0x700] sm:$0xf]
      %v661 = vld [vmem:[%s1 + $0x704] sm:$0xf]
      %v662 = vld [vmem:[%s1 + $0x708] sm:$0xf]
      %v663 = vld [vmem:[%s1 + $0x70c] sm:$0xf]
      %v664 = vld [vmem:[%s1 + $0x710] sm:$0xf]
      %v665 = vld [vmem:[%s1 + $0x714] sm:$0xf]
      %v666 = vld [vmem:[%s1 + $0x718] sm:$0xf]
      %v667 = vld [vmem:[%s1 + $0x71c] sm:$0xf]
      %v668 = vld [vmem:[%s1 + $0x720] sm:$0xf]
      %v669 = vld [vmem:[%s1 + $0x724] sm:$0xf]
      %v670 = vld [vmem:[%s1 + $0x728] sm:$0xf]
      %v671 = vld [vmem:[%s1 + $0x72c] sm:$0xf]
      %v672 = vld [vmem:[%s1 + $0x730] sm:$0xf]
      %v673 = vld [vmem:[%s1 + $0x734] sm:$0xf]
      %v674 = vld [vmem:[%s1 + $0x738] sm:$0xf]
      %v675 = vld [vmem:[%s1 + $0x73c] sm:$0xf]
      %v676 = vld [vmem:[%s1 + $0x740] sm:$0xf]
      %v677 = vld [vmem:[%s1 + $0x744] sm:$0xf]
      %v678 = vld [vmem:[%s1 + $0x748] sm:$0xf]
      %v679 = vld [vmem:[%s1 + $0x74c] sm:$0xf]
      %v680 = vld [vmem:[%s1 + $0x750] sm:$0xf]
      %v681 = vld [vmem:[%s1 + $0x754] sm:$0xf]
      %v682 = vld [vmem:[%s1 + $0x758] sm:$0xf]
      %v683 = vld [vmem:[%s1 + $0x75c] sm:$0xf]
      %v684 = vld [vmem:[%s1 + $0x760] sm:$0xf]
      %v685 = vld [vmem:[%s1 + $0x764] sm:$0xf]
      %v686 = vld [vmem:[%s1 + $0x768] sm:$0xf]
      %v687 = vld [vmem:[%s1 + $0x76c] sm:$0xf]
      %v688 = vld [vmem:[%s1 + $0x770] sm:$0xf]
      %v689 = vld [vmem:[%s1 + $0x774] sm:$0xf]
      %v690 = vld [vmem:[%s1 + $0x778] sm:$0xf]
      %v691 = vld [vmem:[%s1 + $0x77c] sm:$0xf]
      %v692 = vld [vmem:[%s1 + $0x780] sm:$0xf]
      %v693 = vld [vmem:[%s1 + $0x784] sm:$0xf]
      %v694 = vld [vmem:[%s1 + $0x788] sm:$0xf]
      %v695 = vld [vmem:[%s1 + $0x78c] sm:$0xf]
      %v696 = vld [vmem:[%s1 + $0x790] sm:$0xf]
      %v697 = vld [vmem:[%s1 + $0x794] sm:$0xf]
      %v698 = vld [vmem:[%s1 + $0x798] sm:$0xf]
      %v699 = vld [vmem:[%s1 + $0x79c] sm:$0xf]
      %v700 = vld [vmem:[%s1 + $0x7a0] sm:$0xf]
      %v701 = vld [vmem:[%s1 + $0x7a4] sm:$0xf]
      %v702 = vld [vmem:[%s1 + $0x7a8] sm:$0xf]
      %v703 = vld [vmem:[%s1 + $0x7ac] sm:$0xf]
      %v704 = vld [vmem:[%s1 + $0x7b0] sm:$0xf]
      %v705 = vld [vmem:[%s1 + $0x7b4] sm:$0xf]
      %v706 = vld [vmem:[%s1 + $0x7b8] sm:$0xf]
      %v707 = vld [vmem:[%s1 + $0x7bc] sm:$0xf]
      %v708 = vld [vmem:[%s1 + $0x7c0] sm:$0xf]
      %v709 = vld [vmem:[%s1 + $0x7c4] sm:$0xf]
      %v710 = vld [vmem:[%s1 + $0x7c8] sm:$0xf]
      %v711 = vld [vmem:[%s1 + $0x7cc] sm:$0xf]
      %v712 = vld [vmem:[%s1 + $0x7d0] sm:$0xf]
      %v713 = vld [vmem:[%s1 + $0x7d4] sm:$0xf]
      %v714 = vld [vmem:[%s1 + $0x7d8] sm:$0xf]
      %v715 = vld [vmem:[%s1 + $0x7dc] sm:$0xf]
      %v716 = vld [vmem:[%s1 + $0x7e0] sm:$0xf]
      %v717 = vld [vmem:[%s1 + $0x7e4] sm:$0xf]
      %v718 = vld [vmem:[%s1 + $0x7e8] sm:$0xf]
      %v719 = vld [vmem:[%s1 + $0x7ec] sm:$0xf]
      %v720 = vld [vmem:[%s1 + $0x7f0] sm:$0xf]
      %v721 = vld [vmem:[%s1 + $0x7f4] sm:$0xf]
      %v722 = vld [vmem:[%s1 + $0x7f8] sm:$0xf]
      %v723 = vld [vmem:[%s1 + $0x7fc] sm:$0xf]
      %v724 = vld [vmem:[%s1 + $0x800] sm:$0xf]
      %v725 = vld [vmem:[%s1 + $0x804] sm:$0xf]
      %v726 = vld [vmem:[%s1 + $0x808] sm:$0xf]
      %v727 = vld [vmem:[%s1 + $0x80c] sm:$0xf]
      %v728 = vld [vmem:[%s1 + $0x810] sm:$0xf]
      %v729 = vld [vmem:[%s1 + $0x814] sm:$0xf]
      %v730 = vld [vmem:[%s1 + $0x818] sm:$0xf]
      %v731 = vld [vmem:[%s1 + $0x81c] sm:$0xf]
      %v732 = vld [vmem:[%s1 + $0x820] sm:$0xf]
      %v733 = vld [vmem:[%s1 + $0x824] sm:$0xf]
      %v734 = vld [vmem:[%s1 + $0x828] sm:$0xf]
      %v735 = vld [vmem:[%s1 + $0x82c] sm:$0xf]
      %v736 = vld [vmem:[%s1 + $0x830] sm:$0xf]
      %v737 = vld [vmem:[%s1 + $0x834] sm:$0xf]
      %v738 = vld [vmem:[%s1 + $0x838] sm:$0xf]
      %v739 = vld [vmem:[%s1 + $0x83c] sm:$0xf]
      %v740 = vld [vmem:[%s1 + $0x840] sm:$0xf]
      %v741 = vld [vmem:[%s1 + $0x844] sm:$0xf]
      %v742 = vld [vmem:[%s1 + $0x848] sm:$0xf]
      %v743 = vld [vmem:[%s1 + $0x84c] sm:$0xf]
      %v744 = vld [vmem:[%s1 + $0x850] sm:$0xf]
      %v745 = vld [vmem:[%s1 + $0x854] sm:$0xf]
      %v746 = vld [vmem:[%s1 + $0x858] sm:$0xf]
      %v747 = vld [vmem:[%s1 + $0x85c] sm:$0xf]
      %v748 = vld [vmem:[%s1 + $0x860] sm:$0xf]
      %v749 = vld [vmem:[%s1 + $0x864] sm:$0xf]
      %v750 = vld [vmem:[%s1 + $0x868] sm:$0xf]
      %v751 = vld [vmem:[%s1 + $0x86c] sm:$0xf]
      %v752 = vld [vmem:[%s1 + $0x870] sm:$0xf]
      %v753 = vld [vmem:[%s1 + $0x874] sm:$0xf]
      %v754 = vld [vmem:[%s1 + $0x878] sm:$0xf]
      %v755 = vld [vmem:[%s1 + $0x87c] sm:$0xf]
      %v756 = vld [vmem:[%s1 + $0x880] sm:$0xf]
      %v757 = vld [vmem:[%s1 + $0x884] sm:$0xf]
      %v758 = vld [vmem:[%s1 + $0x888] sm:$0xf]
      %v759 = vld [vmem:[%s1 + $0x88c] sm:$0xf]
      %v760 = vld [vmem:[%s1 + $0x890] sm:$0xf]
      %v761 = vld [vmem:[%s1 + $0x894] sm:$0xf]
      %v762 = vld [vmem:[%s1 + $0x898] sm:$0xf]
      %v763 = vld [vmem:[%s1 + $0x89c] sm:$0xf]
      %v764 = vld [vmem:[%s1 + $0x8a0] sm:$0xf]
      %v765 = vld [vmem:[%s1 + $0x8a4] sm:$0xf]
      %v766 = vld [vmem:[%s1 + $0x8a8] sm:$0xf]
      %v767 = vld [vmem:[%s1 + $0x8ac] sm:$0xf]
      %v768 = vld [vmem:[%s1 + $0x8b0] sm:$0xf]
      %v769 = vld [vmem:[%s1 + $0x8b4] sm:$0xf]
      %v770 = vld [vmem:[%s1 + $0x8b8] sm:$0xf]
      %v771 = vld [vmem:[%s1 + $0x8bc] sm:$0xf]
      %v772 = vld [vmem:[%s1 + $0x8c0] sm:$0xf]
      %v773 = vld [vmem:[%s1 + $0x8c4] sm:$0xf]
      %v774 = vld [vmem:[%s1 + $0x8c8] sm:$0xf]
      %v775 = vld [vmem:[%s1 + $0x8cc] sm:$0xf]
      %v776 = vld [vmem:[%s1 + $0x8d0] sm:$0xf]
      %v777 = vld [vmem:[%s1 + $0x8d4] sm:$0xf]
      %v778 = vld [vmem:[%s1 + $0x8d8] sm:$0xf]
      %v779 = vld [vmem:[%s1 + $0x8dc] sm:$0xf]
      %v780 = vld [vmem:[%s1 + $0x8e0] sm:$0xf]
      %v781 = vld [vmem:[%s1 + $0x8e4] sm:$0xf]
      %v782 = vld [vmem:[%s1 + $0x8e8] sm:$0xf]
      %v783 = vld [vmem:[%s1 + $0x8ec] sm:$0xf]
      %v784 = vld [vmem:[%s1 + $0x8f0] sm:$0xf]
      %v785 = vld [vmem:[%s1 + $0x8f4] sm:$0xf]
      %v786 = vld [vmem:[%s1 + $0x8f8] sm:$0xf]
      %v787 = vld [vmem:[%s1 + $0x8fc] sm:$0xf]
      %v788 = vld [vmem:[%s1 + $0x900] sm:$0xf]
      %v789 = vld [vmem:[%s1 + $0x904] sm:$0xf]
      %v790 = vld [vmem:[%s1 + $0x908] sm:$0xf]
      %v791 = vld [vmem:[%s1 + $0x90c] sm:$0xf]
      %v792 = vld [vmem:[%s1 + $0x910] sm:$0xf]
      %v793 = vld [vmem:[%s1 + $0x914] sm:$0xf]
      %v794 = vld [vmem:[%s1 + $0x918] sm:$0xf]
      %v795 = vld [vmem:[%s1 + $0x91c] sm:$0xf]
      %v796 = vld [vmem:[%s1 + $0x920] sm:$0xf]
      %v797 = vld [vmem:[%s1 + $0x924] sm:$0xf]
      %v798 = vld [vmem:[%s1 + $0x928] sm:$0xf]
      %v799 = vld [vmem:[%s1 + $0x92c] sm:$0xf]
      %v800 = vld [vmem:[%s1 + $0x930] sm:$0xf]
      %v801 = vld [vmem:[%s1 + $0x934] sm:$0xf]
      %v802 = vld [vmem:[%s1 + $0x938] sm:$0xf]
      %v803 = vld [vmem:[%s1 + $0x93c] sm:$0xf]
      %v804 = vld [vmem:[%s1 + $0x940] sm:$0xf]
      %v805 = vld [vmem:[%s1 + $0x944] sm:$0xf]
      %v806 = vld [vmem:[%s1 + $0x948] sm:$0xf]
      %v807 = vld [vmem:[%s1 + $0x94c] sm:$0xf]
      %v808 = vld [vmem:[%s1 + $0x950] sm:$0xf]
      %v809 = vld [vmem:[%s1 + $0x954] sm:$0xf]
      %v810 = vld [vmem:[%s1 + $0x958] sm:$0xf]
      %v811 = vld [vmem:[%s1 + $0x95c] sm:$0xf]
      %v812 = vld [vmem:[%s1 + $0x960] sm:$0xf]
      %v813 = vld [vmem:[%s1 + $0x964] sm:$0xf]
      %v814 = vld [vmem:[%s1 + $0x968] sm:$0xf]
      %v815 = vld [vmem:[%s1 + $0x96c] sm:$0xf]
      %v816 = vld [vmem:[%s1 + $0x970] sm:$0xf]
      %v817 = vld [vmem:[%s1 + $0x974] sm:$0xf]
      %v818 = vld [vmem:[%s1 + $0x978] sm:$0xf]
      %v819 = vld [vmem:[%s1 + $0x97c] sm:$0xf]
      %v820 = vld [vmem:[%s1 + $0x980] sm:$0xf]
      %v821 = vld [vmem:[%s1 + $0x984] sm:$0xf]
      %v822 = vld [vmem:[%s1 + $0x988] sm:$0xf]
      %v823 = vld [vmem:[%s1 + $0x98c] sm:$0xf]
      %v824 = vld [vmem:[%s1 + $0x990] sm:$0xf]
      %v825 = vld [vmem:[%s1 + $0x994] sm:$0xf]
      %v826 = vld [vmem:[%s1 + $0x998] sm:$0xf]
      %v827 = vld [vmem:[%s1 + $0x99c] sm:$0xf]
      %v828 = vld [vmem:[%s1 + $0x9a0] sm:$0xf]
      %v829 = vld [vmem:[%s1 + $0x9a4] sm:$0xf]
      %v830 = vld [vmem:[%s1 + $0x9a8] sm:$0xf]
      %v831 = vld [vmem:[%s1 + $0x9ac] sm:$0xf]
      %v832 = vld [vmem:[%s1 + $0x9b0] sm:$0xf]
      %v833 = vld [vmem:[%s1 + $0x9b4] sm:$0xf]
      %v834 = vld [vmem:[%s1 + $0x9b8] sm:$0xf]
      %v835 = vld [vmem:[%s1 + $0x9bc] sm:$0xf]
      %v836 = vld [vmem:[%s1 + $0x9c0] sm:$0xf]
      %v837 = vld [vmem:[%s1 + $0x9c4] sm:$0xf]
      %v838 = vld [vmem:[%s1 + $0x9c8] sm:$0xf]
      %v839 = vld [vmem:[%s1 + $0x9cc] sm:$0xf]
      %v840 = vld [vmem:[%s1 + $0x9d0] sm:$0xf]
      %v841 = vld [vmem:[%s1 + $0x9d4] sm:$0xf]
      %v842 = vld [vmem:[%s1 + $0x9d8] sm:$0xf]
      %v843 = vld [vmem:[%s1 + $0x9dc] sm:$0xf]
      %v844 = vld [vmem:[%s1 + $0x9e0] sm:$0xf]
      %v845 = vld [vmem:[%s1 + $0x9e4] sm:$0xf]
      %v846 = vld [vmem:[%s1 + $0x9e8] sm:$0xf]
      %v847 = vld [vmem:[%s1 + $0x9ec] sm:$0xf]
      %v848 = vld [vmem:[%s1 + $0x9f0] sm:$0xf]
      %v849 = vld [vmem:[%s1 + $0x9f4] sm:$0xf]
      %v850 = vld [vmem:[%s1 + $0x9f8] sm:$0xf]
      %v851 = vld [vmem:[%s1 + $0x9fc] sm:$0xf]
      %v852 = vld [vmem:[%s2] sm:$0x1]
      %v854 = vlaneseq
      %v855 = vshrl.u32 %v854, 7
      %v856 = vsub.s32 0, %v855
      %v857 = vrot.slane %v852, %v856
      %v899 = vunpack.c.l.b16 %v172
      %v900 = vunpack.c.h.b16 %v172
      %v901 = vunpack.c.l.b16 %v173
      %v902 = vunpack.c.h.b16 %v173
      %v903 = vunpack.c.l.b16 %v174
      %v904 = vunpack.c.h.b16 %v174
      %v905 = vunpack.c.l.b16 %v175
      %v906 = vunpack.c.h.b16 %v175
      %v907 = vunpack.c.l.b16 %v176
      %v908 = vunpack.c.h.b16 %v176
      %v909 = vunpack.c.l.b16 %v177
      %v910 = vunpack.c.h.b16 %v177
      %v911 = vunpack.c.l.b16 %v178
      %v912 = vunpack.c.h.b16 %v178
      %v913 = vunpack.c.l.b16 %v179
      %v914 = vunpack.c.h.b16 %v179
      %v915 = vunpack.c.l.b16 %v180
      %v916 = vunpack.c.h.b16 %v180
      %v917 = vunpack.c.l.b16 %v181
      %v918 = vunpack.c.h.b16 %v181
      %v919 = vunpack.c.l.b16 %v182
      %v920 = vunpack.c.h.b16 %v182
      %v921 = vunpack.c.l.b16 %v183
      %v922 = vunpack.c.h.b16 %v183
      %v923 = vunpack.c.l.b16 %v184
      %v924 = vunpack.c.h.b16 %v184
      %v925 = vunpack.c.l.b16 %v185
      %v926 = vunpack.c.h.b16 %v185
      %v927 = vunpack.c.l.b16 %v186
      %v928 = vunpack.c.h.b16 %v186
      %v929 = vunpack.c.l.b16 %v187
      %v930 = vunpack.c.h.b16 %v187
      %v931 = vunpack.c.l.b16 %v188
      %v932 = vunpack.c.h.b16 %v188
      %v933 = vunpack.c.l.b16 %v189
      %v934 = vunpack.c.h.b16 %v189
      %v935 = vunpack.c.l.b16 %v190
      %v936 = vunpack.c.h.b16 %v190
      %v937 = vunpack.c.l.b16 %v191
      %v938 = vunpack.c.h.b16 %v191
      %v939 = vunpack.c.l.b16 %v192
      %v940 = vunpack.c.h.b16 %v192
      %v941 = vunpack.c.l.b16 %v193
      %v942 = vunpack.c.h.b16 %v193
      %v943 = vunpack.c.l.b16 %v194
      %v944 = vunpack.c.h.b16 %v194
      %v945 = vunpack.c.l.b16 %v195
      %v946 = vunpack.c.h.b16 %v195
      %v947 = vunpack.c.l.b16 %v196
      %v948 = vunpack.c.h.b16 %v196
      %v949 = vunpack.c.l.b16 %v197
      %v950 = vunpack.c.h.b16 %v197
      %v951 = vunpack.c.l.b16 %v198
      %v952 = vunpack.c.h.b16 %v198
      %v953 = vunpack.c.l.b16 %v199
      %v954 = vunpack.c.h.b16 %v199
      %v955 = vunpack.c.l.b16 %v200
      %v956 = vunpack.c.h.b16 %v200
      %v957 = vunpack.c.l.b16 %v201
      %v958 = vunpack.c.h.b16 %v201
      %v959 = vunpack.c.l.b16 %v202
      %v960 = vunpack.c.h.b16 %v202
      %v961 = vunpack.c.l.b16 %v203
      %v962 = vunpack.c.h.b16 %v203
      %v963 = vunpack.c.l.b16 %v204
      %v964 = vunpack.c.h.b16 %v204
      %v965 = vunpack.c.l.b16 %v205
      %v966 = vunpack.c.h.b16 %v205
      %v967 = vunpack.c.l.b16 %v206
      %v968 = vunpack.c.h.b16 %v206
      %v969 = vunpack.c.l.b16 %v207
      %v970 = vunpack.c.h.b16 %v207
      %v971 = vunpack.c.l.b16 %v208
      %v972 = vunpack.c.h.b16 %v208
      %v973 = vunpack.c.l.b16 %v209
      %v974 = vunpack.c.h.b16 %v209
      %v975 = vunpack.c.l.b16 %v210
      %v976 = vunpack.c.h.b16 %v210
      %v977 = vunpack.c.l.b16 %v211
      %v978 = vunpack.c.h.b16 %v211
      %v979 = vpack.c.b16 %v939, %v899
      %v980 = vpack.c.b16 %v940, %v900
      %v981 = vpack.c.b16 %v941, %v901
      %v982 = vpack.c.b16 %v942, %v902
      %v983 = vpack.c.b16 %v943, %v903
      %v984 = vpack.c.b16 %v944, %v904
      %v985 = vpack.c.b16 %v945, %v905
      %v986 = vpack.c.b16 %v946, %v906
      %v987 = vpack.c.b16 %v947, %v907
      %v988 = vpack.c.b16 %v948, %v908
      %v989 = vpack.c.b16 %v949, %v909
      %v990 = vpack.c.b16 %v950, %v910
      %v991 = vpack.c.b16 %v951, %v911
      %v992 = vpack.c.b16 %v952, %v912
      %v993 = vpack.c.b16 %v953, %v913
      %v994 = vpack.c.b16 %v954, %v914
      %v995 = vpack.c.b16 %v955, %v915
      %v996 = vpack.c.b16 %v956, %v916
      %v997 = vpack.c.b16 %v957, %v917
      %v998 = vpack.c.b16 %v958, %v918
      %v999 = vpack.c.b16 %v959, %v919
      %v1000 = vpack.c.b16 %v960, %v920
      %v1001 = vpack.c.b16 %v961, %v921
      %v1002 = vpack.c.b16 %v962, %v922
      %v1003 = vpack.c.b16 %v963, %v923
      %v1004 = vpack.c.b16 %v964, %v924
      %v1005 = vpack.c.b16 %v965, %v925
      %v1006 = vpack.c.b16 %v966, %v926
      %v1007 = vpack.c.b16 %v967, %v927
      %v1008 = vpack.c.b16 %v968, %v928
      %v1009 = vpack.c.b16 %v969, %v929
      %v1010 = vpack.c.b16 %v970, %v930
      %v1011 = vpack.c.b16 %v971, %v931
      %v1012 = vpack.c.b16 %v972, %v932
      %v1013 = vpack.c.b16 %v973, %v933
      %v1014 = vpack.c.b16 %v974, %v934
      %v1015 = vpack.c.b16 %v975, %v935
      %v1016 = vpack.c.b16 %v976, %v936
      %v1017 = vpack.c.b16 %v977, %v937
      %v1018 = vpack.c.b16 %v978, %v938
      %v1699 = vunpack.c.l.b16 %v212
      %v1700 = vunpack.c.l.b16 %v213
      %v1701 = vunpack.c.l.b16 %v214
      %v1702 = vunpack.c.l.b16 %v215
      %v1703 = vunpack.c.l.b16 %v216
      %v1704 = vunpack.c.l.b16 %v217
      %v1705 = vunpack.c.l.b16 %v218
      %v1706 = vunpack.c.l.b16 %v219
      %v1707 = vunpack.c.l.b16 %v220
      %v1708 = vunpack.c.l.b16 %v221
      %v1709 = vunpack.c.l.b16 %v222
      %v1710 = vunpack.c.l.b16 %v223
      %v1711 = vunpack.c.l.b16 %v224
      %v1712 = vunpack.c.l.b16 %v225
      %v1713 = vunpack.c.l.b16 %v226
      %v1714 = vunpack.c.l.b16 %v227
      %v1715 = vunpack.c.l.b16 %v228
      %v1716 = vunpack.c.l.b16 %v229
      %v1717 = vunpack.c.l.b16 %v230
      %v1718 = vunpack.c.l.b16 %v231
      %v1719 = vunpack.c.l.b16 %v232
      %v1720 = vunpack.c.l.b16 %v233
      %v1721 = vunpack.c.l.b16 %v234
      %v1722 = vunpack.c.l.b16 %v235
      %v1723 = vunpack.c.l.b16 %v236
      %v1724 = vunpack.c.l.b16 %v237
      %v1725 = vunpack.c.l.b16 %v238
      %v1726 = vunpack.c.l.b16 %v239
      %v1727 = vunpack.c.l.b16 %v240
      %v1728 = vunpack.c.l.b16 %v241
      %v1729 = vunpack.c.l.b16 %v242
      %v1730 = vunpack.c.l.b16 %v243
      %v1731 = vunpack.c.l.b16 %v244
      %v1732 = vunpack.c.l.b16 %v245
      %v1733 = vunpack.c.l.b16 %v246
      %v1734 = vunpack.c.l.b16 %v247
      %v1735 = vunpack.c.l.b16 %v248
      %v1736 = vunpack.c.l.b16 %v249
      %v1737 = vunpack.c.l.b16 %v250
      %v1738 = vunpack.c.l.b16 %v251
      %v1739 = vunpack.c.l.b16 %v252
      %v1740 = vunpack.c.l.b16 %v253
      %v1741 = vunpack.c.l.b16 %v254
      %v1742 = vunpack.c.l.b16 %v255
      %v1743 = vunpack.c.l.b16 %v256
      %v1744 = vunpack.c.l.b16 %v257
      %v1745 = vunpack.c.l.b16 %v258
      %v1746 = vunpack.c.l.b16 %v259
      %v1747 = vunpack.c.l.b16 %v260
      %v1748 = vunpack.c.l.b16 %v261
      %v1749 = vunpack.c.l.b16 %v262
      %v1750 = vunpack.c.l.b16 %v263
      %v1751 = vunpack.c.l.b16 %v264
      %v1752 = vunpack.c.l.b16 %v265
      %v1753 = vunpack.c.l.b16 %v266
      %v1754 = vunpack.c.l.b16 %v267
      %v1755 = vunpack.c.l.b16 %v268
      %v1756 = vunpack.c.l.b16 %v269
      %v1757 = vunpack.c.l.b16 %v270
      %v1758 = vunpack.c.l.b16 %v271
      %v1759 = vunpack.c.l.b16 %v272
      %v1760 = vunpack.c.l.b16 %v273
      %v1761 = vunpack.c.l.b16 %v274
      %v1762 = vunpack.c.l.b16 %v275
      %v1763 = vunpack.c.l.b16 %v276
      %v1764 = vunpack.c.l.b16 %v277
      %v1765 = vunpack.c.l.b16 %v278
      %v1766 = vunpack.c.l.b16 %v279
      %v1767 = vunpack.c.l.b16 %v280
      %v1768 = vunpack.c.l.b16 %v281
      %v1769 = vunpack.c.l.b16 %v282
      %v1770 = vunpack.c.l.b16 %v283
      %v1771 = vunpack.c.l.b16 %v284
      %v1772 = vunpack.c.l.b16 %v285
      %v1773 = vunpack.c.l.b16 %v286
      %v1774 = vunpack.c.l.b16 %v287
      %v1775 = vunpack.c.l.b16 %v288
      %v1776 = vunpack.c.l.b16 %v289
      %v1777 = vunpack.c.l.b16 %v290
      %v1778 = vunpack.c.l.b16 %v291
      %v1779 = vunpack.c.l.b16 %v292
      %v1780 = vunpack.c.l.b16 %v293
      %v1781 = vunpack.c.l.b16 %v294
      %v1782 = vunpack.c.l.b16 %v295
      %v1783 = vunpack.c.l.b16 %v296
      %v1784 = vunpack.c.l.b16 %v297
      %v1785 = vunpack.c.l.b16 %v298
      %v1786 = vunpack.c.l.b16 %v299
      %v1787 = vunpack.c.l.b16 %v300
      %v1788 = vunpack.c.l.b16 %v301
      %v1789 = vunpack.c.l.b16 %v302
      %v1790 = vunpack.c.l.b16 %v303
      %v1791 = vunpack.c.l.b16 %v304
      %v1792 = vunpack.c.l.b16 %v305
      %v1793 = vunpack.c.l.b16 %v306
      %v1794 = vunpack.c.l.b16 %v307
      %v1795 = vunpack.c.l.b16 %v308
      %v1796 = vunpack.c.l.b16 %v309
      %v1797 = vunpack.c.l.b16 %v310
      %v1798 = vunpack.c.l.b16 %v311
      %v1799 = vunpack.c.l.b16 %v312
      %v1800 = vunpack.c.l.b16 %v313
      %v1801 = vunpack.c.l.b16 %v314
      %v1802 = vunpack.c.l.b16 %v315
      %v1803 = vunpack.c.l.b16 %v316
      %v1804 = vunpack.c.l.b16 %v317
      %v1805 = vunpack.c.l.b16 %v318
      %v1806 = vunpack.c.l.b16 %v319
      %v1807 = vunpack.c.l.b16 %v320
      %v1808 = vunpack.c.l.b16 %v321
      %v1809 = vunpack.c.l.b16 %v322
      %v1810 = vunpack.c.l.b16 %v323
      %v1811 = vunpack.c.l.b16 %v324
      %v1812 = vunpack.c.l.b16 %v325
      %v1813 = vunpack.c.l.b16 %v326
      %v1814 = vunpack.c.l.b16 %v327
      %v1815 = vunpack.c.l.b16 %v328
      %v1816 = vunpack.c.l.b16 %v329
      %v1817 = vunpack.c.l.b16 %v330
      %v1818 = vunpack.c.l.b16 %v331
      %v1819 = vunpack.c.l.b16 %v332
      %v1820 = vunpack.c.l.b16 %v333
      %v1821 = vunpack.c.l.b16 %v334
      %v1822 = vunpack.c.l.b16 %v335
      %v1823 = vunpack.c.l.b16 %v336
      %v1824 = vunpack.c.l.b16 %v337
      %v1825 = vunpack.c.l.b16 %v338
      %v1826 = vunpack.c.l.b16 %v339
      %v1827 = vunpack.c.l.b16 %v340
      %v1828 = vunpack.c.l.b16 %v341
      %v1829 = vunpack.c.l.b16 %v342
      %v1830 = vunpack.c.l.b16 %v343
      %v1831 = vunpack.c.l.b16 %v344
      %v1832 = vunpack.c.l.b16 %v345
      %v1833 = vunpack.c.l.b16 %v346
      %v1834 = vunpack.c.l.b16 %v347
      %v1835 = vunpack.c.l.b16 %v348
      %v1836 = vunpack.c.l.b16 %v349
      %v1837 = vunpack.c.l.b16 %v350
      %v1838 = vunpack.c.l.b16 %v351
      %v1839 = vunpack.c.l.b16 %v352
      %v1840 = vunpack.c.l.b16 %v353
      %v1841 = vunpack.c.l.b16 %v354
      %v1842 = vunpack.c.l.b16 %v355
      %v1843 = vunpack.c.l.b16 %v356
      %v1844 = vunpack.c.l.b16 %v357
      %v1845 = vunpack.c.l.b16 %v358
      %v1846 = vunpack.c.l.b16 %v359
      %v1847 = vunpack.c.l.b16 %v360
      %v1848 = vunpack.c.l.b16 %v361
      %v1849 = vunpack.c.l.b16 %v362
      %v1850 = vunpack.c.l.b16 %v363
      %v1851 = vunpack.c.l.b16 %v364
      %v1852 = vunpack.c.l.b16 %v365
      %v1853 = vunpack.c.l.b16 %v366
      %v1854 = vunpack.c.l.b16 %v367
      %v1855 = vunpack.c.l.b16 %v368
      %v1856 = vunpack.c.l.b16 %v369
      %v1857 = vunpack.c.l.b16 %v370
      %v1858 = vunpack.c.l.b16 %v371
      %v1859 = vunpack.c.l.b16 %v372
      %v1860 = vunpack.c.l.b16 %v373
      %v1861 = vunpack.c.l.b16 %v374
      %v1862 = vunpack.c.l.b16 %v375
      %v1863 = vunpack.c.l.b16 %v376
      %v1864 = vunpack.c.l.b16 %v377
      %v1865 = vunpack.c.l.b16 %v378
      %v1866 = vunpack.c.l.b16 %v379
      %v1867 = vunpack.c.l.b16 %v380
      %v1868 = vunpack.c.l.b16 %v381
      %v1869 = vunpack.c.l.b16 %v382
      %v1870 = vunpack.c.l.b16 %v383
      %v1871 = vunpack.c.l.b16 %v384
      %v1872 = vunpack.c.l.b16 %v385
      %v1873 = vunpack.c.l.b16 %v386
      %v1874 = vunpack.c.l.b16 %v387
      %v1875 = vunpack.c.l.b16 %v388
      %v1876 = vunpack.c.l.b16 %v389
      %v1877 = vunpack.c.l.b16 %v390
      %v1878 = vunpack.c.l.b16 %v391
      %v1879 = vunpack.c.l.b16 %v392
      %v1880 = vunpack.c.l.b16 %v393
      %v1881 = vunpack.c.l.b16 %v394
      %v1882 = vunpack.c.l.b16 %v395
      %v1883 = vunpack.c.l.b16 %v396
      %v1884 = vunpack.c.l.b16 %v397
      %v1885 = vunpack.c.l.b16 %v398
      %v1886 = vunpack.c.l.b16 %v399
      %v1887 = vunpack.c.l.b16 %v400
      %v1888 = vunpack.c.l.b16 %v401
      %v1889 = vunpack.c.l.b16 %v402
      %v1890 = vunpack.c.l.b16 %v403
      %v1891 = vunpack.c.l.b16 %v404
      %v1892 = vunpack.c.l.b16 %v405
      %v1893 = vunpack.c.l.b16 %v406
      %v1894 = vunpack.c.l.b16 %v407
      %v1895 = vunpack.c.l.b16 %v408
      %v1896 = vunpack.c.l.b16 %v409
      %v1897 = vunpack.c.l.b16 %v410
      %v1898 = vunpack.c.l.b16 %v411
      %v1899 = vunpack.c.l.b16 %v412
      %v1900 = vunpack.c.l.b16 %v413
      %v1901 = vunpack.c.l.b16 %v414
      %v1902 = vunpack.c.l.b16 %v415
      %v1903 = vunpack.c.l.b16 %v416
      %v1904 = vunpack.c.l.b16 %v417
      %v1905 = vunpack.c.l.b16 %v418
      %v1906 = vunpack.c.l.b16 %v419
      %v1907 = vunpack.c.l.b16 %v420
      %v1908 = vunpack.c.l.b16 %v421
      %v1909 = vunpack.c.l.b16 %v422
      %v1910 = vunpack.c.l.b16 %v423
      %v1911 = vunpack.c.l.b16 %v424
      %v1912 = vunpack.c.l.b16 %v425
      %v1913 = vunpack.c.l.b16 %v426
      %v1914 = vunpack.c.l.b16 %v427
      %v1915 = vunpack.c.l.b16 %v428
      %v1916 = vunpack.c.l.b16 %v429
      %v1917 = vunpack.c.l.b16 %v430
      %v1918 = vunpack.c.l.b16 %v431
      %v1919 = vunpack.c.l.b16 %v432
      %v1920 = vunpack.c.l.b16 %v433
      %v1921 = vunpack.c.l.b16 %v434
      %v1922 = vunpack.c.l.b16 %v435
      %v1923 = vunpack.c.l.b16 %v436
      %v1924 = vunpack.c.l.b16 %v437
      %v1925 = vunpack.c.l.b16 %v438
      %v1926 = vunpack.c.l.b16 %v439
      %v1927 = vunpack.c.l.b16 %v440
      %v1928 = vunpack.c.l.b16 %v441
      %v1929 = vunpack.c.l.b16 %v442
      %v1930 = vunpack.c.l.b16 %v443
      %v1931 = vunpack.c.l.b16 %v444
      %v1932 = vunpack.c.l.b16 %v445
      %v1933 = vunpack.c.l.b16 %v446
      %v1934 = vunpack.c.l.b16 %v447
      %v1935 = vunpack.c.l.b16 %v448
      %v1936 = vunpack.c.l.b16 %v449
      %v1937 = vunpack.c.l.b16 %v450
      %v1938 = vunpack.c.l.b16 %v451
      %v1939 = vunpack.c.l.b16 %v452
      %v1940 = vunpack.c.l.b16 %v453
      %v1941 = vunpack.c.l.b16 %v454
      %v1942 = vunpack.c.l.b16 %v455
      %v1943 = vunpack.c.l.b16 %v456
      %v1944 = vunpack.c.l.b16 %v457
      %v1945 = vunpack.c.l.b16 %v458
      %v1946 = vunpack.c.l.b16 %v459
      %v1947 = vunpack.c.l.b16 %v460
      %v1948 = vunpack.c.l.b16 %v461
      %v1949 = vunpack.c.l.b16 %v462
      %v1950 = vunpack.c.l.b16 %v463
      %v1951 = vunpack.c.l.b16 %v464
      %v1952 = vunpack.c.l.b16 %v465
      %v1953 = vunpack.c.l.b16 %v466
      %v1954 = vunpack.c.l.b16 %v467
      %v1955 = vunpack.c.l.b16 %v468
      %v1956 = vunpack.c.l.b16 %v469
      %v1957 = vunpack.c.l.b16 %v470
      %v1958 = vunpack.c.l.b16 %v471
      %v1959 = vunpack.c.l.b16 %v472
      %v1960 = vunpack.c.l.b16 %v473
      %v1961 = vunpack.c.l.b16 %v474
      %v1962 = vunpack.c.l.b16 %v475
      %v1963 = vunpack.c.l.b16 %v476
      %v1964 = vunpack.c.l.b16 %v477
      %v1965 = vunpack.c.l.b16 %v478
      %v1966 = vunpack.c.l.b16 %v479
      %v1967 = vunpack.c.l.b16 %v480
      %v1968 = vunpack.c.l.b16 %v481
      %v1969 = vunpack.c.l.b16 %v482
      %v1970 = vunpack.c.l.b16 %v483
      %v1971 = vunpack.c.l.b16 %v484
      %v1972 = vunpack.c.l.b16 %v485
      %v1973 = vunpack.c.l.b16 %v486
      %v1974 = vunpack.c.l.b16 %v487
      %v1975 = vunpack.c.l.b16 %v488
      %v1976 = vunpack.c.l.b16 %v489
      %v1977 = vunpack.c.l.b16 %v490
      %v1978 = vunpack.c.l.b16 %v491
      %v1979 = vunpack.c.l.b16 %v492
      %v1980 = vunpack.c.l.b16 %v493
      %v1981 = vunpack.c.l.b16 %v494
      %v1982 = vunpack.c.l.b16 %v495
      %v1983 = vunpack.c.l.b16 %v496
      %v1984 = vunpack.c.l.b16 %v497
      %v1985 = vunpack.c.l.b16 %v498
      %v1986 = vunpack.c.l.b16 %v499
      %v1987 = vunpack.c.l.b16 %v500
      %v1988 = vunpack.c.l.b16 %v501
      %v1989 = vunpack.c.l.b16 %v502
      %v1990 = vunpack.c.l.b16 %v503
      %v1991 = vunpack.c.l.b16 %v504
      %v1992 = vunpack.c.l.b16 %v505
      %v1993 = vunpack.c.l.b16 %v506
      %v1994 = vunpack.c.l.b16 %v507
      %v1995 = vunpack.c.l.b16 %v508
      %v1996 = vunpack.c.l.b16 %v509
      %v1997 = vunpack.c.l.b16 %v510
      %v1998 = vunpack.c.l.b16 %v511
      %v1999 = vunpack.c.l.b16 %v512
      %v2000 = vunpack.c.l.b16 %v513
      %v2001 = vunpack.c.l.b16 %v514
      %v2002 = vunpack.c.l.b16 %v515
      %v2003 = vunpack.c.l.b16 %v516
      %v2004 = vunpack.c.l.b16 %v517
      %v2005 = vunpack.c.l.b16 %v518
      %v2006 = vunpack.c.l.b16 %v519
      %v2007 = vunpack.c.l.b16 %v520
      %v2008 = vunpack.c.l.b16 %v521
      %v2009 = vunpack.c.l.b16 %v522
      %v2010 = vunpack.c.l.b16 %v523
      %v2011 = vunpack.c.l.b16 %v524
      %v2012 = vunpack.c.l.b16 %v525
      %v2013 = vunpack.c.l.b16 %v526
      %v2014 = vunpack.c.l.b16 %v527
      %v2015 = vunpack.c.l.b16 %v528
      %v2016 = vunpack.c.l.b16 %v529
      %v2017 = vunpack.c.l.b16 %v530
      %v2018 = vunpack.c.l.b16 %v531
      %v2019 = vunpack.c.l.b16 %v532
      %v2020 = vunpack.c.l.b16 %v533
      %v2021 = vunpack.c.l.b16 %v534
      %v2022 = vunpack.c.l.b16 %v535
      %v2023 = vunpack.c.l.b16 %v536
      %v2024 = vunpack.c.l.b16 %v537
      %v2025 = vunpack.c.l.b16 %v538
      %v2026 = vunpack.c.l.b16 %v539
      %v2027 = vunpack.c.l.b16 %v540
      %v2028 = vunpack.c.l.b16 %v541
      %v2029 = vunpack.c.l.b16 %v542
      %v2030 = vunpack.c.l.b16 %v543
      %v2031 = vunpack.c.l.b16 %v544
      %v2032 = vunpack.c.l.b16 %v545
      %v2033 = vunpack.c.l.b16 %v546
      %v2034 = vunpack.c.l.b16 %v547
      %v2035 = vunpack.c.l.b16 %v548
      %v2036 = vunpack.c.l.b16 %v549
      %v2037 = vunpack.c.l.b16 %v550
      %v2038 = vunpack.c.l.b16 %v551
      %v2039 = vunpack.c.l.b16 %v552
      %v2040 = vunpack.c.l.b16 %v553
      %v2041 = vunpack.c.l.b16 %v554
      %v2042 = vunpack.c.l.b16 %v555
      %v2043 = vunpack.c.l.b16 %v556
      %v2044 = vunpack.c.l.b16 %v557
      %v2045 = vunpack.c.l.b16 %v558
      %v2046 = vunpack.c.l.b16 %v559
      %v2047 = vunpack.c.l.b16 %v560
      %v2048 = vunpack.c.l.b16 %v561
      %v2049 = vunpack.c.l.b16 %v562
      %v2050 = vunpack.c.l.b16 %v563
      %v2051 = vunpack.c.l.b16 %v564
      %v2052 = vunpack.c.l.b16 %v565
      %v2053 = vunpack.c.l.b16 %v566
      %v2054 = vunpack.c.l.b16 %v567
      %v2055 = vunpack.c.l.b16 %v568
      %v2056 = vunpack.c.l.b16 %v569
      %v2057 = vunpack.c.l.b16 %v570
      %v2058 = vunpack.c.l.b16 %v571
      %v2059 = vunpack.c.l.b16 %v572
      %v2060 = vunpack.c.l.b16 %v573
      %v2061 = vunpack.c.l.b16 %v574
      %v2062 = vunpack.c.l.b16 %v575
      %v2063 = vunpack.c.l.b16 %v576
      %v2064 = vunpack.c.l.b16 %v577
      %v2065 = vunpack.c.l.b16 %v578
      %v2066 = vunpack.c.l.b16 %v579
      %v2067 = vunpack.c.l.b16 %v580
      %v2068 = vunpack.c.l.b16 %v581
      %v2069 = vunpack.c.l.b16 %v582
      %v2070 = vunpack.c.l.b16 %v583
      %v2071 = vunpack.c.l.b16 %v584
      %v2072 = vunpack.c.l.b16 %v585
      %v2073 = vunpack.c.l.b16 %v586
      %v2074 = vunpack.c.l.b16 %v587
      %v2075 = vunpack.c.l.b16 %v588
      %v2076 = vunpack.c.l.b16 %v589
      %v2077 = vunpack.c.l.b16 %v590
      %v2078 = vunpack.c.l.b16 %v591
      %v2079 = vunpack.c.l.b16 %v592
      %v2080 = vunpack.c.l.b16 %v593
      %v2081 = vunpack.c.l.b16 %v594
      %v2082 = vunpack.c.l.b16 %v595
      %v2083 = vunpack.c.l.b16 %v596
      %v2084 = vunpack.c.l.b16 %v597
      %v2085 = vunpack.c.l.b16 %v598
      %v2086 = vunpack.c.l.b16 %v599
      %v2087 = vunpack.c.l.b16 %v600
      %v2088 = vunpack.c.l.b16 %v601
      %v2089 = vunpack.c.l.b16 %v602
      %v2090 = vunpack.c.l.b16 %v603
      %v2091 = vunpack.c.l.b16 %v604
      %v2092 = vunpack.c.l.b16 %v605
      %v2093 = vunpack.c.l.b16 %v606
      %v2094 = vunpack.c.l.b16 %v607
      %v2095 = vunpack.c.l.b16 %v608
      %v2096 = vunpack.c.l.b16 %v609
      %v2097 = vunpack.c.l.b16 %v610
      %v2098 = vunpack.c.l.b16 %v611
      %v2099 = vunpack.c.l.b16 %v612
      %v2100 = vunpack.c.l.b16 %v613
      %v2101 = vunpack.c.l.b16 %v614
      %v2102 = vunpack.c.l.b16 %v615
      %v2103 = vunpack.c.l.b16 %v616
      %v2104 = vunpack.c.l.b16 %v617
      %v2105 = vunpack.c.l.b16 %v618
      %v2106 = vunpack.c.l.b16 %v619
      %v2107 = vunpack.c.l.b16 %v620
      %v2108 = vunpack.c.l.b16 %v621
      %v2109 = vunpack.c.l.b16 %v622
      %v2110 = vunpack.c.l.b16 %v623
      %v2111 = vunpack.c.l.b16 %v624
      %v2112 = vunpack.c.l.b16 %v625
      %v2113 = vunpack.c.l.b16 %v626
      %v2114 = vunpack.c.l.b16 %v627
      %v2115 = vunpack.c.l.b16 %v628
      %v2116 = vunpack.c.l.b16 %v629
      %v2117 = vunpack.c.l.b16 %v630
      %v2118 = vunpack.c.l.b16 %v631
      %v2119 = vunpack.c.l.b16 %v632
      %v2120 = vunpack.c.l.b16 %v633
      %v2121 = vunpack.c.l.b16 %v634
      %v2122 = vunpack.c.l.b16 %v635
      %v2123 = vunpack.c.l.b16 %v636
      %v2124 = vunpack.c.l.b16 %v637
      %v2125 = vunpack.c.l.b16 %v638
      %v2126 = vunpack.c.l.b16 %v639
      %v2127 = vunpack.c.l.b16 %v640
      %v2128 = vunpack.c.l.b16 %v641
      %v2129 = vunpack.c.l.b16 %v642
      %v2130 = vunpack.c.l.b16 %v643
      %v2131 = vunpack.c.l.b16 %v644
      %v2132 = vunpack.c.l.b16 %v645
      %v2133 = vunpack.c.l.b16 %v646
      %v2134 = vunpack.c.l.b16 %v647
      %v2135 = vunpack.c.l.b16 %v648
      %v2136 = vunpack.c.l.b16 %v649
      %v2137 = vunpack.c.l.b16 %v650
      %v2138 = vunpack.c.l.b16 %v651
      %v2139 = vunpack.c.l.b16 %v652
      %v2140 = vunpack.c.l.b16 %v653
      %v2141 = vunpack.c.l.b16 %v654
      %v2142 = vunpack.c.l.b16 %v655
      %v2143 = vunpack.c.l.b16 %v656
      %v2144 = vunpack.c.l.b16 %v657
      %v2145 = vunpack.c.l.b16 %v658
      %v2146 = vunpack.c.l.b16 %v659
      %v2147 = vunpack.c.l.b16 %v660
      %v2148 = vunpack.c.l.b16 %v661
      %v2149 = vunpack.c.l.b16 %v662
      %v2150 = vunpack.c.l.b16 %v663
      %v2151 = vunpack.c.l.b16 %v664
      %v2152 = vunpack.c.l.b16 %v665
      %v2153 = vunpack.c.l.b16 %v666
      %v2154 = vunpack.c.l.b16 %v667
      %v2155 = vunpack.c.l.b16 %v668
      %v2156 = vunpack.c.l.b16 %v669
      %v2157 = vunpack.c.l.b16 %v670
      %v2158 = vunpack.c.l.b16 %v671
      %v2159 = vunpack.c.l.b16 %v672
      %v2160 = vunpack.c.l.b16 %v673
      %v2161 = vunpack.c.l.b16 %v674
      %v2162 = vunpack.c.l.b16 %v675
      %v2163 = vunpack.c.l.b16 %v676
      %v2164 = vunpack.c.l.b16 %v677
      %v2165 = vunpack.c.l.b16 %v678
      %v2166 = vunpack.c.l.b16 %v679
      %v2167 = vunpack.c.l.b16 %v680
      %v2168 = vunpack.c.l.b16 %v681
      %v2169 = vunpack.c.l.b16 %v682
      %v2170 = vunpack.c.l.b16 %v683
      %v2171 = vunpack.c.l.b16 %v684
      %v2172 = vunpack.c.l.b16 %v685
      %v2173 = vunpack.c.l.b16 %v686
      %v2174 = vunpack.c.l.b16 %v687
      %v2175 = vunpack.c.l.b16 %v688
      %v2176 = vunpack.c.l.b16 %v689
      %v2177 = vunpack.c.l.b16 %v690
      %v2178 = vunpack.c.l.b16 %v691
      %v2179 = vunpack.c.l.b16 %v692
      %v2180 = vunpack.c.l.b16 %v693
      %v2181 = vunpack.c.l.b16 %v694
      %v2182 = vunpack.c.l.b16 %v695
      %v2183 = vunpack.c.l.b16 %v696
      %v2184 = vunpack.c.l.b16 %v697
      %v2185 = vunpack.c.l.b16 %v698
      %v2186 = vunpack.c.l.b16 %v699
      %v2187 = vunpack.c.l.b16 %v700
      %v2188 = vunpack.c.l.b16 %v701
      %v2189 = vunpack.c.l.b16 %v702
      %v2190 = vunpack.c.l.b16 %v703
      %v2191 = vunpack.c.l.b16 %v704
      %v2192 = vunpack.c.l.b16 %v705
      %v2193 = vunpack.c.l.b16 %v706
      %v2194 = vunpack.c.l.b16 %v707
      %v2195 = vunpack.c.l.b16 %v708
      %v2196 = vunpack.c.l.b16 %v709
      %v2197 = vunpack.c.l.b16 %v710
      %v2198 = vunpack.c.l.b16 %v711
      %v2199 = vunpack.c.l.b16 %v712
      %v2200 = vunpack.c.l.b16 %v713
      %v2201 = vunpack.c.l.b16 %v714
      %v2202 = vunpack.c.l.b16 %v715
      %v2203 = vunpack.c.l.b16 %v716
      %v2204 = vunpack.c.l.b16 %v717
      %v2205 = vunpack.c.l.b16 %v718
      %v2206 = vunpack.c.l.b16 %v719
      %v2207 = vunpack.c.l.b16 %v720
      %v2208 = vunpack.c.l.b16 %v721
      %v2209 = vunpack.c.l.b16 %v722
      %v2210 = vunpack.c.l.b16 %v723
      %v2211 = vunpack.c.l.b16 %v724
      %v2212 = vunpack.c.l.b16 %v725
      %v2213 = vunpack.c.l.b16 %v726
      %v2214 = vunpack.c.l.b16 %v727
      %v2215 = vunpack.c.l.b16 %v728
      %v2216 = vunpack.c.l.b16 %v729
      %v2217 = vunpack.c.l.b16 %v730
      %v2218 = vunpack.c.l.b16 %v731
      %v2219 = vunpack.c.l.b16 %v732
      %v2220 = vunpack.c.l.b16 %v733
      %v2221 = vunpack.c.l.b16 %v734
      %v2222 = vunpack.c.l.b16 %v735
      %v2223 = vunpack.c.l.b16 %v736
      %v2224 = vunpack.c.l.b16 %v737
      %v2225 = vunpack.c.l.b16 %v738
      %v2226 = vunpack.c.l.b16 %v739
      %v2227 = vunpack.c.l.b16 %v740
      %v2228 = vunpack.c.l.b16 %v741
      %v2229 = vunpack.c.l.b16 %v742
      %v2230 = vunpack.c.l.b16 %v743
      %v2231 = vunpack.c.l.b16 %v744
      %v2232 = vunpack.c.l.b16 %v745
      %v2233 = vunpack.c.l.b16 %v746
      %v2234 = vunpack.c.l.b16 %v747
      %v2235 = vunpack.c.l.b16 %v748
      %v2236 = vunpack.c.l.b16 %v749
      %v2237 = vunpack.c.l.b16 %v750
      %v2238 = vunpack.c.l.b16 %v751
      %v2239 = vunpack.c.l.b16 %v752
      %v2240 = vunpack.c.l.b16 %v753
      %v2241 = vunpack.c.l.b16 %v754
      %v2242 = vunpack.c.l.b16 %v755
      %v2243 = vunpack.c.l.b16 %v756
      %v2244 = vunpack.c.l.b16 %v757
      %v2245 = vunpack.c.l.b16 %v758
      %v2246 = vunpack.c.l.b16 %v759
      %v2247 = vunpack.c.l.b16 %v760
      %v2248 = vunpack.c.l.b16 %v761
      %v2249 = vunpack.c.l.b16 %v762
      %v2250 = vunpack.c.l.b16 %v763
      %v2251 = vunpack.c.l.b16 %v764
      %v2252 = vunpack.c.l.b16 %v765
      %v2253 = vunpack.c.l.b16 %v766
      %v2254 = vunpack.c.l.b16 %v767
      %v2255 = vunpack.c.l.b16 %v768
      %v2256 = vunpack.c.l.b16 %v769
      %v2257 = vunpack.c.l.b16 %v770
      %v2258 = vunpack.c.l.b16 %v771
      %v2259 = vunpack.c.l.b16 %v772
      %v2260 = vunpack.c.l.b16 %v773
      %v2261 = vunpack.c.l.b16 %v774
      %v2262 = vunpack.c.l.b16 %v775
      %v2263 = vunpack.c.l.b16 %v776
      %v2264 = vunpack.c.l.b16 %v777
      %v2265 = vunpack.c.l.b16 %v778
      %v2266 = vunpack.c.l.b16 %v779
      %v2267 = vunpack.c.l.b16 %v780
      %v2268 = vunpack.c.l.b16 %v781
      %v2269 = vunpack.c.l.b16 %v782
      %v2270 = vunpack.c.l.b16 %v783
      %v2271 = vunpack.c.l.b16 %v784
      %v2272 = vunpack.c.l.b16 %v785
      %v2273 = vunpack.c.l.b16 %v786
      %v2274 = vunpack.c.l.b16 %v787
      %v2275 = vunpack.c.l.b16 %v788
      %v2276 = vunpack.c.l.b16 %v789
      %v2277 = vunpack.c.l.b16 %v790
      %v2278 = vunpack.c.l.b16 %v791
      %v2279 = vunpack.c.l.b16 %v792
      %v2280 = vunpack.c.l.b16 %v793
      %v2281 = vunpack.c.l.b16 %v794
      %v2282 = vunpack.c.l.b16 %v795
      %v2283 = vunpack.c.l.b16 %v796
      %v2284 = vunpack.c.l.b16 %v797
      %v2285 = vunpack.c.l.b16 %v798
      %v2286 = vunpack.c.l.b16 %v799
      %v2287 = vunpack.c.l.b16 %v800
      %v2288 = vunpack.c.l.b16 %v801
      %v2289 = vunpack.c.l.b16 %v802
      %v2290 = vunpack.c.l.b16 %v803
      %v2291 = vunpack.c.l.b16 %v804
      %v2292 = vunpack.c.l.b16 %v805
      %v2293 = vunpack.c.l.b16 %v806
      %v2294 = vunpack.c.l.b16 %v807
      %v2295 = vunpack.c.l.b16 %v808
      %v2296 = vunpack.c.l.b16 %v809
      %v2297 = vunpack.c.l.b16 %v810
      %v2298 = vunpack.c.l.b16 %v811
      %v2299 = vunpack.c.l.b16 %v812
      %v2300 = vunpack.c.l.b16 %v813
      %v2301 = vunpack.c.l.b16 %v814
      %v2302 = vunpack.c.l.b16 %v815
      %v2303 = vunpack.c.l.b16 %v816
      %v2304 = vunpack.c.l.b16 %v817
      %v2305 = vunpack.c.l.b16 %v818
      %v2306 = vunpack.c.l.b16 %v819
      %v2307 = vunpack.c.l.b16 %v820
      %v2308 = vunpack.c.l.b16 %v821
      %v2309 = vunpack.c.l.b16 %v822
      %v2310 = vunpack.c.l.b16 %v823
      %v2311 = vunpack.c.l.b16 %v824
      %v2312 = vunpack.c.l.b16 %v825
      %v2313 = vunpack.c.l.b16 %v826
      %v2314 = vunpack.c.l.b16 %v827
      %v2315 = vunpack.c.l.b16 %v828
      %v2316 = vunpack.c.l.b16 %v829
      %v2317 = vunpack.c.l.b16 %v830
      %v2318 = vunpack.c.l.b16 %v831
      %v2319 = vunpack.c.l.b16 %v832
      %v2320 = vunpack.c.l.b16 %v833
      %v2321 = vunpack.c.l.b16 %v834
      %v2322 = vunpack.c.l.b16 %v835
      %v2323 = vunpack.c.l.b16 %v836
      %v2324 = vunpack.c.l.b16 %v837
      %v2325 = vunpack.c.l.b16 %v838
      %v2326 = vunpack.c.l.b16 %v839
      %v2327 = vunpack.c.l.b16 %v840
      %v2328 = vunpack.c.l.b16 %v841
      %v2329 = vunpack.c.l.b16 %v842
      %v2330 = vunpack.c.l.b16 %v843
      %v2331 = vunpack.c.l.b16 %v844
      %v2332 = vunpack.c.l.b16 %v845
      %v2333 = vunpack.c.l.b16 %v846
      %v2334 = vunpack.c.l.b16 %v847
      %v2335 = vunpack.c.l.b16 %v848
      %v2336 = vunpack.c.l.b16 %v849
      %v2337 = vunpack.c.l.b16 %v850
      %v2338 = vunpack.c.l.b16 %v851
      %v2339 = vpack.c.b16 %v1700, %v1699
      %v2340 = vpack.c.b16 %v1702, %v1701
      %v2341 = vpack.c.b16 %v1704, %v1703
      %v2342 = vpack.c.b16 %v1706, %v1705
      %v2343 = vpack.c.b16 %v1708, %v1707
      %v2344 = vpack.c.b16 %v1710, %v1709
      %v2345 = vpack.c.b16 %v1712, %v1711
      %v2346 = vpack.c.b16 %v1714, %v1713
      %v2347 = vpack.c.b16 %v1716, %v1715
      %v2348 = vpack.c.b16 %v1718, %v1717
      %v2349 = vpack.c.b16 %v1720, %v1719
      %v2350 = vpack.c.b16 %v1722, %v1721
      %v2351 = vpack.c.b16 %v1724, %v1723
      %v2352 = vpack.c.b16 %v1726, %v1725
      %v2353 = vpack.c.b16 %v1728, %v1727
      %v2354 = vpack.c.b16 %v1730, %v1729
      %v2355 = vpack.c.b16 %v1732, %v1731
      %v2356 = vpack.c.b16 %v1734, %v1733
      %v2357 = vpack.c.b16 %v1736, %v1735
      %v2358 = vpack.c.b16 %v1738, %v1737
      %v2359 = vpack.c.b16 %v1740, %v1739
      %v2360 = vpack.c.b16 %v1742, %v1741
      %v2361 = vpack.c.b16 %v1744, %v1743
      %v2362 = vpack.c.b16 %v1746, %v1745
      %v2363 = vpack.c.b16 %v1748, %v1747
      %v2364 = vpack.c.b16 %v1750, %v1749
      %v2365 = vpack.c.b16 %v1752, %v1751
      %v2366 = vpack.c.b16 %v1754, %v1753
      %v2367 = vpack.c.b16 %v1756, %v1755
      %v2368 = vpack.c.b16 %v1758, %v1757
      %v2369 = vpack.c.b16 %v1760, %v1759
      %v2370 = vpack.c.b16 %v1762, %v1761
      %v2371 = vpack.c.b16 %v1764, %v1763
      %v2372 = vpack.c.b16 %v1766, %v1765
      %v2373 = vpack.c.b16 %v1768, %v1767
      %v2374 = vpack.c.b16 %v1770, %v1769
      %v2375 = vpack.c.b16 %v1772, %v1771
      %v2376 = vpack.c.b16 %v1774, %v1773
      %v2377 = vpack.c.b16 %v1776, %v1775
      %v2378 = vpack.c.b16 %v1778, %v1777
      %v2379 = vpack.c.b16 %v1780, %v1779
      %v2380 = vpack.c.b16 %v1782, %v1781
      %v2381 = vpack.c.b16 %v1784, %v1783
      %v2382 = vpack.c.b16 %v1786, %v1785
      %v2383 = vpack.c.b16 %v1788, %v1787
      %v2384 = vpack.c.b16 %v1790, %v1789
      %v2385 = vpack.c.b16 %v1792, %v1791
      %v2386 = vpack.c.b16 %v1794, %v1793
      %v2387 = vpack.c.b16 %v1796, %v1795
      %v2388 = vpack.c.b16 %v1798, %v1797
      %v2389 = vpack.c.b16 %v1800, %v1799
      %v2390 = vpack.c.b16 %v1802, %v1801
      %v2391 = vpack.c.b16 %v1804, %v1803
      %v2392 = vpack.c.b16 %v1806, %v1805
      %v2393 = vpack.c.b16 %v1808, %v1807
      %v2394 = vpack.c.b16 %v1810, %v1809
      %v2395 = vpack.c.b16 %v1812, %v1811
      %v2396 = vpack.c.b16 %v1814, %v1813
      %v2397 = vpack.c.b16 %v1816, %v1815
      %v2398 = vpack.c.b16 %v1818, %v1817
      %v2399 = vpack.c.b16 %v1820, %v1819
      %v2400 = vpack.c.b16 %v1822, %v1821
      %v2401 = vpack.c.b16 %v1824, %v1823
      %v2402 = vpack.c.b16 %v1826, %v1825
      %v2403 = vpack.c.b16 %v1828, %v1827
      %v2404 = vpack.c.b16 %v1830, %v1829
      %v2405 = vpack.c.b16 %v1832, %v1831
      %v2406 = vpack.c.b16 %v1834, %v1833
      %v2407 = vpack.c.b16 %v1836, %v1835
      %v2408 = vpack.c.b16 %v1838, %v1837
      %v2409 = vpack.c.b16 %v1840, %v1839
      %v2410 = vpack.c.b16 %v1842, %v1841
      %v2411 = vpack.c.b16 %v1844, %v1843
      %v2412 = vpack.c.b16 %v1846, %v1845
      %v2413 = vpack.c.b16 %v1848, %v1847
      %v2414 = vpack.c.b16 %v1850, %v1849
      %v2415 = vpack.c.b16 %v1852, %v1851
      %v2416 = vpack.c.b16 %v1854, %v1853
      %v2417 = vpack.c.b16 %v1856, %v1855
      %v2418 = vpack.c.b16 %v1858, %v1857
      %v2419 = vpack.c.b16 %v1860, %v1859
      %v2420 = vpack.c.b16 %v1862, %v1861
      %v2421 = vpack.c.b16 %v1864, %v1863
      %v2422 = vpack.c.b16 %v1866, %v1865
      %v2423 = vpack.c.b16 %v1868, %v1867
      %v2424 = vpack.c.b16 %v1870, %v1869
      %v2425 = vpack.c.b16 %v1872, %v1871
      %v2426 = vpack.c.b16 %v1874, %v1873
      %v2427 = vpack.c.b16 %v1876, %v1875
      %v2428 = vpack.c.b16 %v1878, %v1877
      %v2429 = vpack.c.b16 %v1880, %v1879
      %v2430 = vpack.c.b16 %v1882, %v1881
      %v2431 = vpack.c.b16 %v1884, %v1883
      %v2432 = vpack.c.b16 %v1886, %v1885
      %v2433 = vpack.c.b16 %v1888, %v1887
      %v2434 = vpack.c.b16 %v1890, %v1889
      %v2435 = vpack.c.b16 %v1892, %v1891
      %v2436 = vpack.c.b16 %v1894, %v1893
      %v2437 = vpack.c.b16 %v1896, %v1895
      %v2438 = vpack.c.b16 %v1898, %v1897
      %v2439 = vpack.c.b16 %v1900, %v1899
      %v2440 = vpack.c.b16 %v1902, %v1901
      %v2441 = vpack.c.b16 %v1904, %v1903
      %v2442 = vpack.c.b16 %v1906, %v1905
      %v2443 = vpack.c.b16 %v1908, %v1907
      %v2444 = vpack.c.b16 %v1910, %v1909
      %v2445 = vpack.c.b16 %v1912, %v1911
      %v2446 = vpack.c.b16 %v1914, %v1913
      %v2447 = vpack.c.b16 %v1916, %v1915
      %v2448 = vpack.c.b16 %v1918, %v1917
      %v2449 = vpack.c.b16 %v1920, %v1919
      %v2450 = vpack.c.b16 %v1922, %v1921
      %v2451 = vpack.c.b16 %v1924, %v1923
      %v2452 = vpack.c.b16 %v1926, %v1925
      %v2453 = vpack.c.b16 %v1928, %v1927
      %v2454 = vpack.c.b16 %v1930, %v1929
      %v2455 = vpack.c.b16 %v1932, %v1931
      %v2456 = vpack.c.b16 %v1934, %v1933
      %v2457 = vpack.c.b16 %v1936, %v1935
      %v2458 = vpack.c.b16 %v1938, %v1937
      %v2459 = vpack.c.b16 %v1940, %v1939
      %v2460 = vpack.c.b16 %v1942, %v1941
      %v2461 = vpack.c.b16 %v1944, %v1943
      %v2462 = vpack.c.b16 %v1946, %v1945
      %v2463 = vpack.c.b16 %v1948, %v1947
      %v2464 = vpack.c.b16 %v1950, %v1949
      %v2465 = vpack.c.b16 %v1952, %v1951
      %v2466 = vpack.c.b16 %v1954, %v1953
      %v2467 = vpack.c.b16 %v1956, %v1955
      %v2468 = vpack.c.b16 %v1958, %v1957
      %v2469 = vpack.c.b16 %v1960, %v1959
      %v2470 = vpack.c.b16 %v1962, %v1961
      %v2471 = vpack.c.b16 %v1964, %v1963
      %v2472 = vpack.c.b16 %v1966, %v1965
      %v2473 = vpack.c.b16 %v1968, %v1967
      %v2474 = vpack.c.b16 %v1970, %v1969
      %v2475 = vpack.c.b16 %v1972, %v1971
      %v2476 = vpack.c.b16 %v1974, %v1973
      %v2477 = vpack.c.b16 %v1976, %v1975
      %v2478 = vpack.c.b16 %v1978, %v1977
      %v2479 = vpack.c.b16 %v1980, %v1979
      %v2480 = vpack.c.b16 %v1982, %v1981
      %v2481 = vpack.c.b16 %v1984, %v1983
      %v2482 = vpack.c.b16 %v1986, %v1985
      %v2483 = vpack.c.b16 %v1988, %v1987
      %v2484 = vpack.c.b16 %v1990, %v1989
      %v2485 = vpack.c.b16 %v1992, %v1991
      %v2486 = vpack.c.b16 %v1994, %v1993
      %v2487 = vpack.c.b16 %v1996, %v1995
      %v2488 = vpack.c.b16 %v1998, %v1997
      %v2489 = vpack.c.b16 %v2000, %v1999
      %v2490 = vpack.c.b16 %v2002, %v2001
      %v2491 = vpack.c.b16 %v2004, %v2003
      %v2492 = vpack.c.b16 %v2006, %v2005
      %v2493 = vpack.c.b16 %v2008, %v2007
      %v2494 = vpack.c.b16 %v2010, %v2009
      %v2495 = vpack.c.b16 %v2012, %v2011
      %v2496 = vpack.c.b16 %v2014, %v2013
      %v2497 = vpack.c.b16 %v2016, %v2015
      %v2498 = vpack.c.b16 %v2018, %v2017
      %v2499 = vpack.c.b16 %v2020, %v2019
      %v2500 = vpack.c.b16 %v2022, %v2021
      %v2501 = vpack.c.b16 %v2024, %v2023
      %v2502 = vpack.c.b16 %v2026, %v2025
      %v2503 = vpack.c.b16 %v2028, %v2027
      %v2504 = vpack.c.b16 %v2030, %v2029
      %v2505 = vpack.c.b16 %v2032, %v2031
      %v2506 = vpack.c.b16 %v2034, %v2033
      %v2507 = vpack.c.b16 %v2036, %v2035
      %v2508 = vpack.c.b16 %v2038, %v2037
      %v2509 = vpack.c.b16 %v2040, %v2039
      %v2510 = vpack.c.b16 %v2042, %v2041
      %v2511 = vpack.c.b16 %v2044, %v2043
      %v2512 = vpack.c.b16 %v2046, %v2045
      %v2513 = vpack.c.b16 %v2048, %v2047
      %v2514 = vpack.c.b16 %v2050, %v2049
      %v2515 = vpack.c.b16 %v2052, %v2051
      %v2516 = vpack.c.b16 %v2054, %v2053
      %v2517 = vpack.c.b16 %v2056, %v2055
      %v2518 = vpack.c.b16 %v2058, %v2057
      %v2519 = vpack.c.b16 %v2060, %v2059
      %v2520 = vpack.c.b16 %v2062, %v2061
      %v2521 = vpack.c.b16 %v2064, %v2063
      %v2522 = vpack.c.b16 %v2066, %v2065
      %v2523 = vpack.c.b16 %v2068, %v2067
      %v2524 = vpack.c.b16 %v2070, %v2069
      %v2525 = vpack.c.b16 %v2072, %v2071
      %v2526 = vpack.c.b16 %v2074, %v2073
      %v2527 = vpack.c.b16 %v2076, %v2075
      %v2528 = vpack.c.b16 %v2078, %v2077
      %v2529 = vpack.c.b16 %v2080, %v2079
      %v2530 = vpack.c.b16 %v2082, %v2081
      %v2531 = vpack.c.b16 %v2084, %v2083
      %v2532 = vpack.c.b16 %v2086, %v2085
      %v2533 = vpack.c.b16 %v2088, %v2087
      %v2534 = vpack.c.b16 %v2090, %v2089
      %v2535 = vpack.c.b16 %v2092, %v2091
      %v2536 = vpack.c.b16 %v2094, %v2093
      %v2537 = vpack.c.b16 %v2096, %v2095
      %v2538 = vpack.c.b16 %v2098, %v2097
      %v2539 = vpack.c.b16 %v2100, %v2099
      %v2540 = vpack.c.b16 %v2102, %v2101
      %v2541 = vpack.c.b16 %v2104, %v2103
      %v2542 = vpack.c.b16 %v2106, %v2105
      %v2543 = vpack.c.b16 %v2108, %v2107
      %v2544 = vpack.c.b16 %v2110, %v2109
      %v2545 = vpack.c.b16 %v2112, %v2111
      %v2546 = vpack.c.b16 %v2114, %v2113
      %v2547 = vpack.c.b16 %v2116, %v2115
      %v2548 = vpack.c.b16 %v2118, %v2117
      %v2549 = vpack.c.b16 %v2120, %v2119
      %v2550 = vpack.c.b16 %v2122, %v2121
      %v2551 = vpack.c.b16 %v2124, %v2123
      %v2552 = vpack.c.b16 %v2126, %v2125
      %v2553 = vpack.c.b16 %v2128, %v2127
      %v2554 = vpack.c.b16 %v2130, %v2129
      %v2555 = vpack.c.b16 %v2132, %v2131
      %v2556 = vpack.c.b16 %v2134, %v2133
      %v2557 = vpack.c.b16 %v2136, %v2135
      %v2558 = vpack.c.b16 %v2138, %v2137
      %v2559 = vpack.c.b16 %v2140, %v2139
      %v2560 = vpack.c.b16 %v2142, %v2141
      %v2561 = vpack.c.b16 %v2144, %v2143
      %v2562 = vpack.c.b16 %v2146, %v2145
      %v2563 = vpack.c.b16 %v2148, %v2147
      %v2564 = vpack.c.b16 %v2150, %v2149
      %v2565 = vpack.c.b16 %v2152, %v2151
      %v2566 = vpack.c.b16 %v2154, %v2153
      %v2567 = vpack.c.b16 %v2156, %v2155
      %v2568 = vpack.c.b16 %v2158, %v2157
      %v2569 = vpack.c.b16 %v2160, %v2159
      %v2570 = vpack.c.b16 %v2162, %v2161
      %v2571 = vpack.c.b16 %v2164, %v2163
      %v2572 = vpack.c.b16 %v2166, %v2165
      %v2573 = vpack.c.b16 %v2168, %v2167
      %v2574 = vpack.c.b16 %v2170, %v2169
      %v2575 = vpack.c.b16 %v2172, %v2171
      %v2576 = vpack.c.b16 %v2174, %v2173
      %v2577 = vpack.c.b16 %v2176, %v2175
      %v2578 = vpack.c.b16 %v2178, %v2177
      %v2579 = vpack.c.b16 %v2180, %v2179
      %v2580 = vpack.c.b16 %v2182, %v2181
      %v2581 = vpack.c.b16 %v2184, %v2183
      %v2582 = vpack.c.b16 %v2186, %v2185
      %v2583 = vpack.c.b16 %v2188, %v2187
      %v2584 = vpack.c.b16 %v2190, %v2189
      %v2585 = vpack.c.b16 %v2192, %v2191
      %v2586 = vpack.c.b16 %v2194, %v2193
      %v2587 = vpack.c.b16 %v2196, %v2195
      %v2588 = vpack.c.b16 %v2198, %v2197
      %v2589 = vpack.c.b16 %v2200, %v2199
      %v2590 = vpack.c.b16 %v2202, %v2201
      %v2591 = vpack.c.b16 %v2204, %v2203
      %v2592 = vpack.c.b16 %v2206, %v2205
      %v2593 = vpack.c.b16 %v2208, %v2207
      %v2594 = vpack.c.b16 %v2210, %v2209
      %v2595 = vpack.c.b16 %v2212, %v2211
      %v2596 = vpack.c.b16 %v2214, %v2213
      %v2597 = vpack.c.b16 %v2216, %v2215
      %v2598 = vpack.c.b16 %v2218, %v2217
      %v2599 = vpack.c.b16 %v2220, %v2219
      %v2600 = vpack.c.b16 %v2222, %v2221
      %v2601 = vpack.c.b16 %v2224, %v2223
      %v2602 = vpack.c.b16 %v2226, %v2225
      %v2603 = vpack.c.b16 %v2228, %v2227
      %v2604 = vpack.c.b16 %v2230, %v2229
      %v2605 = vpack.c.b16 %v2232, %v2231
      %v2606 = vpack.c.b16 %v2234, %v2233
      %v2607 = vpack.c.b16 %v2236, %v2235
      %v2608 = vpack.c.b16 %v2238, %v2237
      %v2609 = vpack.c.b16 %v2240, %v2239
      %v2610 = vpack.c.b16 %v2242, %v2241
      %v2611 = vpack.c.b16 %v2244, %v2243
      %v2612 = vpack.c.b16 %v2246, %v2245
      %v2613 = vpack.c.b16 %v2248, %v2247
      %v2614 = vpack.c.b16 %v2250, %v2249
      %v2615 = vpack.c.b16 %v2252, %v2251
      %v2616 = vpack.c.b16 %v2254, %v2253
      %v2617 = vpack.c.b16 %v2256, %v2255
      %v2618 = vpack.c.b16 %v2258, %v2257
      %v2619 = vpack.c.b16 %v2260, %v2259
      %v2620 = vpack.c.b16 %v2262, %v2261
      %v2621 = vpack.c.b16 %v2264, %v2263
      %v2622 = vpack.c.b16 %v2266, %v2265
      %v2623 = vpack.c.b16 %v2268, %v2267
      %v2624 = vpack.c.b16 %v2270, %v2269
      %v2625 = vpack.c.b16 %v2272, %v2271
      %v2626 = vpack.c.b16 %v2274, %v2273
      %v2627 = vpack.c.b16 %v2276, %v2275
      %v2628 = vpack.c.b16 %v2278, %v2277
      %v2629 = vpack.c.b16 %v2280, %v2279
      %v2630 = vpack.c.b16 %v2282, %v2281
      %v2631 = vpack.c.b16 %v2284, %v2283
      %v2632 = vpack.c.b16 %v2286, %v2285
      %v2633 = vpack.c.b16 %v2288, %v2287
      %v2634 = vpack.c.b16 %v2290, %v2289
      %v2635 = vpack.c.b16 %v2292, %v2291
      %v2636 = vpack.c.b16 %v2294, %v2293
      %v2637 = vpack.c.b16 %v2296, %v2295
      %v2638 = vpack.c.b16 %v2298, %v2297
      %v2639 = vpack.c.b16 %v2300, %v2299
      %v2640 = vpack.c.b16 %v2302, %v2301
      %v2641 = vpack.c.b16 %v2304, %v2303
      %v2642 = vpack.c.b16 %v2306, %v2305
      %v2643 = vpack.c.b16 %v2308, %v2307
      %v2644 = vpack.c.b16 %v2310, %v2309
      %v2645 = vpack.c.b16 %v2312, %v2311
      %v2646 = vpack.c.b16 %v2314, %v2313
      %v2647 = vpack.c.b16 %v2316, %v2315
      %v2648 = vpack.c.b16 %v2318, %v2317
      %v2649 = vpack.c.b16 %v2320, %v2319
      %v2650 = vpack.c.b16 %v2322, %v2321
      %v2651 = vpack.c.b16 %v2324, %v2323
      %v2652 = vpack.c.b16 %v2326, %v2325
      %v2653 = vpack.c.b16 %v2328, %v2327
      %v2654 = vpack.c.b16 %v2330, %v2329
      %v2655 = vpack.c.b16 %v2332, %v2331
      %v2656 = vpack.c.b16 %v2334, %v2333
      %v2657 = vpack.c.b16 %v2336, %v2335
      %v2658 = vpack.c.b16 %v2338, %v2337
      %2979 = vmatprep.subr.bf16.mxu0 0
      %2980 = vmatpush1.bf16.msra.mxu0 %v2346
      %2981 = vmatprep.subr.bf16.mxu0 0
      %2982 = vmatpush1.bf16.msra.mxu0 %v2345
      %2983 = vmatprep.subr.bf16.mxu0 0
      %2984 = vmatpush1.bf16.msra.mxu0 %v2344
      %2985 = vmatprep.subr.bf16.mxu0 0
      %2986 = vmatpush1.bf16.msra.mxu0 %v2343
      %2987 = vmatprep.subr.bf16.mxu0 0
      %2988 = vmatpush1.bf16.msra.mxu0 %v2342
      %2989 = vmatprep.subr.bf16.mxu0 0
      %2990 = vmatpush1.bf16.msra.mxu0 %v2341
      %2991 = vmatprep.subr.bf16.mxu0 0
      %2992 = vmatpush1.bf16.msra.mxu0 %v2340
      %2993 = vmatprep.subr.bf16.mxu0 0
      %2994 = vmatpush1.bf16.msra.mxu0 %v2339
      %2995 = vmatprep.subr.bf16.mxu0 0
      %2996 = vmatpush2.bf16.msra.mxu0 %v2354
      %2997 = vmatprep.subr.bf16.mxu0 0
      %2998 = vmatpush2.bf16.msra.mxu0 %v2353
      %2999 = vmatprep.subr.bf16.mxu0 0
      %3000 = vmatpush2.bf16.msra.mxu0 %v2352
      %3001 = vmatprep.subr.bf16.mxu0 0
      %3002 = vmatpush2.bf16.msra.mxu0 %v2351
      %3003 = vmatprep.subr.bf16.mxu0 0
      %3004 = vmatpush2.bf16.msra.mxu0 %v2350
      %3005 = vmatprep.subr.bf16.mxu0 0
      %3006 = vmatpush2.bf16.msra.mxu0 %v2349
      %3007 = vmatprep.subr.bf16.mxu0 0
      %3008 = vmatpush2.bf16.msra.mxu0 %v2348
      %3009 = vmatprep.subr.bf16.mxu0 0
      %3010 = vmatpush2.bf16.msra.mxu0 %v2347
      %3011 = vmatprep.mubr.bf16.mxu0 %v980
      %3012 = vmatmul.mubr.bf16.gmra.mxu0 %v979
      %v3013 = vpop.f32.mrf.mxu0
      %v3014 = vadd.f32 %v857, %v3013
      %v3015 = vpop.f32.mrf.mxu0
      %v3016 = vpop.f32.mrf.mxu0
      %v3017 = vadd.f32 %v857, %v3016
      %v3018 = vpop.f32.mrf.mxu0
      %3019 = vdwg.mxu0
      %3020 = vmatprep.subr.bf16.mxu0 0
      %3021 = vmatpush1.bf16.msra.mxu0 %v2362
      %3022 = vmatprep.subr.bf16.mxu0 0
      %3023 = vmatpush1.bf16.msra.mxu0 %v2361
      %3024 = vmatprep.subr.bf16.mxu0 0
      %3025 = vmatpush1.bf16.msra.mxu0 %v2360
      %3026 = vmatprep.subr.bf16.mxu0 0
      %3027 = vmatpush1.bf16.msra.mxu0 %v2359
      %3028 = vmatprep.subr.bf16.mxu0 0
      %3029 = vmatpush1.bf16.msra.mxu0 %v2358
      %3030 = vmatprep.subr.bf16.mxu0 0
      %3031 = vmatpush1.bf16.msra.mxu0 %v2357
      %3032 = vmatprep.subr.bf16.mxu0 0
      %3033 = vmatpush1.bf16.msra.mxu0 %v2356
      %3034 = vmatprep.subr.bf16.mxu0 0
      %3035 = vmatpush1.bf16.msra.mxu0 %v2355
      %3036 = vmatprep.subr.bf16.mxu0 0
      %3037 = vmatpush2.bf16.msra.mxu0 %v2370
      %3038 = vmatprep.subr.bf16.mxu0 0
      %3039 = vmatpush2.bf16.msra.mxu0 %v2369
      %3040 = vmatprep.subr.bf16.mxu0 0
      %3041 = vmatpush2.bf16.msra.mxu0 %v2368
      %3042 = vmatprep.subr.bf16.mxu0 0
      %3043 = vmatpush2.bf16.msra.mxu0 %v2367
      %3044 = vmatprep.subr.bf16.mxu0 0
      %3045 = vmatpush2.bf16.msra.mxu0 %v2366
      %3046 = vmatprep.subr.bf16.mxu0 0
      %3047 = vmatpush2.bf16.msra.mxu0 %v2365
      %3048 = vmatprep.subr.bf16.mxu0 0
      %3049 = vmatpush2.bf16.msra.mxu0 %v2364
      %3050 = vmatprep.subr.bf16.mxu0 0
      %3051 = vmatpush2.bf16.msra.mxu0 %v2363
      %3052 = vmatprep.mubr.bf16.mxu0 %v982
      %3053 = vmatmul.mubr.bf16.gmra.mxu0 %v981
      %v3054 = vpop.f32.mrf.mxu0
      %v3055 = vadd.f32 %v3014, %v3054
      %v3056 = vpop.f32.mrf.mxu0
      %v3057 = vpop.f32.mrf.mxu0
      %v3058 = vadd.f32 %v3017, %v3057
      %v3059 = vpop.f32.mrf.mxu0
      %3060 = vdwg.mxu0
      %3061 = vmatprep.subr.bf16.mxu0 0
      %3062 = vmatpush1.bf16.msra.mxu0 %v2378
      %3063 = vmatprep.subr.bf16.mxu0 0
      %3064 = vmatpush1.bf16.msra.mxu0 %v2377
      %3065 = vmatprep.subr.bf16.mxu0 0
      %3066 = vmatpush1.bf16.msra.mxu0 %v2376
      %3067 = vmatprep.subr.bf16.mxu0 0
      %3068 = vmatpush1.bf16.msra.mxu0 %v2375
      %3069 = vmatprep.subr.bf16.mxu0 0
      %3070 = vmatpush1.bf16.msra.mxu0 %v2374
      %3071 = vmatprep.subr.bf16.mxu0 0
      %3072 = vmatpush1.bf16.msra.mxu0 %v2373
      %3073 = vmatprep.subr.bf16.mxu0 0
      %3074 = vmatpush1.bf16.msra.mxu0 %v2372
      %3075 = vmatprep.subr.bf16.mxu0 0
      %3076 = vmatpush1.bf16.msra.mxu0 %v2371
      %3077 = vmatprep.subr.bf16.mxu0 0
      %3078 = vmatpush2.bf16.msra.mxu0 %v2386
      %3079 = vmatprep.subr.bf16.mxu0 0
      %3080 = vmatpush2.bf16.msra.mxu0 %v2385
      %3081 = vmatprep.subr.bf16.mxu0 0
      %3082 = vmatpush2.bf16.msra.mxu0 %v2384
      %3083 = vmatprep.subr.bf16.mxu0 0
      %3084 = vmatpush2.bf16.msra.mxu0 %v2383
      %3085 = vmatprep.subr.bf16.mxu0 0
      %3086 = vmatpush2.bf16.msra.mxu0 %v2382
      %3087 = vmatprep.subr.bf16.mxu0 0
      %3088 = vmatpush2.bf16.msra.mxu0 %v2381
      %3089 = vmatprep.subr.bf16.mxu0 0
      %3090 = vmatpush2.bf16.msra.mxu0 %v2380
      %3091 = vmatprep.subr.bf16.mxu0 0
      %3092 = vmatpush2.bf16.msra.mxu0 %v2379
      %3093 = vmatprep.mubr.bf16.mxu0 %v984
      %3094 = vmatmul.mubr.bf16.gmra.mxu0 %v983
      %v3095 = vpop.f32.mrf.mxu0
      %v3096 = vadd.f32 %v3055, %v3095
      %v3097 = vpop.f32.mrf.mxu0
      %v3098 = vpop.f32.mrf.mxu0
      %v3099 = vadd.f32 %v3058, %v3098
      %v3100 = vpop.f32.mrf.mxu0
      %3101 = vdwg.mxu0
      %3102 = vmatprep.subr.bf16.mxu0 0
      %3103 = vmatpush1.bf16.msra.mxu0 %v2394
      %3104 = vmatprep.subr.bf16.mxu0 0
      %3105 = vmatpush1.bf16.msra.mxu0 %v2393
      %3106 = vmatprep.subr.bf16.mxu0 0
      %3107 = vmatpush1.bf16.msra.mxu0 %v2392
      %3108 = vmatprep.subr.bf16.mxu0 0
      %3109 = vmatpush1.bf16.msra.mxu0 %v2391
      %3110 = vmatprep.subr.bf16.mxu0 0
      %3111 = vmatpush1.bf16.msra.mxu0 %v2390
      %3112 = vmatprep.subr.bf16.mxu0 0
      %3113 = vmatpush1.bf16.msra.mxu0 %v2389
      %3114 = vmatprep.subr.bf16.mxu0 0
      %3115 = vmatpush1.bf16.msra.mxu0 %v2388
      %3116 = vmatprep.subr.bf16.mxu0 0
      %3117 = vmatpush1.bf16.msra.mxu0 %v2387
      %3118 = vmatprep.subr.bf16.mxu0 0
      %3119 = vmatpush2.bf16.msra.mxu0 %v2402
      %3120 = vmatprep.subr.bf16.mxu0 0
      %3121 = vmatpush2.bf16.msra.mxu0 %v2401
      %3122 = vmatprep.subr.bf16.mxu0 0
      %3123 = vmatpush2.bf16.msra.mxu0 %v2400
      %3124 = vmatprep.subr.bf16.mxu0 0
      %3125 = vmatpush2.bf16.msra.mxu0 %v2399
      %3126 = vmatprep.subr.bf16.mxu0 0
      %3127 = vmatpush2.bf16.msra.mxu0 %v2398
      %3128 = vmatprep.subr.bf16.mxu0 0
      %3129 = vmatpush2.bf16.msra.mxu0 %v2397
      %3130 = vmatprep.subr.bf16.mxu0 0
      %3131 = vmatpush2.bf16.msra.mxu0 %v2396
      %3132 = vmatprep.subr.bf16.mxu0 0
      %3133 = vmatpush2.bf16.msra.mxu0 %v2395
      %3134 = vmatprep.mubr.bf16.mxu0 %v986
      %3135 = vmatmul.mubr.bf16.gmra.mxu0 %v985
      %v3136 = vpop.f32.mrf.mxu0
      %v3137 = vadd.f32 %v3096, %v3136
      %v3138 = vpop.f32.mrf.mxu0
      %v3139 = vpop.f32.mrf.mxu0
      %v3140 = vadd.f32 %v3099, %v3139
      %v3141 = vpop.f32.mrf.mxu0
      %3142 = vdwg.mxu0
      %3143 = vmatprep.subr.bf16.mxu0 0
      %3144 = vmatpush1.bf16.msra.mxu0 %v2410
      %3145 = vmatprep.subr.bf16.mxu0 0
      %3146 = vmatpush1.bf16.msra.mxu0 %v2409
      %3147 = vmatprep.subr.bf16.mxu0 0
      %3148 = vmatpush1.bf16.msra.mxu0 %v2408
      %3149 = vmatprep.subr.bf16.mxu0 0
      %3150 = vmatpush1.bf16.msra.mxu0 %v2407
      %3151 = vmatprep.subr.bf16.mxu0 0
      %3152 = vmatpush1.bf16.msra.mxu0 %v2406
      %3153 = vmatprep.subr.bf16.mxu0 0
      %3154 = vmatpush1.bf16.msra.mxu0 %v2405
      %3155 = vmatprep.subr.bf16.mxu0 0
      %3156 = vmatpush1.bf16.msra.mxu0 %v2404
      %3157 = vmatprep.subr.bf16.mxu0 0
      %3158 = vmatpush1.bf16.msra.mxu0 %v2403
      %3159 = vmatprep.subr.bf16.mxu0 0
      %3160 = vmatpush2.bf16.msra.mxu0 %v2418
      %3161 = vmatprep.subr.bf16.mxu0 0
      %3162 = vmatpush2.bf16.msra.mxu0 %v2417
      %3163 = vmatprep.subr.bf16.mxu0 0
      %3164 = vmatpush2.bf16.msra.mxu0 %v2416
      %3165 = vmatprep.subr.bf16.mxu0 0
      %3166 = vmatpush2.bf16.msra.mxu0 %v2415
      %3167 = vmatprep.subr.bf16.mxu0 0
      %3168 = vmatpush2.bf16.msra.mxu0 %v2414
      %3169 = vmatprep.subr.bf16.mxu0 0
      %3170 = vmatpush2.bf16.msra.mxu0 %v2413
      %3171 = vmatprep.subr.bf16.mxu0 0
      %3172 = vmatpush2.bf16.msra.mxu0 %v2412
      %3173 = vmatprep.subr.bf16.mxu0 0
      %3174 = vmatpush2.bf16.msra.mxu0 %v2411
      %3175 = vmatprep.mubr.bf16.mxu0 %v988
      %3176 = vmatmul.mubr.bf16.gmra.mxu0 %v987
      %v3177 = vpop.f32.mrf.mxu0
      %v3178 = vadd.f32 %v3137, %v3177
      %v3179 = vpop.f32.mrf.mxu0
      %v3180 = vpop.f32.mrf.mxu0
      %v3181 = vadd.f32 %v3140, %v3180
      %v3182 = vpop.f32.mrf.mxu0
      %3183 = vdwg.mxu0
      %3184 = vmatprep.subr.bf16.mxu0 0
      %3185 = vmatpush1.bf16.msra.mxu0 %v2426
      %3186 = vmatprep.subr.bf16.mxu0 0
      %3187 = vmatpush1.bf16.msra.mxu0 %v2425
      %3188 = vmatprep.subr.bf16.mxu0 0
      %3189 = vmatpush1.bf16.msra.mxu0 %v2424
      %3190 = vmatprep.subr.bf16.mxu0 0
      %3191 = vmatpush1.bf16.msra.mxu0 %v2423
      %3192 = vmatprep.subr.bf16.mxu0 0
      %3193 = vmatpush1.bf16.msra.mxu0 %v2422
      %3194 = vmatprep.subr.bf16.mxu0 0
      %3195 = vmatpush1.bf16.msra.mxu0 %v2421
      %3196 = vmatprep.subr.bf16.mxu0 0
      %3197 = vmatpush1.bf16.msra.mxu0 %v2420
      %3198 = vmatprep.subr.bf16.mxu0 0
      %3199 = vmatpush1.bf16.msra.mxu0 %v2419
      %3200 = vmatprep.subr.bf16.mxu0 0
      %3201 = vmatpush2.bf16.msra.mxu0 %v2434
      %3202 = vmatprep.subr.bf16.mxu0 0
      %3203 = vmatpush2.bf16.msra.mxu0 %v2433
      %3204 = vmatprep.subr.bf16.mxu0 0
      %3205 = vmatpush2.bf16.msra.mxu0 %v2432
      %3206 = vmatprep.subr.bf16.mxu0 0
      %3207 = vmatpush2.bf16.msra.mxu0 %v2431
      %3208 = vmatprep.subr.bf16.mxu0 0
      %3209 = vmatpush2.bf16.msra.mxu0 %v2430
      %3210 = vmatprep.subr.bf16.mxu0 0
      %3211 = vmatpush2.bf16.msra.mxu0 %v2429
      %3212 = vmatprep.subr.bf16.mxu0 0
      %3213 = vmatpush2.bf16.msra.mxu0 %v2428
      %3214 = vmatprep.subr.bf16.mxu0 0
      %3215 = vmatpush2.bf16.msra.mxu0 %v2427
      %3216 = vmatprep.mubr.bf16.mxu0 %v990
      %3217 = vmatmul.mubr.bf16.gmra.mxu0 %v989
      %v3218 = vpop.f32.mrf.mxu0
      %v3219 = vadd.f32 %v3178, %v3218
      %v3220 = vpop.f32.mrf.mxu0
      %v3221 = vpop.f32.mrf.mxu0
      %v3222 = vadd.f32 %v3181, %v3221
      %v3223 = vpop.f32.mrf.mxu0
      %3224 = vdwg.mxu0
      %3225 = vmatprep.subr.bf16.mxu0 0
      %3226 = vmatpush1.bf16.msra.mxu0 %v2442
      %3227 = vmatprep.subr.bf16.mxu0 0
      %3228 = vmatpush1.bf16.msra.mxu0 %v2441
      %3229 = vmatprep.subr.bf16.mxu0 0
      %3230 = vmatpush1.bf16.msra.mxu0 %v2440
      %3231 = vmatprep.subr.bf16.mxu0 0
      %3232 = vmatpush1.bf16.msra.mxu0 %v2439
      %3233 = vmatprep.subr.bf16.mxu0 0
      %3234 = vmatpush1.bf16.msra.mxu0 %v2438
      %3235 = vmatprep.subr.bf16.mxu0 0
      %3236 = vmatpush1.bf16.msra.mxu0 %v2437
      %3237 = vmatprep.subr.bf16.mxu0 0
      %3238 = vmatpush1.bf16.msra.mxu0 %v2436
      %3239 = vmatprep.subr.bf16.mxu0 0
      %3240 = vmatpush1.bf16.msra.mxu0 %v2435
      %3241 = vmatprep.subr.bf16.mxu0 0
      %3242 = vmatpush2.bf16.msra.mxu0 %v2450
      %3243 = vmatprep.subr.bf16.mxu0 0
      %3244 = vmatpush2.bf16.msra.mxu0 %v2449
      %3245 = vmatprep.subr.bf16.mxu0 0
      %3246 = vmatpush2.bf16.msra.mxu0 %v2448
      %3247 = vmatprep.subr.bf16.mxu0 0
      %3248 = vmatpush2.bf16.msra.mxu0 %v2447
      %3249 = vmatprep.subr.bf16.mxu0 0
      %3250 = vmatpush2.bf16.msra.mxu0 %v2446
      %3251 = vmatprep.subr.bf16.mxu0 0
      %3252 = vmatpush2.bf16.msra.mxu0 %v2445
      %3253 = vmatprep.subr.bf16.mxu0 0
      %3254 = vmatpush2.bf16.msra.mxu0 %v2444
      %3255 = vmatprep.subr.bf16.mxu0 0
      %3256 = vmatpush2.bf16.msra.mxu0 %v2443
      %3257 = vmatprep.mubr.bf16.mxu0 %v992
      %3258 = vmatmul.mubr.bf16.gmra.mxu0 %v991
      %v3259 = vpop.f32.mrf.mxu0
      %v3260 = vadd.f32 %v3219, %v3259
      %v3261 = vpop.f32.mrf.mxu0
      %v3262 = vpop.f32.mrf.mxu0
      %v3263 = vadd.f32 %v3222, %v3262
      %v3264 = vpop.f32.mrf.mxu0
      %3265 = vdwg.mxu0
      %3266 = vmatprep.subr.bf16.mxu0 0
      %3267 = vmatpush1.bf16.msra.mxu0 %v2458
      %3268 = vmatprep.subr.bf16.mxu0 0
      %3269 = vmatpush1.bf16.msra.mxu0 %v2457
      %3270 = vmatprep.subr.bf16.mxu0 0
      %3271 = vmatpush1.bf16.msra.mxu0 %v2456
      %3272 = vmatprep.subr.bf16.mxu0 0
      %3273 = vmatpush1.bf16.msra.mxu0 %v2455
      %3274 = vmatprep.subr.bf16.mxu0 0
      %3275 = vmatpush1.bf16.msra.mxu0 %v2454
      %3276 = vmatprep.subr.bf16.mxu0 0
      %3277 = vmatpush1.bf16.msra.mxu0 %v2453
      %3278 = vmatprep.subr.bf16.mxu0 0
      %3279 = vmatpush1.bf16.msra.mxu0 %v2452
      %3280 = vmatprep.subr.bf16.mxu0 0
      %3281 = vmatpush1.bf16.msra.mxu0 %v2451
      %3282 = vmatprep.subr.bf16.mxu0 0
      %3283 = vmatpush2.bf16.msra.mxu0 %v2466
      %3284 = vmatprep.subr.bf16.mxu0 0
      %3285 = vmatpush2.bf16.msra.mxu0 %v2465
      %3286 = vmatprep.subr.bf16.mxu0 0
      %3287 = vmatpush2.bf16.msra.mxu0 %v2464
      %3288 = vmatprep.subr.bf16.mxu0 0
      %3289 = vmatpush2.bf16.msra.mxu0 %v2463
      %3290 = vmatprep.subr.bf16.mxu0 0
      %3291 = vmatpush2.bf16.msra.mxu0 %v2462
      %3292 = vmatprep.subr.bf16.mxu0 0
      %3293 = vmatpush2.bf16.msra.mxu0 %v2461
      %3294 = vmatprep.subr.bf16.mxu0 0
      %3295 = vmatpush2.bf16.msra.mxu0 %v2460
      %3296 = vmatprep.subr.bf16.mxu0 0
      %3297 = vmatpush2.bf16.msra.mxu0 %v2459
      %3298 = vmatprep.mubr.bf16.mxu0 %v994
      %3299 = vmatmul.mubr.bf16.gmra.mxu0 %v993
      %v3300 = vpop.f32.mrf.mxu0
      %v3301 = vadd.f32 %v3260, %v3300
      %v3302 = vpop.f32.mrf.mxu0
      %v3303 = vpop.f32.mrf.mxu0
      %v3304 = vadd.f32 %v3263, %v3303
      %v3305 = vpop.f32.mrf.mxu0
      %3306 = vdwg.mxu0
      %3307 = vmatprep.subr.bf16.mxu0 0
      %3308 = vmatpush1.bf16.msra.mxu0 %v2474
      %3309 = vmatprep.subr.bf16.mxu0 0
      %3310 = vmatpush1.bf16.msra.mxu0 %v2473
      %3311 = vmatprep.subr.bf16.mxu0 0
      %3312 = vmatpush1.bf16.msra.mxu0 %v2472
      %3313 = vmatprep.subr.bf16.mxu0 0
      %3314 = vmatpush1.bf16.msra.mxu0 %v2471
      %3315 = vmatprep.subr.bf16.mxu0 0
      %3316 = vmatpush1.bf16.msra.mxu0 %v2470
      %3317 = vmatprep.subr.bf16.mxu0 0
      %3318 = vmatpush1.bf16.msra.mxu0 %v2469
      %3319 = vmatprep.subr.bf16.mxu0 0
      %3320 = vmatpush1.bf16.msra.mxu0 %v2468
      %3321 = vmatprep.subr.bf16.mxu0 0
      %3322 = vmatpush1.bf16.msra.mxu0 %v2467
      %3323 = vmatprep.subr.bf16.mxu0 0
      %3324 = vmatpush2.bf16.msra.mxu0 %v2482
      %3325 = vmatprep.subr.bf16.mxu0 0
      %3326 = vmatpush2.bf16.msra.mxu0 %v2481
      %3327 = vmatprep.subr.bf16.mxu0 0
      %3328 = vmatpush2.bf16.msra.mxu0 %v2480
      %3329 = vmatprep.subr.bf16.mxu0 0
      %3330 = vmatpush2.bf16.msra.mxu0 %v2479
      %3331 = vmatprep.subr.bf16.mxu0 0
      %3332 = vmatpush2.bf16.msra.mxu0 %v2478
      %3333 = vmatprep.subr.bf16.mxu0 0
      %3334 = vmatpush2.bf16.msra.mxu0 %v2477
      %3335 = vmatprep.subr.bf16.mxu0 0
      %3336 = vmatpush2.bf16.msra.mxu0 %v2476
      %3337 = vmatprep.subr.bf16.mxu0 0
      %3338 = vmatpush2.bf16.msra.mxu0 %v2475
      %3339 = vmatprep.mubr.bf16.mxu0 %v996
      %3340 = vmatmul.mubr.bf16.gmra.mxu0 %v995
      %v3341 = vpop.f32.mrf.mxu0
      %v3342 = vadd.f32 %v3301, %v3341
      %v3343 = vpop.f32.mrf.mxu0
      %v3344 = vpop.f32.mrf.mxu0
      %v3345 = vadd.f32 %v3304, %v3344
      %v3346 = vpop.f32.mrf.mxu0
      %3347 = vdwg.mxu0
      %3348 = vmatprep.subr.bf16.mxu0 0
      %3349 = vmatpush1.bf16.msra.mxu0 %v2490
      %3350 = vmatprep.subr.bf16.mxu0 0
      %3351 = vmatpush1.bf16.msra.mxu0 %v2489
      %3352 = vmatprep.subr.bf16.mxu0 0
      %3353 = vmatpush1.bf16.msra.mxu0 %v2488
      %3354 = vmatprep.subr.bf16.mxu0 0
      %3355 = vmatpush1.bf16.msra.mxu0 %v2487
      %3356 = vmatprep.subr.bf16.mxu0 0
      %3357 = vmatpush1.bf16.msra.mxu0 %v2486
      %3358 = vmatprep.subr.bf16.mxu0 0
      %3359 = vmatpush1.bf16.msra.mxu0 %v2485
      %3360 = vmatprep.subr.bf16.mxu0 0
      %3361 = vmatpush1.bf16.msra.mxu0 %v2484
      %3362 = vmatprep.subr.bf16.mxu0 0
      %3363 = vmatpush1.bf16.msra.mxu0 %v2483
      %3364 = vmatprep.subr.bf16.mxu0 0
      %3365 = vmatpush2.bf16.msra.mxu0 %v2498
      %3366 = vmatprep.subr.bf16.mxu0 0
      %3367 = vmatpush2.bf16.msra.mxu0 %v2497
      %3368 = vmatprep.subr.bf16.mxu0 0
      %3369 = vmatpush2.bf16.msra.mxu0 %v2496
      %3370 = vmatprep.subr.bf16.mxu0 0
      %3371 = vmatpush2.bf16.msra.mxu0 %v2495
      %3372 = vmatprep.subr.bf16.mxu0 0
      %3373 = vmatpush2.bf16.msra.mxu0 %v2494
      %3374 = vmatprep.subr.bf16.mxu0 0
      %3375 = vmatpush2.bf16.msra.mxu0 %v2493
      %3376 = vmatprep.subr.bf16.mxu0 0
      %3377 = vmatpush2.bf16.msra.mxu0 %v2492
      %3378 = vmatprep.subr.bf16.mxu0 0
      %3379 = vmatpush2.bf16.msra.mxu0 %v2491
      %3380 = vmatprep.mubr.bf16.mxu0 %v998
      %3381 = vmatmul.mubr.bf16.gmra.mxu0 %v997
      %v3382 = vpop.f32.mrf.mxu0
      %v3383 = vadd.f32 %v3342, %v3382
      %v3384 = vpop.f32.mrf.mxu0
      %v3385 = vpop.f32.mrf.mxu0
      %v3386 = vadd.f32 %v3345, %v3385
      %v3387 = vpop.f32.mrf.mxu0
      %3388 = vdwg.mxu0
      %3389 = vmatprep.subr.bf16.mxu0 0
      %3390 = vmatpush1.bf16.msra.mxu0 %v2506
      %3391 = vmatprep.subr.bf16.mxu0 0
      %3392 = vmatpush1.bf16.msra.mxu0 %v2505
      %3393 = vmatprep.subr.bf16.mxu0 0
      %3394 = vmatpush1.bf16.msra.mxu0 %v2504
      %3395 = vmatprep.subr.bf16.mxu0 0
      %3396 = vmatpush1.bf16.msra.mxu0 %v2503
      %3397 = vmatprep.subr.bf16.mxu0 0
      %3398 = vmatpush1.bf16.msra.mxu0 %v2502
      %3399 = vmatprep.subr.bf16.mxu0 0
      %3400 = vmatpush1.bf16.msra.mxu0 %v2501
      %3401 = vmatprep.subr.bf16.mxu0 0
      %3402 = vmatpush1.bf16.msra.mxu0 %v2500
      %3403 = vmatprep.subr.bf16.mxu0 0
      %3404 = vmatpush1.bf16.msra.mxu0 %v2499
      %3405 = vmatprep.subr.bf16.mxu0 0
      %3406 = vmatpush2.bf16.msra.mxu0 %v2514
      %3407 = vmatprep.subr.bf16.mxu0 0
      %3408 = vmatpush2.bf16.msra.mxu0 %v2513
      %3409 = vmatprep.subr.bf16.mxu0 0
      %3410 = vmatpush2.bf16.msra.mxu0 %v2512
      %3411 = vmatprep.subr.bf16.mxu0 0
      %3412 = vmatpush2.bf16.msra.mxu0 %v2511
      %3413 = vmatprep.subr.bf16.mxu0 0
      %3414 = vmatpush2.bf16.msra.mxu0 %v2510
      %3415 = vmatprep.subr.bf16.mxu0 0
      %3416 = vmatpush2.bf16.msra.mxu0 %v2509
      %3417 = vmatprep.subr.bf16.mxu0 0
      %3418 = vmatpush2.bf16.msra.mxu0 %v2508
      %3419 = vmatprep.subr.bf16.mxu0 0
      %3420 = vmatpush2.bf16.msra.mxu0 %v2507
      %3421 = vmatprep.mubr.bf16.mxu0 %v1000
      %3422 = vmatmul.mubr.bf16.gmra.mxu0 %v999
      %v3423 = vpop.f32.mrf.mxu0
      %v3424 = vadd.f32 %v3383, %v3423
      %v3425 = vpop.f32.mrf.mxu0
      %v3426 = vpop.f32.mrf.mxu0
      %v3427 = vadd.f32 %v3386, %v3426
      %v3428 = vpop.f32.mrf.mxu0
      %3429 = vdwg.mxu0
      %3430 = vmatprep.subr.bf16.mxu0 0
      %3431 = vmatpush1.bf16.msra.mxu0 %v2522
      %3432 = vmatprep.subr.bf16.mxu0 0
      %3433 = vmatpush1.bf16.msra.mxu0 %v2521
      %3434 = vmatprep.subr.bf16.mxu0 0
      %3435 = vmatpush1.bf16.msra.mxu0 %v2520
      %3436 = vmatprep.subr.bf16.mxu0 0
      %3437 = vmatpush1.bf16.msra.mxu0 %v2519
      %3438 = vmatprep.subr.bf16.mxu0 0
      %3439 = vmatpush1.bf16.msra.mxu0 %v2518
      %3440 = vmatprep.subr.bf16.mxu0 0
      %3441 = vmatpush1.bf16.msra.mxu0 %v2517
      %3442 = vmatprep.subr.bf16.mxu0 0
      %3443 = vmatpush1.bf16.msra.mxu0 %v2516
      %3444 = vmatprep.subr.bf16.mxu0 0
      %3445 = vmatpush1.bf16.msra.mxu0 %v2515
      %3446 = vmatprep.subr.bf16.mxu0 0
      %3447 = vmatpush2.bf16.msra.mxu0 %v2530
      %3448 = vmatprep.subr.bf16.mxu0 0
      %3449 = vmatpush2.bf16.msra.mxu0 %v2529
      %3450 = vmatprep.subr.bf16.mxu0 0
      %3451 = vmatpush2.bf16.msra.mxu0 %v2528
      %3452 = vmatprep.subr.bf16.mxu0 0
      %3453 = vmatpush2.bf16.msra.mxu0 %v2527
      %3454 = vmatprep.subr.bf16.mxu0 0
      %3455 = vmatpush2.bf16.msra.mxu0 %v2526
      %3456 = vmatprep.subr.bf16.mxu0 0
      %3457 = vmatpush2.bf16.msra.mxu0 %v2525
      %3458 = vmatprep.subr.bf16.mxu0 0
      %3459 = vmatpush2.bf16.msra.mxu0 %v2524
      %3460 = vmatprep.subr.bf16.mxu0 0
      %3461 = vmatpush2.bf16.msra.mxu0 %v2523
      %3462 = vmatprep.mubr.bf16.mxu0 %v1002
      %3463 = vmatmul.mubr.bf16.gmra.mxu0 %v1001
      %v3464 = vpop.f32.mrf.mxu0
      %v3465 = vadd.f32 %v3424, %v3464
      %v3466 = vpop.f32.mrf.mxu0
      %v3467 = vpop.f32.mrf.mxu0
      %v3468 = vadd.f32 %v3427, %v3467
      %v3469 = vpop.f32.mrf.mxu0
      %3470 = vdwg.mxu0
      %3471 = vmatprep.subr.bf16.mxu0 0
      %3472 = vmatpush1.bf16.msra.mxu0 %v2538
      %3473 = vmatprep.subr.bf16.mxu0 0
      %3474 = vmatpush1.bf16.msra.mxu0 %v2537
      %3475 = vmatprep.subr.bf16.mxu0 0
      %3476 = vmatpush1.bf16.msra.mxu0 %v2536
      %3477 = vmatprep.subr.bf16.mxu0 0
      %3478 = vmatpush1.bf16.msra.mxu0 %v2535
      %3479 = vmatprep.subr.bf16.mxu0 0
      %3480 = vmatpush1.bf16.msra.mxu0 %v2534
      %3481 = vmatprep.subr.bf16.mxu0 0
      %3482 = vmatpush1.bf16.msra.mxu0 %v2533
      %3483 = vmatprep.subr.bf16.mxu0 0
      %3484 = vmatpush1.bf16.msra.mxu0 %v2532
      %3485 = vmatprep.subr.bf16.mxu0 0
      %3486 = vmatpush1.bf16.msra.mxu0 %v2531
      %3487 = vmatprep.subr.bf16.mxu0 0
      %3488 = vmatpush2.bf16.msra.mxu0 %v2546
      %3489 = vmatprep.subr.bf16.mxu0 0
      %3490 = vmatpush2.bf16.msra.mxu0 %v2545
      %3491 = vmatprep.subr.bf16.mxu0 0
      %3492 = vmatpush2.bf16.msra.mxu0 %v2544
      %3493 = vmatprep.subr.bf16.mxu0 0
      %3494 = vmatpush2.bf16.msra.mxu0 %v2543
      %3495 = vmatprep.subr.bf16.mxu0 0
      %3496 = vmatpush2.bf16.msra.mxu0 %v2542
      %3497 = vmatprep.subr.bf16.mxu0 0
      %3498 = vmatpush2.bf16.msra.mxu0 %v2541
      %3499 = vmatprep.subr.bf16.mxu0 0
      %3500 = vmatpush2.bf16.msra.mxu0 %v2540
      %3501 = vmatprep.subr.bf16.mxu0 0
      %3502 = vmatpush2.bf16.msra.mxu0 %v2539
      %3503 = vmatprep.mubr.bf16.mxu0 %v1004
      %3504 = vmatmul.mubr.bf16.gmra.mxu0 %v1003
      %v3505 = vpop.f32.mrf.mxu0
      %v3506 = vadd.f32 %v3465, %v3505
      %v3507 = vpop.f32.mrf.mxu0
      %v3508 = vpop.f32.mrf.mxu0
      %v3509 = vadd.f32 %v3468, %v3508
      %v3510 = vpop.f32.mrf.mxu0
      %3511 = vdwg.mxu0
      %3512 = vmatprep.subr.bf16.mxu0 0
      %3513 = vmatpush1.bf16.msra.mxu0 %v2554
      %3514 = vmatprep.subr.bf16.mxu0 0
      %3515 = vmatpush1.bf16.msra.mxu0 %v2553
      %3516 = vmatprep.subr.bf16.mxu0 0
      %3517 = vmatpush1.bf16.msra.mxu0 %v2552
      %3518 = vmatprep.subr.bf16.mxu0 0
      %3519 = vmatpush1.bf16.msra.mxu0 %v2551
      %3520 = vmatprep.subr.bf16.mxu0 0
      %3521 = vmatpush1.bf16.msra.mxu0 %v2550
      %3522 = vmatprep.subr.bf16.mxu0 0
      %3523 = vmatpush1.bf16.msra.mxu0 %v2549
      %3524 = vmatprep.subr.bf16.mxu0 0
      %3525 = vmatpush1.bf16.msra.mxu0 %v2548
      %3526 = vmatprep.subr.bf16.mxu0 0
      %3527 = vmatpush1.bf16.msra.mxu0 %v2547
      %3528 = vmatprep.subr.bf16.mxu0 0
      %3529 = vmatpush2.bf16.msra.mxu0 %v2562
      %3530 = vmatprep.subr.bf16.mxu0 0
      %3531 = vmatpush2.bf16.msra.mxu0 %v2561
      %3532 = vmatprep.subr.bf16.mxu0 0
      %3533 = vmatpush2.bf16.msra.mxu0 %v2560
      %3534 = vmatprep.subr.bf16.mxu0 0
      %3535 = vmatpush2.bf16.msra.mxu0 %v2559
      %3536 = vmatprep.subr.bf16.mxu0 0
      %3537 = vmatpush2.bf16.msra.mxu0 %v2558
      %3538 = vmatprep.subr.bf16.mxu0 0
      %3539 = vmatpush2.bf16.msra.mxu0 %v2557
      %3540 = vmatprep.subr.bf16.mxu0 0
      %3541 = vmatpush2.bf16.msra.mxu0 %v2556
      %3542 = vmatprep.subr.bf16.mxu0 0
      %3543 = vmatpush2.bf16.msra.mxu0 %v2555
      %3544 = vmatprep.mubr.bf16.mxu0 %v1006
      %3545 = vmatmul.mubr.bf16.gmra.mxu0 %v1005
      %v3546 = vpop.f32.mrf.mxu0
      %v3547 = vadd.f32 %v3506, %v3546
      %v3548 = vpop.f32.mrf.mxu0
      %v3549 = vpop.f32.mrf.mxu0
      %v3550 = vadd.f32 %v3509, %v3549
      %v3551 = vpop.f32.mrf.mxu0
      %3552 = vdwg.mxu0
      %3553 = vmatprep.subr.bf16.mxu0 0
      %3554 = vmatpush1.bf16.msra.mxu0 %v2570
      %3555 = vmatprep.subr.bf16.mxu0 0
      %3556 = vmatpush1.bf16.msra.mxu0 %v2569
      %3557 = vmatprep.subr.bf16.mxu0 0
      %3558 = vmatpush1.bf16.msra.mxu0 %v2568
      %3559 = vmatprep.subr.bf16.mxu0 0
      %3560 = vmatpush1.bf16.msra.mxu0 %v2567
      %3561 = vmatprep.subr.bf16.mxu0 0
      %3562 = vmatpush1.bf16.msra.mxu0 %v2566
      %3563 = vmatprep.subr.bf16.mxu0 0
      %3564 = vmatpush1.bf16.msra.mxu0 %v2565
      %3565 = vmatprep.subr.bf16.mxu0 0
      %3566 = vmatpush1.bf16.msra.mxu0 %v2564
      %3567 = vmatprep.subr.bf16.mxu0 0
      %3568 = vmatpush1.bf16.msra.mxu0 %v2563
      %3569 = vmatprep.subr.bf16.mxu0 0
      %3570 = vmatpush2.bf16.msra.mxu0 %v2578
      %3571 = vmatprep.subr.bf16.mxu0 0
      %3572 = vmatpush2.bf16.msra.mxu0 %v2577
      %3573 = vmatprep.subr.bf16.mxu0 0
      %3574 = vmatpush2.bf16.msra.mxu0 %v2576
      %3575 = vmatprep.subr.bf16.mxu0 0
      %3576 = vmatpush2.bf16.msra.mxu0 %v2575
      %3577 = vmatprep.subr.bf16.mxu0 0
      %3578 = vmatpush2.bf16.msra.mxu0 %v2574
      %3579 = vmatprep.subr.bf16.mxu0 0
      %3580 = vmatpush2.bf16.msra.mxu0 %v2573
      %3581 = vmatprep.subr.bf16.mxu0 0
      %3582 = vmatpush2.bf16.msra.mxu0 %v2572
      %3583 = vmatprep.subr.bf16.mxu0 0
      %3584 = vmatpush2.bf16.msra.mxu0 %v2571
      %3585 = vmatprep.mubr.bf16.mxu0 %v1008
      %3586 = vmatmul.mubr.bf16.gmra.mxu0 %v1007
      %v3587 = vpop.f32.mrf.mxu0
      %v3588 = vadd.f32 %v3547, %v3587
      %v3589 = vpop.f32.mrf.mxu0
      %v3590 = vpop.f32.mrf.mxu0
      %v3591 = vadd.f32 %v3550, %v3590
      %v3592 = vpop.f32.mrf.mxu0
      %3593 = vdwg.mxu0
      %3594 = vmatprep.subr.bf16.mxu0 0
      %3595 = vmatpush1.bf16.msra.mxu0 %v2586
      %3596 = vmatprep.subr.bf16.mxu0 0
      %3597 = vmatpush1.bf16.msra.mxu0 %v2585
      %3598 = vmatprep.subr.bf16.mxu0 0
      %3599 = vmatpush1.bf16.msra.mxu0 %v2584
      %3600 = vmatprep.subr.bf16.mxu0 0
      %3601 = vmatpush1.bf16.msra.mxu0 %v2583
      %3602 = vmatprep.subr.bf16.mxu0 0
      %3603 = vmatpush1.bf16.msra.mxu0 %v2582
      %3604 = vmatprep.subr.bf16.mxu0 0
      %3605 = vmatpush1.bf16.msra.mxu0 %v2581
      %3606 = vmatprep.subr.bf16.mxu0 0
      %3607 = vmatpush1.bf16.msra.mxu0 %v2580
      %3608 = vmatprep.subr.bf16.mxu0 0
      %3609 = vmatpush1.bf16.msra.mxu0 %v2579
      %3610 = vmatprep.subr.bf16.mxu0 0
      %3611 = vmatpush2.bf16.msra.mxu0 %v2594
      %3612 = vmatprep.subr.bf16.mxu0 0
      %3613 = vmatpush2.bf16.msra.mxu0 %v2593
      %3614 = vmatprep.subr.bf16.mxu0 0
      %3615 = vmatpush2.bf16.msra.mxu0 %v2592
      %3616 = vmatprep.subr.bf16.mxu0 0
      %3617 = vmatpush2.bf16.msra.mxu0 %v2591
      %3618 = vmatprep.subr.bf16.mxu0 0
      %3619 = vmatpush2.bf16.msra.mxu0 %v2590
      %3620 = vmatprep.subr.bf16.mxu0 0
      %3621 = vmatpush2.bf16.msra.mxu0 %v2589
      %3622 = vmatprep.subr.bf16.mxu0 0
      %3623 = vmatpush2.bf16.msra.mxu0 %v2588
      %3624 = vmatprep.subr.bf16.mxu0 0
      %3625 = vmatpush2.bf16.msra.mxu0 %v2587
      %3626 = vmatprep.mubr.bf16.mxu0 %v1010
      %3627 = vmatmul.mubr.bf16.gmra.mxu0 %v1009
      %v3628 = vpop.f32.mrf.mxu0
      %v3629 = vadd.f32 %v3588, %v3628
      %v3630 = vpop.f32.mrf.mxu0
      %v3631 = vpop.f32.mrf.mxu0
      %v3632 = vadd.f32 %v3591, %v3631
      %v3633 = vpop.f32.mrf.mxu0
      %3634 = vdwg.mxu0
      %3635 = vmatprep.subr.bf16.mxu0 0
      %3636 = vmatpush1.bf16.msra.mxu0 %v2602
      %3637 = vmatprep.subr.bf16.mxu0 0
      %3638 = vmatpush1.bf16.msra.mxu0 %v2601
      %3639 = vmatprep.subr.bf16.mxu0 0
      %3640 = vmatpush1.bf16.msra.mxu0 %v2600
      %3641 = vmatprep.subr.bf16.mxu0 0
      %3642 = vmatpush1.bf16.msra.mxu0 %v2599
      %3643 = vmatprep.subr.bf16.mxu0 0
      %3644 = vmatpush1.bf16.msra.mxu0 %v2598
      %3645 = vmatprep.subr.bf16.mxu0 0
      %3646 = vmatpush1.bf16.msra.mxu0 %v2597
      %3647 = vmatprep.subr.bf16.mxu0 0
      %3648 = vmatpush1.bf16.msra.mxu0 %v2596
      %3649 = vmatprep.subr.bf16.mxu0 0
      %3650 = vmatpush1.bf16.msra.mxu0 %v2595
      %3651 = vmatprep.subr.bf16.mxu0 0
      %3652 = vmatpush2.bf16.msra.mxu0 %v2610
      %3653 = vmatprep.subr.bf16.mxu0 0
      %3654 = vmatpush2.bf16.msra.mxu0 %v2609
      %3655 = vmatprep.subr.bf16.mxu0 0
      %3656 = vmatpush2.bf16.msra.mxu0 %v2608
      %3657 = vmatprep.subr.bf16.mxu0 0
      %3658 = vmatpush2.bf16.msra.mxu0 %v2607
      %3659 = vmatprep.subr.bf16.mxu0 0
      %3660 = vmatpush2.bf16.msra.mxu0 %v2606
      %3661 = vmatprep.subr.bf16.mxu0 0
      %3662 = vmatpush2.bf16.msra.mxu0 %v2605
      %3663 = vmatprep.subr.bf16.mxu0 0
      %3664 = vmatpush2.bf16.msra.mxu0 %v2604
      %3665 = vmatprep.subr.bf16.mxu0 0
      %3666 = vmatpush2.bf16.msra.mxu0 %v2603
      %3667 = vmatprep.mubr.bf16.mxu0 %v1012
      %3668 = vmatmul.mubr.bf16.gmra.mxu0 %v1011
      %v3669 = vpop.f32.mrf.mxu0
      %v3670 = vadd.f32 %v3629, %v3669
      %v3671 = vpop.f32.mrf.mxu0
      %v3672 = vpop.f32.mrf.mxu0
      %v3673 = vadd.f32 %v3632, %v3672
      %v3674 = vpop.f32.mrf.mxu0
      %3675 = vdwg.mxu0
      %3676 = vmatprep.subr.bf16.mxu0 0
      %3677 = vmatpush1.bf16.msra.mxu0 %v2618
      %3678 = vmatprep.subr.bf16.mxu0 0
      %3679 = vmatpush1.bf16.msra.mxu0 %v2617
      %3680 = vmatprep.subr.bf16.mxu0 0
      %3681 = vmatpush1.bf16.msra.mxu0 %v2616
      %3682 = vmatprep.subr.bf16.mxu0 0
      %3683 = vmatpush1.bf16.msra.mxu0 %v2615
      %3684 = vmatprep.subr.bf16.mxu0 0
      %3685 = vmatpush1.bf16.msra.mxu0 %v2614
      %3686 = vmatprep.subr.bf16.mxu0 0
      %3687 = vmatpush1.bf16.msra.mxu0 %v2613
      %3688 = vmatprep.subr.bf16.mxu0 0
      %3689 = vmatpush1.bf16.msra.mxu0 %v2612
      %3690 = vmatprep.subr.bf16.mxu0 0
      %3691 = vmatpush1.bf16.msra.mxu0 %v2611
      %3692 = vmatprep.subr.bf16.mxu0 0
      %3693 = vmatpush2.bf16.msra.mxu0 %v2626
      %3694 = vmatprep.subr.bf16.mxu0 0
      %3695 = vmatpush2.bf16.msra.mxu0 %v2625
      %3696 = vmatprep.subr.bf16.mxu0 0
      %3697 = vmatpush2.bf16.msra.mxu0 %v2624
      %3698 = vmatprep.subr.bf16.mxu0 0
      %3699 = vmatpush2.bf16.msra.mxu0 %v2623
      %3700 = vmatprep.subr.bf16.mxu0 0
      %3701 = vmatpush2.bf16.msra.mxu0 %v2622
      %3702 = vmatprep.subr.bf16.mxu0 0
      %3703 = vmatpush2.bf16.msra.mxu0 %v2621
      %3704 = vmatprep.subr.bf16.mxu0 0
      %3705 = vmatpush2.bf16.msra.mxu0 %v2620
      %3706 = vmatprep.subr.bf16.mxu0 0
      %3707 = vmatpush2.bf16.msra.mxu0 %v2619
      %3708 = vmatprep.mubr.bf16.mxu0 %v1014
      %3709 = vmatmul.mubr.bf16.gmra.mxu0 %v1013
      %v3710 = vpop.f32.mrf.mxu0
      %v3711 = vadd.f32 %v3670, %v3710
      %v3712 = vpop.f32.mrf.mxu0
      %v3713 = vpop.f32.mrf.mxu0
      %v3714 = vadd.f32 %v3673, %v3713
      %v3715 = vpop.f32.mrf.mxu0
      %3716 = vdwg.mxu0
      %3717 = vmatprep.subr.bf16.mxu0 0
      %3718 = vmatpush1.bf16.msra.mxu0 %v2634
      %3719 = vmatprep.subr.bf16.mxu0 0
      %3720 = vmatpush1.bf16.msra.mxu0 %v2633
      %3721 = vmatprep.subr.bf16.mxu0 0
      %3722 = vmatpush1.bf16.msra.mxu0 %v2632
      %3723 = vmatprep.subr.bf16.mxu0 0
      %3724 = vmatpush1.bf16.msra.mxu0 %v2631
      %3725 = vmatprep.subr.bf16.mxu0 0
      %3726 = vmatpush1.bf16.msra.mxu0 %v2630
      %3727 = vmatprep.subr.bf16.mxu0 0
      %3728 = vmatpush1.bf16.msra.mxu0 %v2629
      %3729 = vmatprep.subr.bf16.mxu0 0
      %3730 = vmatpush1.bf16.msra.mxu0 %v2628
      %3731 = vmatprep.subr.bf16.mxu0 0
      %3732 = vmatpush1.bf16.msra.mxu0 %v2627
      %3733 = vmatprep.subr.bf16.mxu0 0
      %3734 = vmatpush2.bf16.msra.mxu0 %v2642
      %3735 = vmatprep.subr.bf16.mxu0 0
      %3736 = vmatpush2.bf16.msra.mxu0 %v2641
      %3737 = vmatprep.subr.bf16.mxu0 0
      %3738 = vmatpush2.bf16.msra.mxu0 %v2640
      %3739 = vmatprep.subr.bf16.mxu0 0
      %3740 = vmatpush2.bf16.msra.mxu0 %v2639
      %3741 = vmatprep.subr.bf16.mxu0 0
      %3742 = vmatpush2.bf16.msra.mxu0 %v2638
      %3743 = vmatprep.subr.bf16.mxu0 0
      %3744 = vmatpush2.bf16.msra.mxu0 %v2637
      %3745 = vmatprep.subr.bf16.mxu0 0
      %3746 = vmatpush2.bf16.msra.mxu0 %v2636
      %3747 = vmatprep.subr.bf16.mxu0 0
      %3748 = vmatpush2.bf16.msra.mxu0 %v2635
      %3749 = vmatprep.mubr.bf16.mxu0 %v1016
      %3750 = vmatmul.mubr.bf16.gmra.mxu0 %v1015
      %v3751 = vpop.f32.mrf.mxu0
      %v3752 = vadd.f32 %v3711, %v3751
      %v3753 = vpop.f32.mrf.mxu0
      %v3754 = vpop.f32.mrf.mxu0
      %v3755 = vadd.f32 %v3714, %v3754
      %v3756 = vpop.f32.mrf.mxu0
      %3757 = vdwg.mxu0
      %3758 = vmatprep.subr.bf16.mxu0 0
      %3759 = vmatpush1.bf16.msra.mxu0 %v2650
      %3760 = vmatprep.subr.bf16.mxu0 0
      %3761 = vmatpush1.bf16.msra.mxu0 %v2649
      %3762 = vmatprep.subr.bf16.mxu0 0
      %3763 = vmatpush1.bf16.msra.mxu0 %v2648
      %3764 = vmatprep.subr.bf16.mxu0 0
      %3765 = vmatpush1.bf16.msra.mxu0 %v2647
      %3766 = vmatprep.subr.bf16.mxu0 0
      %3767 = vmatpush1.bf16.msra.mxu0 %v2646
      %3768 = vmatprep.subr.bf16.mxu0 0
      %3769 = vmatpush1.bf16.msra.mxu0 %v2645
      %3770 = vmatprep.subr.bf16.mxu0 0
      %3771 = vmatpush1.bf16.msra.mxu0 %v2644
      %3772 = vmatprep.subr.bf16.mxu0 0
      %3773 = vmatpush1.bf16.msra.mxu0 %v2643
      %3774 = vmatprep.subr.bf16.mxu0 0
      %3775 = vmatpush2.bf16.msra.mxu0 %v2658
      %3776 = vmatprep.subr.bf16.mxu0 0
      %3777 = vmatpush2.bf16.msra.mxu0 %v2657
      %3778 = vmatprep.subr.bf16.mxu0 0
      %3779 = vmatpush2.bf16.msra.mxu0 %v2656
      %3780 = vmatprep.subr.bf16.mxu0 0
      %3781 = vmatpush2.bf16.msra.mxu0 %v2655
      %3782 = vmatprep.subr.bf16.mxu0 0
      %3783 = vmatpush2.bf16.msra.mxu0 %v2654
      %3784 = vmatprep.subr.bf16.mxu0 0
      %3785 = vmatpush2.bf16.msra.mxu0 %v2653
      %3786 = vmatprep.subr.bf16.mxu0 0
      %3787 = vmatpush2.bf16.msra.mxu0 %v2652
      %3788 = vmatprep.subr.bf16.mxu0 0
      %3789 = vmatpush2.bf16.msra.mxu0 %v2651
      %3790 = vmatprep.mubr.bf16.mxu0 %v1018
      %3791 = vmatmul.mubr.bf16.gmra.mxu0 %v1017
      %v3792 = vpop.f32.mrf.mxu0
      %v3793 = vadd.f32 %v3752, %v3792
      %v3794 = vpop.f32.mrf.mxu0
      %v3795 = vpop.f32.mrf.mxu0
      %v3796 = vadd.f32 %v3755, %v3795
      %v3797 = vpop.f32.mrf.mxu0
      %3798 = vdwg.mxu0
      %v3799 = vmax.f32 %v3793, 0.0
      %v3800 = vmax.f32 %v3796, 0.0
      %v3801 = vpack.c.bf16 %v3800, %v3799
      %v3803 = vunpack.c.l.b16 %v3801
      %v3804 = vunpack.c.h.b16 %v3801
      %v3805 = vpack.c.b16 %v3803, %v3803
      %v3806 = vpack.c.b16 %v3804, %v3804
      %3809 = vst [vmem:[%s170] sm:$0xf] %v3805
      %3810 = vst [vmem:[%s170 + $0x4] sm:$0xf] %v3806
      %p3811 = scmp.lt.s32.totalorder %s14, 1
      %s3812 = scalar_select %p3811, %s14, 1
      %s3813 = smul.addr %s3812, 2
      %s3814 = smul.addr %s3813, 4
      %s3815 = scalar_lea.vmem %s3, %s3814
      // Predicated region
      $region33: #{forward.6} parent=31 // pred_check
        %p3816 = pneg %p100
      $region34: #{forward.6} parent=31 // pred_check_branch
        %3818 = sbr.rel (%p3816) target = $region36
      $region35: #{forward.6} parent=31 // pred_region
        _
      $region36: #{forward.6} parent=31 // pred_fallthru
        _
    $region32: #{forward.6} parent=5 // pred_fallthru
      _
    %p3819 = scmp.le.s32.totalorder 2, %s9
    // Predicated region
    $region37: #{forward.6} parent=5 // pred_check
      %p3820 = pneg %p3819
    $region38: #{forward.6} parent=5 // pred_check_branch
      %3822 = sbr.rel (%p3820) target = $region40
    $region39: #{forward.6} parent=5 // pred_region
      %s3823 = ssub.s32 %s9, 2
      // Predicated region
      $region41: #{forward.6} parent=39 // pred_check
        %p3824 = pneg %p106
      $region42: #{forward.6} parent=39 // pred_check_branch
        %3826 = sbr.rel (%p3824) target = $region44
      $region43: #{forward.6} parent=39 // pred_region
        %p3827 = scmp.lt.s32.totalorder %s15, 1
        %s3828 = scalar_select %p3827, %s15, 1
        %s3829 = smul.addr %s3828, 2
        %s3830 = smul.addr %s3829, 4
        %s3831 = scalar_lea.vmem %s3, %s3830
      $region44: #{forward.6} parent=39 // pred_fallthru
        _
    $region40: #{forward.6} parent=5 // pred_fallthru
      _
  $region6: #{forward.6} parent=0 // loop_footer
    %s13 = sadd.s32 1, %s9
  $region7: #{forward.6} parent=0 // loop_footer_branch
    %8 = sbr.rel target = $region3
  $region8: #{forward.6} parent=0 // loop_exit
    _

// kernel: forward.7
$region0: #{forward.7}
  #allocation0 [shape = 'u32[]', space=smem, size = 0x4, offset = 0x4, fixed_abs, tag = 'smem constant byte address 0x4 - core index']
  #allocation1 [shape = 'u32[144,128]{1,0:T(1,128)}', space=vmem, size = 0x12000, scoped, tag = 'internal scratch']
  %s0 = inlined_call_operand.vmem [shape: bf16[2,2048], index: 0, kind: input, shape index: {}]
  %s1 = inlined_call_operand.vmem [shape: bf16[2048,512], index: 1, kind: input, shape index: {}]
  %s2 = inlined_call_operand.vmem [shape: f32[1,512], index: 2, kind: input, shape index: {}]
  %s3 = inlined_call_operand.vmem [shape: bf16[512,128], index: 3, kind: input, shape index: {}]
  %s4 = inlined_call_operand.vmem [shape: f32[1,128], index: 4, kind: input, shape index: {}]
  %s5 = inlined_call_operand.hbm [shape: f32[2,128], index: 5, kind: output, shape index: {}]
  %s6 = sld [smem:[#allocation0]]
  $region30: #{forward.7} parent=0
    _
  %s8 = ssub.s32 1, %s6
  %s9 = scalar_select 0, %s8, %s6
  $region1: #{forward.7} parent=0
    #allocation2 [shape = 'u8[1024]{0}', space=vmem, size = 0x400, scoped, tag = 'output window, operand 0, single buffered']
    #allocation3 [shape = 's32[1]{0}', space=sflag, size = 0x4, scoped, tag = 'scoped memory for forward.7']
    %10 = vsyncpa [#allocation3], 0
    // Predicated region
    $region2: #{forward.7} parent=1 // pred_check
      _
    $region3: #{forward.7} parent=1 // pred_check_branch
      %12 = sbr.rel (0) target = $region5
    $region4: #{forward.7} parent=1 // pred_region
      _
    $region5: #{forward.7} parent=1 // pred_fallthru
      _
    // Predicated region
    $region6: #{forward.7} parent=1 // pred_check
      _
    $region7: #{forward.7} parent=1 // pred_check_branch
      %14 = sbr.rel (0) target = $region9
    $region8: #{forward.7} parent=1 // pred_region
      _
    $region9: #{forward.7} parent=1 // pred_fallthru
      _
    // Predicated region
    $region10: #{forward.7} parent=1 // pred_check
      _
    $region11: #{forward.7} parent=1 // pred_check_branch
      %16 = sbr.rel (0) target = $region13
    $region12: #{forward.7} parent=1 // pred_region
      _
    $region13: #{forward.7} parent=1 // pred_fallthru
      _
    // Predicated region
    $region14: #{forward.7} parent=1 // pred_check
      _
    $region15: #{forward.7} parent=1 // pred_check_branch
      %18 = sbr.rel (0) target = $region17
    $region16: #{forward.7} parent=1 // pred_region
      _
    $region17: #{forward.7} parent=1 // pred_fallthru
      _
    // Predicated region
    $region18: #{forward.7} parent=1 // pred_check
      _
    $region19: #{forward.7} parent=1 // pred_check_branch
      %20 = sbr.rel (0) target = $region21
    $region20: #{forward.7} parent=1 // pred_region
      _
    $region21: #{forward.7} parent=1 // pred_fallthru
      _
    %v22 = vld [vmem:[%s0] sm:$0xff]
    %v23 = vld [vmem:[%s0 + $0x8] sm:$0xff]
    %v24 = vld [vmem:[%s1] sm:$0xff]
    %v25 = vld [vmem:[%s1 + $0x8] sm:$0xff]
    %v26 = vld [vmem:[%s1 + $0x10] sm:$0xff]
    %v27 = vld [vmem:[%s1 + $0x18] sm:$0xff]
    %v28 = vld [vmem:[%s1 + $0x20] sm:$0xff]
    %v29 = vld [vmem:[%s1 + $0x28] sm:$0xff]
    %v30 = vld [vmem:[%s1 + $0x30] sm:$0xff]
    %v31 = vld [vmem:[%s1 + $0x38] sm:$0xff]
    %v32 = vld [vmem:[%s1 + $0x40] sm:$0xff]
    %v33 = vld [vmem:[%s1 + $0x48] sm:$0xff]
    %v34 = vld [vmem:[%s1 + $0x50] sm:$0xff]
    %v35 = vld [vmem:[%s1 + $0x58] sm:$0xff]
    %v36 = vld [vmem:[%s1 + $0x60] sm:$0xff]
    %v37 = vld [vmem:[%s1 + $0x68] sm:$0xff]
    %v38 = vld [vmem:[%s1 + $0x70] sm:$0xff]
    %v39 = vld [vmem:[%s1 + $0x78] sm:$0xff]
    %v40 = vld [vmem:[%s1 + $0x80] sm:$0xff]
    %v41 = vld [vmem:[%s1 + $0x88] sm:$0xff]
    %v42 = vld [vmem:[%s1 + $0x90] sm:$0xff]
    %v43 = vld [vmem:[%s1 + $0x98] sm:$0xff]
    %v44 = vld [vmem:[%s1 + $0xa0] sm:$0xff]
    %v45 = vld [vmem:[%s1 + $0xa8] sm:$0xff]
    %v46 = vld [vmem:[%s1 + $0xb0] sm:$0xff]
    %v47 = vld [vmem:[%s1 + $0xb8] sm:$0xff]
    %v48 = vld [vmem:[%s1 + $0xc0] sm:$0xff]
    %v49 = vld [vmem:[%s1 + $0xc8] sm:$0xff]
    %v50 = vld [vmem:[%s1 + $0xd0] sm:$0xff]
    %v51 = vld [vmem:[%s1 + $0xd8] sm:$0xff]
    %v52 = vld [vmem:[%s1 + $0xe0] sm:$0xff]
    %v53 = vld [vmem:[%s1 + $0xe8] sm:$0xff]
    %v54 = vld [vmem:[%s1 + $0xf0] sm:$0xff]
    %v55 = vld [vmem:[%s1 + $0xf8] sm:$0xff]
    %v56 = vld [vmem:[%s1 + $0x100] sm:$0xff]
    %v57 = vld [vmem:[%s1 + $0x108] sm:$0xff]
    %v58 = vld [vmem:[%s1 + $0x110] sm:$0xff]
    %v59 = vld [vmem:[%s1 + $0x118] sm:$0xff]
    %v60 = vld [vmem:[%s1 + $0x120] sm:$0xff]
    %v61 = vld [vmem:[%s1 + $0x128] sm:$0xff]
    %v62 = vld [vmem:[%s1 + $0x130] sm:$0xff]
    %v63 = vld [vmem:[%s1 + $0x138] sm:$0xff]
    %v64 = vld [vmem:[%s1 + $0x140] sm:$0xff]
    %v65 = vld [vmem:[%s1 + $0x148] sm:$0xff]
    %v66 = vld [vmem:[%s1 + $0x150] sm:$0xff]
    %v67 = vld [vmem:[%s1 + $0x158] sm:$0xff]
    %v68 = vld [vmem:[%s1 + $0x160] sm:$0xff]
    %v69 = vld [vmem:[%s1 + $0x168] sm:$0xff]
    %v70 = vld [vmem:[%s1 + $0x170] sm:$0xff]
    %v71 = vld [vmem:[%s1 + $0x178] sm:$0xff]
    %v72 = vld [vmem:[%s1 + $0x180] sm:$0xff]
    %v73 = vld [vmem:[%s1 + $0x188] sm:$0xff]
    %v74 = vld [vmem:[%s1 + $0x190] sm:$0xff]
    %v75 = vld [vmem:[%s1 + $0x198] sm:$0xff]
    %v76 = vld [vmem:[%s1 + $0x1a0] sm:$0xff]
    %v77 = vld [vmem:[%s1 + $0x1a8] sm:$0xff]
    %v78 = vld [vmem:[%s1 + $0x1b0] sm:$0xff]
    %v79 = vld [vmem:[%s1 + $0x1b8] sm:$0xff]
    %v80 = vld [vmem:[%s1 + $0x1c0] sm:$0xff]
    %v81 = vld [vmem:[%s1 + $0x1c8] sm:$0xff]
    %v82 = vld [vmem:[%s1 + $0x1d0] sm:$0xff]
    %v83 = vld [vmem:[%s1 + $0x1d8] sm:$0xff]
    %v84 = vld [vmem:[%s1 + $0x1e0] sm:$0xff]
    %v85 = vld [vmem:[%s1 + $0x1e8] sm:$0xff]
    %v86 = vld [vmem:[%s1 + $0x1f0] sm:$0xff]
    %v87 = vld [vmem:[%s1 + $0x1f8] sm:$0xff]
    %v88 = vld [vmem:[%s1 + $0x200] sm:$0xff]
    %v89 = vld [vmem:[%s1 + $0x208] sm:$0xff]
    %v90 = vld [vmem:[%s1 + $0x210] sm:$0xff]
    %v91 = vld [vmem:[%s1 + $0x218] sm:$0xff]
    %v92 = vld [vmem:[%s1 + $0x220] sm:$0xff]
    %v93 = vld [vmem:[%s1 + $0x228] sm:$0xff]
    %v94 = vld [vmem:[%s1 + $0x230] sm:$0xff]
    %v95 = vld [vmem:[%s1 + $0x238] sm:$0xff]
    %v96 = vld [vmem:[%s1 + $0x240] sm:$0xff]
    %v97 = vld [vmem:[%s1 + $0x248] sm:$0xff]
    %v98 = vld [vmem:[%s1 + $0x250] sm:$0xff]
    %v99 = vld [vmem:[%s1 + $0x258] sm:$0xff]
    %v100 = vld [vmem:[%s1 + $0x260] sm:$0xff]
    %v101 = vld [vmem:[%s1 + $0x268] sm:$0xff]
    %v102 = vld [vmem:[%s1 + $0x270] sm:$0xff]
    %v103 = vld [vmem:[%s1 + $0x278] sm:$0xff]
    %v104 = vld [vmem:[%s1 + $0x280] sm:$0xff]
    %v105 = vld [vmem:[%s1 + $0x288] sm:$0xff]
    %v106 = vld [vmem:[%s1 + $0x290] sm:$0xff]
    %v107 = vld [vmem:[%s1 + $0x298] sm:$0xff]
    %v108 = vld [vmem:[%s1 + $0x2a0] sm:$0xff]
    %v109 = vld [vmem:[%s1 + $0x2a8] sm:$0xff]
    %v110 = vld [vmem:[%s1 + $0x2b0] sm:$0xff]
    %v111 = vld [vmem:[%s1 + $0x2b8] sm:$0xff]
    %v112 = vld [vmem:[%s1 + $0x2c0] sm:$0xff]
    %v113 = vld [vmem:[%s1 + $0x2c8] sm:$0xff]
    %v114 = vld [vmem:[%s1 + $0x2d0] sm:$0xff]
    %v115 = vld [vmem:[%s1 + $0x2d8] sm:$0xff]
    %v116 = vld [vmem:[%s1 + $0x2e0] sm:$0xff]
    %v117 = vld [vmem:[%s1 + $0x2e8] sm:$0xff]
    %v118 = vld [vmem:[%s1 + $0x2f0] sm:$0xff]
    %v119 = vld [vmem:[%s1 + $0x2f8] sm:$0xff]
    %v120 = vld [vmem:[%s1 + $0x300] sm:$0xff]
    %v121 = vld [vmem:[%s1 + $0x308] sm:$0xff]
    %v122 = vld [vmem:[%s1 + $0x310] sm:$0xff]
    %v123 = vld [vmem:[%s1 + $0x318] sm:$0xff]
    %v124 = vld [vmem:[%s1 + $0x320] sm:$0xff]
    %v125 = vld [vmem:[%s1 + $0x328] sm:$0xff]
    %v126 = vld [vmem:[%s1 + $0x330] sm:$0xff]
    %v127 = vld [vmem:[%s1 + $0x338] sm:$0xff]
    %v128 = vld [vmem:[%s1 + $0x340] sm:$0xff]
    %v129 = vld [vmem:[%s1 + $0x348] sm:$0xff]
    %v130 = vld [vmem:[%s1 + $0x350] sm:$0xff]
    %v131 = vld [vmem:[%s1 + $0x358] sm:$0xff]
    %v132 = vld [vmem:[%s1 + $0x360] sm:$0xff]
    %v133 = vld [vmem:[%s1 + $0x368] sm:$0xff]
    %v134 = vld [vmem:[%s1 + $0x370] sm:$0xff]
    %v135 = vld [vmem:[%s1 + $0x378] sm:$0xff]
    %v136 = vld [vmem:[%s1 + $0x380] sm:$0xff]
    %v137 = vld [vmem:[%s1 + $0x388] sm:$0xff]
    %v138 = vld [vmem:[%s1 + $0x390] sm:$0xff]
    %v139 = vld [vmem:[%s1 + $0x398] sm:$0xff]
    %v140 = vld [vmem:[%s1 + $0x3a0] sm:$0xff]
    %v141 = vld [vmem:[%s1 + $0x3a8] sm:$0xff]
    %v142 = vld [vmem:[%s1 + $0x3b0] sm:$0xff]
    %v143 = vld [vmem:[%s1 + $0x3b8] sm:$0xff]
    %v144 = vld [vmem:[%s1 + $0x3c0] sm:$0xff]
    %v145 = vld [vmem:[%s1 + $0x3c8] sm:$0xff]
    %v146 = vld [vmem:[%s1 + $0x3d0] sm:$0xff]
    %v147 = vld [vmem:[%s1 + $0x3d8] sm:$0xff]
    %v148 = vld [vmem:[%s1 + $0x3e0] sm:$0xff]
    %v149 = vld [vmem:[%s1 + $0x3e8] sm:$0xff]
    %v150 = vld [vmem:[%s1 + $0x3f0] sm:$0xff]
    %v151 = vld [vmem:[%s1 + $0x3f8] sm:$0xff]
    %v152 = vld [vmem:[%s1 + $0x400] sm:$0xff]
    %v153 = vld [vmem:[%s1 + $0x408] sm:$0xff]
    %v154 = vld [vmem:[%s1 + $0x410] sm:$0xff]
    %v155 = vld [vmem:[%s1 + $0x418] sm:$0xff]
    %v156 = vld [vmem:[%s1 + $0x420] sm:$0xff]
    %v157 = vld [vmem:[%s1 + $0x428] sm:$0xff]
    %v158 = vld [vmem:[%s1 + $0x430] sm:$0xff]
    %v159 = vld [vmem:[%s1 + $0x438] sm:$0xff]
    %v160 = vld [vmem:[%s1 + $0x440] sm:$0xff]
    %v161 = vld [vmem:[%s1 + $0x448] sm:$0xff]
    %v162 = vld [vmem:[%s1 + $0x450] sm:$0xff]
    %v163 = vld [vmem:[%s1 + $0x458] sm:$0xff]
    %v164 = vld [vmem:[%s1 + $0x460] sm:$0xff]
    %v165 = vld [vmem:[%s1 + $0x468] sm:$0xff]
    %v166 = vld [vmem:[%s1 + $0x470] sm:$0xff]
    %v167 = vld [vmem:[%s1 + $0x478] sm:$0xff]
    %v168 = vld [vmem:[%s1 + $0x480] sm:$0xff]
    %v169 = vld [vmem:[%s1 + $0x488] sm:$0xff]
    %v170 = vld [vmem:[%s1 + $0x490] sm:$0xff]
    %v171 = vld [vmem:[%s1 + $0x498] sm:$0xff]
    %v172 = vld [vmem:[%s1 + $0x4a0] sm:$0xff]
    %v173 = vld [vmem:[%s1 + $0x4a8] sm:$0xff]
    %v174 = vld [vmem:[%s1 + $0x4b0] sm:$0xff]
    %v175 = vld [vmem:[%s1 + $0x4b8] sm:$0xff]
    %v176 = vld [vmem:[%s1 + $0x4c0] sm:$0xff]
    %v177 = vld [vmem:[%s1 + $0x4c8] sm:$0xff]
    %v178 = vld [vmem:[%s1 + $0x4d0] sm:$0xff]
    %v179 = vld [vmem:[%s1 + $0x4d8] sm:$0xff]
    %v180 = vld [vmem:[%s1 + $0x4e0] sm:$0xff]
    %v181 = vld [vmem:[%s1 + $0x4e8] sm:$0xff]
    %v182 = vld [vmem:[%s1 + $0x4f0] sm:$0xff]
    %v183 = vld [vmem:[%s1 + $0x4f8] sm:$0xff]
    %v184 = vld [vmem:[%s1 + $0x500] sm:$0xff]
    %v185 = vld [vmem:[%s1 + $0x508] sm:$0xff]
    %v186 = vld [vmem:[%s1 + $0x510] sm:$0xff]
    %v187 = vld [vmem:[%s1 + $0x518] sm:$0xff]
    %v188 = vld [vmem:[%s1 + $0x520] sm:$0xff]
    %v189 = vld [vmem:[%s1 + $0x528] sm:$0xff]
    %v190 = vld [vmem:[%s1 + $0x530] sm:$0xff]
    %v191 = vld [vmem:[%s1 + $0x538] sm:$0xff]
    %v192 = vld [vmem:[%s1 + $0x540] sm:$0xff]
    %v193 = vld [vmem:[%s1 + $0x548] sm:$0xff]
    %v194 = vld [vmem:[%s1 + $0x550] sm:$0xff]
    %v195 = vld [vmem:[%s1 + $0x558] sm:$0xff]
    %v196 = vld [vmem:[%s1 + $0x560] sm:$0xff]
    %v197 = vld [vmem:[%s1 + $0x568] sm:$0xff]
    %v198 = vld [vmem:[%s1 + $0x570] sm:$0xff]
    %v199 = vld [vmem:[%s1 + $0x578] sm:$0xff]
    %v200 = vld [vmem:[%s1 + $0x580] sm:$0xff]
    %v201 = vld [vmem:[%s1 + $0x588] sm:$0xff]
    %v202 = vld [vmem:[%s1 + $0x590] sm:$0xff]
    %v203 = vld [vmem:[%s1 + $0x598] sm:$0xff]
    %v204 = vld [vmem:[%s1 + $0x5a0] sm:$0xff]
    %v205 = vld [vmem:[%s1 + $0x5a8] sm:$0xff]
    %v206 = vld [vmem:[%s1 + $0x5b0] sm:$0xff]
    %v207 = vld [vmem:[%s1 + $0x5b8] sm:$0xff]
    %v208 = vld [vmem:[%s1 + $0x5c0] sm:$0xff]
    %v209 = vld [vmem:[%s1 + $0x5c8] sm:$0xff]
    %v210 = vld [vmem:[%s1 + $0x5d0] sm:$0xff]
    %v211 = vld [vmem:[%s1 + $0x5d8] sm:$0xff]
    %v212 = vld [vmem:[%s1 + $0x5e0] sm:$0xff]
    %v213 = vld [vmem:[%s1 + $0x5e8] sm:$0xff]
    %v214 = vld [vmem:[%s1 + $0x5f0] sm:$0xff]
    %v215 = vld [vmem:[%s1 + $0x5f8] sm:$0xff]
    %v216 = vld [vmem:[%s1 + $0x600] sm:$0xff]
    %v217 = vld [vmem:[%s1 + $0x608] sm:$0xff]
    %v218 = vld [vmem:[%s1 + $0x610] sm:$0xff]
    %v219 = vld [vmem:[%s1 + $0x618] sm:$0xff]
    %v220 = vld [vmem:[%s1 + $0x620] sm:$0xff]
    %v221 = vld [vmem:[%s1 + $0x628] sm:$0xff]
    %v222 = vld [vmem:[%s1 + $0x630] sm:$0xff]
    %v223 = vld [vmem:[%s1 + $0x638] sm:$0xff]
    %v224 = vld [vmem:[%s1 + $0x640] sm:$0xff]
    %v225 = vld [vmem:[%s1 + $0x648] sm:$0xff]
    %v226 = vld [vmem:[%s1 + $0x650] sm:$0xff]
    %v227 = vld [vmem:[%s1 + $0x658] sm:$0xff]
    %v228 = vld [vmem:[%s1 + $0x660] sm:$0xff]
    %v229 = vld [vmem:[%s1 + $0x668] sm:$0xff]
    %v230 = vld [vmem:[%s1 + $0x670] sm:$0xff]
    %v231 = vld [vmem:[%s1 + $0x678] sm:$0xff]
    %v232 = vld [vmem:[%s1 + $0x680] sm:$0xff]
    %v233 = vld [vmem:[%s1 + $0x688] sm:$0xff]
    %v234 = vld [vmem:[%s1 + $0x690] sm:$0xff]
    %v235 = vld [vmem:[%s1 + $0x698] sm:$0xff]
    %v236 = vld [vmem:[%s1 + $0x6a0] sm:$0xff]
    %v237 = vld [vmem:[%s1 + $0x6a8] sm:$0xff]
    %v238 = vld [vmem:[%s1 + $0x6b0] sm:$0xff]
    %v239 = vld [vmem:[%s1 + $0x6b8] sm:$0xff]
    %v240 = vld [vmem:[%s1 + $0x6c0] sm:$0xff]
    %v241 = vld [vmem:[%s1 + $0x6c8] sm:$0xff]
    %v242 = vld [vmem:[%s1 + $0x6d0] sm:$0xff]
    %v243 = vld [vmem:[%s1 + $0x6d8] sm:$0xff]
    %v244 = vld [vmem:[%s1 + $0x6e0] sm:$0xff]
    %v245 = vld [vmem:[%s1 + $0x6e8] sm:$0xff]
    %v246 = vld [vmem:[%s1 + $0x6f0] sm:$0xff]
    %v247 = vld [vmem:[%s1 + $0x6f8] sm:$0xff]
    %v248 = vld [vmem:[%s1 + $0x700] sm:$0xff]
    %v249 = vld [vmem:[%s1 + $0x708] sm:$0xff]
    %v250 = vld [vmem:[%s1 + $0x710] sm:$0xff]
    %v251 = vld [vmem:[%s1 + $0x718] sm:$0xff]
    %v252 = vld [vmem:[%s1 + $0x720] sm:$0xff]
    %v253 = vld [vmem:[%s1 + $0x728] sm:$0xff]
    %v254 = vld [vmem:[%s1 + $0x730] sm:$0xff]
    %v255 = vld [vmem:[%s1 + $0x738] sm:$0xff]
    %v256 = vld [vmem:[%s1 + $0x740] sm:$0xff]
    %v257 = vld [vmem:[%s1 + $0x748] sm:$0xff]
    %v258 = vld [vmem:[%s1 + $0x750] sm:$0xff]
    %v259 = vld [vmem:[%s1 + $0x758] sm:$0xff]
    %v260 = vld [vmem:[%s1 + $0x760] sm:$0xff]
    %v261 = vld [vmem:[%s1 + $0x768] sm:$0xff]
    %v262 = vld [vmem:[%s1 + $0x770] sm:$0xff]
    %v263 = vld [vmem:[%s1 + $0x778] sm:$0xff]
    %v264 = vld [vmem:[%s1 + $0x780] sm:$0xff]
    %v265 = vld [vmem:[%s1 + $0x788] sm:$0xff]
    %v266 = vld [vmem:[%s1 + $0x790] sm:$0xff]
    %v267 = vld [vmem:[%s1 + $0x798] sm:$0xff]
    %v268 = vld [vmem:[%s1 + $0x7a0] sm:$0xff]
    %v269 = vld [vmem:[%s1 + $0x7a8] sm:$0xff]
    %v270 = vld [vmem:[%s1 + $0x7b0] sm:$0xff]
    %v271 = vld [vmem:[%s1 + $0x7b8] sm:$0xff]
    %v272 = vld [vmem:[%s1 + $0x7c0] sm:$0xff]
    %v273 = vld [vmem:[%s1 + $0x7c8] sm:$0xff]
    %v274 = vld [vmem:[%s1 + $0x7d0] sm:$0xff]
    %v275 = vld [vmem:[%s1 + $0x7d8] sm:$0xff]
    %v276 = vld [vmem:[%s1 + $0x7e0] sm:$0xff]
    %v277 = vld [vmem:[%s1 + $0x7e8] sm:$0xff]
    %v278 = vld [vmem:[%s1 + $0x7f0] sm:$0xff]
    %v279 = vld [vmem:[%s1 + $0x7f8] sm:$0xff]
    %v280 = vld [vmem:[%s1 + $0x800] sm:$0xff]
    %v281 = vld [vmem:[%s1 + $0x808] sm:$0xff]
    %v282 = vld [vmem:[%s1 + $0x810] sm:$0xff]
    %v283 = vld [vmem:[%s1 + $0x818] sm:$0xff]
    %v284 = vld [vmem:[%s1 + $0x820] sm:$0xff]
    %v285 = vld [vmem:[%s1 + $0x828] sm:$0xff]
    %v286 = vld [vmem:[%s1 + $0x830] sm:$0xff]
    %v287 = vld [vmem:[%s1 + $0x838] sm:$0xff]
    %v288 = vld [vmem:[%s1 + $0x840] sm:$0xff]
    %v289 = vld [vmem:[%s1 + $0x848] sm:$0xff]
    %v290 = vld [vmem:[%s1 + $0x850] sm:$0xff]
    %v291 = vld [vmem:[%s1 + $0x858] sm:$0xff]
    %v292 = vld [vmem:[%s1 + $0x860] sm:$0xff]
    %v293 = vld [vmem:[%s1 + $0x868] sm:$0xff]
    %v294 = vld [vmem:[%s1 + $0x870] sm:$0xff]
    %v295 = vld [vmem:[%s1 + $0x878] sm:$0xff]
    %v296 = vld [vmem:[%s1 + $0x880] sm:$0xff]
    %v297 = vld [vmem:[%s1 + $0x888] sm:$0xff]
    %v298 = vld [vmem:[%s1 + $0x890] sm:$0xff]
    %v299 = vld [vmem:[%s1 + $0x898] sm:$0xff]
    %v300 = vld [vmem:[%s1 + $0x8a0] sm:$0xff]
    %v301 = vld [vmem:[%s1 + $0x8a8] sm:$0xff]
    %v302 = vld [vmem:[%s1 + $0x8b0] sm:$0xff]
    %v303 = vld [vmem:[%s1 + $0x8b8] sm:$0xff]
    %v304 = vld [vmem:[%s1 + $0x8c0] sm:$0xff]
    %v305 = vld [vmem:[%s1 + $0x8c8] sm:$0xff]
    %v306 = vld [vmem:[%s1 + $0x8d0] sm:$0xff]
    %v307 = vld [vmem:[%s1 + $0x8d8] sm:$0xff]
    %v308 = vld [vmem:[%s1 + $0x8e0] sm:$0xff]
    %v309 = vld [vmem:[%s1 + $0x8e8] sm:$0xff]
    %v310 = vld [vmem:[%s1 + $0x8f0] sm:$0xff]
    %v311 = vld [vmem:[%s1 + $0x8f8] sm:$0xff]
    %v312 = vld [vmem:[%s1 + $0x900] sm:$0xff]
    %v313 = vld [vmem:[%s1 + $0x908] sm:$0xff]
    %v314 = vld [vmem:[%s1 + $0x910] sm:$0xff]
    %v315 = vld [vmem:[%s1 + $0x918] sm:$0xff]
    %v316 = vld [vmem:[%s1 + $0x920] sm:$0xff]
    %v317 = vld [vmem:[%s1 + $0x928] sm:$0xff]
    %v318 = vld [vmem:[%s1 + $0x930] sm:$0xff]
    %v319 = vld [vmem:[%s1 + $0x938] sm:$0xff]
    %v320 = vld [vmem:[%s1 + $0x940] sm:$0xff]
    %v321 = vld [vmem:[%s1 + $0x948] sm:$0xff]
    %v322 = vld [vmem:[%s1 + $0x950] sm:$0xff]
    %v323 = vld [vmem:[%s1 + $0x958] sm:$0xff]
    %v324 = vld [vmem:[%s1 + $0x960] sm:$0xff]
    %v325 = vld [vmem:[%s1 + $0x968] sm:$0xff]
    %v326 = vld [vmem:[%s1 + $0x970] sm:$0xff]
    %v327 = vld [vmem:[%s1 + $0x978] sm:$0xff]
    %v328 = vld [vmem:[%s1 + $0x980] sm:$0xff]
    %v329 = vld [vmem:[%s1 + $0x988] sm:$0xff]
    %v330 = vld [vmem:[%s1 + $0x990] sm:$0xff]
    %v331 = vld [vmem:[%s1 + $0x998] sm:$0xff]
    %v332 = vld [vmem:[%s1 + $0x9a0] sm:$0xff]
    %v333 = vld [vmem:[%s1 + $0x9a8] sm:$0xff]
    %v334 = vld [vmem:[%s1 + $0x9b0] sm:$0xff]
    %v335 = vld [vmem:[%s1 + $0x9b8] sm:$0xff]
    %v336 = vld [vmem:[%s1 + $0x9c0] sm:$0xff]
    %v337 = vld [vmem:[%s1 + $0x9c8] sm:$0xff]
    %v338 = vld [vmem:[%s1 + $0x9d0] sm:$0xff]
    %v339 = vld [vmem:[%s1 + $0x9d8] sm:$0xff]
    %v340 = vld [vmem:[%s1 + $0x9e0] sm:$0xff]
    %v341 = vld [vmem:[%s1 + $0x9e8] sm:$0xff]
    %v342 = vld [vmem:[%s1 + $0x9f0] sm:$0xff]
    %v343 = vld [vmem:[%s1 + $0x9f8] sm:$0xff]
    %v344 = vld [vmem:[%s1 + $0xa00] sm:$0xff]
    %v345 = vld [vmem:[%s1 + $0xa08] sm:$0xff]
    %v346 = vld [vmem:[%s1 + $0xa10] sm:$0xff]
    %v347 = vld [vmem:[%s1 + $0xa18] sm:$0xff]
    %v348 = vld [vmem:[%s1 + $0xa20] sm:$0xff]
    %v349 = vld [vmem:[%s1 + $0xa28] sm:$0xff]
    %v350 = vld [vmem:[%s1 + $0xa30] sm:$0xff]
    %v351 = vld [vmem:[%s1 + $0xa38] sm:$0xff]
    %v352 = vld [vmem:[%s1 + $0xa40] sm:$0xff]
    %v353 = vld [vmem:[%s1 + $0xa48] sm:$0xff]
    %v354 = vld [vmem:[%s1 + $0xa50] sm:$0xff]
    %v355 = vld [vmem:[%s1 + $0xa58] sm:$0xff]
    %v356 = vld [vmem:[%s1 + $0xa60] sm:$0xff]
    %v357 = vld [vmem:[%s1 + $0xa68] sm:$0xff]
    %v358 = vld [vmem:[%s1 + $0xa70] sm:$0xff]
    %v359 = vld [vmem:[%s1 + $0xa78] sm:$0xff]
    %v360 = vld [vmem:[%s1 + $0xa80] sm:$0xff]
    %v361 = vld [vmem:[%s1 + $0xa88] sm:$0xff]
    %v362 = vld [vmem:[%s1 + $0xa90] sm:$0xff]
    %v363 = vld [vmem:[%s1 + $0xa98] sm:$0xff]
    %v364 = vld [vmem:[%s1 + $0xaa0] sm:$0xff]
    %v365 = vld [vmem:[%s1 + $0xaa8] sm:$0xff]
    %v366 = vld [vmem:[%s1 + $0xab0] sm:$0xff]
    %v367 = vld [vmem:[%s1 + $0xab8] sm:$0xff]
    %v368 = vld [vmem:[%s1 + $0xac0] sm:$0xff]
    %v369 = vld [vmem:[%s1 + $0xac8] sm:$0xff]
    %v370 = vld [vmem:[%s1 + $0xad0] sm:$0xff]
    %v371 = vld [vmem:[%s1 + $0xad8] sm:$0xff]
    %v372 = vld [vmem:[%s1 + $0xae0] sm:$0xff]
    %v373 = vld [vmem:[%s1 + $0xae8] sm:$0xff]
    %v374 = vld [vmem:[%s1 + $0xaf0] sm:$0xff]
    %v375 = vld [vmem:[%s1 + $0xaf8] sm:$0xff]
    %v376 = vld [vmem:[%s1 + $0xb00] sm:$0xff]
    %v377 = vld [vmem:[%s1 + $0xb08] sm:$0xff]
    %v378 = vld [vmem:[%s1 + $0xb10] sm:$0xff]
    %v379 = vld [vmem:[%s1 + $0xb18] sm:$0xff]
    %v380 = vld [vmem:[%s1 + $0xb20] sm:$0xff]
    %v381 = vld [vmem:[%s1 + $0xb28] sm:$0xff]
    %v382 = vld [vmem:[%s1 + $0xb30] sm:$0xff]
    %v383 = vld [vmem:[%s1 + $0xb38] sm:$0xff]
    %v384 = vld [vmem:[%s1 + $0xb40] sm:$0xff]
    %v385 = vld [vmem:[%s1 + $0xb48] sm:$0xff]
    %v386 = vld [vmem:[%s1 + $0xb50] sm:$0xff]
    %v387 = vld [vmem:[%s1 + $0xb58] sm:$0xff]
    %v388 = vld [vmem:[%s1 + $0xb60] sm:$0xff]
    %v389 = vld [vmem:[%s1 + $0xb68] sm:$0xff]
    %v390 = vld [vmem:[%s1 + $0xb70] sm:$0xff]
    %v391 = vld [vmem:[%s1 + $0xb78] sm:$0xff]
    %v392 = vld [vmem:[%s1 + $0xb80] sm:$0xff]
    %v393 = vld [vmem:[%s1 + $0xb88] sm:$0xff]
    %v394 = vld [vmem:[%s1 + $0xb90] sm:$0xff]
    %v395 = vld [vmem:[%s1 + $0xb98] sm:$0xff]
    %v396 = vld [vmem:[%s1 + $0xba0] sm:$0xff]
    %v397 = vld [vmem:[%s1 + $0xba8] sm:$0xff]
    %v398 = vld [vmem:[%s1 + $0xbb0] sm:$0xff]
    %v399 = vld [vmem:[%s1 + $0xbb8] sm:$0xff]
    %v400 = vld [vmem:[%s1 + $0xbc0] sm:$0xff]
    %v401 = vld [vmem:[%s1 + $0xbc8] sm:$0xff]
    %v402 = vld [vmem:[%s1 + $0xbd0] sm:$0xff]
    %v403 = vld [vmem:[%s1 + $0xbd8] sm:$0xff]
    %v404 = vld [vmem:[%s1 + $0xbe0] sm:$0xff]
    %v405 = vld [vmem:[%s1 + $0xbe8] sm:$0xff]
    %v406 = vld [vmem:[%s1 + $0xbf0] sm:$0xff]
    %v407 = vld [vmem:[%s1 + $0xbf8] sm:$0xff]
    %v408 = vld [vmem:[%s1 + $0xc00] sm:$0xff]
    %v409 = vld [vmem:[%s1 + $0xc08] sm:$0xff]
    %v410 = vld [vmem:[%s1 + $0xc10] sm:$0xff]
    %v411 = vld [vmem:[%s1 + $0xc18] sm:$0xff]
    %v412 = vld [vmem:[%s1 + $0xc20] sm:$0xff]
    %v413 = vld [vmem:[%s1 + $0xc28] sm:$0xff]
    %v414 = vld [vmem:[%s1 + $0xc30] sm:$0xff]
    %v415 = vld [vmem:[%s1 + $0xc38] sm:$0xff]
    %v416 = vld [vmem:[%s1 + $0xc40] sm:$0xff]
    %v417 = vld [vmem:[%s1 + $0xc48] sm:$0xff]
    %v418 = vld [vmem:[%s1 + $0xc50] sm:$0xff]
    %v419 = vld [vmem:[%s1 + $0xc58] sm:$0xff]
    %v420 = vld [vmem:[%s1 + $0xc60] sm:$0xff]
    %v421 = vld [vmem:[%s1 + $0xc68] sm:$0xff]
    %v422 = vld [vmem:[%s1 + $0xc70] sm:$0xff]
    %v423 = vld [vmem:[%s1 + $0xc78] sm:$0xff]
    %v424 = vld [vmem:[%s1 + $0xc80] sm:$0xff]
    %v425 = vld [vmem:[%s1 + $0xc88] sm:$0xff]
    %v426 = vld [vmem:[%s1 + $0xc90] sm:$0xff]
    %v427 = vld [vmem:[%s1 + $0xc98] sm:$0xff]
    %v428 = vld [vmem:[%s1 + $0xca0] sm:$0xff]
    %v429 = vld [vmem:[%s1 + $0xca8] sm:$0xff]
    %v430 = vld [vmem:[%s1 + $0xcb0] sm:$0xff]
    %v431 = vld [vmem:[%s1 + $0xcb8] sm:$0xff]
    %v432 = vld [vmem:[%s1 + $0xcc0] sm:$0xff]
    %v433 = vld [vmem:[%s1 + $0xcc8] sm:$0xff]
    %v434 = vld [vmem:[%s1 + $0xcd0] sm:$0xff]
    %v435 = vld [vmem:[%s1 + $0xcd8] sm:$0xff]
    %v436 = vld [vmem:[%s1 + $0xce0] sm:$0xff]
    %v437 = vld [vmem:[%s1 + $0xce8] sm:$0xff]
    %v438 = vld [vmem:[%s1 + $0xcf0] sm:$0xff]
    %v439 = vld [vmem:[%s1 + $0xcf8] sm:$0xff]
    %v440 = vld [vmem:[%s1 + $0xd00] sm:$0xff]
    %v441 = vld [vmem:[%s1 + $0xd08] sm:$0xff]
    %v442 = vld [vmem:[%s1 + $0xd10] sm:$0xff]
    %v443 = vld [vmem:[%s1 + $0xd18] sm:$0xff]
    %v444 = vld [vmem:[%s1 + $0xd20] sm:$0xff]
    %v445 = vld [vmem:[%s1 + $0xd28] sm:$0xff]
    %v446 = vld [vmem:[%s1 + $0xd30] sm:$0xff]
    %v447 = vld [vmem:[%s1 + $0xd38] sm:$0xff]
    %v448 = vld [vmem:[%s1 + $0xd40] sm:$0xff]
    %v449 = vld [vmem:[%s1 + $0xd48] sm:$0xff]
    %v450 = vld [vmem:[%s1 + $0xd50] sm:$0xff]
    %v451 = vld [vmem:[%s1 + $0xd58] sm:$0xff]
    %v452 = vld [vmem:[%s1 + $0xd60] sm:$0xff]
    %v453 = vld [vmem:[%s1 + $0xd68] sm:$0xff]
    %v454 = vld [vmem:[%s1 + $0xd70] sm:$0xff]
    %v455 = vld [vmem:[%s1 + $0xd78] sm:$0xff]
    %v456 = vld [vmem:[%s1 + $0xd80] sm:$0xff]
    %v457 = vld [vmem:[%s1 + $0xd88] sm:$0xff]
    %v458 = vld [vmem:[%s1 + $0xd90] sm:$0xff]
    %v459 = vld [vmem:[%s1 + $0xd98] sm:$0xff]
    %v460 = vld [vmem:[%s1 + $0xda0] sm:$0xff]
    %v461 = vld [vmem:[%s1 + $0xda8] sm:$0xff]
    %v462 = vld [vmem:[%s1 + $0xdb0] sm:$0xff]
    %v463 = vld [vmem:[%s1 + $0xdb8] sm:$0xff]
    %v464 = vld [vmem:[%s1 + $0xdc0] sm:$0xff]
    %v465 = vld [vmem:[%s1 + $0xdc8] sm:$0xff]
    %v466 = vld [vmem:[%s1 + $0xdd0] sm:$0xff]
    %v467 = vld [vmem:[%s1 + $0xdd8] sm:$0xff]
    %v468 = vld [vmem:[%s1 + $0xde0] sm:$0xff]
    %v469 = vld [vmem:[%s1 + $0xde8] sm:$0xff]
    %v470 = vld [vmem:[%s1 + $0xdf0] sm:$0xff]
    %v471 = vld [vmem:[%s1 + $0xdf8] sm:$0xff]
    %v472 = vld [vmem:[%s1 + $0xe00] sm:$0xff]
    %v473 = vld [vmem:[%s1 + $0xe08] sm:$0xff]
    %v474 = vld [vmem:[%s1 + $0xe10] sm:$0xff]
    %v475 = vld [vmem:[%s1 + $0xe18] sm:$0xff]
    %v476 = vld [vmem:[%s1 + $0xe20] sm:$0xff]
    %v477 = vld [vmem:[%s1 + $0xe28] sm:$0xff]
    %v478 = vld [vmem:[%s1 + $0xe30] sm:$0xff]
    %v479 = vld [vmem:[%s1 + $0xe38] sm:$0xff]
    %v480 = vld [vmem:[%s1 + $0xe40] sm:$0xff]
    %v481 = vld [vmem:[%s1 + $0xe48] sm:$0xff]
    %v482 = vld [vmem:[%s1 + $0xe50] sm:$0xff]
    %v483 = vld [vmem:[%s1 + $0xe58] sm:$0xff]
    %v484 = vld [vmem:[%s1 + $0xe60] sm:$0xff]
    %v485 = vld [vmem:[%s1 + $0xe68] sm:$0xff]
    %v486 = vld [vmem:[%s1 + $0xe70] sm:$0xff]
    %v487 = vld [vmem:[%s1 + $0xe78] sm:$0xff]
    %v488 = vld [vmem:[%s1 + $0xe80] sm:$0xff]
    %v489 = vld [vmem:[%s1 + $0xe88] sm:$0xff]
    %v490 = vld [vmem:[%s1 + $0xe90] sm:$0xff]
    %v491 = vld [vmem:[%s1 + $0xe98] sm:$0xff]
    %v492 = vld [vmem:[%s1 + $0xea0] sm:$0xff]
    %v493 = vld [vmem:[%s1 + $0xea8] sm:$0xff]
    %v494 = vld [vmem:[%s1 + $0xeb0] sm:$0xff]
    %v495 = vld [vmem:[%s1 + $0xeb8] sm:$0xff]
    %v496 = vld [vmem:[%s1 + $0xec0] sm:$0xff]
    %v497 = vld [vmem:[%s1 + $0xec8] sm:$0xff]
    %v498 = vld [vmem:[%s1 + $0xed0] sm:$0xff]
    %v499 = vld [vmem:[%s1 + $0xed8] sm:$0xff]
    %v500 = vld [vmem:[%s1 + $0xee0] sm:$0xff]
    %v501 = vld [vmem:[%s1 + $0xee8] sm:$0xff]
    %v502 = vld [vmem:[%s1 + $0xef0] sm:$0xff]
    %v503 = vld [vmem:[%s1 + $0xef8] sm:$0xff]
    %v504 = vld [vmem:[%s1 + $0xf00] sm:$0xff]
    %v505 = vld [vmem:[%s1 + $0xf08] sm:$0xff]
    %v506 = vld [vmem:[%s1 + $0xf10] sm:$0xff]
    %v507 = vld [vmem:[%s1 + $0xf18] sm:$0xff]
    %v508 = vld [vmem:[%s1 + $0xf20] sm:$0xff]
    %v509 = vld [vmem:[%s1 + $0xf28] sm:$0xff]
    %v510 = vld [vmem:[%s1 + $0xf30] sm:$0xff]
    %v511 = vld [vmem:[%s1 + $0xf38] sm:$0xff]
    %v512 = vld [vmem:[%s1 + $0xf40] sm:$0xff]
    %v513 = vld [vmem:[%s1 + $0xf48] sm:$0xff]
    %v514 = vld [vmem:[%s1 + $0xf50] sm:$0xff]
    %v515 = vld [vmem:[%s1 + $0xf58] sm:$0xff]
    %v516 = vld [vmem:[%s1 + $0xf60] sm:$0xff]
    %v517 = vld [vmem:[%s1 + $0xf68] sm:$0xff]
    %v518 = vld [vmem:[%s1 + $0xf70] sm:$0xff]
    %v519 = vld [vmem:[%s1 + $0xf78] sm:$0xff]
    %v520 = vld [vmem:[%s1 + $0xf80] sm:$0xff]
    %v521 = vld [vmem:[%s1 + $0xf88] sm:$0xff]
    %v522 = vld [vmem:[%s1 + $0xf90] sm:$0xff]
    %v523 = vld [vmem:[%s1 + $0xf98] sm:$0xff]
    %v524 = vld [vmem:[%s1 + $0xfa0] sm:$0xff]
    %v525 = vld [vmem:[%s1 + $0xfa8] sm:$0xff]
    %v526 = vld [vmem:[%s1 + $0xfb0] sm:$0xff]
    %v527 = vld [vmem:[%s1 + $0xfb8] sm:$0xff]
    %v528 = vld [vmem:[%s1 + $0xfc0] sm:$0xff]
    %v529 = vld [vmem:[%s1 + $0xfc8] sm:$0xff]
    %v530 = vld [vmem:[%s1 + $0xfd0] sm:$0xff]
    %v531 = vld [vmem:[%s1 + $0xfd8] sm:$0xff]
    %v532 = vld [vmem:[%s1 + $0xfe0] sm:$0xff]
    %v533 = vld [vmem:[%s1 + $0xfe8] sm:$0xff]
    %v534 = vld [vmem:[%s1 + $0xff0] sm:$0xff]
    %v535 = vld [vmem:[%s1 + $0xff8] sm:$0xff]
    %v536 = vld [vmem:[%s2] sm:$0xf]
    %v538 = vlaneseq
    %v539 = vshrl.u32 %v538, 7
    %v540 = vsub.s32 0, %v539
    %v541 = vrot.slane %v536, %v540
    %v542 = vlaneseq
    %v543 = vshrl.u32 %v542, 7
    %v544 = vsub.s32 1, %v543
    %v545 = vrot.slane %v536, %v544
    %v546 = vlaneseq
    %v547 = vshrl.u32 %v546, 7
    %v548 = vsub.s32 2, %v547
    %v549 = vrot.slane %v536, %v548
    %v550 = vlaneseq
    %v551 = vshrl.u32 %v550, 7
    %v552 = vsub.s32 3, %v551
    %v553 = vrot.slane %v536, %v552
    %v560 = vcombine.high %v22, %v22
    %v562 = vunpack.c.l.s4 1966171168
    %v563 = vunpack.c.0.s8 %v562
    %v564 = vlaneseq
    %v565 = vshrl.u32 %v564, 7
    %v566 = vsub.s32 %v563, %v565
    %v567 = vrot.slane %v22, %v566
    %v569 = vunpack.c.l.s4 1966171168
    %v570 = vunpack.c.0.s8 %v569
    %v571 = vlaneseq
    %v572 = vshrl.u32 %v571, 7
    %v573 = vsub.s32 %v570, %v572
    %v574 = vrot.slane %v560, %v573
    %v575 = vcombine.high %v567, %v567
    %v576 = vcombine.high %v574, %v574
    %v578 = vunpack.c.l.s4 1966171168
    %v579 = vunpack.c.0.s8 %v578
    %v580 = vlaneseq
    %v581 = vshrl.u32 %v580, 7
    %v582 = vsub.s32 %v579, %v581
    %v583 = vrot.slane %v567, %v582
    %v585 = vunpack.c.l.s4 1966171168
    %v586 = vunpack.c.0.s8 %v585
    %v587 = vlaneseq
    %v588 = vshrl.u32 %v587, 7
    %v589 = vsub.s32 %v586, %v588
    %v590 = vrot.slane %v574, %v589
    %v592 = vunpack.c.l.s4 1966171168
    %v593 = vunpack.c.0.s8 %v592
    %v594 = vlaneseq
    %v595 = vshrl.u32 %v594, 7
    %v596 = vsub.s32 %v593, %v595
    %v597 = vrot.slane %v575, %v596
    %v599 = vunpack.c.l.s4 1966171168
    %v600 = vunpack.c.0.s8 %v599
    %v601 = vlaneseq
    %v602 = vshrl.u32 %v601, 7
    %v603 = vsub.s32 %v600, %v602
    %v604 = vrot.slane %v576, %v603
    %v605 = vcombine.high %v583, %v583
    %v606 = vcombine.high %v590, %v590
    %v607 = vcombine.high %v597, %v597
    %v608 = vcombine.high %v604, %v604
    %v609 = vcombine.high %v23, %v23
    %v611 = vunpack.c.l.s4 1966171168
    %v612 = vunpack.c.0.s8 %v611
    %v613 = vlaneseq
    %v614 = vshrl.u32 %v613, 7
    %v615 = vsub.s32 %v612, %v614
    %v616 = vrot.slane %v23, %v615
    %v618 = vunpack.c.l.s4 1966171168
    %v619 = vunpack.c.0.s8 %v618
    %v620 = vlaneseq
    %v621 = vshrl.u32 %v620, 7
    %v622 = vsub.s32 %v619, %v621
    %v623 = vrot.slane %v609, %v622
    %v624 = vcombine.high %v616, %v616
    %v625 = vcombine.high %v623, %v623
    %v627 = vunpack.c.l.s4 1966171168
    %v628 = vunpack.c.0.s8 %v627
    %v629 = vlaneseq
    %v630 = vshrl.u32 %v629, 7
    %v631 = vsub.s32 %v628, %v630
    %v632 = vrot.slane %v616, %v631
    %v634 = vunpack.c.l.s4 1966171168
    %v635 = vunpack.c.0.s8 %v634
    %v636 = vlaneseq
    %v637 = vshrl.u32 %v636, 7
    %v638 = vsub.s32 %v635, %v637
    %v639 = vrot.slane %v623, %v638
    %v641 = vunpack.c.l.s4 1966171168
    %v642 = vunpack.c.0.s8 %v641
    %v643 = vlaneseq
    %v644 = vshrl.u32 %v643, 7
    %v645 = vsub.s32 %v642, %v644
    %v646 = vrot.slane %v624, %v645
    %v648 = vunpack.c.l.s4 1966171168
    %v649 = vunpack.c.0.s8 %v648
    %v650 = vlaneseq
    %v651 = vshrl.u32 %v650, 7
    %v652 = vsub.s32 %v649, %v651
    %v653 = vrot.slane %v625, %v652
    %v654 = vcombine.high %v632, %v632
    %v655 = vcombine.high %v639, %v639
    %v656 = vcombine.high %v646, %v646
    %v657 = vcombine.high %v653, %v653
    %v1186 = vunpack.c.l.b16 %v24
    %v1187 = vunpack.c.h.b16 %v24
    %v1188 = vunpack.c.l.b16 %v25
    %v1189 = vunpack.c.h.b16 %v25
    %v1190 = vunpack.c.l.b16 %v26
    %v1191 = vunpack.c.h.b16 %v26
    %v1192 = vunpack.c.l.b16 %v27
    %v1193 = vunpack.c.h.b16 %v27
    %v1194 = vunpack.c.l.b16 %v28
    %v1195 = vunpack.c.h.b16 %v28
    %v1196 = vunpack.c.l.b16 %v29
    %v1197 = vunpack.c.h.b16 %v29
    %v1198 = vunpack.c.l.b16 %v30
    %v1199 = vunpack.c.h.b16 %v30
    %v1200 = vunpack.c.l.b16 %v31
    %v1201 = vunpack.c.h.b16 %v31
    %v1202 = vunpack.c.l.b16 %v32
    %v1203 = vunpack.c.h.b16 %v32
    %v1204 = vunpack.c.l.b16 %v33
    %v1205 = vunpack.c.h.b16 %v33
    %v1206 = vunpack.c.l.b16 %v34
    %v1207 = vunpack.c.h.b16 %v34
    %v1208 = vunpack.c.l.b16 %v35
    %v1209 = vunpack.c.h.b16 %v35
    %v1210 = vunpack.c.l.b16 %v36
    %v1211 = vunpack.c.h.b16 %v36
    %v1212 = vunpack.c.l.b16 %v37
    %v1213 = vunpack.c.h.b16 %v37
    %v1214 = vunpack.c.l.b16 %v38
    %v1215 = vunpack.c.h.b16 %v38
    %v1216 = vunpack.c.l.b16 %v39
    %v1217 = vunpack.c.h.b16 %v39
    %v1218 = vunpack.c.l.b16 %v40
    %v1219 = vunpack.c.h.b16 %v40
    %v1220 = vunpack.c.l.b16 %v41
    %v1221 = vunpack.c.h.b16 %v41
    %v1222 = vunpack.c.l.b16 %v42
    %v1223 = vunpack.c.h.b16 %v42
    %v1224 = vunpack.c.l.b16 %v43
    %v1225 = vunpack.c.h.b16 %v43
    %v1226 = vunpack.c.l.b16 %v44
    %v1227 = vunpack.c.h.b16 %v44
    %v1228 = vunpack.c.l.b16 %v45
    %v1229 = vunpack.c.h.b16 %v45
    %v1230 = vunpack.c.l.b16 %v46
    %v1231 = vunpack.c.h.b16 %v46
    %v1232 = vunpack.c.l.b16 %v47
    %v1233 = vunpack.c.h.b16 %v47
    %v1234 = vunpack.c.l.b16 %v48
    %v1235 = vunpack.c.h.b16 %v48
    %v1236 = vunpack.c.l.b16 %v49
    %v1237 = vunpack.c.h.b16 %v49
    %v1238 = vunpack.c.l.b16 %v50
    %v1239 = vunpack.c.h.b16 %v50
    %v1240 = vunpack.c.l.b16 %v51
    %v1241 = vunpack.c.h.b16 %v51
    %v1242 = vunpack.c.l.b16 %v52
    %v1243 = vunpack.c.h.b16 %v52
    %v1244 = vunpack.c.l.b16 %v53
    %v1245 = vunpack.c.h.b16 %v53
    %v1246 = vunpack.c.l.b16 %v54
    %v1247 = vunpack.c.h.b16 %v54
    %v1248 = vunpack.c.l.b16 %v55
    %v1249 = vunpack.c.h.b16 %v55
    %v1250 = vunpack.c.l.b16 %v56
    %v1251 = vunpack.c.h.b16 %v56
    %v1252 = vunpack.c.l.b16 %v57
    %v1253 = vunpack.c.h.b16 %v57
    %v1254 = vunpack.c.l.b16 %v58
    %v1255 = vunpack.c.h.b16 %v58
    %v1256 = vunpack.c.l.b16 %v59
    %v1257 = vunpack.c.h.b16 %v59
    %v1258 = vunpack.c.l.b16 %v60
    %v1259 = vunpack.c.h.b16 %v60
    %v1260 = vunpack.c.l.b16 %v61
    %v1261 = vunpack.c.h.b16 %v61
    %v1262 = vunpack.c.l.b16 %v62
    %v1263 = vunpack.c.h.b16 %v62
    %v1264 = vunpack.c.l.b16 %v63
    %v1265 = vunpack.c.h.b16 %v63
    %v1266 = vunpack.c.l.b16 %v64
    %v1267 = vunpack.c.h.b16 %v64
    %v1268 = vunpack.c.l.b16 %v65
    %v1269 = vunpack.c.h.b16 %v65
    %v1270 = vunpack.c.l.b16 %v66
    %v1271 = vunpack.c.h.b16 %v66
    %v1272 = vunpack.c.l.b16 %v67
    %v1273 = vunpack.c.h.b16 %v67
    %v1274 = vunpack.c.l.b16 %v68
    %v1275 = vunpack.c.h.b16 %v68
    %v1276 = vunpack.c.l.b16 %v69
    %v1277 = vunpack.c.h.b16 %v69
    %v1278 = vunpack.c.l.b16 %v70
    %v1279 = vunpack.c.h.b16 %v70
    %v1280 = vunpack.c.l.b16 %v71
    %v1281 = vunpack.c.h.b16 %v71
    %v1282 = vunpack.c.l.b16 %v72
    %v1283 = vunpack.c.h.b16 %v72
    %v1284 = vunpack.c.l.b16 %v73
    %v1285 = vunpack.c.h.b16 %v73
    %v1286 = vunpack.c.l.b16 %v74
    %v1287 = vunpack.c.h.b16 %v74
    %v1288 = vunpack.c.l.b16 %v75
    %v1289 = vunpack.c.h.b16 %v75
    %v1290 = vunpack.c.l.b16 %v76
    %v1291 = vunpack.c.h.b16 %v76
    %v1292 = vunpack.c.l.b16 %v77
    %v1293 = vunpack.c.h.b16 %v77
    %v1294 = vunpack.c.l.b16 %v78
    %v1295 = vunpack.c.h.b16 %v78
    %v1296 = vunpack.c.l.b16 %v79
    %v1297 = vunpack.c.h.b16 %v79
    %v1298 = vunpack.c.l.b16 %v80
    %v1299 = vunpack.c.h.b16 %v80
    %v1300 = vunpack.c.l.b16 %v81
    %v1301 = vunpack.c.h.b16 %v81
    %v1302 = vunpack.c.l.b16 %v82
    %v1303 = vunpack.c.h.b16 %v82
    %v1304 = vunpack.c.l.b16 %v83
    %v1305 = vunpack.c.h.b16 %v83
    %v1306 = vunpack.c.l.b16 %v84
    %v1307 = vunpack.c.h.b16 %v84
    %v1308 = vunpack.c.l.b16 %v85
    %v1309 = vunpack.c.h.b16 %v85
    %v1310 = vunpack.c.l.b16 %v86
    %v1311 = vunpack.c.h.b16 %v86
    %v1312 = vunpack.c.l.b16 %v87
    %v1313 = vunpack.c.h.b16 %v87
    %v1314 = vunpack.c.l.b16 %v88
    %v1315 = vunpack.c.h.b16 %v88
    %v1316 = vunpack.c.l.b16 %v89
    %v1317 = vunpack.c.h.b16 %v89
    %v1318 = vunpack.c.l.b16 %v90
    %v1319 = vunpack.c.h.b16 %v90
    %v1320 = vunpack.c.l.b16 %v91
    %v1321 = vunpack.c.h.b16 %v91
    %v1322 = vunpack.c.l.b16 %v92
    %v1323 = vunpack.c.h.b16 %v92
    %v1324 = vunpack.c.l.b16 %v93
    %v1325 = vunpack.c.h.b16 %v93
    %v1326 = vunpack.c.l.b16 %v94
    %v1327 = vunpack.c.h.b16 %v94
    %v1328 = vunpack.c.l.b16 %v95
    %v1329 = vunpack.c.h.b16 %v95
    %v1330 = vunpack.c.l.b16 %v96
    %v1331 = vunpack.c.h.b16 %v96
    %v1332 = vunpack.c.l.b16 %v97
    %v1333 = vunpack.c.h.b16 %v97
    %v1334 = vunpack.c.l.b16 %v98
    %v1335 = vunpack.c.h.b16 %v98
    %v1336 = vunpack.c.l.b16 %v99
    %v1337 = vunpack.c.h.b16 %v99
    %v1338 = vunpack.c.l.b16 %v100
    %v1339 = vunpack.c.h.b16 %v100
    %v1340 = vunpack.c.l.b16 %v101
    %v1341 = vunpack.c.h.b16 %v101
    %v1342 = vunpack.c.l.b16 %v102
    %v1343 = vunpack.c.h.b16 %v102
    %v1344 = vunpack.c.l.b16 %v103
    %v1345 = vunpack.c.h.b16 %v103
    %v1346 = vunpack.c.l.b16 %v104
    %v1347 = vunpack.c.h.b16 %v104
    %v1348 = vunpack.c.l.b16 %v105
    %v1349 = vunpack.c.h.b16 %v105
    %v1350 = vunpack.c.l.b16 %v106
    %v1351 = vunpack.c.h.b16 %v106
    %v1352 = vunpack.c.l.b16 %v107
    %v1353 = vunpack.c.h.b16 %v107
    %v1354 = vunpack.c.l.b16 %v108
    %v1355 = vunpack.c.h.b16 %v108
    %v1356 = vunpack.c.l.b16 %v109
    %v1357 = vunpack.c.h.b16 %v109
    %v1358 = vunpack.c.l.b16 %v110
    %v1359 = vunpack.c.h.b16 %v110
    %v1360 = vunpack.c.l.b16 %v111
    %v1361 = vunpack.c.h.b16 %v111
    %v1362 = vunpack.c.l.b16 %v112
    %v1363 = vunpack.c.h.b16 %v112
    %v1364 = vunpack.c.l.b16 %v113
    %v1365 = vunpack.c.h.b16 %v113
    %v1366 = vunpack.c.l.b16 %v114
    %v1367 = vunpack.c.h.b16 %v114
    %v1368 = vunpack.c.l.b16 %v115
    %v1369 = vunpack.c.h.b16 %v115
    %v1370 = vunpack.c.l.b16 %v116
    %v1371 = vunpack.c.h.b16 %v116
    %v1372 = vunpack.c.l.b16 %v117
    %v1373 = vunpack.c.h.b16 %v117
    %v1374 = vunpack.c.l.b16 %v118
    %v1375 = vunpack.c.h.b16 %v118
    %v1376 = vunpack.c.l.b16 %v119
    %v1377 = vunpack.c.h.b16 %v119
    %v1378 = vunpack.c.l.b16 %v120
    %v1379 = vunpack.c.h.b16 %v120
    %v1380 = vunpack.c.l.b16 %v121
    %v1381 = vunpack.c.h.b16 %v121
    %v1382 = vunpack.c.l.b16 %v122
    %v1383 = vunpack.c.h.b16 %v122
    %v1384 = vunpack.c.l.b16 %v123
    %v1385 = vunpack.c.h.b16 %v123
    %v1386 = vunpack.c.l.b16 %v124
    %v1387 = vunpack.c.h.b16 %v124
    %v1388 = vunpack.c.l.b16 %v125
    %v1389 = vunpack.c.h.b16 %v125
    %v1390 = vunpack.c.l.b16 %v126
    %v1391 = vunpack.c.h.b16 %v126
    %v1392 = vunpack.c.l.b16 %v127
    %v1393 = vunpack.c.h.b16 %v127
    %v1394 = vunpack.c.l.b16 %v128
    %v1395 = vunpack.c.h.b16 %v128
    %v1396 = vunpack.c.l.b16 %v129
    %v1397 = vunpack.c.h.b16 %v129
    %v1398 = vunpack.c.l.b16 %v130
    %v1399 = vunpack.c.h.b16 %v130
    %v1400 = vunpack.c.l.b16 %v131
    %v1401 = vunpack.c.h.b16 %v131
    %v1402 = vunpack.c.l.b16 %v132
    %v1403 = vunpack.c.h.b16 %v132
    %v1404 = vunpack.c.l.b16 %v133
    %v1405 = vunpack.c.h.b16 %v133
    %v1406 = vunpack.c.l.b16 %v134
    %v1407 = vunpack.c.h.b16 %v134
    %v1408 = vunpack.c.l.b16 %v135
    %v1409 = vunpack.c.h.b16 %v135
    %v1410 = vunpack.c.l.b16 %v136
    %v1411 = vunpack.c.h.b16 %v136
    %v1412 = vunpack.c.l.b16 %v137
    %v1413 = vunpack.c.h.b16 %v137
    %v1414 = vunpack.c.l.b16 %v138
    %v1415 = vunpack.c.h.b16 %v138
    %v1416 = vunpack.c.l.b16 %v139
    %v1417 = vunpack.c.h.b16 %v139
    %v1418 = vunpack.c.l.b16 %v140
    %v1419 = vunpack.c.h.b16 %v140
    %v1420 = vunpack.c.l.b16 %v141
    %v1421 = vunpack.c.h.b16 %v141
    %v1422 = vunpack.c.l.b16 %v142
    %v1423 = vunpack.c.h.b16 %v142
    %v1424 = vunpack.c.l.b16 %v143
    %v1425 = vunpack.c.h.b16 %v143
    %v1426 = vunpack.c.l.b16 %v144
    %v1427 = vunpack.c.h.b16 %v144
    %v1428 = vunpack.c.l.b16 %v145
    %v1429 = vunpack.c.h.b16 %v145
    %v1430 = vunpack.c.l.b16 %v146
    %v1431 = vunpack.c.h.b16 %v146
    %v1432 = vunpack.c.l.b16 %v147
    %v1433 = vunpack.c.h.b16 %v147
    %v1434 = vunpack.c.l.b16 %v148
    %v1435 = vunpack.c.h.b16 %v148
    %v1436 = vunpack.c.l.b16 %v149
    %v1437 = vunpack.c.h.b16 %v149
    %v1438 = vunpack.c.l.b16 %v150
    %v1439 = vunpack.c.h.b16 %v150
    %v1440 = vunpack.c.l.b16 %v151
    %v1441 = vunpack.c.h.b16 %v151
    %v1442 = vunpack.c.l.b16 %v152
    %v1443 = vunpack.c.h.b16 %v152
    %v1444 = vunpack.c.l.b16 %v153
    %v1445 = vunpack.c.h.b16 %v153
    %v1446 = vunpack.c.l.b16 %v154
    %v1447 = vunpack.c.h.b16 %v154
    %v1448 = vunpack.c.l.b16 %v155
    %v1449 = vunpack.c.h.b16 %v155
    %v1450 = vunpack.c.l.b16 %v156
    %v1451 = vunpack.c.h.b16 %v156
    %v1452 = vunpack.c.l.b16 %v157
    %v1453 = vunpack.c.h.b16 %v157
    %v1454 = vunpack.c.l.b16 %v158
    %v1455 = vunpack.c.h.b16 %v158
    %v1456 = vunpack.c.l.b16 %v159
    %v1457 = vunpack.c.h.b16 %v159
    %v1458 = vunpack.c.l.b16 %v160
    %v1459 = vunpack.c.h.b16 %v160
    %v1460 = vunpack.c.l.b16 %v161
    %v1461 = vunpack.c.h.b16 %v161
    %v1462 = vunpack.c.l.b16 %v162
    %v1463 = vunpack.c.h.b16 %v162
    %v1464 = vunpack.c.l.b16 %v163
    %v1465 = vunpack.c.h.b16 %v163
    %v1466 = vunpack.c.l.b16 %v164
    %v1467 = vunpack.c.h.b16 %v164
    %v1468 = vunpack.c.l.b16 %v165
    %v1469 = vunpack.c.h.b16 %v165
    %v1470 = vunpack.c.l.b16 %v166
    %v1471 = vunpack.c.h.b16 %v166
    %v1472 = vunpack.c.l.b16 %v167
    %v1473 = vunpack.c.h.b16 %v167
    %v1474 = vunpack.c.l.b16 %v168
    %v1475 = vunpack.c.h.b16 %v168
    %v1476 = vunpack.c.l.b16 %v169
    %v1477 = vunpack.c.h.b16 %v169
    %v1478 = vunpack.c.l.b16 %v170
    %v1479 = vunpack.c.h.b16 %v170
    %v1480 = vunpack.c.l.b16 %v171
    %v1481 = vunpack.c.h.b16 %v171
    %v1482 = vunpack.c.l.b16 %v172
    %v1483 = vunpack.c.h.b16 %v172
    %v1484 = vunpack.c.l.b16 %v173
    %v1485 = vunpack.c.h.b16 %v173
    %v1486 = vunpack.c.l.b16 %v174
    %v1487 = vunpack.c.h.b16 %v174
    %v1488 = vunpack.c.l.b16 %v175
    %v1489 = vunpack.c.h.b16 %v175
    %v1490 = vunpack.c.l.b16 %v176
    %v1491 = vunpack.c.h.b16 %v176
    %v1492 = vunpack.c.l.b16 %v177
    %v1493 = vunpack.c.h.b16 %v177
    %v1494 = vunpack.c.l.b16 %v178
    %v1495 = vunpack.c.h.b16 %v178
    %v1496 = vunpack.c.l.b16 %v179
    %v1497 = vunpack.c.h.b16 %v179
    %v1498 = vunpack.c.l.b16 %v180
    %v1499 = vunpack.c.h.b16 %v180
    %v1500 = vunpack.c.l.b16 %v181
    %v1501 = vunpack.c.h.b16 %v181
    %v1502 = vunpack.c.l.b16 %v182
    %v1503 = vunpack.c.h.b16 %v182
    %v1504 = vunpack.c.l.b16 %v183
    %v1505 = vunpack.c.h.b16 %v183
    %v1506 = vunpack.c.l.b16 %v184
    %v1507 = vunpack.c.h.b16 %v184
    %v1508 = vunpack.c.l.b16 %v185
    %v1509 = vunpack.c.h.b16 %v185
    %v1510 = vunpack.c.l.b16 %v186
    %v1511 = vunpack.c.h.b16 %v186
    %v1512 = vunpack.c.l.b16 %v187
    %v1513 = vunpack.c.h.b16 %v187
    %v1514 = vunpack.c.l.b16 %v188
    %v1515 = vunpack.c.h.b16 %v188
    %v1516 = vunpack.c.l.b16 %v189
    %v1517 = vunpack.c.h.b16 %v189
    %v1518 = vunpack.c.l.b16 %v190
    %v1519 = vunpack.c.h.b16 %v190
    %v1520 = vunpack.c.l.b16 %v191
    %v1521 = vunpack.c.h.b16 %v191
    %v1522 = vunpack.c.l.b16 %v192
    %v1523 = vunpack.c.h.b16 %v192
    %v1524 = vunpack.c.l.b16 %v193
    %v1525 = vunpack.c.h.b16 %v193
    %v1526 = vunpack.c.l.b16 %v194
    %v1527 = vunpack.c.h.b16 %v194
    %v1528 = vunpack.c.l.b16 %v195
    %v1529 = vunpack.c.h.b16 %v195
    %v1530 = vunpack.c.l.b16 %v196
    %v1531 = vunpack.c.h.b16 %v196
    %v1532 = vunpack.c.l.b16 %v197
    %v1533 = vunpack.c.h.b16 %v197
    %v1534 = vunpack.c.l.b16 %v198
    %v1535 = vunpack.c.h.b16 %v198
    %v1536 = vunpack.c.l.b16 %v199
    %v1537 = vunpack.c.h.b16 %v199
    %v1538 = vunpack.c.l.b16 %v200
    %v1539 = vunpack.c.h.b16 %v200
    %v1540 = vunpack.c.l.b16 %v201
    %v1541 = vunpack.c.h.b16 %v201
    %v1542 = vunpack.c.l.b16 %v202
    %v1543 = vunpack.c.h.b16 %v202
    %v1544 = vunpack.c.l.b16 %v203
    %v1545 = vunpack.c.h.b16 %v203
    %v1546 = vunpack.c.l.b16 %v204
    %v1547 = vunpack.c.h.b16 %v204
    %v1548 = vunpack.c.l.b16 %v205
    %v1549 = vunpack.c.h.b16 %v205
    %v1550 = vunpack.c.l.b16 %v206
    %v1551 = vunpack.c.h.b16 %v206
    %v1552 = vunpack.c.l.b16 %v207
    %v1553 = vunpack.c.h.b16 %v207
    %v1554 = vunpack.c.l.b16 %v208
    %v1555 = vunpack.c.h.b16 %v208
    %v1556 = vunpack.c.l.b16 %v209
    %v1557 = vunpack.c.h.b16 %v209
    %v1558 = vunpack.c.l.b16 %v210
    %v1559 = vunpack.c.h.b16 %v210
    %v1560 = vunpack.c.l.b16 %v211
    %v1561 = vunpack.c.h.b16 %v211
    %v1562 = vunpack.c.l.b16 %v212
    %v1563 = vunpack.c.h.b16 %v212
    %v1564 = vunpack.c.l.b16 %v213
    %v1565 = vunpack.c.h.b16 %v213
    %v1566 = vunpack.c.l.b16 %v214
    %v1567 = vunpack.c.h.b16 %v214
    %v1568 = vunpack.c.l.b16 %v215
    %v1569 = vunpack.c.h.b16 %v215
    %v1570 = vunpack.c.l.b16 %v216
    %v1571 = vunpack.c.h.b16 %v216
    %v1572 = vunpack.c.l.b16 %v217
    %v1573 = vunpack.c.h.b16 %v217
    %v1574 = vunpack.c.l.b16 %v218
    %v1575 = vunpack.c.h.b16 %v218
    %v1576 = vunpack.c.l.b16 %v219
    %v1577 = vunpack.c.h.b16 %v219
    %v1578 = vunpack.c.l.b16 %v220
    %v1579 = vunpack.c.h.b16 %v220
    %v1580 = vunpack.c.l.b16 %v221
    %v1581 = vunpack.c.h.b16 %v221
    %v1582 = vunpack.c.l.b16 %v222
    %v1583 = vunpack.c.h.b16 %v222
    %v1584 = vunpack.c.l.b16 %v223
    %v1585 = vunpack.c.h.b16 %v223
    %v1586 = vunpack.c.l.b16 %v224
    %v1587 = vunpack.c.h.b16 %v224
    %v1588 = vunpack.c.l.b16 %v225
    %v1589 = vunpack.c.h.b16 %v225
    %v1590 = vunpack.c.l.b16 %v226
    %v1591 = vunpack.c.h.b16 %v226
    %v1592 = vunpack.c.l.b16 %v227
    %v1593 = vunpack.c.h.b16 %v227
    %v1594 = vunpack.c.l.b16 %v228
    %v1595 = vunpack.c.h.b16 %v228
    %v1596 = vunpack.c.l.b16 %v229
    %v1597 = vunpack.c.h.b16 %v229
    %v1598 = vunpack.c.l.b16 %v230
    %v1599 = vunpack.c.h.b16 %v230
    %v1600 = vunpack.c.l.b16 %v231
    %v1601 = vunpack.c.h.b16 %v231
    %v1602 = vunpack.c.l.b16 %v232
    %v1603 = vunpack.c.h.b16 %v232
    %v1604 = vunpack.c.l.b16 %v233
    %v1605 = vunpack.c.h.b16 %v233
    %v1606 = vunpack.c.l.b16 %v234
    %v1607 = vunpack.c.h.b16 %v234
    %v1608 = vunpack.c.l.b16 %v235
    %v1609 = vunpack.c.h.b16 %v235
    %v1610 = vunpack.c.l.b16 %v236
    %v1611 = vunpack.c.h.b16 %v236
    %v1612 = vunpack.c.l.b16 %v237
    %v1613 = vunpack.c.h.b16 %v237
    %v1614 = vunpack.c.l.b16 %v238
    %v1615 = vunpack.c.h.b16 %v238
    %v1616 = vunpack.c.l.b16 %v239
    %v1617 = vunpack.c.h.b16 %v239
    %v1618 = vunpack.c.l.b16 %v240
    %v1619 = vunpack.c.h.b16 %v240
    %v1620 = vunpack.c.l.b16 %v241
    %v1621 = vunpack.c.h.b16 %v241
    %v1622 = vunpack.c.l.b16 %v242
    %v1623 = vunpack.c.h.b16 %v242
    %v1624 = vunpack.c.l.b16 %v243
    %v1625 = vunpack.c.h.b16 %v243
    %v1626 = vunpack.c.l.b16 %v244
    %v1627 = vunpack.c.h.b16 %v244
    %v1628 = vunpack.c.l.b16 %v245
    %v1629 = vunpack.c.h.b16 %v245
    %v1630 = vunpack.c.l.b16 %v246
    %v1631 = vunpack.c.h.b16 %v246
    %v1632 = vunpack.c.l.b16 %v247
    %v1633 = vunpack.c.h.b16 %v247
    %v1634 = vunpack.c.l.b16 %v248
    %v1635 = vunpack.c.h.b16 %v248
    %v1636 = vunpack.c.l.b16 %v249
    %v1637 = vunpack.c.h.b16 %v249
    %v1638 = vunpack.c.l.b16 %v250
    %v1639 = vunpack.c.h.b16 %v250
    %v1640 = vunpack.c.l.b16 %v251
    %v1641 = vunpack.c.h.b16 %v251
    %v1642 = vunpack.c.l.b16 %v252
    %v1643 = vunpack.c.h.b16 %v252
    %v1644 = vunpack.c.l.b16 %v253
    %v1645 = vunpack.c.h.b16 %v253
    %v1646 = vunpack.c.l.b16 %v254
    %v1647 = vunpack.c.h.b16 %v254
    %v1648 = vunpack.c.l.b16 %v255
    %v1649 = vunpack.c.h.b16 %v255
    %v1650 = vunpack.c.l.b16 %v256
    %v1651 = vunpack.c.h.b16 %v256
    %v1652 = vunpack.c.l.b16 %v257
    %v1653 = vunpack.c.h.b16 %v257
    %v1654 = vunpack.c.l.b16 %v258
    %v1655 = vunpack.c.h.b16 %v258
    %v1656 = vunpack.c.l.b16 %v259
    %v1657 = vunpack.c.h.b16 %v259
    %v1658 = vunpack.c.l.b16 %v260
    %v1659 = vunpack.c.h.b16 %v260
    %v1660 = vunpack.c.l.b16 %v261
    %v1661 = vunpack.c.h.b16 %v261
    %v1662 = vunpack.c.l.b16 %v262
    %v1663 = vunpack.c.h.b16 %v262
    %v1664 = vunpack.c.l.b16 %v263
    %v1665 = vunpack.c.h.b16 %v263
    %v1666 = vunpack.c.l.b16 %v264
    %v1667 = vunpack.c.h.b16 %v264
    %v1668 = vunpack.c.l.b16 %v265
    %v1669 = vunpack.c.h.b16 %v265
    %v1670 = vunpack.c.l.b16 %v266
    %v1671 = vunpack.c.h.b16 %v266
    %v1672 = vunpack.c.l.b16 %v267
    %v1673 = vunpack.c.h.b16 %v267
    %v1674 = vunpack.c.l.b16 %v268
    %v1675 = vunpack.c.h.b16 %v268
    %v1676 = vunpack.c.l.b16 %v269
    %v1677 = vunpack.c.h.b16 %v269
    %v1678 = vunpack.c.l.b16 %v270
    %v1679 = vunpack.c.h.b16 %v270
    %v1680 = vunpack.c.l.b16 %v271
    %v1681 = vunpack.c.h.b16 %v271
    %v1682 = vunpack.c.l.b16 %v272
    %v1683 = vunpack.c.h.b16 %v272
    %v1684 = vunpack.c.l.b16 %v273
    %v1685 = vunpack.c.h.b16 %v273
    %v1686 = vunpack.c.l.b16 %v274
    %v1687 = vunpack.c.h.b16 %v274
    %v1688 = vunpack.c.l.b16 %v275
    %v1689 = vunpack.c.h.b16 %v275
    %v1690 = vunpack.c.l.b16 %v276
    %v1691 = vunpack.c.h.b16 %v276
    %v1692 = vunpack.c.l.b16 %v277
    %v1693 = vunpack.c.h.b16 %v277
    %v1694 = vunpack.c.l.b16 %v278
    %v1695 = vunpack.c.h.b16 %v278
    %v1696 = vunpack.c.l.b16 %v279
    %v1697 = vunpack.c.h.b16 %v279
    %v1698 = vunpack.c.l.b16 %v280
    %v1699 = vunpack.c.h.b16 %v280
    %v1700 = vunpack.c.l.b16 %v281
    %v1701 = vunpack.c.h.b16 %v281
    %v1702 = vunpack.c.l.b16 %v282
    %v1703 = vunpack.c.h.b16 %v282
    %v1704 = vunpack.c.l.b16 %v283
    %v1705 = vunpack.c.h.b16 %v283
    %v1706 = vunpack.c.l.b16 %v284
    %v1707 = vunpack.c.h.b16 %v284
    %v1708 = vunpack.c.l.b16 %v285
    %v1709 = vunpack.c.h.b16 %v285
    %v1710 = vunpack.c.l.b16 %v286
    %v1711 = vunpack.c.h.b16 %v286
    %v1712 = vunpack.c.l.b16 %v287
    %v1713 = vunpack.c.h.b16 %v287
    %v1714 = vunpack.c.l.b16 %v288
    %v1715 = vunpack.c.h.b16 %v288
    %v1716 = vunpack.c.l.b16 %v289
    %v1717 = vunpack.c.h.b16 %v289
    %v1718 = vunpack.c.l.b16 %v290
    %v1719 = vunpack.c.h.b16 %v290
    %v1720 = vunpack.c.l.b16 %v291
    %v1721 = vunpack.c.h.b16 %v291
    %v1722 = vunpack.c.l.b16 %v292
    %v1723 = vunpack.c.h.b16 %v292
    %v1724 = vunpack.c.l.b16 %v293
    %v1725 = vunpack.c.h.b16 %v293
    %v1726 = vunpack.c.l.b16 %v294
    %v1727 = vunpack.c.h.b16 %v294
    %v1728 = vunpack.c.l.b16 %v295
    %v1729 = vunpack.c.h.b16 %v295
    %v1730 = vunpack.c.l.b16 %v296
    %v1731 = vunpack.c.h.b16 %v296
    %v1732 = vunpack.c.l.b16 %v297
    %v1733 = vunpack.c.h.b16 %v297
    %v1734 = vunpack.c.l.b16 %v298
    %v1735 = vunpack.c.h.b16 %v298
    %v1736 = vunpack.c.l.b16 %v299
    %v1737 = vunpack.c.h.b16 %v299
    %v1738 = vunpack.c.l.b16 %v300
    %v1739 = vunpack.c.h.b16 %v300
    %v1740 = vunpack.c.l.b16 %v301
    %v1741 = vunpack.c.h.b16 %v301
    %v1742 = vunpack.c.l.b16 %v302
    %v1743 = vunpack.c.h.b16 %v302
    %v1744 = vunpack.c.l.b16 %v303
    %v1745 = vunpack.c.h.b16 %v303
    %v1746 = vunpack.c.l.b16 %v304
    %v1747 = vunpack.c.h.b16 %v304
    %v1748 = vunpack.c.l.b16 %v305
    %v1749 = vunpack.c.h.b16 %v305
    %v1750 = vunpack.c.l.b16 %v306
    %v1751 = vunpack.c.h.b16 %v306
    %v1752 = vunpack.c.l.b16 %v307
    %v1753 = vunpack.c.h.b16 %v307
    %v1754 = vunpack.c.l.b16 %v308
    %v1755 = vunpack.c.h.b16 %v308
    %v1756 = vunpack.c.l.b16 %v309
    %v1757 = vunpack.c.h.b16 %v309
    %v1758 = vunpack.c.l.b16 %v310
    %v1759 = vunpack.c.h.b16 %v310
    %v1760 = vunpack.c.l.b16 %v311
    %v1761 = vunpack.c.h.b16 %v311
    %v1762 = vunpack.c.l.b16 %v312
    %v1763 = vunpack.c.h.b16 %v312
    %v1764 = vunpack.c.l.b16 %v313
    %v1765 = vunpack.c.h.b16 %v313
    %v1766 = vunpack.c.l.b16 %v314
    %v1767 = vunpack.c.h.b16 %v314
    %v1768 = vunpack.c.l.b16 %v315
    %v1769 = vunpack.c.h.b16 %v315
    %v1770 = vunpack.c.l.b16 %v316
    %v1771 = vunpack.c.h.b16 %v316
    %v1772 = vunpack.c.l.b16 %v317
    %v1773 = vunpack.c.h.b16 %v317
    %v1774 = vunpack.c.l.b16 %v318
    %v1775 = vunpack.c.h.b16 %v318
    %v1776 = vunpack.c.l.b16 %v319
    %v1777 = vunpack.c.h.b16 %v319
    %v1778 = vunpack.c.l.b16 %v320
    %v1779 = vunpack.c.h.b16 %v320
    %v1780 = vunpack.c.l.b16 %v321
    %v1781 = vunpack.c.h.b16 %v321
    %v1782 = vunpack.c.l.b16 %v322
    %v1783 = vunpack.c.h.b16 %v322
    %v1784 = vunpack.c.l.b16 %v323
    %v1785 = vunpack.c.h.b16 %v323
    %v1786 = vunpack.c.l.b16 %v324
    %v1787 = vunpack.c.h.b16 %v324
    %v1788 = vunpack.c.l.b16 %v325
    %v1789 = vunpack.c.h.b16 %v325
    %v1790 = vunpack.c.l.b16 %v326
    %v1791 = vunpack.c.h.b16 %v326
    %v1792 = vunpack.c.l.b16 %v327
    %v1793 = vunpack.c.h.b16 %v327
    %v1794 = vunpack.c.l.b16 %v328
    %v1795 = vunpack.c.h.b16 %v328
    %v1796 = vunpack.c.l.b16 %v329
    %v1797 = vunpack.c.h.b16 %v329
    %v1798 = vunpack.c.l.b16 %v330
    %v1799 = vunpack.c.h.b16 %v330
    %v1800 = vunpack.c.l.b16 %v331
    %v1801 = vunpack.c.h.b16 %v331
    %v1802 = vunpack.c.l.b16 %v332
    %v1803 = vunpack.c.h.b16 %v332
    %v1804 = vunpack.c.l.b16 %v333
    %v1805 = vunpack.c.h.b16 %v333
    %v1806 = vunpack.c.l.b16 %v334
    %v1807 = vunpack.c.h.b16 %v334
    %v1808 = vunpack.c.l.b16 %v335
    %v1809 = vunpack.c.h.b16 %v335
    %v1810 = vunpack.c.l.b16 %v336
    %v1811 = vunpack.c.h.b16 %v336
    %v1812 = vunpack.c.l.b16 %v337
    %v1813 = vunpack.c.h.b16 %v337
    %v1814 = vunpack.c.l.b16 %v338
    %v1815 = vunpack.c.h.b16 %v338
    %v1816 = vunpack.c.l.b16 %v339
    %v1817 = vunpack.c.h.b16 %v339
    %v1818 = vunpack.c.l.b16 %v340
    %v1819 = vunpack.c.h.b16 %v340
    %v1820 = vunpack.c.l.b16 %v341
    %v1821 = vunpack.c.h.b16 %v341
    %v1822 = vunpack.c.l.b16 %v342
    %v1823 = vunpack.c.h.b16 %v342
    %v1824 = vunpack.c.l.b16 %v343
    %v1825 = vunpack.c.h.b16 %v343
    %v1826 = vunpack.c.l.b16 %v344
    %v1827 = vunpack.c.h.b16 %v344
    %v1828 = vunpack.c.l.b16 %v345
    %v1829 = vunpack.c.h.b16 %v345
    %v1830 = vunpack.c.l.b16 %v346
    %v1831 = vunpack.c.h.b16 %v346
    %v1832 = vunpack.c.l.b16 %v347
    %v1833 = vunpack.c.h.b16 %v347
    %v1834 = vunpack.c.l.b16 %v348
    %v1835 = vunpack.c.h.b16 %v348
    %v1836 = vunpack.c.l.b16 %v349
    %v1837 = vunpack.c.h.b16 %v349
    %v1838 = vunpack.c.l.b16 %v350
    %v1839 = vunpack.c.h.b16 %v350
    %v1840 = vunpack.c.l.b16 %v351
    %v1841 = vunpack.c.h.b16 %v351
    %v1842 = vunpack.c.l.b16 %v352
    %v1843 = vunpack.c.h.b16 %v352
    %v1844 = vunpack.c.l.b16 %v353
    %v1845 = vunpack.c.h.b16 %v353
    %v1846 = vunpack.c.l.b16 %v354
    %v1847 = vunpack.c.h.b16 %v354
    %v1848 = vunpack.c.l.b16 %v355
    %v1849 = vunpack.c.h.b16 %v355
    %v1850 = vunpack.c.l.b16 %v356
    %v1851 = vunpack.c.h.b16 %v356
    %v1852 = vunpack.c.l.b16 %v357
    %v1853 = vunpack.c.h.b16 %v357
    %v1854 = vunpack.c.l.b16 %v358
    %v1855 = vunpack.c.h.b16 %v358
    %v1856 = vunpack.c.l.b16 %v359
    %v1857 = vunpack.c.h.b16 %v359
    %v1858 = vunpack.c.l.b16 %v360
    %v1859 = vunpack.c.h.b16 %v360
    %v1860 = vunpack.c.l.b16 %v361
    %v1861 = vunpack.c.h.b16 %v361
    %v1862 = vunpack.c.l.b16 %v362
    %v1863 = vunpack.c.h.b16 %v362
    %v1864 = vunpack.c.l.b16 %v363
    %v1865 = vunpack.c.h.b16 %v363
    %v1866 = vunpack.c.l.b16 %v364
    %v1867 = vunpack.c.h.b16 %v364
    %v1868 = vunpack.c.l.b16 %v365
    %v1869 = vunpack.c.h.b16 %v365
    %v1870 = vunpack.c.l.b16 %v366
    %v1871 = vunpack.c.h.b16 %v366
    %v1872 = vunpack.c.l.b16 %v367
    %v1873 = vunpack.c.h.b16 %v367
    %v1874 = vunpack.c.l.b16 %v368
    %v1875 = vunpack.c.h.b16 %v368
    %v1876 = vunpack.c.l.b16 %v369
    %v1877 = vunpack.c.h.b16 %v369
    %v1878 = vunpack.c.l.b16 %v370
    %v1879 = vunpack.c.h.b16 %v370
    %v1880 = vunpack.c.l.b16 %v371
    %v1881 = vunpack.c.h.b16 %v371
    %v1882 = vunpack.c.l.b16 %v372
    %v1883 = vunpack.c.h.b16 %v372
    %v1884 = vunpack.c.l.b16 %v373
    %v1885 = vunpack.c.h.b16 %v373
    %v1886 = vunpack.c.l.b16 %v374
    %v1887 = vunpack.c.h.b16 %v374
    %v1888 = vunpack.c.l.b16 %v375
    %v1889 = vunpack.c.h.b16 %v375
    %v1890 = vunpack.c.l.b16 %v376
    %v1891 = vunpack.c.h.b16 %v376
    %v1892 = vunpack.c.l.b16 %v377
    %v1893 = vunpack.c.h.b16 %v377
    %v1894 = vunpack.c.l.b16 %v378
    %v1895 = vunpack.c.h.b16 %v378
    %v1896 = vunpack.c.l.b16 %v379
    %v1897 = vunpack.c.h.b16 %v379
    %v1898 = vunpack.c.l.b16 %v380
    %v1899 = vunpack.c.h.b16 %v380
    %v1900 = vunpack.c.l.b16 %v381
    %v1901 = vunpack.c.h.b16 %v381
    %v1902 = vunpack.c.l.b16 %v382
    %v1903 = vunpack.c.h.b16 %v382
    %v1904 = vunpack.c.l.b16 %v383
    %v1905 = vunpack.c.h.b16 %v383
    %v1906 = vunpack.c.l.b16 %v384
    %v1907 = vunpack.c.h.b16 %v384
    %v1908 = vunpack.c.l.b16 %v385
    %v1909 = vunpack.c.h.b16 %v385
    %v1910 = vunpack.c.l.b16 %v386
    %v1911 = vunpack.c.h.b16 %v386
    %v1912 = vunpack.c.l.b16 %v387
    %v1913 = vunpack.c.h.b16 %v387
    %v1914 = vunpack.c.l.b16 %v388
    %v1915 = vunpack.c.h.b16 %v388
    %v1916 = vunpack.c.l.b16 %v389
    %v1917 = vunpack.c.h.b16 %v389
    %v1918 = vunpack.c.l.b16 %v390
    %v1919 = vunpack.c.h.b16 %v390
    %v1920 = vunpack.c.l.b16 %v391
    %v1921 = vunpack.c.h.b16 %v391
    %v1922 = vunpack.c.l.b16 %v392
    %v1923 = vunpack.c.h.b16 %v392
    %v1924 = vunpack.c.l.b16 %v393
    %v1925 = vunpack.c.h.b16 %v393
    %v1926 = vunpack.c.l.b16 %v394
    %v1927 = vunpack.c.h.b16 %v394
    %v1928 = vunpack.c.l.b16 %v395
    %v1929 = vunpack.c.h.b16 %v395
    %v1930 = vunpack.c.l.b16 %v396
    %v1931 = vunpack.c.h.b16 %v396
    %v1932 = vunpack.c.l.b16 %v397
    %v1933 = vunpack.c.h.b16 %v397
    %v1934 = vunpack.c.l.b16 %v398
    %v1935 = vunpack.c.h.b16 %v398
    %v1936 = vunpack.c.l.b16 %v399
    %v1937 = vunpack.c.h.b16 %v399
    %v1938 = vunpack.c.l.b16 %v400
    %v1939 = vunpack.c.h.b16 %v400
    %v1940 = vunpack.c.l.b16 %v401
    %v1941 = vunpack.c.h.b16 %v401
    %v1942 = vunpack.c.l.b16 %v402
    %v1943 = vunpack.c.h.b16 %v402
    %v1944 = vunpack.c.l.b16 %v403
    %v1945 = vunpack.c.h.b16 %v403
    %v1946 = vunpack.c.l.b16 %v404
    %v1947 = vunpack.c.h.b16 %v404
    %v1948 = vunpack.c.l.b16 %v405
    %v1949 = vunpack.c.h.b16 %v405
    %v1950 = vunpack.c.l.b16 %v406
    %v1951 = vunpack.c.h.b16 %v406
    %v1952 = vunpack.c.l.b16 %v407
    %v1953 = vunpack.c.h.b16 %v407
    %v1954 = vunpack.c.l.b16 %v408
    %v1955 = vunpack.c.h.b16 %v408
    %v1956 = vunpack.c.l.b16 %v409
    %v1957 = vunpack.c.h.b16 %v409
    %v1958 = vunpack.c.l.b16 %v410
    %v1959 = vunpack.c.h.b16 %v410
    %v1960 = vunpack.c.l.b16 %v411
    %v1961 = vunpack.c.h.b16 %v411
    %v1962 = vunpack.c.l.b16 %v412
    %v1963 = vunpack.c.h.b16 %v412
    %v1964 = vunpack.c.l.b16 %v413
    %v1965 = vunpack.c.h.b16 %v413
    %v1966 = vunpack.c.l.b16 %v414
    %v1967 = vunpack.c.h.b16 %v414
    %v1968 = vunpack.c.l.b16 %v415
    %v1969 = vunpack.c.h.b16 %v415
    %v1970 = vunpack.c.l.b16 %v416
    %v1971 = vunpack.c.h.b16 %v416
    %v1972 = vunpack.c.l.b16 %v417
    %v1973 = vunpack.c.h.b16 %v417
    %v1974 = vunpack.c.l.b16 %v418
    %v1975 = vunpack.c.h.b16 %v418
    %v1976 = vunpack.c.l.b16 %v419
    %v1977 = vunpack.c.h.b16 %v419
    %v1978 = vunpack.c.l.b16 %v420
    %v1979 = vunpack.c.h.b16 %v420
    %v1980 = vunpack.c.l.b16 %v421
    %v1981 = vunpack.c.h.b16 %v421
    %v1982 = vunpack.c.l.b16 %v422
    %v1983 = vunpack.c.h.b16 %v422
    %v1984 = vunpack.c.l.b16 %v423
    %v1985 = vunpack.c.h.b16 %v423
    %v1986 = vunpack.c.l.b16 %v424
    %v1987 = vunpack.c.h.b16 %v424
    %v1988 = vunpack.c.l.b16 %v425
    %v1989 = vunpack.c.h.b16 %v425
    %v1990 = vunpack.c.l.b16 %v426
    %v1991 = vunpack.c.h.b16 %v426
    %v1992 = vunpack.c.l.b16 %v427
    %v1993 = vunpack.c.h.b16 %v427
    %v1994 = vunpack.c.l.b16 %v428
    %v1995 = vunpack.c.h.b16 %v428
    %v1996 = vunpack.c.l.b16 %v429
    %v1997 = vunpack.c.h.b16 %v429
    %v1998 = vunpack.c.l.b16 %v430
    %v1999 = vunpack.c.h.b16 %v430
    %v2000 = vunpack.c.l.b16 %v431
    %v2001 = vunpack.c.h.b16 %v431
    %v2002 = vunpack.c.l.b16 %v432
    %v2003 = vunpack.c.h.b16 %v432
    %v2004 = vunpack.c.l.b16 %v433
    %v2005 = vunpack.c.h.b16 %v433
    %v2006 = vunpack.c.l.b16 %v434
    %v2007 = vunpack.c.h.b16 %v434
    %v2008 = vunpack.c.l.b16 %v435
    %v2009 = vunpack.c.h.b16 %v435
    %v2010 = vunpack.c.l.b16 %v436
    %v2011 = vunpack.c.h.b16 %v436
    %v2012 = vunpack.c.l.b16 %v437
    %v2013 = vunpack.c.h.b16 %v437
    %v2014 = vunpack.c.l.b16 %v438
    %v2015 = vunpack.c.h.b16 %v438
    %v2016 = vunpack.c.l.b16 %v439
    %v2017 = vunpack.c.h.b16 %v439
    %v2018 = vunpack.c.l.b16 %v440
    %v2019 = vunpack.c.h.b16 %v440
    %v2020 = vunpack.c.l.b16 %v441
    %v2021 = vunpack.c.h.b16 %v441
    %v2022 = vunpack.c.l.b16 %v442
    %v2023 = vunpack.c.h.b16 %v442
    %v2024 = vunpack.c.l.b16 %v443
    %v2025 = vunpack.c.h.b16 %v443
    %v2026 = vunpack.c.l.b16 %v444
    %v2027 = vunpack.c.h.b16 %v444
    %v2028 = vunpack.c.l.b16 %v445
    %v2029 = vunpack.c.h.b16 %v445
    %v2030 = vunpack.c.l.b16 %v446
    %v2031 = vunpack.c.h.b16 %v446
    %v2032 = vunpack.c.l.b16 %v447
    %v2033 = vunpack.c.h.b16 %v447
    %v2034 = vunpack.c.l.b16 %v448
    %v2035 = vunpack.c.h.b16 %v448
    %v2036 = vunpack.c.l.b16 %v449
    %v2037 = vunpack.c.h.b16 %v449
    %v2038 = vunpack.c.l.b16 %v450
    %v2039 = vunpack.c.h.b16 %v450
    %v2040 = vunpack.c.l.b16 %v451
    %v2041 = vunpack.c.h.b16 %v451
    %v2042 = vunpack.c.l.b16 %v452
    %v2043 = vunpack.c.h.b16 %v452
    %v2044 = vunpack.c.l.b16 %v453
    %v2045 = vunpack.c.h.b16 %v453
    %v2046 = vunpack.c.l.b16 %v454
    %v2047 = vunpack.c.h.b16 %v454
    %v2048 = vunpack.c.l.b16 %v455
    %v2049 = vunpack.c.h.b16 %v455
    %v2050 = vunpack.c.l.b16 %v456
    %v2051 = vunpack.c.h.b16 %v456
    %v2052 = vunpack.c.l.b16 %v457
    %v2053 = vunpack.c.h.b16 %v457
    %v2054 = vunpack.c.l.b16 %v458
    %v2055 = vunpack.c.h.b16 %v458
    %v2056 = vunpack.c.l.b16 %v459
    %v2057 = vunpack.c.h.b16 %v459
    %v2058 = vunpack.c.l.b16 %v460
    %v2059 = vunpack.c.h.b16 %v460
    %v2060 = vunpack.c.l.b16 %v461
    %v2061 = vunpack.c.h.b16 %v461
    %v2062 = vunpack.c.l.b16 %v462
    %v2063 = vunpack.c.h.b16 %v462
    %v2064 = vunpack.c.l.b16 %v463
    %v2065 = vunpack.c.h.b16 %v463
    %v2066 = vunpack.c.l.b16 %v464
    %v2067 = vunpack.c.h.b16 %v464
    %v2068 = vunpack.c.l.b16 %v465
    %v2069 = vunpack.c.h.b16 %v465
    %v2070 = vunpack.c.l.b16 %v466
    %v2071 = vunpack.c.h.b16 %v466
    %v2072 = vunpack.c.l.b16 %v467
    %v2073 = vunpack.c.h.b16 %v467
    %v2074 = vunpack.c.l.b16 %v468
    %v2075 = vunpack.c.h.b16 %v468
    %v2076 = vunpack.c.l.b16 %v469
    %v2077 = vunpack.c.h.b16 %v469
    %v2078 = vunpack.c.l.b16 %v470
    %v2079 = vunpack.c.h.b16 %v470
    %v2080 = vunpack.c.l.b16 %v471
    %v2081 = vunpack.c.h.b16 %v471
    %v2082 = vunpack.c.l.b16 %v472
    %v2083 = vunpack.c.h.b16 %v472
    %v2084 = vunpack.c.l.b16 %v473
    %v2085 = vunpack.c.h.b16 %v473
    %v2086 = vunpack.c.l.b16 %v474
    %v2087 = vunpack.c.h.b16 %v474
    %v2088 = vunpack.c.l.b16 %v475
    %v2089 = vunpack.c.h.b16 %v475
    %v2090 = vunpack.c.l.b16 %v476
    %v2091 = vunpack.c.h.b16 %v476
    %v2092 = vunpack.c.l.b16 %v477
    %v2093 = vunpack.c.h.b16 %v477
    %v2094 = vunpack.c.l.b16 %v478
    %v2095 = vunpack.c.h.b16 %v478
    %v2096 = vunpack.c.l.b16 %v479
    %v2097 = vunpack.c.h.b16 %v479
    %v2098 = vunpack.c.l.b16 %v480
    %v2099 = vunpack.c.h.b16 %v480
    %v2100 = vunpack.c.l.b16 %v481
    %v2101 = vunpack.c.h.b16 %v481
    %v2102 = vunpack.c.l.b16 %v482
    %v2103 = vunpack.c.h.b16 %v482
    %v2104 = vunpack.c.l.b16 %v483
    %v2105 = vunpack.c.h.b16 %v483
    %v2106 = vunpack.c.l.b16 %v484
    %v2107 = vunpack.c.h.b16 %v484
    %v2108 = vunpack.c.l.b16 %v485
    %v2109 = vunpack.c.h.b16 %v485
    %v2110 = vunpack.c.l.b16 %v486
    %v2111 = vunpack.c.h.b16 %v486
    %v2112 = vunpack.c.l.b16 %v487
    %v2113 = vunpack.c.h.b16 %v487
    %v2114 = vunpack.c.l.b16 %v488
    %v2115 = vunpack.c.h.b16 %v488
    %v2116 = vunpack.c.l.b16 %v489
    %v2117 = vunpack.c.h.b16 %v489
    %v2118 = vunpack.c.l.b16 %v490
    %v2119 = vunpack.c.h.b16 %v490
    %v2120 = vunpack.c.l.b16 %v491
    %v2121 = vunpack.c.h.b16 %v491
    %v2122 = vunpack.c.l.b16 %v492
    %v2123 = vunpack.c.h.b16 %v492
    %v2124 = vunpack.c.l.b16 %v493
    %v2125 = vunpack.c.h.b16 %v493
    %v2126 = vunpack.c.l.b16 %v494
    %v2127 = vunpack.c.h.b16 %v494
    %v2128 = vunpack.c.l.b16 %v495
    %v2129 = vunpack.c.h.b16 %v495
    %v2130 = vunpack.c.l.b16 %v496
    %v2131 = vunpack.c.h.b16 %v496
    %v2132 = vunpack.c.l.b16 %v497
    %v2133 = vunpack.c.h.b16 %v497
    %v2134 = vunpack.c.l.b16 %v498
    %v2135 = vunpack.c.h.b16 %v498
    %v2136 = vunpack.c.l.b16 %v499
    %v2137 = vunpack.c.h.b16 %v499
    %v2138 = vunpack.c.l.b16 %v500
    %v2139 = vunpack.c.h.b16 %v500
    %v2140 = vunpack.c.l.b16 %v501
    %v2141 = vunpack.c.h.b16 %v501
    %v2142 = vunpack.c.l.b16 %v502
    %v2143 = vunpack.c.h.b16 %v502
    %v2144 = vunpack.c.l.b16 %v503
    %v2145 = vunpack.c.h.b16 %v503
    %v2146 = vunpack.c.l.b16 %v504
    %v2147 = vunpack.c.h.b16 %v504
    %v2148 = vunpack.c.l.b16 %v505
    %v2149 = vunpack.c.h.b16 %v505
    %v2150 = vunpack.c.l.b16 %v506
    %v2151 = vunpack.c.h.b16 %v506
    %v2152 = vunpack.c.l.b16 %v507
    %v2153 = vunpack.c.h.b16 %v507
    %v2154 = vunpack.c.l.b16 %v508
    %v2155 = vunpack.c.h.b16 %v508
    %v2156 = vunpack.c.l.b16 %v509
    %v2157 = vunpack.c.h.b16 %v509
    %v2158 = vunpack.c.l.b16 %v510
    %v2159 = vunpack.c.h.b16 %v510
    %v2160 = vunpack.c.l.b16 %v511
    %v2161 = vunpack.c.h.b16 %v511
    %v2162 = vunpack.c.l.b16 %v512
    %v2163 = vunpack.c.h.b16 %v512
    %v2164 = vunpack.c.l.b16 %v513
    %v2165 = vunpack.c.h.b16 %v513
    %v2166 = vunpack.c.l.b16 %v514
    %v2167 = vunpack.c.h.b16 %v514
    %v2168 = vunpack.c.l.b16 %v515
    %v2169 = vunpack.c.h.b16 %v515
    %v2170 = vunpack.c.l.b16 %v516
    %v2171 = vunpack.c.h.b16 %v516
    %v2172 = vunpack.c.l.b16 %v517
    %v2173 = vunpack.c.h.b16 %v517
    %v2174 = vunpack.c.l.b16 %v518
    %v2175 = vunpack.c.h.b16 %v518
    %v2176 = vunpack.c.l.b16 %v519
    %v2177 = vunpack.c.h.b16 %v519
    %v2178 = vunpack.c.l.b16 %v520
    %v2179 = vunpack.c.h.b16 %v520
    %v2180 = vunpack.c.l.b16 %v521
    %v2181 = vunpack.c.h.b16 %v521
    %v2182 = vunpack.c.l.b16 %v522
    %v2183 = vunpack.c.h.b16 %v522
    %v2184 = vunpack.c.l.b16 %v523
    %v2185 = vunpack.c.h.b16 %v523
    %v2186 = vunpack.c.l.b16 %v524
    %v2187 = vunpack.c.h.b16 %v524
    %v2188 = vunpack.c.l.b16 %v525
    %v2189 = vunpack.c.h.b16 %v525
    %v2190 = vunpack.c.l.b16 %v526
    %v2191 = vunpack.c.h.b16 %v526
    %v2192 = vunpack.c.l.b16 %v527
    %v2193 = vunpack.c.h.b16 %v527
    %v2194 = vunpack.c.l.b16 %v528
    %v2195 = vunpack.c.h.b16 %v528
    %v2196 = vunpack.c.l.b16 %v529
    %v2197 = vunpack.c.h.b16 %v529
    %v2198 = vunpack.c.l.b16 %v530
    %v2199 = vunpack.c.h.b16 %v530
    %v2200 = vunpack.c.l.b16 %v531
    %v2201 = vunpack.c.h.b16 %v531
    %v2202 = vunpack.c.l.b16 %v532
    %v2203 = vunpack.c.h.b16 %v532
    %v2204 = vunpack.c.l.b16 %v533
    %v2205 = vunpack.c.h.b16 %v533
    %v2206 = vunpack.c.l.b16 %v534
    %v2207 = vunpack.c.h.b16 %v534
    %v2208 = vunpack.c.l.b16 %v535
    %v2209 = vunpack.c.h.b16 %v535
    %v2210 = vpack.c.b16 %v1190, %v1186
    %v2211 = vpack.c.b16 %v1191, %v1187
    %v2212 = vpack.c.b16 %v1192, %v1188
    %v2213 = vpack.c.b16 %v1193, %v1189
    %v2214 = vpack.c.b16 %v1198, %v1194
    %v2215 = vpack.c.b16 %v1199, %v1195
    %v2216 = vpack.c.b16 %v1200, %v1196
    %v2217 = vpack.c.b16 %v1201, %v1197
    %v2218 = vpack.c.b16 %v1206, %v1202
    %v2219 = vpack.c.b16 %v1207, %v1203
    %v2220 = vpack.c.b16 %v1208, %v1204
    %v2221 = vpack.c.b16 %v1209, %v1205
    %v2222 = vpack.c.b16 %v1214, %v1210
    %v2223 = vpack.c.b16 %v1215, %v1211
    %v2224 = vpack.c.b16 %v1216, %v1212
    %v2225 = vpack.c.b16 %v1217, %v1213
    %v2226 = vpack.c.b16 %v1222, %v1218
    %v2227 = vpack.c.b16 %v1223, %v1219
    %v2228 = vpack.c.b16 %v1224, %v1220
    %v2229 = vpack.c.b16 %v1225, %v1221
    %v2230 = vpack.c.b16 %v1230, %v1226
    %v2231 = vpack.c.b16 %v1231, %v1227
    %v2232 = vpack.c.b16 %v1232, %v1228
    %v2233 = vpack.c.b16 %v1233, %v1229
    %v2234 = vpack.c.b16 %v1238, %v1234
    %v2235 = vpack.c.b16 %v1239, %v1235
    %v2236 = vpack.c.b16 %v1240, %v1236
    %v2237 = vpack.c.b16 %v1241, %v1237
    %v2238 = vpack.c.b16 %v1246, %v1242
    %v2239 = vpack.c.b16 %v1247, %v1243
    %v2240 = vpack.c.b16 %v1248, %v1244
    %v2241 = vpack.c.b16 %v1249, %v1245
    %v2242 = vpack.c.b16 %v1254, %v1250
    %v2243 = vpack.c.b16 %v1255, %v1251
    %v2244 = vpack.c.b16 %v1256, %v1252
    %v2245 = vpack.c.b16 %v1257, %v1253
    %v2246 = vpack.c.b16 %v1262, %v1258
    %v2247 = vpack.c.b16 %v1263, %v1259
    %v2248 = vpack.c.b16 %v1264, %v1260
    %v2249 = vpack.c.b16 %v1265, %v1261
    %v2250 = vpack.c.b16 %v1270, %v1266
    %v2251 = vpack.c.b16 %v1271, %v1267
    %v2252 = vpack.c.b16 %v1272, %v1268
    %v2253 = vpack.c.b16 %v1273, %v1269
    %v2254 = vpack.c.b16 %v1278, %v1274
    %v2255 = vpack.c.b16 %v1279, %v1275
    %v2256 = vpack.c.b16 %v1280, %v1276
    %v2257 = vpack.c.b16 %v1281, %v1277
    %v2258 = vpack.c.b16 %v1286, %v1282
    %v2259 = vpack.c.b16 %v1287, %v1283
    %v2260 = vpack.c.b16 %v1288, %v1284
    %v2261 = vpack.c.b16 %v1289, %v1285
    %v2262 = vpack.c.b16 %v1294, %v1290
    %v2263 = vpack.c.b16 %v1295, %v1291
    %v2264 = vpack.c.b16 %v1296, %v1292
    %v2265 = vpack.c.b16 %v1297, %v1293
    %v2266 = vpack.c.b16 %v1302, %v1298
    %v2267 = vpack.c.b16 %v1303, %v1299
    %v2268 = vpack.c.b16 %v1304, %v1300
    %v2269 = vpack.c.b16 %v1305, %v1301
    %v2270 = vpack.c.b16 %v1310, %v1306
    %v2271 = vpack.c.b16 %v1311, %v1307
    %v2272 = vpack.c.b16 %v1312, %v1308
    %v2273 = vpack.c.b16 %v1313, %v1309
    %v2274 = vpack.c.b16 %v1318, %v1314
    %v2275 = vpack.c.b16 %v1319, %v1315
    %v2276 = vpack.c.b16 %v1320, %v1316
    %v2277 = vpack.c.b16 %v1321, %v1317
    %v2278 = vpack.c.b16 %v1326, %v1322
    %v2279 = vpack.c.b16 %v1327, %v1323
    %v2280 = vpack.c.b16 %v1328, %v1324
    %v2281 = vpack.c.b16 %v1329, %v1325
    %v2282 = vpack.c.b16 %v1334, %v1330
    %v2283 = vpack.c.b16 %v1335, %v1331
    %v2284 = vpack.c.b16 %v1336, %v1332
    %v2285 = vpack.c.b16 %v1337, %v1333
    %v2286 = vpack.c.b16 %v1342, %v1338
    %v2287 = vpack.c.b16 %v1343, %v1339
    %v2288 = vpack.c.b16 %v1344, %v1340
    %v2289 = vpack.c.b16 %v1345, %v1341
    %v2290 = vpack.c.b16 %v1350, %v1346
    %v2291 = vpack.c.b16 %v1351, %v1347
    %v2292 = vpack.c.b16 %v1352, %v1348
    %v2293 = vpack.c.b16 %v1353, %v1349
    %v2294 = vpack.c.b16 %v1358, %v1354
    %v2295 = vpack.c.b16 %v1359, %v1355
    %v2296 = vpack.c.b16 %v1360, %v1356
    %v2297 = vpack.c.b16 %v1361, %v1357
    %v2298 = vpack.c.b16 %v1366, %v1362
    %v2299 = vpack.c.b16 %v1367, %v1363
    %v2300 = vpack.c.b16 %v1368, %v1364
    %v2301 = vpack.c.b16 %v1369, %v1365
    %v2302 = vpack.c.b16 %v1374, %v1370
    %v2303 = vpack.c.b16 %v1375, %v1371
    %v2304 = vpack.c.b16 %v1376, %v1372
    %v2305 = vpack.c.b16 %v1377, %v1373
    %v2306 = vpack.c.b16 %v1382, %v1378
    %v2307 = vpack.c.b16 %v1383, %v1379
    %v2308 = vpack.c.b16 %v1384, %v1380
    %v2309 = vpack.c.b16 %v1385, %v1381
    %v2310 = vpack.c.b16 %v1390, %v1386
    %v2311 = vpack.c.b16 %v1391, %v1387
    %v2312 = vpack.c.b16 %v1392, %v1388
    %v2313 = vpack.c.b16 %v1393, %v1389
    %v2314 = vpack.c.b16 %v1398, %v1394
    %v2315 = vpack.c.b16 %v1399, %v1395
    %v2316 = vpack.c.b16 %v1400, %v1396
    %v2317 = vpack.c.b16 %v1401, %v1397
    %v2318 = vpack.c.b16 %v1406, %v1402
    %v2319 = vpack.c.b16 %v1407, %v1403
    %v2320 = vpack.c.b16 %v1408, %v1404
    %v2321 = vpack.c.b16 %v1409, %v1405
    %v2322 = vpack.c.b16 %v1414, %v1410
    %v2323 = vpack.c.b16 %v1415, %v1411
    %v2324 = vpack.c.b16 %v1416, %v1412
    %v2325 = vpack.c.b16 %v1417, %v1413
    %v2326 = vpack.c.b16 %v1422, %v1418
    %v2327 = vpack.c.b16 %v1423, %v1419
    %v2328 = vpack.c.b16 %v1424, %v1420
    %v2329 = vpack.c.b16 %v1425, %v1421
    %v2330 = vpack.c.b16 %v1430, %v1426
    %v2331 = vpack.c.b16 %v1431, %v1427
    %v2332 = vpack.c.b16 %v1432, %v1428
    %v2333 = vpack.c.b16 %v1433, %v1429
    %v2334 = vpack.c.b16 %v1438, %v1434
    %v2335 = vpack.c.b16 %v1439, %v1435
    %v2336 = vpack.c.b16 %v1440, %v1436
    %v2337 = vpack.c.b16 %v1441, %v1437
    %v2338 = vpack.c.b16 %v1446, %v1442
    %v2339 = vpack.c.b16 %v1447, %v1443
    %v2340 = vpack.c.b16 %v1448, %v1444
    %v2341 = vpack.c.b16 %v1449, %v1445
    %v2342 = vpack.c.b16 %v1454, %v1450
    %v2343 = vpack.c.b16 %v1455, %v1451
    %v2344 = vpack.c.b16 %v1456, %v1452
    %v2345 = vpack.c.b16 %v1457, %v1453
    %v2346 = vpack.c.b16 %v1462, %v1458
    %v2347 = vpack.c.b16 %v1463, %v1459
    %v2348 = vpack.c.b16 %v1464, %v1460
    %v2349 = vpack.c.b16 %v1465, %v1461
    %v2350 = vpack.c.b16 %v1470, %v1466
    %v2351 = vpack.c.b16 %v1471, %v1467
    %v2352 = vpack.c.b16 %v1472, %v1468
    %v2353 = vpack.c.b16 %v1473, %v1469
    %v2354 = vpack.c.b16 %v1478, %v1474
    %v2355 = vpack.c.b16 %v1479, %v1475
    %v2356 = vpack.c.b16 %v1480, %v1476
    %v2357 = vpack.c.b16 %v1481, %v1477
    %v2358 = vpack.c.b16 %v1486, %v1482
    %v2359 = vpack.c.b16 %v1487, %v1483
    %v2360 = vpack.c.b16 %v1488, %v1484
    %v2361 = vpack.c.b16 %v1489, %v1485
    %v2362 = vpack.c.b16 %v1494, %v1490
    %v2363 = vpack.c.b16 %v1495, %v1491
    %v2364 = vpack.c.b16 %v1496, %v1492
    %v2365 = vpack.c.b16 %v1497, %v1493
    %v2366 = vpack.c.b16 %v1502, %v1498
    %v2367 = vpack.c.b16 %v1503, %v1499
    %v2368 = vpack.c.b16 %v1504, %v1500
    %v2369 = vpack.c.b16 %v1505, %v1501
    %v2370 = vpack.c.b16 %v1510, %v1506
    %v2371 = vpack.c.b16 %v1511, %v1507
    %v2372 = vpack.c.b16 %v1512, %v1508
    %v2373 = vpack.c.b16 %v1513, %v1509
    %v2374 = vpack.c.b16 %v1518, %v1514
    %v2375 = vpack.c.b16 %v1519, %v1515
    %v2376 = vpack.c.b16 %v1520, %v1516
    %v2377 = vpack.c.b16 %v1521, %v1517
    %v2378 = vpack.c.b16 %v1526, %v1522
    %v2379 = vpack.c.b16 %v1527, %v1523
    %v2380 = vpack.c.b16 %v1528, %v1524
    %v2381 = vpack.c.b16 %v1529, %v1525
    %v2382 = vpack.c.b16 %v1534, %v1530
    %v2383 = vpack.c.b16 %v1535, %v1531
    %v2384 = vpack.c.b16 %v1536, %v1532
    %v2385 = vpack.c.b16 %v1537, %v1533
    %v2386 = vpack.c.b16 %v1542, %v1538
    %v2387 = vpack.c.b16 %v1543, %v1539
    %v2388 = vpack.c.b16 %v1544, %v1540
    %v2389 = vpack.c.b16 %v1545, %v1541
    %v2390 = vpack.c.b16 %v1550, %v1546
    %v2391 = vpack.c.b16 %v1551, %v1547
    %v2392 = vpack.c.b16 %v1552, %v1548
    %v2393 = vpack.c.b16 %v1553, %v1549
    %v2394 = vpack.c.b16 %v1558, %v1554
    %v2395 = vpack.c.b16 %v1559, %v1555
    %v2396 = vpack.c.b16 %v1560, %v1556
    %v2397 = vpack.c.b16 %v1561, %v1557
    %v2398 = vpack.c.b16 %v1566, %v1562
    %v2399 = vpack.c.b16 %v1567, %v1563
    %v2400 = vpack.c.b16 %v1568, %v1564
    %v2401 = vpack.c.b16 %v1569, %v1565
    %v2402 = vpack.c.b16 %v1574, %v1570
    %v2403 = vpack.c.b16 %v1575, %v1571
    %v2404 = vpack.c.b16 %v1576, %v1572
    %v2405 = vpack.c.b16 %v1577, %v1573
    %v2406 = vpack.c.b16 %v1582, %v1578
    %v2407 = vpack.c.b16 %v1583, %v1579
    %v2408 = vpack.c.b16 %v1584, %v1580
    %v2409 = vpack.c.b16 %v1585, %v1581
    %v2410 = vpack.c.b16 %v1590, %v1586
    %v2411 = vpack.c.b16 %v1591, %v1587
    %v2412 = vpack.c.b16 %v1592, %v1588
    %v2413 = vpack.c.b16 %v1593, %v1589
    %v2414 = vpack.c.b16 %v1598, %v1594
    %v2415 = vpack.c.b16 %v1599, %v1595
    %v2416 = vpack.c.b16 %v1600, %v1596
    %v2417 = vpack.c.b16 %v1601, %v1597
    %v2418 = vpack.c.b16 %v1606, %v1602
    %v2419 = vpack.c.b16 %v1607, %v1603
    %v2420 = vpack.c.b16 %v1608, %v1604
    %v2421 = vpack.c.b16 %v1609, %v1605
    %v2422 = vpack.c.b16 %v1614, %v1610
    %v2423 = vpack.c.b16 %v1615, %v1611
    %v2424 = vpack.c.b16 %v1616, %v1612
    %v2425 = vpack.c.b16 %v1617, %v1613
    %v2426 = vpack.c.b16 %v1622, %v1618
    %v2427 = vpack.c.b16 %v1623, %v1619
    %v2428 = vpack.c.b16 %v1624, %v1620
    %v2429 = vpack.c.b16 %v1625, %v1621
    %v2430 = vpack.c.b16 %v1630, %v1626
    %v2431 = vpack.c.b16 %v1631, %v1627
    %v2432 = vpack.c.b16 %v1632, %v1628
    %v2433 = vpack.c.b16 %v1633, %v1629
    %v2434 = vpack.c.b16 %v1638, %v1634
    %v2435 = vpack.c.b16 %v1639, %v1635
    %v2436 = vpack.c.b16 %v1640, %v1636
    %v2437 = vpack.c.b16 %v1641, %v1637
    %v2438 = vpack.c.b16 %v1646, %v1642
    %v2439 = vpack.c.b16 %v1647, %v1643
    %v2440 = vpack.c.b16 %v1648, %v1644
    %v2441 = vpack.c.b16 %v1649, %v1645
    %v2442 = vpack.c.b16 %v1654, %v1650
    %v2443 = vpack.c.b16 %v1655, %v1651
    %v2444 = vpack.c.b16 %v1656, %v1652
    %v2445 = vpack.c.b16 %v1657, %v1653
    %v2446 = vpack.c.b16 %v1662, %v1658
    %v2447 = vpack.c.b16 %v1663, %v1659
    %v2448 = vpack.c.b16 %v1664, %v1660
    %v2449 = vpack.c.b16 %v1665, %v1661
    %v2450 = vpack.c.b16 %v1670, %v1666
    %v2451 = vpack.c.b16 %v1671, %v1667
    %v2452 = vpack.c.b16 %v1672, %v1668
    %v2453 = vpack.c.b16 %v1673, %v1669
    %v2454 = vpack.c.b16 %v1678, %v1674
    %v2455 = vpack.c.b16 %v1679, %v1675
    %v2456 = vpack.c.b16 %v1680, %v1676
    %v2457 = vpack.c.b16 %v1681, %v1677
    %v2458 = vpack.c.b16 %v1686, %v1682
    %v2459 = vpack.c.b16 %v1687, %v1683
    %v2460 = vpack.c.b16 %v1688, %v1684
    %v2461 = vpack.c.b16 %v1689, %v1685
    %v2462 = vpack.c.b16 %v1694, %v1690
    %v2463 = vpack.c.b16 %v1695, %v1691
    %v2464 = vpack.c.b16 %v1696, %v1692
    %v2465 = vpack.c.b16 %v1697, %v1693
    %v2466 = vpack.c.b16 %v1702, %v1698
    %v2467 = vpack.c.b16 %v1703, %v1699
    %v2468 = vpack.c.b16 %v1704, %v1700
    %v2469 = vpack.c.b16 %v1705, %v1701
    %v2470 = vpack.c.b16 %v1710, %v1706
    %v2471 = vpack.c.b16 %v1711, %v1707
    %v2472 = vpack.c.b16 %v1712, %v1708
    %v2473 = vpack.c.b16 %v1713, %v1709
    %v2474 = vpack.c.b16 %v1718, %v1714
    %v2475 = vpack.c.b16 %v1719, %v1715
    %v2476 = vpack.c.b16 %v1720, %v1716
    %v2477 = vpack.c.b16 %v1721, %v1717
    %v2478 = vpack.c.b16 %v1726, %v1722
    %v2479 = vpack.c.b16 %v1727, %v1723
    %v2480 = vpack.c.b16 %v1728, %v1724
    %v2481 = vpack.c.b16 %v1729, %v1725
    %v2482 = vpack.c.b16 %v1734, %v1730
    %v2483 = vpack.c.b16 %v1735, %v1731
    %v2484 = vpack.c.b16 %v1736, %v1732
    %v2485 = vpack.c.b16 %v1737, %v1733
    %v2486 = vpack.c.b16 %v1742, %v1738
    %v2487 = vpack.c.b16 %v1743, %v1739
    %v2488 = vpack.c.b16 %v1744, %v1740
    %v2489 = vpack.c.b16 %v1745, %v1741
    %v2490 = vpack.c.b16 %v1750, %v1746
    %v2491 = vpack.c.b16 %v1751, %v1747
    %v2492 = vpack.c.b16 %v1752, %v1748
    %v2493 = vpack.c.b16 %v1753, %v1749
    %v2494 = vpack.c.b16 %v1758, %v1754
    %v2495 = vpack.c.b16 %v1759, %v1755
    %v2496 = vpack.c.b16 %v1760, %v1756
    %v2497 = vpack.c.b16 %v1761, %v1757
    %v2498 = vpack.c.b16 %v1766, %v1762
    %v2499 = vpack.c.b16 %v1767, %v1763
    %v2500 = vpack.c.b16 %v1768, %v1764
    %v2501 = vpack.c.b16 %v1769, %v1765
    %v2502 = vpack.c.b16 %v1774, %v1770
    %v2503 = vpack.c.b16 %v1775, %v1771
    %v2504 = vpack.c.b16 %v1776, %v1772
    %v2505 = vpack.c.b16 %v1777, %v1773
    %v2506 = vpack.c.b16 %v1782, %v1778
    %v2507 = vpack.c.b16 %v1783, %v1779
    %v2508 = vpack.c.b16 %v1784, %v1780
    %v2509 = vpack.c.b16 %v1785, %v1781
    %v2510 = vpack.c.b16 %v1790, %v1786
    %v2511 = vpack.c.b16 %v1791, %v1787
    %v2512 = vpack.c.b16 %v1792, %v1788
    %v2513 = vpack.c.b16 %v1793, %v1789
    %v2514 = vpack.c.b16 %v1798, %v1794
    %v2515 = vpack.c.b16 %v1799, %v1795
    %v2516 = vpack.c.b16 %v1800, %v1796
    %v2517 = vpack.c.b16 %v1801, %v1797
    %v2518 = vpack.c.b16 %v1806, %v1802
    %v2519 = vpack.c.b16 %v1807, %v1803
    %v2520 = vpack.c.b16 %v1808, %v1804
    %v2521 = vpack.c.b16 %v1809, %v1805
    %v2522 = vpack.c.b16 %v1814, %v1810
    %v2523 = vpack.c.b16 %v1815, %v1811
    %v2524 = vpack.c.b16 %v1816, %v1812
    %v2525 = vpack.c.b16 %v1817, %v1813
    %v2526 = vpack.c.b16 %v1822, %v1818
    %v2527 = vpack.c.b16 %v1823, %v1819
    %v2528 = vpack.c.b16 %v1824, %v1820
    %v2529 = vpack.c.b16 %v1825, %v1821
    %v2530 = vpack.c.b16 %v1830, %v1826
    %v2531 = vpack.c.b16 %v1831, %v1827
    %v2532 = vpack.c.b16 %v1832, %v1828
    %v2533 = vpack.c.b16 %v1833, %v1829
    %v2534 = vpack.c.b16 %v1838, %v1834
    %v2535 = vpack.c.b16 %v1839, %v1835
    %v2536 = vpack.c.b16 %v1840, %v1836
    %v2537 = vpack.c.b16 %v1841, %v1837
    %v2538 = vpack.c.b16 %v1846, %v1842
    %v2539 = vpack.c.b16 %v1847, %v1843
    %v2540 = vpack.c.b16 %v1848, %v1844
    %v2541 = vpack.c.b16 %v1849, %v1845
    %v2542 = vpack.c.b16 %v1854, %v1850
    %v2543 = vpack.c.b16 %v1855, %v1851
    %v2544 = vpack.c.b16 %v1856, %v1852
    %v2545 = vpack.c.b16 %v1857, %v1853
    %v2546 = vpack.c.b16 %v1862, %v1858
    %v2547 = vpack.c.b16 %v1863, %v1859
    %v2548 = vpack.c.b16 %v1864, %v1860
    %v2549 = vpack.c.b16 %v1865, %v1861
    %v2550 = vpack.c.b16 %v1870, %v1866
    %v2551 = vpack.c.b16 %v1871, %v1867
    %v2552 = vpack.c.b16 %v1872, %v1868
    %v2553 = vpack.c.b16 %v1873, %v1869
    %v2554 = vpack.c.b16 %v1878, %v1874
    %v2555 = vpack.c.b16 %v1879, %v1875
    %v2556 = vpack.c.b16 %v1880, %v1876
    %v2557 = vpack.c.b16 %v1881, %v1877
    %v2558 = vpack.c.b16 %v1886, %v1882
    %v2559 = vpack.c.b16 %v1887, %v1883
    %v2560 = vpack.c.b16 %v1888, %v1884
    %v2561 = vpack.c.b16 %v1889, %v1885
    %v2562 = vpack.c.b16 %v1894, %v1890
    %v2563 = vpack.c.b16 %v1895, %v1891
    %v2564 = vpack.c.b16 %v1896, %v1892
    %v2565 = vpack.c.b16 %v1897, %v1893
    %v2566 = vpack.c.b16 %v1902, %v1898
    %v2567 = vpack.c.b16 %v1903, %v1899
    %v2568 = vpack.c.b16 %v1904, %v1900
    %v2569 = vpack.c.b16 %v1905, %v1901
    %v2570 = vpack.c.b16 %v1910, %v1906
    %v2571 = vpack.c.b16 %v1911, %v1907
    %v2572 = vpack.c.b16 %v1912, %v1908
    %v2573 = vpack.c.b16 %v1913, %v1909
    %v2574 = vpack.c.b16 %v1918, %v1914
    %v2575 = vpack.c.b16 %v1919, %v1915
    %v2576 = vpack.c.b16 %v1920, %v1916
    %v2577 = vpack.c.b16 %v1921, %v1917
    %v2578 = vpack.c.b16 %v1926, %v1922
    %v2579 = vpack.c.b16 %v1927, %v1923
    %v2580 = vpack.c.b16 %v1928, %v1924
    %v2581 = vpack.c.b16 %v1929, %v1925
    %v2582 = vpack.c.b16 %v1934, %v1930
    %v2583 = vpack.c.b16 %v1935, %v1931
    %v2584 = vpack.c.b16 %v1936, %v1932
    %v2585 = vpack.c.b16 %v1937, %v1933
    %v2586 = vpack.c.b16 %v1942, %v1938
    %v2587 = vpack.c.b16 %v1943, %v1939
    %v2588 = vpack.c.b16 %v1944, %v1940
    %v2589 = vpack.c.b16 %v1945, %v1941
    %v2590 = vpack.c.b16 %v1950, %v1946
    %v2591 = vpack.c.b16 %v1951, %v1947
    %v2592 = vpack.c.b16 %v1952, %v1948
    %v2593 = vpack.c.b16 %v1953, %v1949
    %v2594 = vpack.c.b16 %v1958, %v1954
    %v2595 = vpack.c.b16 %v1959, %v1955
    %v2596 = vpack.c.b16 %v1960, %v1956
    %v2597 = vpack.c.b16 %v1961, %v1957
    %v2598 = vpack.c.b16 %v1966, %v1962
    %v2599 = vpack.c.b16 %v1967, %v1963
    %v2600 = vpack.c.b16 %v1968, %v1964
    %v2601 = vpack.c.b16 %v1969, %v1965
    %v2602 = vpack.c.b16 %v1974, %v1970
    %v2603 = vpack.c.b16 %v1975, %v1971
    %v2604 = vpack.c.b16 %v1976, %v1972
    %v2605 = vpack.c.b16 %v1977, %v1973
    %v2606 = vpack.c.b16 %v1982, %v1978
    %v2607 = vpack.c.b16 %v1983, %v1979
    %v2608 = vpack.c.b16 %v1984, %v1980
    %v2609 = vpack.c.b16 %v1985, %v1981
    %v2610 = vpack.c.b16 %v1990, %v1986
    %v2611 = vpack.c.b16 %v1991, %v1987
    %v2612 = vpack.c.b16 %v1992, %v1988
    %v2613 = vpack.c.b16 %v1993, %v1989
    %v2614 = vpack.c.b16 %v1998, %v1994
    %v2615 = vpack.c.b16 %v1999, %v1995
    %v2616 = vpack.c.b16 %v2000, %v1996
    %v2617 = vpack.c.b16 %v2001, %v1997
    %v2618 = vpack.c.b16 %v2006, %v2002
    %v2619 = vpack.c.b16 %v2007, %v2003
    %v2620 = vpack.c.b16 %v2008, %v2004
    %v2621 = vpack.c.b16 %v2009, %v2005
    %v2622 = vpack.c.b16 %v2014, %v2010
    %v2623 = vpack.c.b16 %v2015, %v2011
    %v2624 = vpack.c.b16 %v2016, %v2012
    %v2625 = vpack.c.b16 %v2017, %v2013
    %v2626 = vpack.c.b16 %v2022, %v2018
    %v2627 = vpack.c.b16 %v2023, %v2019
    %v2628 = vpack.c.b16 %v2024, %v2020
    %v2629 = vpack.c.b16 %v2025, %v2021
    %v2630 = vpack.c.b16 %v2030, %v2026
    %v2631 = vpack.c.b16 %v2031, %v2027
    %v2632 = vpack.c.b16 %v2032, %v2028
    %v2633 = vpack.c.b16 %v2033, %v2029
    %v2634 = vpack.c.b16 %v2038, %v2034
    %v2635 = vpack.c.b16 %v2039, %v2035
    %v2636 = vpack.c.b16 %v2040, %v2036
    %v2637 = vpack.c.b16 %v2041, %v2037
    %v2638 = vpack.c.b16 %v2046, %v2042
    %v2639 = vpack.c.b16 %v2047, %v2043
    %v2640 = vpack.c.b16 %v2048, %v2044
    %v2641 = vpack.c.b16 %v2049, %v2045
    %v2642 = vpack.c.b16 %v2054, %v2050
    %v2643 = vpack.c.b16 %v2055, %v2051
    %v2644 = vpack.c.b16 %v2056, %v2052
    %v2645 = vpack.c.b16 %v2057, %v2053
    %v2646 = vpack.c.b16 %v2062, %v2058
    %v2647 = vpack.c.b16 %v2063, %v2059
    %v2648 = vpack.c.b16 %v2064, %v2060
    %v2649 = vpack.c.b16 %v2065, %v2061
    %v2650 = vpack.c.b16 %v2070, %v2066
    %v2651 = vpack.c.b16 %v2071, %v2067
    %v2652 = vpack.c.b16 %v2072, %v2068
    %v2653 = vpack.c.b16 %v2073, %v2069
    %v2654 = vpack.c.b16 %v2078, %v2074
    %v2655 = vpack.c.b16 %v2079, %v2075
    %v2656 = vpack.c.b16 %v2080, %v2076
    %v2657 = vpack.c.b16 %v2081, %v2077
    %v2658 = vpack.c.b16 %v2086, %v2082
    %v2659 = vpack.c.b16 %v2087, %v2083
    %v2660 = vpack.c.b16 %v2088, %v2084
    %v2661 = vpack.c.b16 %v2089, %v2085
    %v2662 = vpack.c.b16 %v2094, %v2090
    %v2663 = vpack.c.b16 %v2095, %v2091
    %v2664 = vpack.c.b16 %v2096, %v2092
    %v2665 = vpack.c.b16 %v2097, %v2093
    %v2666 = vpack.c.b16 %v2102, %v2098
    %v2667 = vpack.c.b16 %v2103, %v2099
    %v2668 = vpack.c.b16 %v2104, %v2100
    %v2669 = vpack.c.b16 %v2105, %v2101
    %v2670 = vpack.c.b16 %v2110, %v2106
    %v2671 = vpack.c.b16 %v2111, %v2107
    %v2672 = vpack.c.b16 %v2112, %v2108
    %v2673 = vpack.c.b16 %v2113, %v2109
    %v2674 = vpack.c.b16 %v2118, %v2114
    %v2675 = vpack.c.b16 %v2119, %v2115
    %v2676 = vpack.c.b16 %v2120, %v2116
    %v2677 = vpack.c.b16 %v2121, %v2117
    %v2678 = vpack.c.b16 %v2126, %v2122
    %v2679 = vpack.c.b16 %v2127, %v2123
    %v2680 = vpack.c.b16 %v2128, %v2124
    %v2681 = vpack.c.b16 %v2129, %v2125
    %v2682 = vpack.c.b16 %v2134, %v2130
    %v2683 = vpack.c.b16 %v2135, %v2131
    %v2684 = vpack.c.b16 %v2136, %v2132
    %v2685 = vpack.c.b16 %v2137, %v2133
    %v2686 = vpack.c.b16 %v2142, %v2138
    %v2687 = vpack.c.b16 %v2143, %v2139
    %v2688 = vpack.c.b16 %v2144, %v2140
    %v2689 = vpack.c.b16 %v2145, %v2141
    %v2690 = vpack.c.b16 %v2150, %v2146
    %v2691 = vpack.c.b16 %v2151, %v2147
    %v2692 = vpack.c.b16 %v2152, %v2148
    %v2693 = vpack.c.b16 %v2153, %v2149
    %v2694 = vpack.c.b16 %v2158, %v2154
    %v2695 = vpack.c.b16 %v2159, %v2155
    %v2696 = vpack.c.b16 %v2160, %v2156
    %v2697 = vpack.c.b16 %v2161, %v2157
    %v2698 = vpack.c.b16 %v2166, %v2162
    %v2699 = vpack.c.b16 %v2167, %v2163
    %v2700 = vpack.c.b16 %v2168, %v2164
    %v2701 = vpack.c.b16 %v2169, %v2165
    %v2702 = vpack.c.b16 %v2174, %v2170
    %v2703 = vpack.c.b16 %v2175, %v2171
    %v2704 = vpack.c.b16 %v2176, %v2172
    %v2705 = vpack.c.b16 %v2177, %v2173
    %v2706 = vpack.c.b16 %v2182, %v2178
    %v2707 = vpack.c.b16 %v2183, %v2179
    %v2708 = vpack.c.b16 %v2184, %v2180
    %v2709 = vpack.c.b16 %v2185, %v2181
    %v2710 = vpack.c.b16 %v2190, %v2186
    %v2711 = vpack.c.b16 %v2191, %v2187
    %v2712 = vpack.c.b16 %v2192, %v2188
    %v2713 = vpack.c.b16 %v2193, %v2189
    %v2714 = vpack.c.b16 %v2198, %v2194
    %v2715 = vpack.c.b16 %v2199, %v2195
    %v2716 = vpack.c.b16 %v2200, %v2196
    %v2717 = vpack.c.b16 %v2201, %v2197
    %v2718 = vpack.c.b16 %v2206, %v2202
    %v2719 = vpack.c.b16 %v2207, %v2203
    %v2720 = vpack.c.b16 %v2208, %v2204
    %v2721 = vpack.c.b16 %v2209, %v2205
    %3234 = vmatprep.subr.bf16.mxu0 %v2239
    %3235 = vmatpush1.bf16.msra.mxu0 %v2238
    %3236 = vmatprep.subr.bf16.mxu0 %v2235
    %3237 = vmatpush1.bf16.msra.mxu0 %v2234
    %3238 = vmatprep.subr.bf16.mxu0 %v2231
    %3239 = vmatpush1.bf16.msra.mxu0 %v2230
    %3240 = vmatprep.subr.bf16.mxu0 %v2227
    %3241 = vmatpush1.bf16.msra.mxu0 %v2226
    %3242 = vmatprep.subr.bf16.mxu0 %v2223
    %3243 = vmatpush1.bf16.msra.mxu0 %v2222
    %3244 = vmatprep.subr.bf16.mxu0 %v2219
    %3245 = vmatpush1.bf16.msra.mxu0 %v2218
    %3246 = vmatprep.subr.bf16.mxu0 %v2215
    %3247 = vmatpush1.bf16.msra.mxu0 %v2214
    %3248 = vmatprep.subr.bf16.mxu0 %v2211
    %3249 = vmatpush1.bf16.msra.mxu0 %v2210
    %3250 = vmatprep.subr.bf16.mxu0 %v2271
    %3251 = vmatpush2.bf16.msra.mxu0 %v2270
    %3252 = vmatprep.subr.bf16.mxu0 %v2267
    %3253 = vmatpush2.bf16.msra.mxu0 %v2266
    %3254 = vmatprep.subr.bf16.mxu0 %v2263
    %3255 = vmatpush2.bf16.msra.mxu0 %v2262
    %3256 = vmatprep.subr.bf16.mxu0 %v2259
    %3257 = vmatpush2.bf16.msra.mxu0 %v2258
    %3258 = vmatprep.subr.bf16.mxu0 %v2255
    %3259 = vmatpush2.bf16.msra.mxu0 %v2254
    %3260 = vmatprep.subr.bf16.mxu0 %v2251
    %3261 = vmatpush2.bf16.msra.mxu0 %v2250
    %3262 = vmatprep.subr.bf16.mxu0 %v2247
    %3263 = vmatpush2.bf16.msra.mxu0 %v2246
    %3264 = vmatprep.subr.bf16.mxu0 %v2243
    %3265 = vmatpush2.bf16.msra.mxu0 %v2242
    %3266 = vmatprep.mubr.bf16.mxu0 %v597
    %3267 = vmatmul.mubr.bf16.gmra.mxu0 %v583
    %v3268 = vpop.f32.mrf.mxu0
    %v3269 = vadd.f32 %v541, %v3268
    %v3270 = vpop.f32.mrf.mxu0
    %v3271 = vadd.f32 %v545, %v3270
    %v3272 = vpop.f32.mrf.mxu0
    %v3273 = vpop.f32.mrf.mxu0
    %3274 = vdwg.mxu0
    %3275 = vmatprep.subr.bf16.mxu0 %v2303
    %3276 = vmatpush1.bf16.msra.mxu0 %v2302
    %3277 = vmatprep.subr.bf16.mxu0 %v2299
    %3278 = vmatpush1.bf16.msra.mxu0 %v2298
    %3279 = vmatprep.subr.bf16.mxu0 %v2295
    %3280 = vmatpush1.bf16.msra.mxu0 %v2294
    %3281 = vmatprep.subr.bf16.mxu0 %v2291
    %3282 = vmatpush1.bf16.msra.mxu0 %v2290
    %3283 = vmatprep.subr.bf16.mxu0 %v2287
    %3284 = vmatpush1.bf16.msra.mxu0 %v2286
    %3285 = vmatprep.subr.bf16.mxu0 %v2283
    %3286 = vmatpush1.bf16.msra.mxu0 %v2282
    %3287 = vmatprep.subr.bf16.mxu0 %v2279
    %3288 = vmatpush1.bf16.msra.mxu0 %v2278
    %3289 = vmatprep.subr.bf16.mxu0 %v2275
    %3290 = vmatpush1.bf16.msra.mxu0 %v2274
    %3291 = vmatprep.subr.bf16.mxu0 %v2335
    %3292 = vmatpush2.bf16.msra.mxu0 %v2334
    %3293 = vmatprep.subr.bf16.mxu0 %v2331
    %3294 = vmatpush2.bf16.msra.mxu0 %v2330
    %3295 = vmatprep.subr.bf16.mxu0 %v2327
    %3296 = vmatpush2.bf16.msra.mxu0 %v2326
    %3297 = vmatprep.subr.bf16.mxu0 %v2323
    %3298 = vmatpush2.bf16.msra.mxu0 %v2322
    %3299 = vmatprep.subr.bf16.mxu0 %v2319
    %3300 = vmatpush2.bf16.msra.mxu0 %v2318
    %3301 = vmatprep.subr.bf16.mxu0 %v2315
    %3302 = vmatpush2.bf16.msra.mxu0 %v2314
    %3303 = vmatprep.subr.bf16.mxu0 %v2311
    %3304 = vmatpush2.bf16.msra.mxu0 %v2310
    %3305 = vmatprep.subr.bf16.mxu0 %v2307
    %3306 = vmatpush2.bf16.msra.mxu0 %v2306
    %3307 = vmatprep.mubr.bf16.mxu0 %v607
    %3308 = vmatmul.mubr.bf16.gmra.mxu0 %v605
    %v3309 = vpop.f32.mrf.mxu0
    %v3310 = vadd.f32 %v3269, %v3309
    %v3311 = vpop.f32.mrf.mxu0
    %v3312 = vadd.f32 %v3271, %v3311
    %v3313 = vpop.f32.mrf.mxu0
    %v3314 = vpop.f32.mrf.mxu0
    %3315 = vdwg.mxu0
    %3316 = vmatprep.subr.bf16.mxu0 %v2367
    %3317 = vmatpush1.bf16.msra.mxu0 %v2366
    %3318 = vmatprep.subr.bf16.mxu0 %v2363
    %3319 = vmatpush1.bf16.msra.mxu0 %v2362
    %3320 = vmatprep.subr.bf16.mxu0 %v2359
    %3321 = vmatpush1.bf16.msra.mxu0 %v2358
    %3322 = vmatprep.subr.bf16.mxu0 %v2355
    %3323 = vmatpush1.bf16.msra.mxu0 %v2354
    %3324 = vmatprep.subr.bf16.mxu0 %v2351
    %3325 = vmatpush1.bf16.msra.mxu0 %v2350
    %3326 = vmatprep.subr.bf16.mxu0 %v2347
    %3327 = vmatpush1.bf16.msra.mxu0 %v2346
    %3328 = vmatprep.subr.bf16.mxu0 %v2343
    %3329 = vmatpush1.bf16.msra.mxu0 %v2342
    %3330 = vmatprep.subr.bf16.mxu0 %v2339
    %3331 = vmatpush1.bf16.msra.mxu0 %v2338
    %3332 = vmatprep.subr.bf16.mxu0 %v2399
    %3333 = vmatpush2.bf16.msra.mxu0 %v2398
    %3334 = vmatprep.subr.bf16.mxu0 %v2395
    %3335 = vmatpush2.bf16.msra.mxu0 %v2394
    %3336 = vmatprep.subr.bf16.mxu0 %v2391
    %3337 = vmatpush2.bf16.msra.mxu0 %v2390
    %3338 = vmatprep.subr.bf16.mxu0 %v2387
    %3339 = vmatpush2.bf16.msra.mxu0 %v2386
    %3340 = vmatprep.subr.bf16.mxu0 %v2383
    %3341 = vmatpush2.bf16.msra.mxu0 %v2382
    %3342 = vmatprep.subr.bf16.mxu0 %v2379
    %3343 = vmatpush2.bf16.msra.mxu0 %v2378
    %3344 = vmatprep.subr.bf16.mxu0 %v2375
    %3345 = vmatpush2.bf16.msra.mxu0 %v2374
    %3346 = vmatprep.subr.bf16.mxu0 %v2371
    %3347 = vmatpush2.bf16.msra.mxu0 %v2370
    %3348 = vmatprep.mubr.bf16.mxu0 %v604
    %3349 = vmatmul.mubr.bf16.gmra.mxu0 %v590
    %v3350 = vpop.f32.mrf.mxu0
    %v3351 = vadd.f32 %v3310, %v3350
    %v3352 = vpop.f32.mrf.mxu0
    %v3353 = vadd.f32 %v3312, %v3352
    %v3354 = vpop.f32.mrf.mxu0
    %v3355 = vpop.f32.mrf.mxu0
    %3356 = vdwg.mxu0
    %3357 = vmatprep.subr.bf16.mxu0 %v2431
    %3358 = vmatpush1.bf16.msra.mxu0 %v2430
    %3359 = vmatprep.subr.bf16.mxu0 %v2427
    %3360 = vmatpush1.bf16.msra.mxu0 %v2426
    %3361 = vmatprep.subr.bf16.mxu0 %v2423
    %3362 = vmatpush1.bf16.msra.mxu0 %v2422
    %3363 = vmatprep.subr.bf16.mxu0 %v2419
    %3364 = vmatpush1.bf16.msra.mxu0 %v2418
    %3365 = vmatprep.subr.bf16.mxu0 %v2415
    %3366 = vmatpush1.bf16.msra.mxu0 %v2414
    %3367 = vmatprep.subr.bf16.mxu0 %v2411
    %3368 = vmatpush1.bf16.msra.mxu0 %v2410
    %3369 = vmatprep.subr.bf16.mxu0 %v2407
    %3370 = vmatpush1.bf16.msra.mxu0 %v2406
    %3371 = vmatprep.subr.bf16.mxu0 %v2403
    %3372 = vmatpush1.bf16.msra.mxu0 %v2402
    %3373 = vmatprep.subr.bf16.mxu0 %v2463
    %3374 = vmatpush2.bf16.msra.mxu0 %v2462
    %3375 = vmatprep.subr.bf16.mxu0 %v2459
    %3376 = vmatpush2.bf16.msra.mxu0 %v2458
    %3377 = vmatprep.subr.bf16.mxu0 %v2455
    %3378 = vmatpush2.bf16.msra.mxu0 %v2454
    %3379 = vmatprep.subr.bf16.mxu0 %v2451
    %3380 = vmatpush2.bf16.msra.mxu0 %v2450
    %3381 = vmatprep.subr.bf16.mxu0 %v2447
    %3382 = vmatpush2.bf16.msra.mxu0 %v2446
    %3383 = vmatprep.subr.bf16.mxu0 %v2443
    %3384 = vmatpush2.bf16.msra.mxu0 %v2442
    %3385 = vmatprep.subr.bf16.mxu0 %v2439
    %3386 = vmatpush2.bf16.msra.mxu0 %v2438
    %3387 = vmatprep.subr.bf16.mxu0 %v2435
    %3388 = vmatpush2.bf16.msra.mxu0 %v2434
    %3389 = vmatprep.mubr.bf16.mxu0 %v608
    %3390 = vmatmul.mubr.bf16.gmra.mxu0 %v606
    %v3391 = vpop.f32.mrf.mxu0
    %v3392 = vadd.f32 %v3351, %v3391
    %v3393 = vpop.f32.mrf.mxu0
    %v3394 = vadd.f32 %v3353, %v3393
    %v3395 = vpop.f32.mrf.mxu0
    %v3396 = vpop.f32.mrf.mxu0
    %3397 = vdwg.mxu0
    %3398 = vmatprep.subr.bf16.mxu0 %v2495
    %3399 = vmatpush1.bf16.msra.mxu0 %v2494
    %3400 = vmatprep.subr.bf16.mxu0 %v2491
    %3401 = vmatpush1.bf16.msra.mxu0 %v2490
    %3402 = vmatprep.subr.bf16.mxu0 %v2487
    %3403 = vmatpush1.bf16.msra.mxu0 %v2486
    %3404 = vmatprep.subr.bf16.mxu0 %v2483
    %3405 = vmatpush1.bf16.msra.mxu0 %v2482
    %3406 = vmatprep.subr.bf16.mxu0 %v2479
    %3407 = vmatpush1.bf16.msra.mxu0 %v2478
    %3408 = vmatprep.subr.bf16.mxu0 %v2475
    %3409 = vmatpush1.bf16.msra.mxu0 %v2474
    %3410 = vmatprep.subr.bf16.mxu0 %v2471
    %3411 = vmatpush1.bf16.msra.mxu0 %v2470
    %3412 = vmatprep.subr.bf16.mxu0 %v2467
    %3413 = vmatpush1.bf16.msra.mxu0 %v2466
    %3414 = vmatprep.subr.bf16.mxu0 %v2527
    %3415 = vmatpush2.bf16.msra.mxu0 %v2526
    %3416 = vmatprep.subr.bf16.mxu0 %v2523
    %3417 = vmatpush2.bf16.msra.mxu0 %v2522
    %3418 = vmatprep.subr.bf16.mxu0 %v2519
    %3419 = vmatpush2.bf16.msra.mxu0 %v2518
    %3420 = vmatprep.subr.bf16.mxu0 %v2515
    %3421 = vmatpush2.bf16.msra.mxu0 %v2514
    %3422 = vmatprep.subr.bf16.mxu0 %v2511
    %3423 = vmatpush2.bf16.msra.mxu0 %v2510
    %3424 = vmatprep.subr.bf16.mxu0 %v2507
    %3425 = vmatpush2.bf16.msra.mxu0 %v2506
    %3426 = vmatprep.subr.bf16.mxu0 %v2503
    %3427 = vmatpush2.bf16.msra.mxu0 %v2502
    %3428 = vmatprep.subr.bf16.mxu0 %v2499
    %3429 = vmatpush2.bf16.msra.mxu0 %v2498
    %3430 = vmatprep.mubr.bf16.mxu0 %v646
    %3431 = vmatmul.mubr.bf16.gmra.mxu0 %v632
    %v3432 = vpop.f32.mrf.mxu0
    %v3433 = vadd.f32 %v3392, %v3432
    %v3434 = vpop.f32.mrf.mxu0
    %v3435 = vadd.f32 %v3394, %v3434
    %v3436 = vpop.f32.mrf.mxu0
    %v3437 = vpop.f32.mrf.mxu0
    %3438 = vdwg.mxu0
    %3439 = vmatprep.subr.bf16.mxu0 %v2559
    %3440 = vmatpush1.bf16.msra.mxu0 %v2558
    %3441 = vmatprep.subr.bf16.mxu0 %v2555
    %3442 = vmatpush1.bf16.msra.mxu0 %v2554
    %3443 = vmatprep.subr.bf16.mxu0 %v2551
    %3444 = vmatpush1.bf16.msra.mxu0 %v2550
    %3445 = vmatprep.subr.bf16.mxu0 %v2547
    %3446 = vmatpush1.bf16.msra.mxu0 %v2546
    %3447 = vmatprep.subr.bf16.mxu0 %v2543
    %3448 = vmatpush1.bf16.msra.mxu0 %v2542
    %3449 = vmatprep.subr.bf16.mxu0 %v2539
    %3450 = vmatpush1.bf16.msra.mxu0 %v2538
    %3451 = vmatprep.subr.bf16.mxu0 %v2535
    %3452 = vmatpush1.bf16.msra.mxu0 %v2534
    %3453 = vmatprep.subr.bf16.mxu0 %v2531
    %3454 = vmatpush1.bf16.msra.mxu0 %v2530
    %3455 = vmatprep.subr.bf16.mxu0 %v2591
    %3456 = vmatpush2.bf16.msra.mxu0 %v2590
    %3457 = vmatprep.subr.bf16.mxu0 %v2587
    %3458 = vmatpush2.bf16.msra.mxu0 %v2586
    %3459 = vmatprep.subr.bf16.mxu0 %v2583
    %3460 = vmatpush2.bf16.msra.mxu0 %v2582
    %3461 = vmatprep.subr.bf16.mxu0 %v2579
    %3462 = vmatpush2.bf16.msra.mxu0 %v2578
    %3463 = vmatprep.subr.bf16.mxu0 %v2575
    %3464 = vmatpush2.bf16.msra.mxu0 %v2574
    %3465 = vmatprep.subr.bf16.mxu0 %v2571
    %3466 = vmatpush2.bf16.msra.mxu0 %v2570
    %3467 = vmatprep.subr.bf16.mxu0 %v2567
    %3468 = vmatpush2.bf16.msra.mxu0 %v2566
    %3469 = vmatprep.subr.bf16.mxu0 %v2563
    %3470 = vmatpush2.bf16.msra.mxu0 %v2562
    %3471 = vmatprep.mubr.bf16.mxu0 %v656
    %3472 = vmatmul.mubr.bf16.gmra.mxu0 %v654
    %v3473 = vpop.f32.mrf.mxu0
    %v3474 = vadd.f32 %v3433, %v3473
    %v3475 = vpop.f32.mrf.mxu0
    %v3476 = vadd.f32 %v3435, %v3475
    %v3477 = vpop.f32.mrf.mxu0
    %v3478 = vpop.f32.mrf.mxu0
    %3479 = vdwg.mxu0
    %3480 = vmatprep.subr.bf16.mxu0 %v2623
    %3481 = vmatpush1.bf16.msra.mxu0 %v2622
    %3482 = vmatprep.subr.bf16.mxu0 %v2619
    %3483 = vmatpush1.bf16.msra.mxu0 %v2618
    %3484 = vmatprep.subr.bf16.mxu0 %v2615
    %3485 = vmatpush1.bf16.msra.mxu0 %v2614
    %3486 = vmatprep.subr.bf16.mxu0 %v2611
    %3487 = vmatpush1.bf16.msra.mxu0 %v2610
    %3488 = vmatprep.subr.bf16.mxu0 %v2607
    %3489 = vmatpush1.bf16.msra.mxu0 %v2606
    %3490 = vmatprep.subr.bf16.mxu0 %v2603
    %3491 = vmatpush1.bf16.msra.mxu0 %v2602
    %3492 = vmatprep.subr.bf16.mxu0 %v2599
    %3493 = vmatpush1.bf16.msra.mxu0 %v2598
    %3494 = vmatprep.subr.bf16.mxu0 %v2595
    %3495 = vmatpush1.bf16.msra.mxu0 %v2594
    %3496 = vmatprep.subr.bf16.mxu0 %v2655
    %3497 = vmatpush2.bf16.msra.mxu0 %v2654
    %3498 = vmatprep.subr.bf16.mxu0 %v2651
    %3499 = vmatpush2.bf16.msra.mxu0 %v2650
    %3500 = vmatprep.subr.bf16.mxu0 %v2647
    %3501 = vmatpush2.bf16.msra.mxu0 %v2646
    %3502 = vmatprep.subr.bf16.mxu0 %v2643
    %3503 = vmatpush2.bf16.msra.mxu0 %v2642
    %3504 = vmatprep.subr.bf16.mxu0 %v2639
    %3505 = vmatpush2.bf16.msra.mxu0 %v2638
    %3506 = vmatprep.subr.bf16.mxu0 %v2635
    %3507 = vmatpush2.bf16.msra.mxu0 %v2634
    %3508 = vmatprep.subr.bf16.mxu0 %v2631
    %3509 = vmatpush2.bf16.msra.mxu0 %v2630
    %3510 = vmatprep.subr.bf16.mxu0 %v2627
    %3511 = vmatpush2.bf16.msra.mxu0 %v2626
    %3512 = vmatprep.mubr.bf16.mxu0 %v653
    %3513 = vmatmul.mubr.bf16.gmra.mxu0 %v639
    %v3514 = vpop.f32.mrf.mxu0
    %v3515 = vadd.f32 %v3474, %v3514
    %v3516 = vpop.f32.mrf.mxu0
    %v3517 = vadd.f32 %v3476, %v3516
    %v3518 = vpop.f32.mrf.mxu0
    %v3519 = vpop.f32.mrf.mxu0
    %3520 = vdwg.mxu0
    %3521 = vmatprep.subr.bf16.mxu0 %v2687
    %3522 = vmatpush1.bf16.msra.mxu0 %v2686
    %3523 = vmatprep.subr.bf16.mxu0 %v2683
    %3524 = vmatpush1.bf16.msra.mxu0 %v2682
    %3525 = vmatprep.subr.bf16.mxu0 %v2679
    %3526 = vmatpush1.bf16.msra.mxu0 %v2678
    %3527 = vmatprep.subr.bf16.mxu0 %v2675
    %3528 = vmatpush1.bf16.msra.mxu0 %v2674
    %3529 = vmatprep.subr.bf16.mxu0 %v2671
    %3530 = vmatpush1.bf16.msra.mxu0 %v2670
    %3531 = vmatprep.subr.bf16.mxu0 %v2667
    %3532 = vmatpush1.bf16.msra.mxu0 %v2666
    %3533 = vmatprep.subr.bf16.mxu0 %v2663
    %3534 = vmatpush1.bf16.msra.mxu0 %v2662
    %3535 = vmatprep.subr.bf16.mxu0 %v2659
    %3536 = vmatpush1.bf16.msra.mxu0 %v2658
    %3537 = vmatprep.subr.bf16.mxu0 %v2719
    %3538 = vmatpush2.bf16.msra.mxu0 %v2718
    %3539 = vmatprep.subr.bf16.mxu0 %v2715
    %3540 = vmatpush2.bf16.msra.mxu0 %v2714
    %3541 = vmatprep.subr.bf16.mxu0 %v2711
    %3542 = vmatpush2.bf16.msra.mxu0 %v2710
    %3543 = vmatprep.subr.bf16.mxu0 %v2707
    %3544 = vmatpush2.bf16.msra.mxu0 %v2706
    %3545 = vmatprep.subr.bf16.mxu0 %v2703
    %3546 = vmatpush2.bf16.msra.mxu0 %v2702
    %3547 = vmatprep.subr.bf16.mxu0 %v2699
    %3548 = vmatpush2.bf16.msra.mxu0 %v2698
    %3549 = vmatprep.subr.bf16.mxu0 %v2695
    %3550 = vmatpush2.bf16.msra.mxu0 %v2694
    %3551 = vmatprep.subr.bf16.mxu0 %v2691
    %3552 = vmatpush2.bf16.msra.mxu0 %v2690
    %3553 = vmatprep.mubr.bf16.mxu0 %v657
    %3554 = vmatmul.mubr.bf16.gmra.mxu0 %v655
    %v3555 = vpop.f32.mrf.mxu0
    %v3556 = vadd.f32 %v3515, %v3555
    %v3557 = vpop.f32.mrf.mxu0
    %v3558 = vadd.f32 %v3517, %v3557
    %v3559 = vpop.f32.mrf.mxu0
    %v3560 = vpop.f32.mrf.mxu0
    %3561 = vdwg.mxu0
    %3562 = vmatprep.subr.bf16.mxu0 %v2241
    %3563 = vmatpush1.bf16.msra.mxu0 %v2240
    %3564 = vmatprep.subr.bf16.mxu0 %v2237
    %3565 = vmatpush1.bf16.msra.mxu0 %v2236
    %3566 = vmatprep.subr.bf16.mxu0 %v2233
    %3567 = vmatpush1.bf16.msra.mxu0 %v2232
    %3568 = vmatprep.subr.bf16.mxu0 %v2229
    %3569 = vmatpush1.bf16.msra.mxu0 %v2228
    %3570 = vmatprep.subr.bf16.mxu0 %v2225
    %3571 = vmatpush1.bf16.msra.mxu0 %v2224
    %3572 = vmatprep.subr.bf16.mxu0 %v2221
    %3573 = vmatpush1.bf16.msra.mxu0 %v2220
    %3574 = vmatprep.subr.bf16.mxu0 %v2217
    %3575 = vmatpush1.bf16.msra.mxu0 %v2216
    %3576 = vmatprep.subr.bf16.mxu0 %v2213
    %3577 = vmatpush1.bf16.msra.mxu0 %v2212
    %3578 = vmatprep.subr.bf16.mxu0 %v2273
    %3579 = vmatpush2.bf16.msra.mxu0 %v2272
    %3580 = vmatprep.subr.bf16.mxu0 %v2269
    %3581 = vmatpush2.bf16.msra.mxu0 %v2268
    %3582 = vmatprep.subr.bf16.mxu0 %v2265
    %3583 = vmatpush2.bf16.msra.mxu0 %v2264
    %3584 = vmatprep.subr.bf16.mxu0 %v2261
    %3585 = vmatpush2.bf16.msra.mxu0 %v2260
    %3586 = vmatprep.subr.bf16.mxu0 %v2257
    %3587 = vmatpush2.bf16.msra.mxu0 %v2256
    %3588 = vmatprep.subr.bf16.mxu0 %v2253
    %3589 = vmatpush2.bf16.msra.mxu0 %v2252
    %3590 = vmatprep.subr.bf16.mxu0 %v2249
    %3591 = vmatpush2.bf16.msra.mxu0 %v2248
    %3592 = vmatprep.subr.bf16.mxu0 %v2245
    %3593 = vmatpush2.bf16.msra.mxu0 %v2244
    %3594 = vmatprep.mubr.bf16.mxu0 %v597
    %3595 = vmatmul.mubr.bf16.gmra.mxu0 %v583
    %v3596 = vpop.f32.mrf.mxu0
    %v3597 = vadd.f32 %v549, %v3596
    %v3598 = vpop.f32.mrf.mxu0
    %v3599 = vadd.f32 %v553, %v3598
    %v3600 = vpop.f32.mrf.mxu0
    %v3601 = vpop.f32.mrf.mxu0
    %3602 = vdwg.mxu0
    %3603 = vmatprep.subr.bf16.mxu0 %v2305
    %3604 = vmatpush1.bf16.msra.mxu0 %v2304
    %3605 = vmatprep.subr.bf16.mxu0 %v2301
    %3606 = vmatpush1.bf16.msra.mxu0 %v2300
    %3607 = vmatprep.subr.bf16.mxu0 %v2297
    %3608 = vmatpush1.bf16.msra.mxu0 %v2296
    %3609 = vmatprep.subr.bf16.mxu0 %v2293
    %3610 = vmatpush1.bf16.msra.mxu0 %v2292
    %3611 = vmatprep.subr.bf16.mxu0 %v2289
    %3612 = vmatpush1.bf16.msra.mxu0 %v2288
    %3613 = vmatprep.subr.bf16.mxu0 %v2285
    %3614 = vmatpush1.bf16.msra.mxu0 %v2284
    %3615 = vmatprep.subr.bf16.mxu0 %v2281
    %3616 = vmatpush1.bf16.msra.mxu0 %v2280
    %3617 = vmatprep.subr.bf16.mxu0 %v2277
    %3618 = vmatpush1.bf16.msra.mxu0 %v2276
    %3619 = vmatprep.subr.bf16.mxu0 %v2337
    %3620 = vmatpush2.bf16.msra.mxu0 %v2336
    %3621 = vmatprep.subr.bf16.mxu0 %v2333
    %3622 = vmatpush2.bf16.msra.mxu0 %v2332
    %3623 = vmatprep.subr.bf16.mxu0 %v2329
    %3624 = vmatpush2.bf16.msra.mxu0 %v2328
    %3625 = vmatprep.subr.bf16.mxu0 %v2325
    %3626 = vmatpush2.bf16.msra.mxu0 %v2324
    %3627 = vmatprep.subr.bf16.mxu0 %v2321
    %3628 = vmatpush2.bf16.msra.mxu0 %v2320
    %3629 = vmatprep.subr.bf16.mxu0 %v2317
    %3630 = vmatpush2.bf16.msra.mxu0 %v2316
    %3631 = vmatprep.subr.bf16.mxu0 %v2313
    %3632 = vmatpush2.bf16.msra.mxu0 %v2312
    %3633 = vmatprep.subr.bf16.mxu0 %v2309
    %3634 = vmatpush2.bf16.msra.mxu0 %v2308
    %3635 = vmatprep.mubr.bf16.mxu0 %v607
    %3636 = vmatmul.mubr.bf16.gmra.mxu0 %v605
    %v3637 = vpop.f32.mrf.mxu0
    %v3638 = vadd.f32 %v3597, %v3637
    %v3639 = vpop.f32.mrf.mxu0
    %v3640 = vadd.f32 %v3599, %v3639
    %v3641 = vpop.f32.mrf.mxu0
    %v3642 = vpop.f32.mrf.mxu0
    %3643 = vdwg.mxu0
    %3644 = vmatprep.subr.bf16.mxu0 %v2369
    %3645 = vmatpush1.bf16.msra.mxu0 %v2368
    %3646 = vmatprep.subr.bf16.mxu0 %v2365
    %3647 = vmatpush1.bf16.msra.mxu0 %v2364
    %3648 = vmatprep.subr.bf16.mxu0 %v2361
    %3649 = vmatpush1.bf16.msra.mxu0 %v2360
    %3650 = vmatprep.subr.bf16.mxu0 %v2357
    %3651 = vmatpush1.bf16.msra.mxu0 %v2356
    %3652 = vmatprep.subr.bf16.mxu0 %v2353
    %3653 = vmatpush1.bf16.msra.mxu0 %v2352
    %3654 = vmatprep.subr.bf16.mxu0 %v2349
    %3655 = vmatpush1.bf16.msra.mxu0 %v2348
    %3656 = vmatprep.subr.bf16.mxu0 %v2345
    %3657 = vmatpush1.bf16.msra.mxu0 %v2344
    %3658 = vmatprep.subr.bf16.mxu0 %v2341
    %3659 = vmatpush1.bf16.msra.mxu0 %v2340
    %3660 = vmatprep.subr.bf16.mxu0 %v2401
    %3661 = vmatpush2.bf16.msra.mxu0 %v2400
    %3662 = vmatprep.subr.bf16.mxu0 %v2397
    %3663 = vmatpush2.bf16.msra.mxu0 %v2396
    %3664 = vmatprep.subr.bf16.mxu0 %v2393
    %3665 = vmatpush2.bf16.msra.mxu0 %v2392
    %3666 = vmatprep.subr.bf16.mxu0 %v2389
    %3667 = vmatpush2.bf16.msra.mxu0 %v2388
    %3668 = vmatprep.subr.bf16.mxu0 %v2385
    %3669 = vmatpush2.bf16.msra.mxu0 %v2384
    %3670 = vmatprep.subr.bf16.mxu0 %v2381
    %3671 = vmatpush2.bf16.msra.mxu0 %v2380
    %3672 = vmatprep.subr.bf16.mxu0 %v2377
    %3673 = vmatpush2.bf16.msra.mxu0 %v2376
    %3674 = vmatprep.subr.bf16.mxu0 %v2373
    %3675 = vmatpush2.bf16.msra.mxu0 %v2372
    %3676 = vmatprep.mubr.bf16.mxu0 %v604
    %3677 = vmatmul.mubr.bf16.gmra.mxu0 %v590
    %v3678 = vpop.f32.mrf.mxu0
    %v3679 = vadd.f32 %v3638, %v3678
    %v3680 = vpop.f32.mrf.mxu0
    %v3681 = vadd.f32 %v3640, %v3680
    %v3682 = vpop.f32.mrf.mxu0
    %v3683 = vpop.f32.mrf.mxu0
    %3684 = vdwg.mxu0
    %3685 = vmatprep.subr.bf16.mxu0 %v2433
    %3686 = vmatpush1.bf16.msra.mxu0 %v2432
    %3687 = vmatprep.subr.bf16.mxu0 %v2429
    %3688 = vmatpush1.bf16.msra.mxu0 %v2428
    %3689 = vmatprep.subr.bf16.mxu0 %v2425
    %3690 = vmatpush1.bf16.msra.mxu0 %v2424
    %3691 = vmatprep.subr.bf16.mxu0 %v2421
    %3692 = vmatpush1.bf16.msra.mxu0 %v2420
    %3693 = vmatprep.subr.bf16.mxu0 %v2417
    %3694 = vmatpush1.bf16.msra.mxu0 %v2416
    %3695 = vmatprep.subr.bf16.mxu0 %v2413
    %3696 = vmatpush1.bf16.msra.mxu0 %v2412
    %3697 = vmatprep.subr.bf16.mxu0 %v2409
    %3698 = vmatpush1.bf16.msra.mxu0 %v2408
    %3699 = vmatprep.subr.bf16.mxu0 %v2405
    %3700 = vmatpush1.bf16.msra.mxu0 %v2404
    %3701 = vmatprep.subr.bf16.mxu0 %v2465
    %3702 = vmatpush2.bf16.msra.mxu0 %v2464
    %3703 = vmatprep.subr.bf16.mxu0 %v2461
    %3704 = vmatpush2.bf16.msra.mxu0 %v2460
    %3705 = vmatprep.subr.bf16.mxu0 %v2457
    %3706 = vmatpush2.bf16.msra.mxu0 %v2456
    %3707 = vmatprep.subr.bf16.mxu0 %v2453
    %3708 = vmatpush2.bf16.msra.mxu0 %v2452
    %3709 = vmatprep.subr.bf16.mxu0 %v2449
    %3710 = vmatpush2.bf16.msra.mxu0 %v2448
    %3711 = vmatprep.subr.bf16.mxu0 %v2445
    %3712 = vmatpush2.bf16.msra.mxu0 %v2444
    %3713 = vmatprep.subr.bf16.mxu0 %v2441
    %3714 = vmatpush2.bf16.msra.mxu0 %v2440
    %3715 = vmatprep.subr.bf16.mxu0 %v2437
    %3716 = vmatpush2.bf16.msra.mxu0 %v2436
    %3717 = vmatprep.mubr.bf16.mxu0 %v608
    %3718 = vmatmul.mubr.bf16.gmra.mxu0 %v606
    %v3719 = vpop.f32.mrf.mxu0
    %v3720 = vadd.f32 %v3679, %v3719
    %v3721 = vpop.f32.mrf.mxu0
    %v3722 = vadd.f32 %v3681, %v3721
    %v3723 = vpop.f32.mrf.mxu0
    %v3724 = vpop.f32.mrf.mxu0
    %3725 = vdwg.mxu0
    %3726 = vmatprep.subr.bf16.mxu0 %v2497
    %3727 = vmatpush1.bf16.msra.mxu0 %v2496
    %3728 = vmatprep.subr.bf16.mxu0 %v2493
    %3729 = vmatpush1.bf16.msra.mxu0 %v2492
    %3730 = vmatprep.subr.bf16.mxu0 %v2489
    %3731 = vmatpush1.bf16.msra.mxu0 %v2488
    %3732 = vmatprep.subr.bf16.mxu0 %v2485
    %3733 = vmatpush1.bf16.msra.mxu0 %v2484
    %3734 = vmatprep.subr.bf16.mxu0 %v2481
    %3735 = vmatpush1.bf16.msra.mxu0 %v2480
    %3736 = vmatprep.subr.bf16.mxu0 %v2477
    %3737 = vmatpush1.bf16.msra.mxu0 %v2476
    %3738 = vmatprep.subr.bf16.mxu0 %v2473
    %3739 = vmatpush1.bf16.msra.mxu0 %v2472
    %3740 = vmatprep.subr.bf16.mxu0 %v2469
    %3741 = vmatpush1.bf16.msra.mxu0 %v2468
    %3742 = vmatprep.subr.bf16.mxu0 %v2529
    %3743 = vmatpush2.bf16.msra.mxu0 %v2528
    %3744 = vmatprep.subr.bf16.mxu0 %v2525
    %3745 = vmatpush2.bf16.msra.mxu0 %v2524
    %3746 = vmatprep.subr.bf16.mxu0 %v2521
    %3747 = vmatpush2.bf16.msra.mxu0 %v2520
    %3748 = vmatprep.subr.bf16.mxu0 %v2517
    %3749 = vmatpush2.bf16.msra.mxu0 %v2516
    %3750 = vmatprep.subr.bf16.mxu0 %v2513
    %3751 = vmatpush2.bf16.msra.mxu0 %v2512
    %3752 = vmatprep.subr.bf16.mxu0 %v2509
    %3753 = vmatpush2.bf16.msra.mxu0 %v2508
    %3754 = vmatprep.subr.bf16.mxu0 %v2505
    %3755 = vmatpush2.bf16.msra.mxu0 %v2504
    %3756 = vmatprep.subr.bf16.mxu0 %v2501
    %3757 = vmatpush2.bf16.msra.mxu0 %v2500
    %3758 = vmatprep.mubr.bf16.mxu0 %v646
    %3759 = vmatmul.mubr.bf16.gmra.mxu0 %v632
    %v3760 = vpop.f32.mrf.mxu0
    %v3761 = vadd.f32 %v3720, %v3760
    %v3762 = vpop.f32.mrf.mxu0
    %v3763 = vadd.f32 %v3722, %v3762
    %v3764 = vpop.f32.mrf.mxu0
    %v3765 = vpop.f32.mrf.mxu0
    %3766 = vdwg.mxu0
    %3767 = vmatprep.subr.bf16.mxu0 %v2561
    %3768 = vmatpush1.bf16.msra.mxu0 %v2560
    %3769 = vmatprep.subr.bf16.mxu0 %v2557
    %3770 = vmatpush1.bf16.msra.mxu0 %v2556
    %3771 = vmatprep.subr.bf16.mxu0 %v2553
    %3772 = vmatpush1.bf16.msra.mxu0 %v2552
    %3773 = vmatprep.subr.bf16.mxu0 %v2549
    %3774 = vmatpush1.bf16.msra.mxu0 %v2548
    %3775 = vmatprep.subr.bf16.mxu0 %v2545
    %3776 = vmatpush1.bf16.msra.mxu0 %v2544
    %3777 = vmatprep.subr.bf16.mxu0 %v2541
    %3778 = vmatpush1.bf16.msra.mxu0 %v2540
    %3779 = vmatprep.subr.bf16.mxu0 %v2537
    %3780 = vmatpush1.bf16.msra.mxu0 %v2536
    %3781 = vmatprep.subr.bf16.mxu0 %v2533
    %3782 = vmatpush1.bf16.msra.mxu0 %v2532
    %3783 = vmatprep.subr.bf16.mxu0 %v2593
    %3784 = vmatpush2.bf16.msra.mxu0 %v2592
    %3785 = vmatprep.subr.bf16.mxu0 %v2589
    %3786 = vmatpush2.bf16.msra.mxu0 %v2588
    %3787 = vmatprep.subr.bf16.mxu0 %v2585
    %3788 = vmatpush2.bf16.msra.mxu0 %v2584
    %3789 = vmatprep.subr.bf16.mxu0 %v2581
    %3790 = vmatpush2.bf16.msra.mxu0 %v2580
    %3791 = vmatprep.subr.bf16.mxu0 %v2577
    %3792 = vmatpush2.bf16.msra.mxu0 %v2576
    %3793 = vmatprep.subr.bf16.mxu0 %v2573
    %3794 = vmatpush2.bf16.msra.mxu0 %v2572
    %3795 = vmatprep.subr.bf16.mxu0 %v2569
    %3796 = vmatpush2.bf16.msra.mxu0 %v2568
    %3797 = vmatprep.subr.bf16.mxu0 %v2565
    %3798 = vmatpush2.bf16.msra.mxu0 %v2564
    %3799 = vmatprep.mubr.bf16.mxu0 %v656
    %3800 = vmatmul.mubr.bf16.gmra.mxu0 %v654
    %v3801 = vpop.f32.mrf.mxu0
    %v3802 = vadd.f32 %v3761, %v3801
    %v3803 = vpop.f32.mrf.mxu0
    %v3804 = vadd.f32 %v3763, %v3803
    %v3805 = vpop.f32.mrf.mxu0
    %v3806 = vpop.f32.mrf.mxu0
    %3807 = vdwg.mxu0
    %3808 = vmatprep.subr.bf16.mxu0 %v2625
    %3809 = vmatpush1.bf16.msra.mxu0 %v2624
    %3810 = vmatprep.subr.bf16.mxu0 %v2621
    %3811 = vmatpush1.bf16.msra.mxu0 %v2620
    %3812 = vmatprep.subr.bf16.mxu0 %v2617
    %3813 = vmatpush1.bf16.msra.mxu0 %v2616
    %3814 = vmatprep.subr.bf16.mxu0 %v2613
    %3815 = vmatpush1.bf16.msra.mxu0 %v2612
    %3816 = vmatprep.subr.bf16.mxu0 %v2609
    %3817 = vmatpush1.bf16.msra.mxu0 %v2608
    %3818 = vmatprep.subr.bf16.mxu0 %v2605
    %3819 = vmatpush1.bf16.msra.mxu0 %v2604
    %3820 = vmatprep.subr.bf16.mxu0 %v2601
    %3821 = vmatpush1.bf16.msra.mxu0 %v2600
    %3822 = vmatprep.subr.bf16.mxu0 %v2597
    %3823 = vmatpush1.bf16.msra.mxu0 %v2596
    %3824 = vmatprep.subr.bf16.mxu0 %v2657
    %3825 = vmatpush2.bf16.msra.mxu0 %v2656
    %3826 = vmatprep.subr.bf16.mxu0 %v2653
    %3827 = vmatpush2.bf16.msra.mxu0 %v2652
    %3828 = vmatprep.subr.bf16.mxu0 %v2649
    %3829 = vmatpush2.bf16.msra.mxu0 %v2648
    %3830 = vmatprep.subr.bf16.mxu0 %v2645
    %3831 = vmatpush2.bf16.msra.mxu0 %v2644
    %3832 = vmatprep.subr.bf16.mxu0 %v2641
    %3833 = vmatpush2.bf16.msra.mxu0 %v2640
    %3834 = vmatprep.subr.bf16.mxu0 %v2637
    %3835 = vmatpush2.bf16.msra.mxu0 %v2636
    %3836 = vmatprep.subr.bf16.mxu0 %v2633
    %3837 = vmatpush2.bf16.msra.mxu0 %v2632
    %3838 = vmatprep.subr.bf16.mxu0 %v2629
    %3839 = vmatpush2.bf16.msra.mxu0 %v2628
    %3840 = vmatprep.mubr.bf16.mxu0 %v653
    %3841 = vmatmul.mubr.bf16.gmra.mxu0 %v639
    %v3842 = vpop.f32.mrf.mxu0
    %v3843 = vadd.f32 %v3802, %v3842
    %v3844 = vpop.f32.mrf.mxu0
    %v3845 = vadd.f32 %v3804, %v3844
    %v3846 = vpop.f32.mrf.mxu0
    %v3847 = vpop.f32.mrf.mxu0
    %3848 = vdwg.mxu0
    %3849 = vmatprep.subr.bf16.mxu0 %v2689
    %3850 = vmatpush1.bf16.msra.mxu0 %v2688
    %3851 = vmatprep.subr.bf16.mxu0 %v2685
    %3852 = vmatpush1.bf16.msra.mxu0 %v2684
    %3853 = vmatprep.subr.bf16.mxu0 %v2681
    %3854 = vmatpush1.bf16.msra.mxu0 %v2680
    %3855 = vmatprep.subr.bf16.mxu0 %v2677
    %3856 = vmatpush1.bf16.msra.mxu0 %v2676
    %3857 = vmatprep.subr.bf16.mxu0 %v2673
    %3858 = vmatpush1.bf16.msra.mxu0 %v2672
    %3859 = vmatprep.subr.bf16.mxu0 %v2669
    %3860 = vmatpush1.bf16.msra.mxu0 %v2668
    %3861 = vmatprep.subr.bf16.mxu0 %v2665
    %3862 = vmatpush1.bf16.msra.mxu0 %v2664
    %3863 = vmatprep.subr.bf16.mxu0 %v2661
    %3864 = vmatpush1.bf16.msra.mxu0 %v2660
    %3865 = vmatprep.subr.bf16.mxu0 %v2721
    %3866 = vmatpush2.bf16.msra.mxu0 %v2720
    %3867 = vmatprep.subr.bf16.mxu0 %v2717
    %3868 = vmatpush2.bf16.msra.mxu0 %v2716
    %3869 = vmatprep.subr.bf16.mxu0 %v2713
    %3870 = vmatpush2.bf16.msra.mxu0 %v2712
    %3871 = vmatprep.subr.bf16.mxu0 %v2709
    %3872 = vmatpush2.bf16.msra.mxu0 %v2708
    %3873 = vmatprep.subr.bf16.mxu0 %v2705
    %3874 = vmatpush2.bf16.msra.mxu0 %v2704
    %3875 = vmatprep.subr.bf16.mxu0 %v2701
    %3876 = vmatpush2.bf16.msra.mxu0 %v2700
    %3877 = vmatprep.subr.bf16.mxu0 %v2697
    %3878 = vmatpush2.bf16.msra.mxu0 %v2696
    %3879 = vmatprep.subr.bf16.mxu0 %v2693
    %3880 = vmatpush2.bf16.msra.mxu0 %v2692
    %3881 = vmatprep.mubr.bf16.mxu0 %v657
    %3882 = vmatmul.mubr.bf16.gmra.mxu0 %v655
    %v3883 = vpop.f32.mrf.mxu0
    %v3884 = vadd.f32 %v3843, %v3883
    %v3885 = vpop.f32.mrf.mxu0
    %v3886 = vadd.f32 %v3845, %v3885
    %v3887 = vpop.f32.mrf.mxu0
    %v3888 = vpop.f32.mrf.mxu0
    %3889 = vdwg.mxu0
    %v3890 = vmax.f32 %v3556, 0.0
    %v3891 = vmax.f32 %v3558, 0.0
    %v3892 = vmax.f32 %v3884, 0.0
    %v3893 = vmax.f32 %v3886, 0.0
    %v3894 = vpack.c.bf16 %v3890, %v3890
    %v3895 = vpack.c.bf16 %v3891, %v3891
    %v3896 = vpack.c.bf16 %v3892, %v3892
    %v3897 = vpack.c.bf16 %v3893, %v3893
    %v3898 = vld [vmem:[%s3] sm:$0xf]
    %v3899 = vld [vmem:[%s3 + $0x4] sm:$0xf]
    %v3900 = vld [vmem:[%s3 + $0x8] sm:$0xf]
    %v3901 = vld [vmem:[%s3 + $0xc] sm:$0xf]
    %v3902 = vld [vmem:[%s3 + $0x10] sm:$0xf]
    %v3903 = vld [vmem:[%s3 + $0x14] sm:$0xf]
    %v3904 = vld [vmem:[%s3 + $0x18] sm:$0xf]
    %v3905 = vld [vmem:[%s3 + $0x1c] sm:$0xf]
    %v3906 = vld [vmem:[%s3 + $0x20] sm:$0xf]
    %v3907 = vld [vmem:[%s3 + $0x24] sm:$0xf]
    %v3908 = vld [vmem:[%s3 + $0x28] sm:$0xf]
    %v3909 = vld [vmem:[%s3 + $0x2c] sm:$0xf]
    %v3910 = vld [vmem:[%s3 + $0x30] sm:$0xf]
    %v3911 = vld [vmem:[%s3 + $0x34] sm:$0xf]
    %v3912 = vld [vmem:[%s3 + $0x38] sm:$0xf]
    %v3913 = vld [vmem:[%s3 + $0x3c] sm:$0xf]
    %v3914 = vld [vmem:[%s3 + $0x40] sm:$0xf]
    %v3915 = vld [vmem:[%s3 + $0x44] sm:$0xf]
    %v3916 = vld [vmem:[%s3 + $0x48] sm:$0xf]
    %v3917 = vld [vmem:[%s3 + $0x4c] sm:$0xf]
    %v3918 = vld [vmem:[%s3 + $0x50] sm:$0xf]
    %v3919 = vld [vmem:[%s3 + $0x54] sm:$0xf]
    %v3920 = vld [vmem:[%s3 + $0x58] sm:$0xf]
    %v3921 = vld [vmem:[%s3 + $0x5c] sm:$0xf]
    %v3922 = vld [vmem:[%s3 + $0x60] sm:$0xf]
    %v3923 = vld [vmem:[%s3 + $0x64] sm:$0xf]
    %v3924 = vld [vmem:[%s3 + $0x68] sm:$0xf]
    %v3925 = vld [vmem:[%s3 + $0x6c] sm:$0xf]
    %v3926 = vld [vmem:[%s3 + $0x70] sm:$0xf]
    %v3927 = vld [vmem:[%s3 + $0x74] sm:$0xf]
    %v3928 = vld [vmem:[%s3 + $0x78] sm:$0xf]
    %v3929 = vld [vmem:[%s3 + $0x7c] sm:$0xf]
    %v3930 = vld [vmem:[%s3 + $0x80] sm:$0xf]
    %v3931 = vld [vmem:[%s3 + $0x84] sm:$0xf]
    %v3932 = vld [vmem:[%s3 + $0x88] sm:$0xf]
    %v3933 = vld [vmem:[%s3 + $0x8c] sm:$0xf]
    %v3934 = vld [vmem:[%s3 + $0x90] sm:$0xf]
    %v3935 = vld [vmem:[%s3 + $0x94] sm:$0xf]
    %v3936 = vld [vmem:[%s3 + $0x98] sm:$0xf]
    %v3937 = vld [vmem:[%s3 + $0x9c] sm:$0xf]
    %v3938 = vld [vmem:[%s3 + $0xa0] sm:$0xf]
    %v3939 = vld [vmem:[%s3 + $0xa4] sm:$0xf]
    %v3940 = vld [vmem:[%s3 + $0xa8] sm:$0xf]
    %v3941 = vld [vmem:[%s3 + $0xac] sm:$0xf]
    %v3942 = vld [vmem:[%s3 + $0xb0] sm:$0xf]
    %v3943 = vld [vmem:[%s3 + $0xb4] sm:$0xf]
    %v3944 = vld [vmem:[%s3 + $0xb8] sm:$0xf]
    %v3945 = vld [vmem:[%s3 + $0xbc] sm:$0xf]
    %v3946 = vld [vmem:[%s3 + $0xc0] sm:$0xf]
    %v3947 = vld [vmem:[%s3 + $0xc4] sm:$0xf]
    %v3948 = vld [vmem:[%s3 + $0xc8] sm:$0xf]
    %v3949 = vld [vmem:[%s3 + $0xcc] sm:$0xf]
    %v3950 = vld [vmem:[%s3 + $0xd0] sm:$0xf]
    %v3951 = vld [vmem:[%s3 + $0xd4] sm:$0xf]
    %v3952 = vld [vmem:[%s3 + $0xd8] sm:$0xf]
    %v3953 = vld [vmem:[%s3 + $0xdc] sm:$0xf]
    %v3954 = vld [vmem:[%s3 + $0xe0] sm:$0xf]
    %v3955 = vld [vmem:[%s3 + $0xe4] sm:$0xf]
    %v3956 = vld [vmem:[%s3 + $0xe8] sm:$0xf]
    %v3957 = vld [vmem:[%s3 + $0xec] sm:$0xf]
    %v3958 = vld [vmem:[%s3 + $0xf0] sm:$0xf]
    %v3959 = vld [vmem:[%s3 + $0xf4] sm:$0xf]
    %v3960 = vld [vmem:[%s3 + $0xf8] sm:$0xf]
    %v3961 = vld [vmem:[%s3 + $0xfc] sm:$0xf]
    %v3962 = vld [vmem:[%s4] sm:$0x1]
    %v3964 = vlaneseq
    %v3965 = vshrl.u32 %v3964, 7
    %v3966 = vsub.s32 0, %v3965
    %v3967 = vrot.slane %v3962, %v3966
    %v4033 = vunpack.c.l.b16 %v3898
    %v4034 = vunpack.c.l.b16 %v3899
    %v4035 = vunpack.c.l.b16 %v3900
    %v4036 = vunpack.c.l.b16 %v3901
    %v4037 = vunpack.c.l.b16 %v3902
    %v4038 = vunpack.c.l.b16 %v3903
    %v4039 = vunpack.c.l.b16 %v3904
    %v4040 = vunpack.c.l.b16 %v3905
    %v4041 = vunpack.c.l.b16 %v3906
    %v4042 = vunpack.c.l.b16 %v3907
    %v4043 = vunpack.c.l.b16 %v3908
    %v4044 = vunpack.c.l.b16 %v3909
    %v4045 = vunpack.c.l.b16 %v3910
    %v4046 = vunpack.c.l.b16 %v3911
    %v4047 = vunpack.c.l.b16 %v3912
    %v4048 = vunpack.c.l.b16 %v3913
    %v4049 = vunpack.c.l.b16 %v3914
    %v4050 = vunpack.c.l.b16 %v3915
    %v4051 = vunpack.c.l.b16 %v3916
    %v4052 = vunpack.c.l.b16 %v3917
    %v4053 = vunpack.c.l.b16 %v3918
    %v4054 = vunpack.c.l.b16 %v3919
    %v4055 = vunpack.c.l.b16 %v3920
    %v4056 = vunpack.c.l.b16 %v3921
    %v4057 = vunpack.c.l.b16 %v3922
    %v4058 = vunpack.c.l.b16 %v3923
    %v4059 = vunpack.c.l.b16 %v3924
    %v4060 = vunpack.c.l.b16 %v3925
    %v4061 = vunpack.c.l.b16 %v3926
    %v4062 = vunpack.c.l.b16 %v3927
    %v4063 = vunpack.c.l.b16 %v3928
    %v4064 = vunpack.c.l.b16 %v3929
    %v4065 = vunpack.c.l.b16 %v3930
    %v4066 = vunpack.c.l.b16 %v3931
    %v4067 = vunpack.c.l.b16 %v3932
    %v4068 = vunpack.c.l.b16 %v3933
    %v4069 = vunpack.c.l.b16 %v3934
    %v4070 = vunpack.c.l.b16 %v3935
    %v4071 = vunpack.c.l.b16 %v3936
    %v4072 = vunpack.c.l.b16 %v3937
    %v4073 = vunpack.c.l.b16 %v3938
    %v4074 = vunpack.c.l.b16 %v3939
    %v4075 = vunpack.c.l.b16 %v3940
    %v4076 = vunpack.c.l.b16 %v3941
    %v4077 = vunpack.c.l.b16 %v3942
    %v4078 = vunpack.c.l.b16 %v3943
    %v4079 = vunpack.c.l.b16 %v3944
    %v4080 = vunpack.c.l.b16 %v3945
    %v4081 = vunpack.c.l.b16 %v3946
    %v4082 = vunpack.c.l.b16 %v3947
    %v4083 = vunpack.c.l.b16 %v3948
    %v4084 = vunpack.c.l.b16 %v3949
    %v4085 = vunpack.c.l.b16 %v3950
    %v4086 = vunpack.c.l.b16 %v3951
    %v4087 = vunpack.c.l.b16 %v3952
    %v4088 = vunpack.c.l.b16 %v3953
    %v4089 = vunpack.c.l.b16 %v3954
    %v4090 = vunpack.c.l.b16 %v3955
    %v4091 = vunpack.c.l.b16 %v3956
    %v4092 = vunpack.c.l.b16 %v3957
    %v4093 = vunpack.c.l.b16 %v3958
    %v4094 = vunpack.c.l.b16 %v3959
    %v4095 = vunpack.c.l.b16 %v3960
    %v4096 = vunpack.c.l.b16 %v3961
    %v4097 = vpack.c.b16 %v4034, %v4033
    %v4098 = vpack.c.b16 %v4036, %v4035
    %v4099 = vpack.c.b16 %v4038, %v4037
    %v4100 = vpack.c.b16 %v4040, %v4039
    %v4101 = vpack.c.b16 %v4042, %v4041
    %v4102 = vpack.c.b16 %v4044, %v4043
    %v4103 = vpack.c.b16 %v4046, %v4045
    %v4104 = vpack.c.b16 %v4048, %v4047
    %v4105 = vpack.c.b16 %v4050, %v4049
    %v4106 = vpack.c.b16 %v4052, %v4051
    %v4107 = vpack.c.b16 %v4054, %v4053
    %v4108 = vpack.c.b16 %v4056, %v4055
    %v4109 = vpack.c.b16 %v4058, %v4057
    %v4110 = vpack.c.b16 %v4060, %v4059
    %v4111 = vpack.c.b16 %v4062, %v4061
    %v4112 = vpack.c.b16 %v4064, %v4063
    %v4113 = vpack.c.b16 %v4066, %v4065
    %v4114 = vpack.c.b16 %v4068, %v4067
    %v4115 = vpack.c.b16 %v4070, %v4069
    %v4116 = vpack.c.b16 %v4072, %v4071
    %v4117 = vpack.c.b16 %v4074, %v4073
    %v4118 = vpack.c.b16 %v4076, %v4075
    %v4119 = vpack.c.b16 %v4078, %v4077
    %v4120 = vpack.c.b16 %v4080, %v4079
    %v4121 = vpack.c.b16 %v4082, %v4081
    %v4122 = vpack.c.b16 %v4084, %v4083
    %v4123 = vpack.c.b16 %v4086, %v4085
    %v4124 = vpack.c.b16 %v4088, %v4087
    %v4125 = vpack.c.b16 %v4090, %v4089
    %v4126 = vpack.c.b16 %v4092, %v4091
    %v4127 = vpack.c.b16 %v4094, %v4093
    %v4128 = vpack.c.b16 %v4096, %v4095
    %4161 = vmatprep.subr.bf16.mxu0 0
    %4162 = vmatpush1.bf16.msra.mxu0 %v4104
    %4163 = vmatprep.subr.bf16.mxu0 0
    %4164 = vmatpush1.bf16.msra.mxu0 %v4103
    %4165 = vmatprep.subr.bf16.mxu0 0
    %4166 = vmatpush1.bf16.msra.mxu0 %v4102
    %4167 = vmatprep.subr.bf16.mxu0 0
    %4168 = vmatpush1.bf16.msra.mxu0 %v4101
    %4169 = vmatprep.subr.bf16.mxu0 0
    %4170 = vmatpush1.bf16.msra.mxu0 %v4100
    %4171 = vmatprep.subr.bf16.mxu0 0
    %4172 = vmatpush1.bf16.msra.mxu0 %v4099
    %4173 = vmatprep.subr.bf16.mxu0 0
    %4174 = vmatpush1.bf16.msra.mxu0 %v4098
    %4175 = vmatprep.subr.bf16.mxu0 0
    %4176 = vmatpush1.bf16.msra.mxu0 %v4097
    %4177 = vmatprep.subr.bf16.mxu0 0
    %4178 = vmatpush2.bf16.msra.mxu0 %v4112
    %4179 = vmatprep.subr.bf16.mxu0 0
    %4180 = vmatpush2.bf16.msra.mxu0 %v4111
    %4181 = vmatprep.subr.bf16.mxu0 0
    %4182 = vmatpush2.bf16.msra.mxu0 %v4110
    %4183 = vmatprep.subr.bf16.mxu0 0
    %4184 = vmatpush2.bf16.msra.mxu0 %v4109
    %4185 = vmatprep.subr.bf16.mxu0 0
    %4186 = vmatpush2.bf16.msra.mxu0 %v4108
    %4187 = vmatprep.subr.bf16.mxu0 0
    %4188 = vmatpush2.bf16.msra.mxu0 %v4107
    %4189 = vmatprep.subr.bf16.mxu0 0
    %4190 = vmatpush2.bf16.msra.mxu0 %v4106
    %4191 = vmatprep.subr.bf16.mxu0 0
    %4192 = vmatpush2.bf16.msra.mxu0 %v4105
    %4193 = vmatprep.mubr.bf16.mxu0 %v3895
    %4194 = vmatmul.mubr.bf16.gmra.mxu0 %v3894
    %v4195 = vpop.f32.mrf.mxu0
    %v4196 = vadd.f32 %v3967, %v4195
    %v4197 = vpop.f32.mrf.mxu0
    %v4198 = vpop.f32.mrf.mxu0
    %v4199 = vpop.f32.mrf.mxu0
    %4200 = vdwg.mxu0
    %4201 = vmatprep.subr.bf16.mxu0 0
    %4202 = vmatpush1.bf16.msra.mxu0 %v4120
    %4203 = vmatprep.subr.bf16.mxu0 0
    %4204 = vmatpush1.bf16.msra.mxu0 %v4119
    %4205 = vmatprep.subr.bf16.mxu0 0
    %4206 = vmatpush1.bf16.msra.mxu0 %v4118
    %4207 = vmatprep.subr.bf16.mxu0 0
    %4208 = vmatpush1.bf16.msra.mxu0 %v4117
    %4209 = vmatprep.subr.bf16.mxu0 0
    %4210 = vmatpush1.bf16.msra.mxu0 %v4116
    %4211 = vmatprep.subr.bf16.mxu0 0
    %4212 = vmatpush1.bf16.msra.mxu0 %v4115
    %4213 = vmatprep.subr.bf16.mxu0 0
    %4214 = vmatpush1.bf16.msra.mxu0 %v4114
    %4215 = vmatprep.subr.bf16.mxu0 0
    %4216 = vmatpush1.bf16.msra.mxu0 %v4113
    %4217 = vmatprep.subr.bf16.mxu0 0
    %4218 = vmatpush2.bf16.msra.mxu0 %v4128
    %4219 = vmatprep.subr.bf16.mxu0 0
    %4220 = vmatpush2.bf16.msra.mxu0 %v4127
    %4221 = vmatprep.subr.bf16.mxu0 0
    %4222 = vmatpush2.bf16.msra.mxu0 %v4126
    %4223 = vmatprep.subr.bf16.mxu0 0
    %4224 = vmatpush2.bf16.msra.mxu0 %v4125
    %4225 = vmatprep.subr.bf16.mxu0 0
    %4226 = vmatpush2.bf16.msra.mxu0 %v4124
    %4227 = vmatprep.subr.bf16.mxu0 0
    %4228 = vmatpush2.bf16.msra.mxu0 %v4123
    %4229 = vmatprep.subr.bf16.mxu0 0
    %4230 = vmatpush2.bf16.msra.mxu0 %v4122
    %4231 = vmatprep.subr.bf16.mxu0 0
    %4232 = vmatpush2.bf16.msra.mxu0 %v4121
    %4233 = vmatprep.mubr.bf16.mxu0 %v3897
    %4234 = vmatmul.mubr.bf16.gmra.mxu0 %v3896
    %v4235 = vpop.f32.mrf.mxu0
    %v4236 = vadd.f32 %v4196, %v4235
    %v4237 = vpop.f32.mrf.mxu0
    %v4238 = vpop.f32.mrf.mxu0
    %v4239 = vpop.f32.mrf.mxu0
    %4240 = vdwg.mxu0
    %4241 = vst [vmem:[#allocation2] sm:$0x3] %v4236
    // Predicated region
    $region22: #{forward.7} parent=1 // pred_check
      _
    $region23: #{forward.7} parent=1 // pred_check_branch
      %4243 = sbr.rel (0) target = $region25
    $region24: #{forward.7} parent=1 // pred_region
      %s4245 = ssub.s32 32, 32
      %4246 = vsyncadd [#allocation3], %s4245
      %s4248 = sshll.u32 [#allocation2], 4
      %s4249 = int_to_ptr.vmem [resolvable:$true] %s4248
      %4251 = dma.vmem_to_hbm [thread:$0]  %s4249, 32, %s5, [#allocation3]
    $region25: #{forward.7} parent=1 // pred_fallthru
      _
    // Predicated region
    $region26: #{forward.7} parent=1 // pred_check
      _
    $region27: #{forward.7} parent=1 // pred_check_branch
      %4253 = sbr.rel (0) target = $region29
    $region28: #{forward.7} parent=1 // pred_region
      %4254 = dma.done [#allocation3], 32
    $region29: #{forward.7} parent=1 // pred_fallthru
      _
    %4255 = vsyncpa [#allocation3], 1

</llo_original>
